<compile_context>
chip_gen: v7x
topology: tpu7x:2x2x1
jax: 0.10.0
libtpu: 0.0.40
codegen_flags: <defaults>
</compile_context>

<pallas_src>
import jax
import jax.numpy as jnp
from jax import lax
from jax.experimental import pallas as pl
from jax.experimental.pallas import tpu as pltpu


_VMEM_LIMIT = 32 * 1024 * 1024  # safe on v5e/v6e (128 MiB) and v7x (64 MiB)
_APPROX_RECIPROCAL = True       # EUP vrcp for softmax denominators


# ----------------------------------------------------------------------------
# Generic tiled linear (bf16 MXU operands, f32 accumulation)
# ----------------------------------------------------------------------------

def _linear_kernel(x_ref, w_ref, b_ref, o_ref):
    o_ref[...] = (
        jnp.dot(x_ref[...].astype(jnp.bfloat16), w_ref[...],
                preferred_element_type=jnp.float32)
        + b_ref[...]
    )


def pallas_linear(x, w, b=None, tm=512):
    """(M, K) @ (K, N) + b -> (M, N).  x is passed bf16, output f32."""
    M, K = x.shape
    N = w.shape[1]
    b2 = (jnp.zeros((1, N), jnp.float32) if b is None
          else b.reshape(1, N).astype(jnp.float32))
    wb = w.astype(jnp.bfloat16)
    xb = x.astype(jnp.bfloat16)

    if M > tm:
        pad = (-M) % tm
        xp = jnp.pad(xb, ((0, pad), (0, 0))) if pad else xb
        Mp, bm, gm = M + pad, tm, (M + pad) // tm
    else:
        xp, Mp, bm, gm = xb, M, M, 1

    out = pl.pallas_call(
        _linear_kernel,
        out_shape=jax.ShapeDtypeStruct((Mp, N), jnp.float32),
        grid=(gm,),
        in_specs=[
            pl.BlockSpec((bm, K), lambda i: (i, 0)),
            pl.BlockSpec((K, N), lambda i: (0, 0)),
            pl.BlockSpec((1, N), lambda i: (0, 0)),
        ],
        out_specs=pl.BlockSpec((bm, N), lambda i: (i, 0)),
        compiler_params=pltpu.CompilerParams(
            dimension_semantics=("parallel",),
            vmem_limit_bytes=_VMEM_LIMIT),
    )(xp, wb, b2)
    return out[:M]


# ----------------------------------------------------------------------------
# Embedding projection + fused highway layers
# ----------------------------------------------------------------------------

def _emb_hwy_kernel(x_ref, wp_ref, wt0_ref, bt0_ref, wg0_ref, bg0_ref,
                    wt1_ref, bt1_ref, wg1_ref, bg1_ref, o_ref):
    x = jnp.dot(x_ref[...].astype(jnp.bfloat16), wp_ref[...],
                preferred_element_type=jnp.float32)
    for wt_ref, bt_ref, wg_ref, bg_ref in (
            (wt0_ref, bt0_ref, wg0_ref, bg0_ref),
            (wt1_ref, bt1_ref, wg1_ref, bg1_ref)):
        xb = x.astype(jnp.bfloat16)
        t = jnp.maximum(
            jnp.dot(xb, wt_ref[...], preferred_element_type=jnp.float32)
            + bt_ref[...], 0.0)
        g = jax.nn.sigmoid(
            jnp.dot(xb, wg_ref[...], preferred_element_type=jnp.float32)
            + bg_ref[...])
        x = g * t + (1.0 - g) * x
    o_ref[...] = x


def pallas_emb_highway(x, wp, hwy, tm=512):
    """x:(M,E) (bf16) -> proj (M,H) -> 2 fused highway layers -> (M,H) f32."""
    M, E = x.shape
    H = wp.shape[1]
    (wt0, bt0, wg0, bg0), (wt1, bt1, wg1, bg1) = hwy
    xb = x.astype(jnp.bfloat16)

    if M > tm:
        pad = (-M) % tm
        xpad = jnp.pad(xb, ((0, pad), (0, 0))) if pad else xb
        Mp, bm, gm = M + pad, tm, (M + pad) // tm
    else:
        xpad, Mp, bm, gm = xb, M, M, 1

    def mk(shape):
        return pl.BlockSpec(shape, lambda i, _s=shape: tuple(0 for _ in _s))

    out = pl.pallas_call(
        _emb_hwy_kernel,
        out_shape=jax.ShapeDtypeStruct((Mp, H), jnp.float32),
        grid=(gm,),
        in_specs=[
            pl.BlockSpec((bm, E), lambda i: (i, 0)),
            mk((E, H)),
            mk((H, H)), mk((1, H)), mk((H, H)), mk((1, H)),
            mk((H, H)), mk((1, H)), mk((H, H)), mk((1, H)),
        ],
        out_specs=pl.BlockSpec((bm, H), lambda i: (i, 0)),
        compiler_params=pltpu.CompilerParams(
            dimension_semantics=("parallel",),
            vmem_limit_bytes=_VMEM_LIMIT),
    )(xpad,
      wp.astype(jnp.bfloat16),
      wt0.astype(jnp.bfloat16), bt0.reshape(1, H).astype(jnp.float32),
      wg0.astype(jnp.bfloat16), bg0.reshape(1, H).astype(jnp.float32),
      wt1.astype(jnp.bfloat16), bt1.reshape(1, H).astype(jnp.float32),
      wg1.astype(jnp.bfloat16), bg1.reshape(1, H).astype(jnp.float32))
    return out[:M]


# ----------------------------------------------------------------------------
# Bidirectional LSTM layer: gate-fused, time-blocked, single pallas_call
# ----------------------------------------------------------------------------

def _bilstm_kernel(xf_ref, xb_ref, whf_ref, whb_ref, of_ref, ob_ref,
                   hf_scr, cf_scr, hb_scr, cb_scr):
    # xf_ref : (T_BLK, B, 4H) f32 fwd gate pre-activations, time block t.
    # xb_ref : (T_BLK, B, 4H) f32 bwd gate pre-activations, time block Tb-1-t
    #          (original time order within the block; iterated in reverse).
    # whf/whb: (H, 4H) bf16 gate-fused recurrent weights.
    # of/ob  : (T_BLK, B, H) f32 hidden outputs (time-aligned).
    # scratch: h (bf16) and c (f32) per direction, persist across the grid.
    T_BLK = xf_ref.shape[0]
    H = whf_ref.shape[0]

    @pl.when(pl.program_id(0) == 0)
    def _():
        hf_scr[...] = jnp.zeros_like(hf_scr)
        cf_scr[...] = jnp.zeros_like(cf_scr)
        hb_scr[...] = jnp.zeros_like(hb_scr)
        cb_scr[...] = jnp.zeros_like(cb_scr)

    def cell(z, c):
        i = jax.nn.sigmoid(z[:, 0:H])
        f = jax.nn.sigmoid(z[:, H:2 * H])
        g = jnp.tanh(z[:, 2 * H:3 * H])
        o = jax.nn.sigmoid(z[:, 3 * H:4 * H])
        c_new = f * c + i * g
        h_new = o * jnp.tanh(c_new)
        return h_new, c_new

    h_f, c_f = hf_scr[...], cf_scr[...]
    h_b, c_b = hb_scr[...], cb_scr[...]
    wf = whf_ref[...]
    wb = whb_ref[...]

    for j in range(T_BLK):                       # unrolled (T_BLK is small)
        # forward direction, block-local time j
        zf = xf_ref[j] + jnp.dot(h_f, wf, preferred_element_type=jnp.float32)
        hf_new, c_f = cell(zf, c_f)
        of_ref[j] = hf_new
        h_f = hf_new.astype(jnp.bfloat16)

        # backward direction, block-local time T_BLK-1-j
        jb = T_BLK - 1 - j
        zb = xb_ref[jb] + jnp.dot(h_b, wb, preferred_element_type=jnp.float32)
        hb_new, c_b = cell(zb, c_b)
        ob_ref[jb] = hb_new
        h_b = hb_new.astype(jnp.bfloat16)

    hf_scr[...], cf_scr[...] = h_f, c_f
    hb_scr[...], cb_scr[...] = h_b, c_b


def _pick_tblk(L):
    for cand in (32, 16, 8, 4, 2, 1):
        if L % cand == 0:
            return cand
    return 1


def bilstm_layer_tm(x, lp):
    """One bidirectional LSTM layer.  x: (L, B, In) time-major -> (L, B, 2H)."""
    L, B, In = x.shape
    H = lp['w_hh_f'].shape[1]

    # Fused input projection for BOTH directions: (L*B, In) @ (In, 8H).
    w_ih = jnp.concatenate([lp['w_ih_f'], lp['w_ih_b']], axis=0)     # (8H, In)
    bias = jnp.concatenate([lp['b_ih_f'] + lp['b_hh_f'],
                            lp['b_ih_b'] + lp['b_hh_b']], axis=0)    # (8H,)
    xp = pallas_linear(x.reshape(L * B, In).astype(jnp.bfloat16),
                       jnp.transpose(w_ih), bias)                    # (L*B, 8H)
    xp = xp.reshape(L, B, 8 * H)
    xp_f = xp[..., :4 * H]                                           # (L, B, 4H)
    xp_b = xp[..., 4 * H:]                                           # (L, B, 4H)

    whf = jnp.transpose(lp['w_hh_f']).astype(jnp.bfloat16)           # (H, 4H)
    whb = jnp.transpose(lp['w_hh_b']).astype(jnp.bfloat16)           # (H, 4H)

    T_BLK = _pick_tblk(L)
    Tb = L // T_BLK

    out_f, out_b = pl.pallas_call(
        _bilstm_kernel,
        out_shape=(jax.ShapeDtypeStruct((L, B, H), jnp.float32),
                   jax.ShapeDtypeStruct((L, B, H), jnp.float32)),
        grid=(Tb,),
        in_specs=[
            pl.BlockSpec((T_BLK, B, 4 * H), lambda t: (t, 0, 0)),
            pl.BlockSpec((T_BLK, B, 4 * H), lambda t: (Tb - 1 - t, 0, 0)),
            pl.BlockSpec((H, 4 * H), lambda t: (0, 0)),
            pl.BlockSpec((H, 4 * H), lambda t: (0, 0)),
        ],
        out_specs=(pl.BlockSpec((T_BLK, B, H), lambda t: (t, 0, 0)),
                   pl.BlockSpec((T_BLK, B, H), lambda t: (Tb - 1 - t, 0, 0))),
        scratch_shapes=[pltpu.VMEM((B, H), jnp.bfloat16),
                        pltpu.VMEM((B, H), jnp.float32),
                        pltpu.VMEM((B, H), jnp.bfloat16),
                        pltpu.VMEM((B, H), jnp.float32)],
        compiler_params=pltpu.CompilerParams(
            dimension_semantics=("arbitrary",)),
    )(xp_f, xp_b, whf, whb)

    return jnp.concatenate([out_f, out_b], axis=-1)                  # (L, B, 2H)


def rnn_encoder(x, layer_params):
    """Bidirectional multi-layer LSTM encoder (drop_prob = 0).  x: (B,L,D)."""
    x = jnp.transpose(x, (1, 0, 2))                    # time-major inside stack
    for lp in layer_params:
        x = bilstm_layer_tm(x, lp)
    return jnp.transpose(x, (1, 0, 2))                 # back to (B, L, 2H)


# ----------------------------------------------------------------------------
# BiDAF attention (fused, per-batch-element)
# ----------------------------------------------------------------------------

def _bidaf_att_kernel(c_ref, q_ref, cm_ref, qm_ref, cw_ref, qw_ref, cqw_ref,
                      bias_ref, out_ref):
    c = c_ref[0]            # (Lc, D) f32
    q = q_ref[0]            # (Lq, D) f32
    cm = cm_ref[0]          # (Lc, 1) float mask
    qm = qm_ref[0]          # (1, Lq) float mask

    # similarity matrix: s = c.cw + (q.qw)^T + (c*cqw)@q^T + bias
    s0 = jnp.sum(c * cw_ref[...], axis=-1, keepdims=True)           # (Lc, 1)
    s1 = jnp.sum(q * qw_ref[...], axis=-1, keepdims=True)           # (Lq, 1)
    qb = q.astype(jnp.bfloat16)
    cb = c.astype(jnp.bfloat16)
    # contract shared D dim directly (no in-kernel transpose)
    s2 = lax.dot_general((c * cqw_ref[...]).astype(jnp.bfloat16), qb,
                         (((1,), (1,)), ((), ())),
                         preferred_element_type=jnp.float32)        # (Lc, Lq)
    s = s0 + s1.T + s2 + bias_ref[...]

    # masked softmax over q axis (torch dim=2)
    ml1 = qm * s + (1.0 - qm) * (-1e30)
    ml1 = ml1 - jnp.max(ml1, axis=1, keepdims=True)
    e1 = jnp.exp(ml1)
    p1 = e1 * pl.reciprocal(jnp.sum(e1, axis=1, keepdims=True),
                            approx=_APPROX_RECIPROCAL)

    # masked softmax over c axis (torch dim=1)
    ml2 = cm * s + (1.0 - cm) * (-1e30)
    ml2 = ml2 - jnp.max(ml2, axis=0, keepdims=True)
    e2 = jnp.exp(ml2)
    p2 = e2 * pl.reciprocal(jnp.sum(e2, axis=0, keepdims=True),
                            approx=_APPROX_RECIPROCAL)

    p1b = p1.astype(jnp.bfloat16)
    a = jnp.dot(p1b, qb, preferred_element_type=jnp.float32)        # (Lc, D)
    # Q2C reassociated: b = p1 @ (p2^T @ c) -- contract Lc dim, no transpose
    qc = lax.dot_general(p2.astype(jnp.bfloat16), cb,
                         (((0,), (0,)), ((), ())),
                         preferred_element_type=jnp.float32)        # (Lq, D)
    b = jnp.dot(p1b, qc.astype(jnp.bfloat16),
                preferred_element_type=jnp.float32)                 # (Lc, D)

    out_ref[0] = jnp.concatenate([c, a, c * a, c * b], axis=-1)


def bidaf_attention(c, q, c_mask_f, q_mask_f, params):
    B, Lc, D = c.shape
    Lq = q.shape[1]
    cm = c_mask_f.reshape(B, Lc, 1)
    qm = q_mask_f.reshape(B, 1, Lq)

    def mk(shape):
        return pl.BlockSpec(shape, lambda i, _s=shape: tuple(0 for _ in _s))

    return pl.pallas_call(
        _bidaf_att_kernel,
        out_shape=jax.ShapeDtypeStruct((B, Lc, 4 * D), jnp.float32),
        grid=(B,),
        in_specs=[
            pl.BlockSpec((1, Lc, D), lambda i: (i, 0, 0)),
            pl.BlockSpec((1, Lq, D), lambda i: (i, 0, 0)),
            pl.BlockSpec((1, Lc, 1), lambda i: (i, 0, 0)),
            pl.BlockSpec((1, 1, Lq), lambda i: (i, 0, 0)),
            mk((1, D)), mk((1, D)), mk((1, D)), mk((1, 1)),
        ],
        out_specs=pl.BlockSpec((1, Lc, 4 * D), lambda i: (i, 0, 0)),
        compiler_params=pltpu.CompilerParams(
            dimension_semantics=("parallel",)),
    )(c, q, cm, qm,
      params['att_c_w'].reshape(1, D), params['att_q_w'].reshape(1, D),
      params['att_cq_w'].reshape(1, D), params['att_bias'])


# ----------------------------------------------------------------------------
# Output layer (both 1-wide projections + masked log-softmax fused)
# ----------------------------------------------------------------------------

def _output_kernel(att_ref, mod_ref, mod2_ref, mask_ref,
                   w_att1_ref, w_mod1_ref, b1_ref,
                   w_att2_ref, w_mod2_ref, b2_ref,
                   lp1_ref, lp2_ref):
    att = att_ref[...]        # (1, Lc, 8h)
    mod = mod_ref[...]        # (1, Lc, 2h)
    mod2 = mod2_ref[...]      # (1, Lc, 2h)
    m = mask_ref[0]           # (1, Lc)

    # 1-wide projections as VPU reductions (no lane-1 HBM writes)
    logits1 = (jnp.sum(att * w_att1_ref[...], axis=-1)
               + jnp.sum(mod * w_mod1_ref[...], axis=-1)
               + b1_ref[...])                              # (1, Lc)
    logits2 = (jnp.sum(att * w_att2_ref[...], axis=-1)
               + jnp.sum(mod2 * w_mod2_ref[...], axis=-1)
               + b2_ref[...])                              # (1, Lc)

    def mls(x):
        x = m * x + (1.0 - m) * (-1e30)
        x = x - jnp.max(x, axis=-1, keepdims=True)
        lse = jnp.log(jnp.sum(jnp.exp(x), axis=-1, keepdims=True))
        return x - lse

    lp1_ref[0] = mls(logits1)
    lp2_ref[0] = mls(logits2)


def output_layer(att, mod, c_mask_f, params):
    B, Lc, D8 = att.shape
    D2 = mod.shape[-1]
    mod_2 = rnn_encoder(mod, params['out_rnn'])            # (B, Lc, 2h)

    w_att1 = params['out_att1_w'].reshape(1, D8)
    w_mod1 = params['out_mod1_w'].reshape(1, D2)
    b1 = (params['out_att1_b'] + params['out_mod1_b']).reshape(1, 1)
    w_att2 = params['out_att2_w'].reshape(1, D8)
    w_mod2 = params['out_mod2_w'].reshape(1, D2)
    b2 = (params['out_att2_b'] + params['out_mod2_b']).reshape(1, 1)

    def mk(shape):
        return pl.BlockSpec(shape, lambda i, _s=shape: tuple(0 for _ in _s))

    log_p1, log_p2 = pl.pallas_call(
        _output_kernel,
        out_shape=(jax.ShapeDtypeStruct((B, 1, Lc), jnp.float32),
                   jax.ShapeDtypeStruct((B, 1, Lc), jnp.float32)),
        grid=(B,),
        in_specs=[
            pl.BlockSpec((1, Lc, D8), lambda i: (i, 0, 0)),
            pl.BlockSpec((1, Lc, D2), lambda i: (i, 0, 0)),
            pl.BlockSpec((1, Lc, D2), lambda i: (i, 0, 0)),
            pl.BlockSpec((1, 1, Lc), lambda i: (i, 0, 0)),
            mk((1, D8)), mk((1, D2)), mk((1, 1)),
            mk((1, D8)), mk((1, D2)), mk((1, 1)),
        ],
        out_specs=(pl.BlockSpec((1, 1, Lc), lambda i: (i, 0, 0)),
                   pl.BlockSpec((1, 1, Lc), lambda i: (i, 0, 0))),
        compiler_params=pltpu.CompilerParams(
            dimension_semantics=("parallel",)),
    )(att, mod, mod_2, c_mask_f.reshape(B, 1, Lc),
      w_att1, w_mod1, b1, w_att2, w_mod2, b2)
    return log_p1.reshape(B, Lc), log_p2.reshape(B, Lc)


# ----------------------------------------------------------------------------
# Model glue (embedding lookup, layer composition) in plain JAX
# ----------------------------------------------------------------------------

def embedding(params, idxs, pos, ner):
    emb = params['word_vectors'][idxs]                     # gather (XLA glue)
    B, L, E = emb.shape
    x = pallas_emb_highway(
        emb.reshape(B * L, E).astype(jnp.bfloat16), params['emb_proj_w'],
        [(params['hwy_t_w_0'], params['hwy_t_b_0'],
          params['hwy_g_w_0'], params['hwy_g_b_0']),
         (params['hwy_t_w_1'], params['hwy_t_b_1'],
          params['hwy_g_w_1'], params['hwy_g_b_1'])])
    x = x.reshape(B, L, -1)
    x = jnp.concatenate(
        [x, pos.astype(jnp.float32)[..., None], ner.astype(jnp.float32)[..., None]],
        axis=2)
    return x


@jax.jit
def bidaf_forward(params, cw_idxs, cw_pos, cw_ner, qw_idxs, qw_pos, qw_ner):
    c_mask_f = (cw_idxs != 0).astype(jnp.float32)
    q_mask_f = (qw_idxs != 0).astype(jnp.float32)

    c_emb = embedding(params, cw_idxs, cw_pos, cw_ner)     # (B, Lc, h+2)
    q_emb = embedding(params, qw_idxs, qw_pos, qw_ner)     # (B, Lq, h+2)

    # TODO(synk): c/q encoders could be batched into one call (pad Lq->Lc) once
    # length-aware state masking is added for the backward direction.
    c_enc = rnn_encoder(c_emb, params['enc'])              # (B, Lc, 2h)
    q_enc = rnn_encoder(q_emb, params['enc'])              # (B, Lq, 2h)

    att = bidaf_attention(c_enc, q_enc, c_mask_f, q_mask_f, params)  # (B,Lc,8h)
    mod = rnn_encoder(att, params['mod'])                  # (B, Lc, 2h)

    return output_layer(att, mod, c_mask_f, params)


# ----------------------------------------------------------------------------
# Deterministic parameter construction
# ----------------------------------------------------------------------------

class KeyGen:
    def __init__(self, seed):
        self._key = jax.random.PRNGKey(seed)

    def __call__(self):
        self._key, sub = jax.random.split(self._key)
        return sub


def _uniform(kg, shape, scale=0.08):
    return jax.random.uniform(kg(), shape, jnp.float32, -scale, scale)


def lstm_layer_params(kg, in_sz, h):
    return dict(
        w_ih_f=_uniform(kg, (4 * h, in_sz)), w_hh_f=_uniform(kg, (4 * h, h)),
        b_ih_f=_uniform(kg, (4 * h,)), b_hh_f=_uniform(kg, (4 * h,)),
        w_ih_b=_uniform(kg, (4 * h, in_sz)), w_hh_b=_uniform(kg, (4 * h, h)),
        b_ih_b=_uniform(kg, (4 * h,)), b_hh_b=_uniform(kg, (4 * h,)),
    )


def init_params(vocab, emb_dim, h, seed=0):
    kg = KeyGen(seed)
    p = {}
    p['word_vectors'] = _uniform(kg, (vocab, emb_dim), 1.0)
    p['emb_proj_w'] = _uniform(kg, (emb_dim, h))
    for layer in range(2):
        p[f'hwy_t_w_{layer}'] = _uniform(kg, (h, h))
        p[f'hwy_t_b_{layer}'] = _uniform(kg, (h,))
        p[f'hwy_g_w_{layer}'] = _uniform(kg, (h, h))
        p[f'hwy_g_b_{layer}'] = _uniform(kg, (h,))
    rnn_in = h + 2  # use_pos + use_ner
    p['enc'] = [lstm_layer_params(kg, rnn_in, h)]
    p['att_c_w'] = _uniform(kg, (2 * h, 1))
    p['att_q_w'] = _uniform(kg, (2 * h, 1))
    p['att_cq_w'] = _uniform(kg, (1, 2 * h))
    p['att_bias'] = jnp.zeros((1, 1), jnp.float32)
    p['mod'] = [lstm_layer_params(kg, 8 * h, h),
                lstm_layer_params(kg, 2 * h, h)]
    p['out_att1_w'] = _uniform(kg, (8 * h, 1)); p['out_att1_b'] = _uniform(kg, (1,))
    p['out_mod1_w'] = _uniform(kg, (2 * h, 1)); p['out_mod1_b'] = _uniform(kg, (1,))
    p['out_rnn'] = [lstm_layer_params(kg, 2 * h, h)]
    p['out_att2_w'] = _uniform(kg, (8 * h, 1)); p['out_att2_b'] = _uniform(kg, (1,))
    p['out_mod2_w'] = _uniform(kg, (2 * h, 1)); p['out_mod2_b'] = _uniform(kg, (1,))
    return p


# ----------------------------------------------------------------------------
# Main
# ----------------------------------------------------------------------------

if __name__ == "__main__":
    B, Lc, Lq = 2, 12, 8
    HIDDEN, EMB_DIM, VOCAB = 32, 64, 50

    params = init_params(VOCAB, EMB_DIM, HIDDEN, seed=0)

    key = jax.random.PRNGKey(0)
    k1, k2, k3, k4, k5, k6 = jax.random.split(key, 6)
    # indices in [1, VOCAB) so masks are all-true (full-length sequences)
    cw_idxs = jax.random.randint(k1, (B, Lc), 1, VOCAB, dtype=jnp.int32)
    qw_idxs = jax.random.randint(k2, (B, Lq), 1, VOCAB, dtype=jnp.int32)
    cw_pos = jax.random.randint(k3, (B, Lc), 0, 10, dtype=jnp.int32)
    cw_ner = jax.random.randint(k4, (B, Lc), 0, 5, dtype=jnp.int32)
    qw_pos = jax.random.randint(k5, (B, Lq), 0, 10, dtype=jnp.int32)
    qw_ner = jax.random.randint(k6, (B, Lq), 0, 5, dtype=jnp.int32)

    log_p1, log_p2 = bidaf_forward(
        params, cw_idxs, cw_pos, cw_ner, qw_idxs, qw_pos, qw_ner)
    jax.block_until_ready((log_p1, log_p2))

    assert log_p1.shape == (B, Lc) and log_p2.shape == (B, Lc)
    assert bool(jnp.all(jnp.isfinite(log_p1))) and bool(jnp.all(jnp.isfinite(log_p2)))
    print("KERNEL_OK")
</pallas_src>

<mosaic_0001>
module attributes {stable_mosaic.version = 11 : i64} {
  func.func @_emb_hwy_kernel(%arg0: i32, %arg1: memref<16x64xbf16, #tpu.memory_space<vmem>>, %arg2: memref<64x32xbf16, #tpu.memory_space<vmem>>, %arg3: memref<32x32xbf16, #tpu.memory_space<vmem>>, %arg4: memref<1x32xf32, #tpu.memory_space<vmem>>, %arg5: memref<32x32xbf16, #tpu.memory_space<vmem>>, %arg6: memref<1x32xf32, #tpu.memory_space<vmem>>, %arg7: memref<32x32xbf16, #tpu.memory_space<vmem>>, %arg8: memref<1x32xf32, #tpu.memory_space<vmem>>, %arg9: memref<32x32xbf16, #tpu.memory_space<vmem>>, %arg10: memref<1x32xf32, #tpu.memory_space<vmem>>, %arg11: memref<16x32xf32, #tpu.memory_space<vmem>>) attributes {dimension_semantics = [#tpu.dimension_semantics<parallel>], iteration_bounds = array<i64: 1>, scalar_prefetch = 0 : i64, scratch_operands = 0 : i64, tpu.core_type = #tpu.core_type<tc>, window_params = [{transform_indices = @transform_0, window_bounds = array<i64: 16, 64>}, {pipeline_mode = #tpu.pipeline_mode<synchronous>, transform_indices = @transform_1, window_bounds = array<i64: 64, 32>}, {pipeline_mode = #tpu.pipeline_mode<synchronous>, transform_indices = @transform_2, window_bounds = array<i64: 32, 32>}, {pipeline_mode = #tpu.pipeline_mode<synchronous>, transform_indices = @transform_3, window_bounds = array<i64: 1, 32>}, {pipeline_mode = #tpu.pipeline_mode<synchronous>, transform_indices = @transform_4, window_bounds = array<i64: 32, 32>}, {pipeline_mode = #tpu.pipeline_mode<synchronous>, transform_indices = @transform_5, window_bounds = array<i64: 1, 32>}, {pipeline_mode = #tpu.pipeline_mode<synchronous>, transform_indices = @transform_6, window_bounds = array<i64: 32, 32>}, {pipeline_mode = #tpu.pipeline_mode<synchronous>, transform_indices = @transform_7, window_bounds = array<i64: 1, 32>}, {pipeline_mode = #tpu.pipeline_mode<synchronous>, transform_indices = @transform_8, window_bounds = array<i64: 32, 32>}, {pipeline_mode = #tpu.pipeline_mode<synchronous>, transform_indices = @transform_9, window_bounds = array<i64: 1, 32>}, {transform_indices = @transform_10, window_bounds = array<i64: 16, 32>}]} {
    %c0 = arith.constant 0 : index
    %c0_0 = arith.constant 0 : index
    %0 = vector.load %arg1[%c0, %c0_0] : memref<16x64xbf16, #tpu.memory_space<vmem>>, vector<16x64xbf16>
    %c0_1 = arith.constant 0 : index
    %c0_2 = arith.constant 0 : index
    %1 = vector.load %arg2[%c0_1, %c0_2] : memref<64x32xbf16, #tpu.memory_space<vmem>>, vector<64x32xbf16>
    %cst = arith.constant dense<0.000000e+00> : vector<16x32xf32>
    %2 = tpu.matmul %0, %1, %cst {dimension_numbers = #tpu.dot_dimension_numbers<[1], [0], [0], [1], [0, 0, 1, 1], [], []>} : vector<16x64xbf16>, vector<64x32xbf16>, vector<16x32xf32> -> vector<16x32xf32>
    %3 = arith.truncf %2 : vector<16x32xf32> to vector<16x32xbf16>
    %c0_3 = arith.constant 0 : index
    %c0_4 = arith.constant 0 : index
    %4 = vector.load %arg3[%c0_3, %c0_4] : memref<32x32xbf16, #tpu.memory_space<vmem>>, vector<32x32xbf16>
    %cst_5 = arith.constant dense<0.000000e+00> : vector<16x32xf32>
    %5 = tpu.matmul %3, %4, %cst_5 {dimension_numbers = #tpu.dot_dimension_numbers<[1], [0], [0], [1], [0, 0, 1, 1], [], []>} : vector<16x32xbf16>, vector<32x32xbf16>, vector<16x32xf32> -> vector<16x32xf32>
    %c0_6 = arith.constant 0 : index
    %c0_7 = arith.constant 0 : index
    %6 = vector.load %arg4[%c0_6, %c0_7] : memref<1x32xf32, #tpu.memory_space<vmem>>, vector<1x32xf32>
    %7 = vector.broadcast %6 : vector<1x32xf32> to vector<16x32xf32>
    %8 = arith.addf %5, %7 : vector<16x32xf32>
    %cst_8 = arith.constant 0.000000e+00 : f32
    %9 = vector.broadcast %cst_8 : f32 to vector<16x32xf32>
    %10 = arith.maximumf %8, %9 : vector<16x32xf32>
    %c0_9 = arith.constant 0 : index
    %c0_10 = arith.constant 0 : index
    %11 = vector.load %arg5[%c0_9, %c0_10] : memref<32x32xbf16, #tpu.memory_space<vmem>>, vector<32x32xbf16>
    %cst_11 = arith.constant dense<0.000000e+00> : vector<16x32xf32>
    %12 = tpu.matmul %3, %11, %cst_11 {dimension_numbers = #tpu.dot_dimension_numbers<[1], [0], [0], [1], [0, 0, 1, 1], [], []>} : vector<16x32xbf16>, vector<32x32xbf16>, vector<16x32xf32> -> vector<16x32xf32>
    %c0_12 = arith.constant 0 : index
    %c0_13 = arith.constant 0 : index
    %13 = vector.load %arg6[%c0_12, %c0_13] : memref<1x32xf32, #tpu.memory_space<vmem>>, vector<1x32xf32>
    %14 = vector.broadcast %13 : vector<1x32xf32> to vector<16x32xf32>
    %15 = arith.addf %12, %14 : vector<16x32xf32>
    %16 = arith.negf %15 : vector<16x32xf32>
    %17 = math.exp %16 : vector<16x32xf32>
    %cst_14 = arith.constant 1.000000e+00 : f32
    %18 = vector.broadcast %cst_14 : f32 to vector<16x32xf32>
    %19 = arith.addf %18, %17 : vector<16x32xf32>
    %20 = arith.divf %18, %19 : vector<16x32xf32>
    %21 = arith.mulf %20, %10 : vector<16x32xf32>
    %cst_15 = arith.constant 1.000000e+00 : f32
    %22 = vector.broadcast %cst_15 : f32 to vector<16x32xf32>
    %23 = arith.subf %22, %20 : vector<16x32xf32>
    %24 = arith.mulf %23, %2 : vector<16x32xf32>
    %25 = arith.addf %21, %24 : vector<16x32xf32>
    %26 = arith.truncf %25 : vector<16x32xf32> to vector<16x32xbf16>
    %c0_16 = arith.constant 0 : index
    %c0_17 = arith.constant 0 : index
    %27 = vector.load %arg7[%c0_16, %c0_17] : memref<32x32xbf16, #tpu.memory_space<vmem>>, vector<32x32xbf16>
    %cst_18 = arith.constant dense<0.000000e+00> : vector<16x32xf32>
    %28 = tpu.matmul %26, %27, %cst_18 {dimension_numbers = #tpu.dot_dimension_numbers<[1], [0], [0], [1], [0, 0, 1, 1], [], []>} : vector<16x32xbf16>, vector<32x32xbf16>, vector<16x32xf32> -> vector<16x32xf32>
    %c0_19 = arith.constant 0 : index
    %c0_20 = arith.constant 0 : index
    %29 = vector.load %arg8[%c0_19, %c0_20] : memref<1x32xf32, #tpu.memory_space<vmem>>, vector<1x32xf32>
    %30 = vector.broadcast %29 : vector<1x32xf32> to vector<16x32xf32>
    %31 = arith.addf %28, %30 : vector<16x32xf32>
    %cst_21 = arith.constant 0.000000e+00 : f32
    %32 = vector.broadcast %cst_21 : f32 to vector<16x32xf32>
    %33 = arith.maximumf %31, %32 : vector<16x32xf32>
    %c0_22 = arith.constant 0 : index
    %c0_23 = arith.constant 0 : index
    %34 = vector.load %arg9[%c0_22, %c0_23] : memref<32x32xbf16, #tpu.memory_space<vmem>>, vector<32x32xbf16>
    %cst_24 = arith.constant dense<0.000000e+00> : vector<16x32xf32>
    %35 = tpu.matmul %26, %34, %cst_24 {dimension_numbers = #tpu.dot_dimension_numbers<[1], [0], [0], [1], [0, 0, 1, 1], [], []>} : vector<16x32xbf16>, vector<32x32xbf16>, vector<16x32xf32> -> vector<16x32xf32>
    %c0_25 = arith.constant 0 : index
    %c0_26 = arith.constant 0 : index
    %36 = vector.load %arg10[%c0_25, %c0_26] : memref<1x32xf32, #tpu.memory_space<vmem>>, vector<1x32xf32>
    %37 = vector.broadcast %36 : vector<1x32xf32> to vector<16x32xf32>
    %38 = arith.addf %35, %37 : vector<16x32xf32>
    %39 = arith.negf %38 : vector<16x32xf32>
    %40 = math.exp %39 : vector<16x32xf32>
    %cst_27 = arith.constant 1.000000e+00 : f32
    %41 = vector.broadcast %cst_27 : f32 to vector<16x32xf32>
    %42 = arith.addf %41, %40 : vector<16x32xf32>
    %43 = arith.divf %41, %42 : vector<16x32xf32>
    %44 = arith.mulf %43, %33 : vector<16x32xf32>
    %cst_28 = arith.constant 1.000000e+00 : f32
    %45 = vector.broadcast %cst_28 : f32 to vector<16x32xf32>
    %46 = arith.subf %45, %43 : vector<16x32xf32>
    %47 = arith.mulf %46, %25 : vector<16x32xf32>
    %48 = arith.addf %44, %47 : vector<16x32xf32>
    %c0_29 = arith.constant 0 : index
    %c0_30 = arith.constant 0 : index
    %49 = vector.load %arg11[%c0_29, %c0_30] : memref<16x32xf32, #tpu.memory_space<vmem>>, vector<16x32xf32>
    tpu.vector_store %arg11[%c0_29, %c0_30], %48 {strides = array<i32>} : memref<16x32xf32, #tpu.memory_space<vmem>>, vector<16x32xf32>,
    return
  }
  func.func @transform_0(%arg0: i32) -> (i32, i32) {
    %c0_i32 = arith.constant 0 : i32
    %c0_i32_0 = arith.constant 0 : i32
    return %arg0, %c0_i32 : i32, i32
  }
  func.func @transform_1(%arg0: i32) -> (i32, i32) {
    %c0_i32 = arith.constant 0 : i32
    %c0_i32_0 = arith.constant 0 : i32
    %c0_i32_1 = arith.constant 0 : i32
    return %c0_i32, %c0_i32_0 : i32, i32
  }
  func.func @transform_2(%arg0: i32) -> (i32, i32) {
    %c0_i32 = arith.constant 0 : i32
    %c0_i32_0 = arith.constant 0 : i32
    %c0_i32_1 = arith.constant 0 : i32
    return %c0_i32, %c0_i32_0 : i32, i32
  }
  func.func @transform_3(%arg0: i32) -> (i32, i32) {
    %c0_i32 = arith.constant 0 : i32
    %c0_i32_0 = arith.constant 0 : i32
    %c0_i32_1 = arith.constant 0 : i32
    return %c0_i32, %c0_i32_0 : i32, i32
  }
  func.func @transform_4(%arg0: i32) -> (i32, i32) {
    %c0_i32 = arith.constant 0 : i32
    %c0_i32_0 = arith.constant 0 : i32
    %c0_i32_1 = arith.constant 0 : i32
    return %c0_i32, %c0_i32_0 : i32, i32
  }
  func.func @transform_5(%arg0: i32) -> (i32, i32) {
    %c0_i32 = arith.constant 0 : i32
    %c0_i32_0 = arith.constant 0 : i32
    %c0_i32_1 = arith.constant 0 : i32
    return %c0_i32, %c0_i32_0 : i32, i32
  }
  func.func @transform_6(%arg0: i32) -> (i32, i32) {
    %c0_i32 = arith.constant 0 : i32
    %c0_i32_0 = arith.constant 0 : i32
    %c0_i32_1 = arith.constant 0 : i32
    return %c0_i32, %c0_i32_0 : i32, i32
  }
  func.func @transform_7(%arg0: i32) -> (i32, i32) {
    %c0_i32 = arith.constant 0 : i32
    %c0_i32_0 = arith.constant 0 : i32
    %c0_i32_1 = arith.constant 0 : i32
    return %c0_i32, %c0_i32_0 : i32, i32
  }
  func.func @transform_8(%arg0: i32) -> (i32, i32) {
    %c0_i32 = arith.constant 0 : i32
    %c0_i32_0 = arith.constant 0 : i32
    %c0_i32_1 = arith.constant 0 : i32
    return %c0_i32, %c0_i32_0 : i32, i32
  }
  func.func @transform_9(%arg0: i32) -> (i32, i32) {
    %c0_i32 = arith.constant 0 : i32
    %c0_i32_0 = arith.constant 0 : i32
    %c0_i32_1 = arith.constant 0 : i32
    return %c0_i32, %c0_i32_0 : i32, i32
  }
  func.func @transform_10(%arg0: i32) -> (i32, i32) {
    %c0_i32 = arith.constant 0 : i32
    %c0_i32_0 = arith.constant 0 : i32
    return %arg0, %c0_i32 : i32, i32
  }
}

module attributes {stable_mosaic.version = 11 : i64} {
  func.func @_linear_kernel(%arg0: i32, %arg1: memref<16x34xbf16, #tpu.memory_space<vmem>>, %arg2: memref<34x256xbf16, #tpu.memory_space<vmem>>, %arg3: memref<1x256xf32, #tpu.memory_space<vmem>>, %arg4: memref<16x256xf32, #tpu.memory_space<vmem>>) attributes {dimension_semantics = [#tpu.dimension_semantics<parallel>], iteration_bounds = array<i64: 1>, scalar_prefetch = 0 : i64, scratch_operands = 0 : i64, tpu.core_type = #tpu.core_type<tc>, window_params = [{transform_indices = @transform_0, window_bounds = array<i64: 16, 34>}, {pipeline_mode = #tpu.pipeline_mode<synchronous>, transform_indices = @transform_1, window_bounds = array<i64: 34, 256>}, {pipeline_mode = #tpu.pipeline_mode<synchronous>, transform_indices = @transform_2, window_bounds = array<i64: 1, 256>}, {transform_indices = @transform_3, window_bounds = array<i64: 16, 256>}]} {
    %c0 = arith.constant 0 : index
    %c0_0 = arith.constant 0 : index
    %0 = vector.load %arg1[%c0, %c0_0] : memref<16x34xbf16, #tpu.memory_space<vmem>>, vector<16x34xbf16>
    %c0_1 = arith.constant 0 : index
    %c0_2 = arith.constant 0 : index
    %1 = vector.load %arg2[%c0_1, %c0_2] : memref<34x256xbf16, #tpu.memory_space<vmem>>, vector<34x256xbf16>
    %cst = arith.constant dense<0.000000e+00> : vector<16x256xf32>
    %2 = tpu.matmul %0, %1, %cst {dimension_numbers = #tpu.dot_dimension_numbers<[1], [0], [0], [1], [0, 0, 1, 1], [], []>} : vector<16x34xbf16>, vector<34x256xbf16>, vector<16x256xf32> -> vector<16x256xf32>
    %c0_3 = arith.constant 0 : index
    %c0_4 = arith.constant 0 : index
    %3 = vector.load %arg3[%c0_3, %c0_4] : memref<1x256xf32, #tpu.memory_space<vmem>>, vector<1x256xf32>
    %4 = vector.broadcast %3 : vector<1x256xf32> to vector<16x256xf32>
    %5 = arith.addf %2, %4 : vector<16x256xf32>
    %c0_5 = arith.constant 0 : index
    %c0_6 = arith.constant 0 : index
    %6 = vector.load %arg4[%c0_5, %c0_6] : memref<16x256xf32, #tpu.memory_space<vmem>>, vector<16x256xf32>
    tpu.vector_store %arg4[%c0_5, %c0_6], %5 {strides = array<i32>} : memref<16x256xf32, #tpu.memory_space<vmem>>, vector<16x256xf32>,
    return
  }
  func.func @transform_0(%arg0: i32) -> (i32, i32) {
    %c0_i32 = arith.constant 0 : i32
    %c0_i32_0 = arith.constant 0 : i32
    return %arg0, %c0_i32 : i32, i32
  }
  func.func @transform_1(%arg0: i32) -> (i32, i32) {
    %c0_i32 = arith.constant 0 : i32
    %c0_i32_0 = arith.constant 0 : i32
    %c0_i32_1 = arith.constant 0 : i32
    return %c0_i32, %c0_i32_0 : i32, i32
  }
  func.func @transform_2(%arg0: i32) -> (i32, i32) {
    %c0_i32 = arith.constant 0 : i32
    %c0_i32_0 = arith.constant 0 : i32
    %c0_i32_1 = arith.constant 0 : i32
    return %c0_i32, %c0_i32_0 : i32, i32
  }
  func.func @transform_3(%arg0: i32) -> (i32, i32) {
    %c0_i32 = arith.constant 0 : i32
    %c0_i32_0 = arith.constant 0 : i32
    return %arg0, %c0_i32 : i32, i32
  }
}

module attributes {stable_mosaic.version = 11 : i64} {
  func.func @_bilstm_kernel(%arg0: i32, %arg1: memref<8x2x128xf32, #tpu.memory_space<vmem>>, %arg2: memref<8x2x128xf32, #tpu.memory_space<vmem>>, %arg3: memref<32x128xbf16, #tpu.memory_space<vmem>>, %arg4: memref<32x128xbf16, #tpu.memory_space<vmem>>, %arg5: memref<8x2x32xf32, #tpu.memory_space<vmem>>, %arg6: memref<8x2x32xf32, #tpu.memory_space<vmem>>, %arg7: memref<2x32xbf16, #tpu.memory_space<vmem>>, %arg8: memref<2x32xf32, #tpu.memory_space<vmem>>, %arg9: memref<2x32xbf16, #tpu.memory_space<vmem>>, %arg10: memref<2x32xf32, #tpu.memory_space<vmem>>) attributes {dimension_semantics = [#tpu.dimension_semantics<arbitrary>], iteration_bounds = array<i64: 1>, scalar_prefetch = 0 : i64, scratch_operands = 4 : i64, tpu.core_type = #tpu.core_type<tc>, window_params = [{transform_indices = @transform_0, window_bounds = array<i64: 8, 2, 128>}, {transform_indices = @transform_1, window_bounds = array<i64: 8, 2, 128>}, {pipeline_mode = #tpu.pipeline_mode<synchronous>, transform_indices = @transform_2, window_bounds = array<i64: 32, 128>}, {pipeline_mode = #tpu.pipeline_mode<synchronous>, transform_indices = @transform_3, window_bounds = array<i64: 32, 128>}, {transform_indices = @transform_4, window_bounds = array<i64: 8, 2, 32>}, {transform_indices = @transform_5, window_bounds = array<i64: 8, 2, 32>}]} {
    %c0_i32 = arith.constant 0 : i32
    %0 = arith.cmpi eq, %arg0, %c0_i32 : i32
    %1 = arith.extui %0 : i1 to i32
    %c0_i32_0 = arith.constant 0 : i32
    %2 = arith.cmpi ne, %1, %c0_i32_0 : i32
    scf.if %2 {
      %cst_172 = arith.constant 0.000000e+00 : bf16
      %541 = vector.broadcast %cst_172 : bf16 to vector<2x32xbf16>
      %c0_173 = arith.constant 0 : index
      %c0_174 = arith.constant 0 : index
      %542 = vector.load %arg7[%c0_173, %c0_174] : memref<2x32xbf16, #tpu.memory_space<vmem>>, vector<2x32xbf16>
      tpu.vector_store %arg7[%c0_173, %c0_174], %541 {strides = array<i32>} : memref<2x32xbf16, #tpu.memory_space<vmem>>, vector<2x32xbf16>,
      %cst_175 = arith.constant 0.000000e+00 : f32
      %543 = vector.broadcast %cst_175 : f32 to vector<2x32xf32>
      %c0_176 = arith.constant 0 : index
      %c0_177 = arith.constant 0 : index
      %544 = vector.load %arg8[%c0_176, %c0_177] : memref<2x32xf32, #tpu.memory_space<vmem>>, vector<2x32xf32>
      tpu.vector_store %arg8[%c0_176, %c0_177], %543 {strides = array<i32>} : memref<2x32xf32, #tpu.memory_space<vmem>>, vector<2x32xf32>,
      %cst_178 = arith.constant 0.000000e+00 : bf16
      %545 = vector.broadcast %cst_178 : bf16 to vector<2x32xbf16>
      %c0_179 = arith.constant 0 : index
      %c0_180 = arith.constant 0 : index
      %546 = vector.load %arg9[%c0_179, %c0_180] : memref<2x32xbf16, #tpu.memory_space<vmem>>, vector<2x32xbf16>
      tpu.vector_store %arg9[%c0_179, %c0_180], %545 {strides = array<i32>} : memref<2x32xbf16, #tpu.memory_space<vmem>>, vector<2x32xbf16>,
      %cst_181 = arith.constant 0.000000e+00 : f32
      %547 = vector.broadcast %cst_181 : f32 to vector<2x32xf32>
      %c0_182 = arith.constant 0 : index
      %c0_183 = arith.constant 0 : index
      %548 = vector.load %arg10[%c0_182, %c0_183] : memref<2x32xf32, #tpu.memory_space<vmem>>, vector<2x32xf32>
      tpu.vector_store %arg10[%c0_182, %c0_183], %547 {strides = array<i32>} : memref<2x32xf32, #tpu.memory_space<vmem>>, vector<2x32xf32>,
    } else {
    }
    %c0 = arith.constant 0 : index
    %c0_1 = arith.constant 0 : index
    %3 = vector.load %arg7[%c0, %c0_1] : memref<2x32xbf16, #tpu.memory_space<vmem>>, vector<2x32xbf16>
    %c0_2 = arith.constant 0 : index
    %c0_3 = arith.constant 0 : index
    %4 = vector.load %arg8[%c0_2, %c0_3] : memref<2x32xf32, #tpu.memory_space<vmem>>, vector<2x32xf32>
    %c0_4 = arith.constant 0 : index
    %c0_5 = arith.constant 0 : index
    %5 = vector.load %arg9[%c0_4, %c0_5] : memref<2x32xbf16, #tpu.memory_space<vmem>>, vector<2x32xbf16>
    %c0_6 = arith.constant 0 : index
    %c0_7 = arith.constant 0 : index
    %6 = vector.load %arg10[%c0_6, %c0_7] : memref<2x32xf32, #tpu.memory_space<vmem>>, vector<2x32xf32>
    %c0_8 = arith.constant 0 : index
    %c0_9 = arith.constant 0 : index
    %7 = vector.load %arg3[%c0_8, %c0_9] : memref<32x128xbf16, #tpu.memory_space<vmem>>, vector<32x128xbf16>
    %c0_10 = arith.constant 0 : index
    %c0_11 = arith.constant 0 : index
    %8 = vector.load %arg4[%c0_10, %c0_11] : memref<32x128xbf16, #tpu.memory_space<vmem>>, vector<32x128xbf16>
    %c0_12 = arith.constant 0 : index
    %c0_13 = arith.constant 0 : index
    %c0_14 = arith.constant 0 : index
    %9 = vector.load %arg1[%c0_12, %c0_13, %c0_14] : memref<8x2x128xf32, #tpu.memory_space<vmem>>, vector<1x2x128xf32>
    %10 = vector.shape_cast %9 : vector<1x2x128xf32> to vector<2x128xf32>
    %cst = arith.constant dense<0.000000e+00> : vector<2x128xf32>
    %11 = tpu.matmul %3, %7, %cst {dimension_numbers = #tpu.dot_dimension_numbers<[1], [0], [0], [1], [0, 0, 1, 1], [], []>} : vector<2x32xbf16>, vector<32x128xbf16>, vector<2x128xf32> -> vector<2x128xf32>
    %12 = arith.addf %10, %11 : vector<2x128xf32>
    %13 = vector.extract_strided_slice %12 {offsets = [0, 0], sizes = [2, 32], strides = [1, 1]} : vector<2x128xf32> to vector<2x32xf32>
    %14 = arith.negf %13 : vector<2x32xf32>
    %15 = math.exp %14 : vector<2x32xf32>
    %cst_15 = arith.constant 1.000000e+00 : f32
    %16 = vector.broadcast %cst_15 : f32 to vector<2x32xf32>
    %17 = arith.addf %16, %15 : vector<2x32xf32>
    %18 = arith.divf %16, %17 : vector<2x32xf32>
    %19 = vector.extract_strided_slice %12 {offsets = [0, 32], sizes = [2, 32], strides = [1, 1]} : vector<2x128xf32> to vector<2x32xf32>
    %20 = arith.negf %19 : vector<2x32xf32>
    %21 = math.exp %20 : vector<2x32xf32>
    %cst_16 = arith.constant 1.000000e+00 : f32
    %22 = vector.broadcast %cst_16 : f32 to vector<2x32xf32>
    %23 = arith.addf %22, %21 : vector<2x32xf32>
    %24 = arith.divf %22, %23 : vector<2x32xf32>
    %25 = vector.extract_strided_slice %12 {offsets = [0, 64], sizes = [2, 32], strides = [1, 1]} : vector<2x128xf32> to vector<2x32xf32>
    %26 = math.tanh %25 : vector<2x32xf32>
    %27 = vector.extract_strided_slice %12 {offsets = [0, 96], sizes = [2, 32], strides = [1, 1]} : vector<2x128xf32> to vector<2x32xf32>
    %28 = arith.negf %27 : vector<2x32xf32>
    %29 = math.exp %28 : vector<2x32xf32>
    %cst_17 = arith.constant 1.000000e+00 : f32
    %30 = vector.broadcast %cst_17 : f32 to vector<2x32xf32>
    %31 = arith.addf %30, %29 : vector<2x32xf32>
    %32 = arith.divf %30, %31 : vector<2x32xf32>
    %33 = arith.mulf %24, %4 : vector<2x32xf32>
    %34 = arith.mulf %18, %26 : vector<2x32xf32>
    %35 = arith.addf %33, %34 : vector<2x32xf32>
    %36 = math.tanh %35 : vector<2x32xf32>
    %37 = arith.mulf %32, %36 : vector<2x32xf32>
    %c0_18 = arith.constant 0 : index
    %c0_19 = arith.constant 0 : index
    %c0_20 = arith.constant 0 : index
    %38 = vector.load %arg5[%c0_18, %c0_19, %c0_20] : memref<8x2x32xf32, #tpu.memory_space<vmem>>, vector<1x2x32xf32>
    %39 = vector.shape_cast %38 : vector<1x2x32xf32> to vector<2x32xf32>
    %40 = vector.shape_cast %37 : vector<2x32xf32> to vector<1x2x32xf32>
    tpu.vector_store %arg5[%c0_18, %c0_19, %c0_20], %40 {strides = array<i32>} : memref<8x2x32xf32, #tpu.memory_space<vmem>>, vector<1x2x32xf32>,
    %41 = arith.truncf %37 : vector<2x32xf32> to vector<2x32xbf16>
    %c7 = arith.constant 7 : index
    %c0_21 = arith.constant 0 : index
    %c0_22 = arith.constant 0 : index
    %42 = vector.load %arg2[%c7, %c0_21, %c0_22] : memref<8x2x128xf32, #tpu.memory_space<vmem>>, vector<1x2x128xf32>
    %43 = vector.shape_cast %42 : vector<1x2x128xf32> to vector<2x128xf32>
    %cst_23 = arith.constant dense<0.000000e+00> : vector<2x128xf32>
    %44 = tpu.matmul %5, %8, %cst_23 {dimension_numbers = #tpu.dot_dimension_numbers<[1], [0], [0], [1], [0, 0, 1, 1], [], []>} : vector<2x32xbf16>, vector<32x128xbf16>, vector<2x128xf32> -> vector<2x128xf32>
    %45 = arith.addf %43, %44 : vector<2x128xf32>
    %46 = vector.extract_strided_slice %45 {offsets = [0, 0], sizes = [2, 32], strides = [1, 1]} : vector<2x128xf32> to vector<2x32xf32>
    %47 = arith.negf %46 : vector<2x32xf32>
    %48 = math.exp %47 : vector<2x32xf32>
    %cst_24 = arith.constant 1.000000e+00 : f32
    %49 = vector.broadcast %cst_24 : f32 to vector<2x32xf32>
    %50 = arith.addf %49, %48 : vector<2x32xf32>
    %51 = arith.divf %49, %50 : vector<2x32xf32>
    %52 = vector.extract_strided_slice %45 {offsets = [0, 32], sizes = [2, 32], strides = [1, 1]} : vector<2x128xf32> to vector<2x32xf32>
    %53 = arith.negf %52 : vector<2x32xf32>
    %54 = math.exp %53 : vector<2x32xf32>
    %cst_25 = arith.constant 1.000000e+00 : f32
    %55 = vector.broadcast %cst_25 : f32 to vector<2x32xf32>
    %56 = arith.addf %55, %54 : vector<2x32xf32>
    %57 = arith.divf %55, %56 : vector<2x32xf32>
    %58 = vector.extract_strided_slice %45 {offsets = [0, 64], sizes = [2, 32], strides = [1, 1]} : vector<2x128xf32> to vector<2x32xf32>
    %59 = math.tanh %58 : vector<2x32xf32>
    %60 = vector.extract_strided_slice %45 {offsets = [0, 96], sizes = [2, 32], strides = [1, 1]} : vector<2x128xf32> to vector<2x32xf32>
    %61 = arith.negf %60 : vector<2x32xf32>
    %62 = math.exp %61 : vector<2x32xf32>
    %cst_26 = arith.constant 1.000000e+00 : f32
    %63 = vector.broadcast %cst_26 : f32 to vector<2x32xf32>
    %64 = arith.addf %63, %62 : vector<2x32xf32>
    %65 = arith.divf %63, %64 : vector<2x32xf32>
    %66 = arith.mulf %57, %6 : vector<2x32xf32>
    %67 = arith.mulf %51, %59 : vector<2x32xf32>
    %68 = arith.addf %66, %67 : vector<2x32xf32>
    %69 = math.tanh %68 : vector<2x32xf32>
    %70 = arith.mulf %65, %69 : vector<2x32xf32>
    %c7_27 = arith.constant 7 : index
    %c0_28 = arith.constant 0 : index
    %c0_29 = arith.constant 0 : index
    %71 = vector.load %arg6[%c7_27, %c0_28, %c0_29] : memref<8x2x32xf32, #tpu.memory_space<vmem>>, vector<1x2x32xf32>
    %72 = vector.shape_cast %71 : vector<1x2x32xf32> to vector<2x32xf32>
    %73 = vector.shape_cast %70 : vector<2x32xf32> to vector<1x2x32xf32>
    tpu.vector_store %arg6[%c7_27, %c0_28, %c0_29], %73 {strides = array<i32>} : memref<8x2x32xf32, #tpu.memory_space<vmem>>, vector<1x2x32xf32>,
    %74 = arith.truncf %70 : vector<2x32xf32> to vector<2x32xbf16>
    %c1 = arith.constant 1 : index
    %c0_30 = arith.constant 0 : index
    %c0_31 = arith.constant 0 : index
    %75 = vector.load %arg1[%c1, %c0_30, %c0_31] : memref<8x2x128xf32, #tpu.memory_space<vmem>>, vector<1x2x128xf32>
    %76 = vector.shape_cast %75 : vector<1x2x128xf32> to vector<2x128xf32>
    %cst_32 = arith.constant dense<0.000000e+00> : vector<2x128xf32>
    %77 = tpu.matmul %41, %7, %cst_32 {dimension_numbers = #tpu.dot_dimension_numbers<[1], [0], [0], [1], [0, 0, 1, 1], [], []>} : vector<2x32xbf16>, vector<32x128xbf16>, vector<2x128xf32> -> vector<2x128xf32>
    %78 = arith.addf %76, %77 : vector<2x128xf32>
    %79 = vector.extract_strided_slice %78 {offsets = [0, 0], sizes = [2, 32], strides = [1, 1]} : vector<2x128xf32> to vector<2x32xf32>
    %80 = arith.negf %79 : vector<2x32xf32>
    %81 = math.exp %80 : vector<2x32xf32>
    %cst_33 = arith.constant 1.000000e+00 : f32
    %82 = vector.broadcast %cst_33 : f32 to vector<2x32xf32>
    %83 = arith.addf %82, %81 : vector<2x32xf32>
    %84 = arith.divf %82, %83 : vector<2x32xf32>
    %85 = vector.extract_strided_slice %78 {offsets = [0, 32], sizes = [2, 32], strides = [1, 1]} : vector<2x128xf32> to vector<2x32xf32>
    %86 = arith.negf %85 : vector<2x32xf32>
    %87 = math.exp %86 : vector<2x32xf32>
    %cst_34 = arith.constant 1.000000e+00 : f32
    %88 = vector.broadcast %cst_34 : f32 to vector<2x32xf32>
    %89 = arith.addf %88, %87 : vector<2x32xf32>
    %90 = arith.divf %88, %89 : vector<2x32xf32>
    %91 = vector.extract_strided_slice %78 {offsets = [0, 64], sizes = [2, 32], strides = [1, 1]} : vector<2x128xf32> to vector<2x32xf32>
    %92 = math.tanh %91 : vector<2x32xf32>
    %93 = vector.extract_strided_slice %78 {offsets = [0, 96], sizes = [2, 32], strides = [1, 1]} : vector<2x128xf32> to vector<2x32xf32>
    %94 = arith.negf %93 : vector<2x32xf32>
    %95 = math.exp %94 : vector<2x32xf32>
    %cst_35 = arith.constant 1.000000e+00 : f32
    %96 = vector.broadcast %cst_35 : f32 to vector<2x32xf32>
    %97 = arith.addf %96, %95 : vector<2x32xf32>
    %98 = arith.divf %96, %97 : vector<2x32xf32>
    %99 = arith.mulf %90, %35 : vector<2x32xf32>
    %100 = arith.mulf %84, %92 : vector<2x32xf32>
    %101 = arith.addf %99, %100 : vector<2x32xf32>
    %102 = math.tanh %101 : vector<2x32xf32>
    %103 = arith.mulf %98, %102 : vector<2x32xf32>
    %c1_36 = arith.constant 1 : index
    %c0_37 = arith.constant 0 : index
    %c0_38 = arith.constant 0 : index
    %104 = vector.load %arg5[%c1_36, %c0_37, %c0_38] : memref<8x2x32xf32, #tpu.memory_space<vmem>>, vector<1x2x32xf32>
    %105 = vector.shape_cast %104 : vector<1x2x32xf32> to vector<2x32xf32>
    %106 = vector.shape_cast %103 : vector<2x32xf32> to vector<1x2x32xf32>
    tpu.vector_store %arg5[%c1_36, %c0_37, %c0_38], %106 {strides = array<i32>} : memref<8x2x32xf32, #tpu.memory_space<vmem>>, vector<1x2x32xf32>,
    %107 = arith.truncf %103 : vector<2x32xf32> to vector<2x32xbf16>
    %c6 = arith.constant 6 : index
    %c0_39 = arith.constant 0 : index
    %c0_40 = arith.constant 0 : index
    %108 = vector.load %arg2[%c6, %c0_39, %c0_40] : memref<8x2x128xf32, #tpu.memory_space<vmem>>, vector<1x2x128xf32>
    %109 = vector.shape_cast %108 : vector<1x2x128xf32> to vector<2x128xf32>
    %cst_41 = arith.constant dense<0.000000e+00> : vector<2x128xf32>
    %110 = tpu.matmul %74, %8, %cst_41 {dimension_numbers = #tpu.dot_dimension_numbers<[1], [0], [0], [1], [0, 0, 1, 1], [], []>} : vector<2x32xbf16>, vector<32x128xbf16>, vector<2x128xf32> -> vector<2x128xf32>
    %111 = arith.addf %109, %110 : vector<2x128xf32>
    %112 = vector.extract_strided_slice %111 {offsets = [0, 0], sizes = [2, 32], strides = [1, 1]} : vector<2x128xf32> to vector<2x32xf32>
    %113 = arith.negf %112 : vector<2x32xf32>
    %114 = math.exp %113 : vector<2x32xf32>
    %cst_42 = arith.constant 1.000000e+00 : f32
    %115 = vector.broadcast %cst_42 : f32 to vector<2x32xf32>
    %116 = arith.addf %115, %114 : vector<2x32xf32>
    %117 = arith.divf %115, %116 : vector<2x32xf32>
    %118 = vector.extract_strided_slice %111 {offsets = [0, 32], sizes = [2, 32], strides = [1, 1]} : vector<2x128xf32> to vector<2x32xf32>
    %119 = arith.negf %118 : vector<2x32xf32>
    %120 = math.exp %119 : vector<2x32xf32>
    %cst_43 = arith.constant 1.000000e+00 : f32
    %121 = vector.broadcast %cst_43 : f32 to vector<2x32xf32>
    %122 = arith.addf %121, %120 : vector<2x32xf32>
    %123 = arith.divf %121, %122 : vector<2x32xf32>
    %124 = vector.extract_strided_slice %111 {offsets = [0, 64], sizes = [2, 32], strides = [1, 1]} : vector<2x128xf32> to vector<2x32xf32>
    %125 = math.tanh %124 : vector<2x32xf32>
    %126 = vector.extract_strided_slice %111 {offsets = [0, 96], sizes = [2, 32], strides = [1, 1]} : vector<2x128xf32> to vector<2x32xf32>
    %127 = arith.negf %126 : vector<2x32xf32>
    %128 = math.exp %127 : vector<2x32xf32>
    %cst_44 = arith.constant 1.000000e+00 : f32
    %129 = vector.broadcast %cst_44 : f32 to vector<2x32xf32>
    %130 = arith.addf %129, %128 : vector<2x32xf32>
    %131 = arith.divf %129, %130 : vector<2x32xf32>
    %132 = arith.mulf %123, %68 : vector<2x32xf32>
    %133 = arith.mulf %117, %125 : vector<2x32xf32>
    %134 = arith.addf %132, %133 : vector<2x32xf32>
    %135 = math.tanh %134 : vector<2x32xf32>
    %136 = arith.mulf %131, %135 : vector<2x32xf32>
    %c6_45 = arith.constant 6 : index
    %c0_46 = arith.constant 0 : index
    %c0_47 = arith.constant 0 : index
    %137 = vector.load %arg6[%c6_45, %c0_46, %c0_47] : memref<8x2x32xf32, #tpu.memory_space<vmem>>, vector<1x2x32xf32>
    %138 = vector.shape_cast %137 : vector<1x2x32xf32> to vector<2x32xf32>
    %139 = vector.shape_cast %136 : vector<2x32xf32> to vector<1x2x32xf32>
    tpu.vector_store %arg6[%c6_45, %c0_46, %c0_47], %139 {strides = array<i32>} : memref<8x2x32xf32, #tpu.memory_space<vmem>>, vector<1x2x32xf32>,
    %140 = arith.truncf %136 : vector<2x32xf32> to vector<2x32xbf16>
    %c2 = arith.constant 2 : index
    %c0_48 = arith.constant 0 : index
    %c0_49 = arith.constant 0 : index
    %141 = vector.load %arg1[%c2, %c0_48, %c0_49] : memref<8x2x128xf32, #tpu.memory_space<vmem>>, vector<1x2x128xf32>
    %142 = vector.shape_cast %141 : vector<1x2x128xf32> to vector<2x128xf32>
    %cst_50 = arith.constant dense<0.000000e+00> : vector<2x128xf32>
    %143 = tpu.matmul %107, %7, %cst_50 {dimension_numbers = #tpu.dot_dimension_numbers<[1], [0], [0], [1], [0, 0, 1, 1], [], []>} : vector<2x32xbf16>, vector<32x128xbf16>, vector<2x128xf32> -> vector<2x128xf32>
    %144 = arith.addf %142, %143 : vector<2x128xf32>
    %145 = vector.extract_strided_slice %144 {offsets = [0, 0], sizes = [2, 32], strides = [1, 1]} : vector<2x128xf32> to vector<2x32xf32>
    %146 = arith.negf %145 : vector<2x32xf32>
    %147 = math.exp %146 : vector<2x32xf32>
    %cst_51 = arith.constant 1.000000e+00 : f32
    %148 = vector.broadcast %cst_51 : f32 to vector<2x32xf32>
    %149 = arith.addf %148, %147 : vector<2x32xf32>
    %150 = arith.divf %148, %149 : vector<2x32xf32>
    %151 = vector.extract_strided_slice %144 {offsets = [0, 32], sizes = [2, 32], strides = [1, 1]} : vector<2x128xf32> to vector<2x32xf32>
    %152 = arith.negf %151 : vector<2x32xf32>
    %153 = math.exp %152 : vector<2x32xf32>
    %cst_52 = arith.constant 1.000000e+00 : f32
    %154 = vector.broadcast %cst_52 : f32 to vector<2x32xf32>
    %155 = arith.addf %154, %153 : vector<2x32xf32>
    %156 = arith.divf %154, %155 : vector<2x32xf32>
    %157 = vector.extract_strided_slice %144 {offsets = [0, 64], sizes = [2, 32], strides = [1, 1]} : vector<2x128xf32> to vector<2x32xf32>
    %158 = math.tanh %157 : vector<2x32xf32>
    %159 = vector.extract_strided_slice %144 {offsets = [0, 96], sizes = [2, 32], strides = [1, 1]} : vector<2x128xf32> to vector<2x32xf32>
    %160 = arith.negf %159 : vector<2x32xf32>
    %161 = math.exp %160 : vector<2x32xf32>
    %cst_53 = arith.constant 1.000000e+00 : f32
    %162 = vector.broadcast %cst_53 : f32 to vector<2x32xf32>
    %163 = arith.addf %162, %161 : vector<2x32xf32>
    %164 = arith.divf %162, %163 : vector<2x32xf32>
    %165 = arith.mulf %156, %101 : vector<2x32xf32>
    %166 = arith.mulf %150, %158 : vector<2x32xf32>
    %167 = arith.addf %165, %166 : vector<2x32xf32>
    %168 = math.tanh %167 : vector<2x32xf32>
    %169 = arith.mulf %164, %168 : vector<2x32xf32>
    %c2_54 = arith.constant 2 : index
    %c0_55 = arith.constant 0 : index
    %c0_56 = arith.constant 0 : index
    %170 = vector.load %arg5[%c2_54, %c0_55, %c0_56] : memref<8x2x32xf32, #tpu.memory_space<vmem>>, vector<1x2x32xf32>
    %171 = vector.shape_cast %170 : vector<1x2x32xf32> to vector<2x32xf32>
    %172 = vector.shape_cast %169 : vector<2x32xf32> to vector<1x2x32xf32>
    tpu.vector_store %arg5[%c2_54, %c0_55, %c0_56], %172 {strides = array<i32>} : memref<8x2x32xf32, #tpu.memory_space<vmem>>, vector<1x2x32xf32>,
    %173 = arith.truncf %169 : vector<2x32xf32> to vector<2x32xbf16>
    %c5 = arith.constant 5 : index
    %c0_57 = arith.constant 0 : index
    %c0_58 = arith.constant 0 : index
    %174 = vector.load %arg2[%c5, %c0_57, %c0_58] : memref<8x2x128xf32, #tpu.memory_space<vmem>>, vector<1x2x128xf32>
    %175 = vector.shape_cast %174 : vector<1x2x128xf32> to vector<2x128xf32>
    %cst_59 = arith.constant dense<0.000000e+00> : vector<2x128xf32>
    %176 = tpu.matmul %140, %8, %cst_59 {dimension_numbers = #tpu.dot_dimension_numbers<[1], [0], [0], [1], [0, 0, 1, 1], [], []>} : vector<2x32xbf16>, vector<32x128xbf16>, vector<2x128xf32> -> vector<2x128xf32>
    %177 = arith.addf %175, %176 : vector<2x128xf32>
    %178 = vector.extract_strided_slice %177 {offsets = [0, 0], sizes = [2, 32], strides = [1, 1]} : vector<2x128xf32> to vector<2x32xf32>
    %179 = arith.negf %178 : vector<2x32xf32>
    %180 = math.exp %179 : vector<2x32xf32>
    %cst_60 = arith.constant 1.000000e+00 : f32
    %181 = vector.broadcast %cst_60 : f32 to vector<2x32xf32>
    %182 = arith.addf %181, %180 : vector<2x32xf32>
    %183 = arith.divf %181, %182 : vector<2x32xf32>
    %184 = vector.extract_strided_slice %177 {offsets = [0, 32], sizes = [2, 32], strides = [1, 1]} : vector<2x128xf32> to vector<2x32xf32>
    %185 = arith.negf %184 : vector<2x32xf32>
    %186 = math.exp %185 : vector<2x32xf32>
    %cst_61 = arith.constant 1.000000e+00 : f32
    %187 = vector.broadcast %cst_61 : f32 to vector<2x32xf32>
    %188 = arith.addf %187, %186 : vector<2x32xf32>
    %189 = arith.divf %187, %188 : vector<2x32xf32>
    %190 = vector.extract_strided_slice %177 {offsets = [0, 64], sizes = [2, 32], strides = [1, 1]} : vector<2x128xf32> to vector<2x32xf32>
    %191 = math.tanh %190 : vector<2x32xf32>
    %192 = vector.extract_strided_slice %177 {offsets = [0, 96], sizes = [2, 32], strides = [1, 1]} : vector<2x128xf32> to vector<2x32xf32>
    %193 = arith.negf %192 : vector<2x32xf32>
    %194 = math.exp %193 : vector<2x32xf32>
    %cst_62 = arith.constant 1.000000e+00 : f32
    %195 = vector.broadcast %cst_62 : f32 to vector<2x32xf32>
    %196 = arith.addf %195, %194 : vector<2x32xf32>
    %197 = arith.divf %195, %196 : vector<2x32xf32>
    %198 = arith.mulf %189, %134 : vector<2x32xf32>
    %199 = arith.mulf %183, %191 : vector<2x32xf32>
    %200 = arith.addf %198, %199 : vector<2x32xf32>
    %201 = math.tanh %200 : vector<2x32xf32>
    %202 = arith.mulf %197, %201 : vector<2x32xf32>
    %c5_63 = arith.constant 5 : index
    %c0_64 = arith.constant 0 : index
    %c0_65 = arith.constant 0 : index
    %203 = vector.load %arg6[%c5_63, %c0_64, %c0_65] : memref<8x2x32xf32, #tpu.memory_space<vmem>>, vector<1x2x32xf32>
    %204 = vector.shape_cast %203 : vector<1x2x32xf32> to vector<2x32xf32>
    %205 = vector.shape_cast %202 : vector<2x32xf32> to vector<1x2x32xf32>
    tpu.vector_store %arg6[%c5_63, %c0_64, %c0_65], %205 {strides = array<i32>} : memref<8x2x32xf32, #tpu.memory_space<vmem>>, vector<1x2x32xf32>,
    %206 = arith.truncf %202 : vector<2x32xf32> to vector<2x32xbf16>
    %c3 = arith.constant 3 : index
    %c0_66 = arith.constant 0 : index
    %c0_67 = arith.constant 0 : index
    %207 = vector.load %arg1[%c3, %c0_66, %c0_67] : memref<8x2x128xf32, #tpu.memory_space<vmem>>, vector<1x2x128xf32>
    %208 = vector.shape_cast %207 : vector<1x2x128xf32> to vector<2x128xf32>
    %cst_68 = arith.constant dense<0.000000e+00> : vector<2x128xf32>
    %209 = tpu.matmul %173, %7, %cst_68 {dimension_numbers = #tpu.dot_dimension_numbers<[1], [0], [0], [1], [0, 0, 1, 1], [], []>} : vector<2x32xbf16>, vector<32x128xbf16>, vector<2x128xf32> -> vector<2x128xf32>
    %210 = arith.addf %208, %209 : vector<2x128xf32>
    %211 = vector.extract_strided_slice %210 {offsets = [0, 0], sizes = [2, 32], strides = [1, 1]} : vector<2x128xf32> to vector<2x32xf32>
    %212 = arith.negf %211 : vector<2x32xf32>
    %213 = math.exp %212 : vector<2x32xf32>
    %cst_69 = arith.constant 1.000000e+00 : f32
    %214 = vector.broadcast %cst_69 : f32 to vector<2x32xf32>
    %215 = arith.addf %214, %213 : vector<2x32xf32>
    %216 = arith.divf %214, %215 : vector<2x32xf32>
    %217 = vector.extract_strided_slice %210 {offsets = [0, 32], sizes = [2, 32], strides = [1, 1]} : vector<2x128xf32> to vector<2x32xf32>
    %218 = arith.negf %217 : vector<2x32xf32>
    %219 = math.exp %218 : vector<2x32xf32>
    %cst_70 = arith.constant 1.000000e+00 : f32
    %220 = vector.broadcast %cst_70 : f32 to vector<2x32xf32>
    %221 = arith.addf %220, %219 : vector<2x32xf32>
    %222 = arith.divf %220, %221 : vector<2x32xf32>
    %223 = vector.extract_strided_slice %210 {offsets = [0, 64], sizes = [2, 32], strides = [1, 1]} : vector<2x128xf32> to vector<2x32xf32>
    %224 = math.tanh %223 : vector<2x32xf32>
    %225 = vector.extract_strided_slice %210 {offsets = [0, 96], sizes = [2, 32], strides = [1, 1]} : vector<2x128xf32> to vector<2x32xf32>
    %226 = arith.negf %225 : vector<2x32xf32>
    %227 = math.exp %226 : vector<2x32xf32>
    %cst_71 = arith.constant 1.000000e+00 : f32
    %228 = vector.broadcast %cst_71 : f32 to vector<2x32xf32>
    %229 = arith.addf %228, %227 : vector<2x32xf32>
    %230 = arith.divf %228, %229 : vector<2x32xf32>
    %231 = arith.mulf %222, %167 : vector<2x32xf32>
    %232 = arith.mulf %216, %224 : vector<2x32xf32>
    %233 = arith.addf %231, %232 : vector<2x32xf32>
    %234 = math.tanh %233 : vector<2x32xf32>
    %235 = arith.mulf %230, %234 : vector<2x32xf32>
    %c3_72 = arith.constant 3 : index
    %c0_73 = arith.constant 0 : index
    %c0_74 = arith.constant 0 : index
    %236 = vector.load %arg5[%c3_72, %c0_73, %c0_74] : memref<8x2x32xf32, #tpu.memory_space<vmem>>, vector<1x2x32xf32>
    %237 = vector.shape_cast %236 : vector<1x2x32xf32> to vector<2x32xf32>
    %238 = vector.shape_cast %235 : vector<2x32xf32> to vector<1x2x32xf32>
    tpu.vector_store %arg5[%c3_72, %c0_73, %c0_74], %238 {strides = array<i32>} : memref<8x2x32xf32, #tpu.memory_space<vmem>>, vector<1x2x32xf32>,
    %239 = arith.truncf %235 : vector<2x32xf32> to vector<2x32xbf16>
    %c4 = arith.constant 4 : index
    %c0_75 = arith.constant 0 : index
    %c0_76 = arith.constant 0 : index
    %240 = vector.load %arg2[%c4, %c0_75, %c0_76] : memref<8x2x128xf32, #tpu.memory_space<vmem>>, vector<1x2x128xf32>
    %241 = vector.shape_cast %240 : vector<1x2x128xf32> to vector<2x128xf32>
    %cst_77 = arith.constant dense<0.000000e+00> : vector<2x128xf32>
    %242 = tpu.matmul %206, %8, %cst_77 {dimension_numbers = #tpu.dot_dimension_numbers<[1], [0], [0], [1], [0, 0, 1, 1], [], []>} : vector<2x32xbf16>, vector<32x128xbf16>, vector<2x128xf32> -> vector<2x128xf32>
    %243 = arith.addf %241, %242 : vector<2x128xf32>
    %244 = vector.extract_strided_slice %243 {offsets = [0, 0], sizes = [2, 32], strides = [1, 1]} : vector<2x128xf32> to vector<2x32xf32>
    %245 = arith.negf %244 : vector<2x32xf32>
    %246 = math.exp %245 : vector<2x32xf32>
    %cst_78 = arith.constant 1.000000e+00 : f32
    %247 = vector.broadcast %cst_78 : f32 to vector<2x32xf32>
    %248 = arith.addf %247, %246 : vector<2x32xf32>
    %249 = arith.divf %247, %248 : vector<2x32xf32>
    %250 = vector.extract_strided_slice %243 {offsets = [0, 32], sizes = [2, 32], strides = [1, 1]} : vector<2x128xf32> to vector<2x32xf32>
    %251 = arith.negf %250 : vector<2x32xf32>
    %252 = math.exp %251 : vector<2x32xf32>
    %cst_79 = arith.constant 1.000000e+00 : f32
    %253 = vector.broadcast %cst_79 : f32 to vector<2x32xf32>
    %254 = arith.addf %253, %252 : vector<2x32xf32>
    %255 = arith.divf %253, %254 : vector<2x32xf32>
    %256 = vector.extract_strided_slice %243 {offsets = [0, 64], sizes = [2, 32], strides = [1, 1]} : vector<2x128xf32> to vector<2x32xf32>
    %257 = math.tanh %256 : vector<2x32xf32>
    %258 = vector.extract_strided_slice %243 {offsets = [0, 96], sizes = [2, 32], strides = [1, 1]} : vector<2x128xf32> to vector<2x32xf32>
    %259 = arith.negf %258 : vector<2x32xf32>
    %260 = math.exp %259 : vector<2x32xf32>
    %cst_80 = arith.constant 1.000000e+00 : f32
    %261 = vector.broadcast %cst_80 : f32 to vector<2x32xf32>
    %262 = arith.addf %261, %260 : vector<2x32xf32>
    %263 = arith.divf %261, %262 : vector<2x32xf32>
    %264 = arith.mulf %255, %200 : vector<2x32xf32>
    %265 = arith.mulf %249, %257 : vector<2x32xf32>
    %266 = arith.addf %264, %265 : vector<2x32xf32>
    %267 = math.tanh %266 : vector<2x32xf32>
    %268 = arith.mulf %263, %267 : vector<2x32xf32>
    %c4_81 = arith.constant 4 : index
    %c0_82 = arith.constant 0 : index
    %c0_83 = arith.constant 0 : index
    %269 = vector.load %arg6[%c4_81, %c0_82, %c0_83] : memref<8x2x32xf32, #tpu.memory_space<vmem>>, vector<1x2x32xf32>
    %270 = vector.shape_cast %269 : vector<1x2x32xf32> to vector<2x32xf32>
    %271 = vector.shape_cast %268 : vector<2x32xf32> to vector<1x2x32xf32>
    tpu.vector_store %arg6[%c4_81, %c0_82, %c0_83], %271 {strides = array<i32>} : memref<8x2x32xf32, #tpu.memory_space<vmem>>, vector<1x2x32xf32>,
    %272 = arith.truncf %268 : vector<2x32xf32> to vector<2x32xbf16>
    %c4_84 = arith.constant 4 : index
    %c0_85 = arith.constant 0 : index
    %c0_86 = arith.constant 0 : index
    %273 = vector.load %arg1[%c4_84, %c0_85, %c0_86] : memref<8x2x128xf32, #tpu.memory_space<vmem>>, vector<1x2x128xf32>
    %274 = vector.shape_cast %273 : vector<1x2x128xf32> to vector<2x128xf32>
    %cst_87 = arith.constant dense<0.000000e+00> : vector<2x128xf32>
    %275 = tpu.matmul %239, %7, %cst_87 {dimension_numbers = #tpu.dot_dimension_numbers<[1], [0], [0], [1], [0, 0, 1, 1], [], []>} : vector<2x32xbf16>, vector<32x128xbf16>, vector<2x128xf32> -> vector<2x128xf32>
    %276 = arith.addf %274, %275 : vector<2x128xf32>
    %277 = vector.extract_strided_slice %276 {offsets = [0, 0], sizes = [2, 32], strides = [1, 1]} : vector<2x128xf32> to vector<2x32xf32>
    %278 = arith.negf %277 : vector<2x32xf32>
    %279 = math.exp %278 : vector<2x32xf32>
    %cst_88 = arith.constant 1.000000e+00 : f32
    %280 = vector.broadcast %cst_88 : f32 to vector<2x32xf32>
    %281 = arith.addf %280, %279 : vector<2x32xf32>
    %282 = arith.divf %280, %281 : vector<2x32xf32>
    %283 = vector.extract_strided_slice %276 {offsets = [0, 32], sizes = [2, 32], strides = [1, 1]} : vector<2x128xf32> to vector<2x32xf32>
    %284 = arith.negf %283 : vector<2x32xf32>
    %285 = math.exp %284 : vector<2x32xf32>
    %cst_89 = arith.constant 1.000000e+00 : f32
    %286 = vector.broadcast %cst_89 : f32 to vector<2x32xf32>
    %287 = arith.addf %286, %285 : vector<2x32xf32>
    %288 = arith.divf %286, %287 : vector<2x32xf32>
    %289 = vector.extract_strided_slice %276 {offsets = [0, 64], sizes = [2, 32], strides = [1, 1]} : vector<2x128xf32> to vector<2x32xf32>
    %290 = math.tanh %289 : vector<2x32xf32>
    %291 = vector.extract_strided_slice %276 {offsets = [0, 96], sizes = [2, 32], strides = [1, 1]} : vector<2x128xf32> to vector<2x32xf32>
    %292 = arith.negf %291 : vector<2x32xf32>
    %293 = math.exp %292 : vector<2x32xf32>
    %cst_90 = arith.constant 1.000000e+00 : f32
    %294 = vector.broadcast %cst_90 : f32 to vector<2x32xf32>
    %295 = arith.addf %294, %293 : vector<2x32xf32>
    %296 = arith.divf %294, %295 : vector<2x32xf32>
    %297 = arith.mulf %288, %233 : vector<2x32xf32>
    %298 = arith.mulf %282, %290 : vector<2x32xf32>
    %299 = arith.addf %297, %298 : vector<2x32xf32>
    %300 = math.tanh %299 : vector<2x32xf32>
    %301 = arith.mulf %296, %300 : vector<2x32xf32>
    %c4_91 = arith.constant 4 : index
    %c0_92 = arith.constant 0 : index
    %c0_93 = arith.constant 0 : index
    %302 = vector.load %arg5[%c4_91, %c0_92, %c0_93] : memref<8x2x32xf32, #tpu.memory_space<vmem>>, vector<1x2x32xf32>
    %303 = vector.shape_cast %302 : vector<1x2x32xf32> to vector<2x32xf32>
    %304 = vector.shape_cast %301 : vector<2x32xf32> to vector<1x2x32xf32>
    tpu.vector_store %arg5[%c4_91, %c0_92, %c0_93], %304 {strides = array<i32>} : memref<8x2x32xf32, #tpu.memory_space<vmem>>, vector<1x2x32xf32>,
    %305 = arith.truncf %301 : vector<2x32xf32> to vector<2x32xbf16>
    %c3_94 = arith.constant 3 : index
    %c0_95 = arith.constant 0 : index
    %c0_96 = arith.constant 0 : index
    %306 = vector.load %arg2[%c3_94, %c0_95, %c0_96] : memref<8x2x128xf32, #tpu.memory_space<vmem>>, vector<1x2x128xf32>
    %307 = vector.shape_cast %306 : vector<1x2x128xf32> to vector<2x128xf32>
    %cst_97 = arith.constant dense<0.000000e+00> : vector<2x128xf32>
    %308 = tpu.matmul %272, %8, %cst_97 {dimension_numbers = #tpu.dot_dimension_numbers<[1], [0], [0], [1], [0, 0, 1, 1], [], []>} : vector<2x32xbf16>, vector<32x128xbf16>, vector<2x128xf32> -> vector<2x128xf32>
    %309 = arith.addf %307, %308 : vector<2x128xf32>
    %310 = vector.extract_strided_slice %309 {offsets = [0, 0], sizes = [2, 32], strides = [1, 1]} : vector<2x128xf32> to vector<2x32xf32>
    %311 = arith.negf %310 : vector<2x32xf32>
    %312 = math.exp %311 : vector<2x32xf32>
    %cst_98 = arith.constant 1.000000e+00 : f32
    %313 = vector.broadcast %cst_98 : f32 to vector<2x32xf32>
    %314 = arith.addf %313, %312 : vector<2x32xf32>
    %315 = arith.divf %313, %314 : vector<2x32xf32>
    %316 = vector.extract_strided_slice %309 {offsets = [0, 32], sizes = [2, 32], strides = [1, 1]} : vector<2x128xf32> to vector<2x32xf32>
    %317 = arith.negf %316 : vector<2x32xf32>
    %318 = math.exp %317 : vector<2x32xf32>
    %cst_99 = arith.constant 1.000000e+00 : f32
    %319 = vector.broadcast %cst_99 : f32 to vector<2x32xf32>
    %320 = arith.addf %319, %318 : vector<2x32xf32>
    %321 = arith.divf %319, %320 : vector<2x32xf32>
    %322 = vector.extract_strided_slice %309 {offsets = [0, 64], sizes = [2, 32], strides = [1, 1]} : vector<2x128xf32> to vector<2x32xf32>
    %323 = math.tanh %322 : vector<2x32xf32>
    %324 = vector.extract_strided_slice %309 {offsets = [0, 96], sizes = [2, 32], strides = [1, 1]} : vector<2x128xf32> to vector<2x32xf32>
    %325 = arith.negf %324 : vector<2x32xf32>
    %326 = math.exp %325 : vector<2x32xf32>
    %cst_100 = arith.constant 1.000000e+00 : f32
    %327 = vector.broadcast %cst_100 : f32 to vector<2x32xf32>
    %328 = arith.addf %327, %326 : vector<2x32xf32>
    %329 = arith.divf %327, %328 : vector<2x32xf32>
    %330 = arith.mulf %321, %266 : vector<2x32xf32>
    %331 = arith.mulf %315, %323 : vector<2x32xf32>
    %332 = arith.addf %330, %331 : vector<2x32xf32>
    %333 = math.tanh %332 : vector<2x32xf32>
    %334 = arith.mulf %329, %333 : vector<2x32xf32>
    %c3_101 = arith.constant 3 : index
    %c0_102 = arith.constant 0 : index
    %c0_103 = arith.constant 0 : index
    %335 = vector.load %arg6[%c3_101, %c0_102, %c0_103] : memref<8x2x32xf32, #tpu.memory_space<vmem>>, vector<1x2x32xf32>
    %336 = vector.shape_cast %335 : vector<1x2x32xf32> to vector<2x32xf32>
    %337 = vector.shape_cast %334 : vector<2x32xf32> to vector<1x2x32xf32>
    tpu.vector_store %arg6[%c3_101, %c0_102, %c0_103], %337 {strides = array<i32>} : memref<8x2x32xf32, #tpu.memory_space<vmem>>, vector<1x2x32xf32>,
    %338 = arith.truncf %334 : vector<2x32xf32> to vector<2x32xbf16>
    %c5_104 = arith.constant 5 : index
    %c0_105 = arith.constant 0 : index
    %c0_106 = arith.constant 0 : index
    %339 = vector.load %arg1[%c5_104, %c0_105, %c0_106] : memref<8x2x128xf32, #tpu.memory_space<vmem>>, vector<1x2x128xf32>
    %340 = vector.shape_cast %339 : vector<1x2x128xf32> to vector<2x128xf32>
    %cst_107 = arith.constant dense<0.000000e+00> : vector<2x128xf32>
    %341 = tpu.matmul %305, %7, %cst_107 {dimension_numbers = #tpu.dot_dimension_numbers<[1], [0], [0], [1], [0, 0, 1, 1], [], []>} : vector<2x32xbf16>, vector<32x128xbf16>, vector<2x128xf32> -> vector<2x128xf32>
    %342 = arith.addf %340, %341 : vector<2x128xf32>
    %343 = vector.extract_strided_slice %342 {offsets = [0, 0], sizes = [2, 32], strides = [1, 1]} : vector<2x128xf32> to vector<2x32xf32>
    %344 = arith.negf %343 : vector<2x32xf32>
    %345 = math.exp %344 : vector<2x32xf32>
    %cst_108 = arith.constant 1.000000e+00 : f32
    %346 = vector.broadcast %cst_108 : f32 to vector<2x32xf32>
    %347 = arith.addf %346, %345 : vector<2x32xf32>
    %348 = arith.divf %346, %347 : vector<2x32xf32>
    %349 = vector.extract_strided_slice %342 {offsets = [0, 32], sizes = [2, 32], strides = [1, 1]} : vector<2x128xf32> to vector<2x32xf32>
    %350 = arith.negf %349 : vector<2x32xf32>
    %351 = math.exp %350 : vector<2x32xf32>
    %cst_109 = arith.constant 1.000000e+00 : f32
    %352 = vector.broadcast %cst_109 : f32 to vector<2x32xf32>
    %353 = arith.addf %352, %351 : vector<2x32xf32>
    %354 = arith.divf %352, %353 : vector<2x32xf32>
    %355 = vector.extract_strided_slice %342 {offsets = [0, 64], sizes = [2, 32], strides = [1, 1]} : vector<2x128xf32> to vector<2x32xf32>
    %356 = math.tanh %355 : vector<2x32xf32>
    %357 = vector.extract_strided_slice %342 {offsets = [0, 96], sizes = [2, 32], strides = [1, 1]} : vector<2x128xf32> to vector<2x32xf32>
    %358 = arith.negf %357 : vector<2x32xf32>
    %359 = math.exp %358 : vector<2x32xf32>
    %cst_110 = arith.constant 1.000000e+00 : f32
    %360 = vector.broadcast %cst_110 : f32 to vector<2x32xf32>
    %361 = arith.addf %360, %359 : vector<2x32xf32>
    %362 = arith.divf %360, %361 : vector<2x32xf32>
    %363 = arith.mulf %354, %299 : vector<2x32xf32>
    %364 = arith.mulf %348, %356 : vector<2x32xf32>
    %365 = arith.addf %363, %364 : vector<2x32xf32>
    %366 = math.tanh %365 : vector<2x32xf32>
    %367 = arith.mulf %362, %366 : vector<2x32xf32>
    %c5_111 = arith.constant 5 : index
    %c0_112 = arith.constant 0 : index
    %c0_113 = arith.constant 0 : index
    %368 = vector.load %arg5[%c5_111, %c0_112, %c0_113] : memref<8x2x32xf32, #tpu.memory_space<vmem>>, vector<1x2x32xf32>
    %369 = vector.shape_cast %368 : vector<1x2x32xf32> to vector<2x32xf32>
    %370 = vector.shape_cast %367 : vector<2x32xf32> to vector<1x2x32xf32>
    tpu.vector_store %arg5[%c5_111, %c0_112, %c0_113], %370 {strides = array<i32>} : memref<8x2x32xf32, #tpu.memory_space<vmem>>, vector<1x2x32xf32>,
    %371 = arith.truncf %367 : vector<2x32xf32> to vector<2x32xbf16>
    %c2_114 = arith.constant 2 : index
    %c0_115 = arith.constant 0 : index
    %c0_116 = arith.constant 0 : index
    %372 = vector.load %arg2[%c2_114, %c0_115, %c0_116] : memref<8x2x128xf32, #tpu.memory_space<vmem>>, vector<1x2x128xf32>
    %373 = vector.shape_cast %372 : vector<1x2x128xf32> to vector<2x128xf32>
    %cst_117 = arith.constant dense<0.000000e+00> : vector<2x128xf32>
    %374 = tpu.matmul %338, %8, %cst_117 {dimension_numbers = #tpu.dot_dimension_numbers<[1], [0], [0], [1], [0, 0, 1, 1], [], []>} : vector<2x32xbf16>, vector<32x128xbf16>, vector<2x128xf32> -> vector<2x128xf32>
    %375 = arith.addf %373, %374 : vector<2x128xf32>
    %376 = vector.extract_strided_slice %375 {offsets = [0, 0], sizes = [2, 32], strides = [1, 1]} : vector<2x128xf32> to vector<2x32xf32>
    %377 = arith.negf %376 : vector<2x32xf32>
    %378 = math.exp %377 : vector<2x32xf32>
    %cst_118 = arith.constant 1.000000e+00 : f32
    %379 = vector.broadcast %cst_118 : f32 to vector<2x32xf32>
    %380 = arith.addf %379, %378 : vector<2x32xf32>
    %381 = arith.divf %379, %380 : vector<2x32xf32>
    %382 = vector.extract_strided_slice %375 {offsets = [0, 32], sizes = [2, 32], strides = [1, 1]} : vector<2x128xf32> to vector<2x32xf32>
    %383 = arith.negf %382 : vector<2x32xf32>
    %384 = math.exp %383 : vector<2x32xf32>
    %cst_119 = arith.constant 1.000000e+00 : f32
    %385 = vector.broadcast %cst_119 : f32 to vector<2x32xf32>
    %386 = arith.addf %385, %384 : vector<2x32xf32>
    %387 = arith.divf %385, %386 : vector<2x32xf32>
    %388 = vector.extract_strided_slice %375 {offsets = [0, 64], sizes = [2, 32], strides = [1, 1]} : vector<2x128xf32> to vector<2x32xf32>
    %389 = math.tanh %388 : vector<2x32xf32>
    %390 = vector.extract_strided_slice %375 {offsets = [0, 96], sizes = [2, 32], strides = [1, 1]} : vector<2x128xf32> to vector<2x32xf32>
    %391 = arith.negf %390 : vector<2x32xf32>
    %392 = math.exp %391 : vector<2x32xf32>
    %cst_120 = arith.constant 1.000000e+00 : f32
    %393 = vector.broadcast %cst_120 : f32 to vector<2x32xf32>
    %394 = arith.addf %393, %392 : vector<2x32xf32>
    %395 = arith.divf %393, %394 : vector<2x32xf32>
    %396 = arith.mulf %387, %332 : vector<2x32xf32>
    %397 = arith.mulf %381, %389 : vector<2x32xf32>
    %398 = arith.addf %396, %397 : vector<2x32xf32>
    %399 = math.tanh %398 : vector<2x32xf32>
    %400 = arith.mulf %395, %399 : vector<2x32xf32>
    %c2_121 = arith.constant 2 : index
    %c0_122 = arith.constant 0 : index
    %c0_123 = arith.constant 0 : index
    %401 = vector.load %arg6[%c2_121, %c0_122, %c0_123] : memref<8x2x32xf32, #tpu.memory_space<vmem>>, vector<1x2x32xf32>
    %402 = vector.shape_cast %401 : vector<1x2x32xf32> to vector<2x32xf32>
    %403 = vector.shape_cast %400 : vector<2x32xf32> to vector<1x2x32xf32>
    tpu.vector_store %arg6[%c2_121, %c0_122, %c0_123], %403 {strides = array<i32>} : memref<8x2x32xf32, #tpu.memory_space<vmem>>, vector<1x2x32xf32>,
    %404 = arith.truncf %400 : vector<2x32xf32> to vector<2x32xbf16>
    %c6_124 = arith.constant 6 : index
    %c0_125 = arith.constant 0 : index
    %c0_126 = arith.constant 0 : index
    %405 = vector.load %arg1[%c6_124, %c0_125, %c0_126] : memref<8x2x128xf32, #tpu.memory_space<vmem>>, vector<1x2x128xf32>
    %406 = vector.shape_cast %405 : vector<1x2x128xf32> to vector<2x128xf32>
    %cst_127 = arith.constant dense<0.000000e+00> : vector<2x128xf32>
    %407 = tpu.matmul %371, %7, %cst_127 {dimension_numbers = #tpu.dot_dimension_numbers<[1], [0], [0], [1], [0, 0, 1, 1], [], []>} : vector<2x32xbf16>, vector<32x128xbf16>, vector<2x128xf32> -> vector<2x128xf32>
    %408 = arith.addf %406, %407 : vector<2x128xf32>
    %409 = vector.extract_strided_slice %408 {offsets = [0, 0], sizes = [2, 32], strides = [1, 1]} : vector<2x128xf32> to vector<2x32xf32>
    %410 = arith.negf %409 : vector<2x32xf32>
    %411 = math.exp %410 : vector<2x32xf32>
    %cst_128 = arith.constant 1.000000e+00 : f32
    %412 = vector.broadcast %cst_128 : f32 to vector<2x32xf32>
    %413 = arith.addf %412, %411 : vector<2x32xf32>
    %414 = arith.divf %412, %413 : vector<2x32xf32>
    %415 = vector.extract_strided_slice %408 {offsets = [0, 32], sizes = [2, 32], strides = [1, 1]} : vector<2x128xf32> to vector<2x32xf32>
    %416 = arith.negf %415 : vector<2x32xf32>
    %417 = math.exp %416 : vector<2x32xf32>
    %cst_129 = arith.constant 1.000000e+00 : f32
    %418 = vector.broadcast %cst_129 : f32 to vector<2x32xf32>
    %419 = arith.addf %418, %417 : vector<2x32xf32>
    %420 = arith.divf %418, %419 : vector<2x32xf32>
    %421 = vector.extract_strided_slice %408 {offsets = [0, 64], sizes = [2, 32], strides = [1, 1]} : vector<2x128xf32> to vector<2x32xf32>
    %422 = math.tanh %421 : vector<2x32xf32>
    %423 = vector.extract_strided_slice %408 {offsets = [0, 96], sizes = [2, 32], strides = [1, 1]} : vector<2x128xf32> to vector<2x32xf32>
    %424 = arith.negf %423 : vector<2x32xf32>
    %425 = math.exp %424 : vector<2x32xf32>
    %cst_130 = arith.constant 1.000000e+00 : f32
    %426 = vector.broadcast %cst_130 : f32 to vector<2x32xf32>
    %427 = arith.addf %426, %425 : vector<2x32xf32>
    %428 = arith.divf %426, %427 : vector<2x32xf32>
    %429 = arith.mulf %420, %365 : vector<2x32xf32>
    %430 = arith.mulf %414, %422 : vector<2x32xf32>
    %431 = arith.addf %429, %430 : vector<2x32xf32>
    %432 = math.tanh %431 : vector<2x32xf32>
    %433 = arith.mulf %428, %432 : vector<2x32xf32>
    %c6_131 = arith.constant 6 : index
    %c0_132 = arith.constant 0 : index
    %c0_133 = arith.constant 0 : index
    %434 = vector.load %arg5[%c6_131, %c0_132, %c0_133] : memref<8x2x32xf32, #tpu.memory_space<vmem>>, vector<1x2x32xf32>
    %435 = vector.shape_cast %434 : vector<1x2x32xf32> to vector<2x32xf32>
    %436 = vector.shape_cast %433 : vector<2x32xf32> to vector<1x2x32xf32>
    tpu.vector_store %arg5[%c6_131, %c0_132, %c0_133], %436 {strides = array<i32>} : memref<8x2x32xf32, #tpu.memory_space<vmem>>, vector<1x2x32xf32>,
    %437 = arith.truncf %433 : vector<2x32xf32> to vector<2x32xbf16>
    %c1_134 = arith.constant 1 : index
    %c0_135 = arith.constant 0 : index
    %c0_136 = arith.constant 0 : index
    %438 = vector.load %arg2[%c1_134, %c0_135, %c0_136] : memref<8x2x128xf32, #tpu.memory_space<vmem>>, vector<1x2x128xf32>
    %439 = vector.shape_cast %438 : vector<1x2x128xf32> to vector<2x128xf32>
    %cst_137 = arith.constant dense<0.000000e+00> : vector<2x128xf32>
    %440 = tpu.matmul %404, %8, %cst_137 {dimension_numbers = #tpu.dot_dimension_numbers<[1], [0], [0], [1], [0, 0, 1, 1], [], []>} : vector<2x32xbf16>, vector<32x128xbf16>, vector<2x128xf32> -> vector<2x128xf32>
    %441 = arith.addf %439, %440 : vector<2x128xf32>
    %442 = vector.extract_strided_slice %441 {offsets = [0, 0], sizes = [2, 32], strides = [1, 1]} : vector<2x128xf32> to vector<2x32xf32>
    %443 = arith.negf %442 : vector<2x32xf32>
    %444 = math.exp %443 : vector<2x32xf32>
    %cst_138 = arith.constant 1.000000e+00 : f32
    %445 = vector.broadcast %cst_138 : f32 to vector<2x32xf32>
    %446 = arith.addf %445, %444 : vector<2x32xf32>
    %447 = arith.divf %445, %446 : vector<2x32xf32>
    %448 = vector.extract_strided_slice %441 {offsets = [0, 32], sizes = [2, 32], strides = [1, 1]} : vector<2x128xf32> to vector<2x32xf32>
    %449 = arith.negf %448 : vector<2x32xf32>
    %450 = math.exp %449 : vector<2x32xf32>
    %cst_139 = arith.constant 1.000000e+00 : f32
    %451 = vector.broadcast %cst_139 : f32 to vector<2x32xf32>
    %452 = arith.addf %451, %450 : vector<2x32xf32>
    %453 = arith.divf %451, %452 : vector<2x32xf32>
    %454 = vector.extract_strided_slice %441 {offsets = [0, 64], sizes = [2, 32], strides = [1, 1]} : vector<2x128xf32> to vector<2x32xf32>
    %455 = math.tanh %454 : vector<2x32xf32>
    %456 = vector.extract_strided_slice %441 {offsets = [0, 96], sizes = [2, 32], strides = [1, 1]} : vector<2x128xf32> to vector<2x32xf32>
    %457 = arith.negf %456 : vector<2x32xf32>
    %458 = math.exp %457 : vector<2x32xf32>
    %cst_140 = arith.constant 1.000000e+00 : f32
    %459 = vector.broadcast %cst_140 : f32 to vector<2x32xf32>
    %460 = arith.addf %459, %458 : vector<2x32xf32>
    %461 = arith.divf %459, %460 : vector<2x32xf32>
    %462 = arith.mulf %453, %398 : vector<2x32xf32>
    %463 = arith.mulf %447, %455 : vector<2x32xf32>
    %464 = arith.addf %462, %463 : vector<2x32xf32>
    %465 = math.tanh %464 : vector<2x32xf32>
    %466 = arith.mulf %461, %465 : vector<2x32xf32>
    %c1_141 = arith.constant 1 : index
    %c0_142 = arith.constant 0 : index
    %c0_143 = arith.constant 0 : index
    %467 = vector.load %arg6[%c1_141, %c0_142, %c0_143] : memref<8x2x32xf32, #tpu.memory_space<vmem>>, vector<1x2x32xf32>
    %468 = vector.shape_cast %467 : vector<1x2x32xf32> to vector<2x32xf32>
    %469 = vector.shape_cast %466 : vector<2x32xf32> to vector<1x2x32xf32>
    tpu.vector_store %arg6[%c1_141, %c0_142, %c0_143], %469 {strides = array<i32>} : memref<8x2x32xf32, #tpu.memory_space<vmem>>, vector<1x2x32xf32>,
    %470 = arith.truncf %466 : vector<2x32xf32> to vector<2x32xbf16>
    %c7_144 = arith.constant 7 : index
    %c0_145 = arith.constant 0 : index
    %c0_146 = arith.constant 0 : index
    %471 = vector.load %arg1[%c7_144, %c0_145, %c0_146] : memref<8x2x128xf32, #tpu.memory_space<vmem>>, vector<1x2x128xf32>
    %472 = vector.shape_cast %471 : vector<1x2x128xf32> to vector<2x128xf32>
    %cst_147 = arith.constant dense<0.000000e+00> : vector<2x128xf32>
    %473 = tpu.matmul %437, %7, %cst_147 {dimension_numbers = #tpu.dot_dimension_numbers<[1], [0], [0], [1], [0, 0, 1, 1], [], []>} : vector<2x32xbf16>, vector<32x128xbf16>, vector<2x128xf32> -> vector<2x128xf32>
    %474 = arith.addf %472, %473 : vector<2x128xf32>
    %475 = vector.extract_strided_slice %474 {offsets = [0, 0], sizes = [2, 32], strides = [1, 1]} : vector<2x128xf32> to vector<2x32xf32>
    %476 = arith.negf %475 : vector<2x32xf32>
    %477 = math.exp %476 : vector<2x32xf32>
    %cst_148 = arith.constant 1.000000e+00 : f32
    %478 = vector.broadcast %cst_148 : f32 to vector<2x32xf32>
    %479 = arith.addf %478, %477 : vector<2x32xf32>
    %480 = arith.divf %478, %479 : vector<2x32xf32>
    %481 = vector.extract_strided_slice %474 {offsets = [0, 32], sizes = [2, 32], strides = [1, 1]} : vector<2x128xf32> to vector<2x32xf32>
    %482 = arith.negf %481 : vector<2x32xf32>
    %483 = math.exp %482 : vector<2x32xf32>
    %cst_149 = arith.constant 1.000000e+00 : f32
    %484 = vector.broadcast %cst_149 : f32 to vector<2x32xf32>
    %485 = arith.addf %484, %483 : vector<2x32xf32>
    %486 = arith.divf %484, %485 : vector<2x32xf32>
    %487 = vector.extract_strided_slice %474 {offsets = [0, 64], sizes = [2, 32], strides = [1, 1]} : vector<2x128xf32> to vector<2x32xf32>
    %488 = math.tanh %487 : vector<2x32xf32>
    %489 = vector.extract_strided_slice %474 {offsets = [0, 96], sizes = [2, 32], strides = [1, 1]} : vector<2x128xf32> to vector<2x32xf32>
    %490 = arith.negf %489 : vector<2x32xf32>
    %491 = math.exp %490 : vector<2x32xf32>
    %cst_150 = arith.constant 1.000000e+00 : f32
    %492 = vector.broadcast %cst_150 : f32 to vector<2x32xf32>
    %493 = arith.addf %492, %491 : vector<2x32xf32>
    %494 = arith.divf %492, %493 : vector<2x32xf32>
    %495 = arith.mulf %486, %431 : vector<2x32xf32>
    %496 = arith.mulf %480, %488 : vector<2x32xf32>
    %497 = arith.addf %495, %496 : vector<2x32xf32>
    %498 = math.tanh %497 : vector<2x32xf32>
    %499 = arith.mulf %494, %498 : vector<2x32xf32>
    %c7_151 = arith.constant 7 : index
    %c0_152 = arith.constant 0 : index
    %c0_153 = arith.constant 0 : index
    %500 = vector.load %arg5[%c7_151, %c0_152, %c0_153] : memref<8x2x32xf32, #tpu.memory_space<vmem>>, vector<1x2x32xf32>
    %501 = vector.shape_cast %500 : vector<1x2x32xf32> to vector<2x32xf32>
    %502 = vector.shape_cast %499 : vector<2x32xf32> to vector<1x2x32xf32>
    tpu.vector_store %arg5[%c7_151, %c0_152, %c0_153], %502 {strides = array<i32>} : memref<8x2x32xf32, #tpu.memory_space<vmem>>, vector<1x2x32xf32>,
    %503 = arith.truncf %499 : vector<2x32xf32> to vector<2x32xbf16>
    %c0_154 = arith.constant 0 : index
    %c0_155 = arith.constant 0 : index
    %c0_156 = arith.constant 0 : index
    %504 = vector.load %arg2[%c0_154, %c0_155, %c0_156] : memref<8x2x128xf32, #tpu.memory_space<vmem>>, vector<1x2x128xf32>
    %505 = vector.shape_cast %504 : vector<1x2x128xf32> to vector<2x128xf32>
    %cst_157 = arith.constant dense<0.000000e+00> : vector<2x128xf32>
    %506 = tpu.matmul %470, %8, %cst_157 {dimension_numbers = #tpu.dot_dimension_numbers<[1], [0], [0], [1], [0, 0, 1, 1], [], []>} : vector<2x32xbf16>, vector<32x128xbf16>, vector<2x128xf32> -> vector<2x128xf32>
    %507 = arith.addf %505, %506 : vector<2x128xf32>
    %508 = vector.extract_strided_slice %507 {offsets = [0, 0], sizes = [2, 32], strides = [1, 1]} : vector<2x128xf32> to vector<2x32xf32>
    %509 = arith.negf %508 : vector<2x32xf32>
    %510 = math.exp %509 : vector<2x32xf32>
    %cst_158 = arith.constant 1.000000e+00 : f32
    %511 = vector.broadcast %cst_158 : f32 to vector<2x32xf32>
    %512 = arith.addf %511, %510 : vector<2x32xf32>
    %513 = arith.divf %511, %512 : vector<2x32xf32>
    %514 = vector.extract_strided_slice %507 {offsets = [0, 32], sizes = [2, 32], strides = [1, 1]} : vector<2x128xf32> to vector<2x32xf32>
    %515 = arith.negf %514 : vector<2x32xf32>
    %516 = math.exp %515 : vector<2x32xf32>
    %cst_159 = arith.constant 1.000000e+00 : f32
    %517 = vector.broadcast %cst_159 : f32 to vector<2x32xf32>
    %518 = arith.addf %517, %516 : vector<2x32xf32>
    %519 = arith.divf %517, %518 : vector<2x32xf32>
    %520 = vector.extract_strided_slice %507 {offsets = [0, 64], sizes = [2, 32], strides = [1, 1]} : vector<2x128xf32> to vector<2x32xf32>
    %521 = math.tanh %520 : vector<2x32xf32>
    %522 = vector.extract_strided_slice %507 {offsets = [0, 96], sizes = [2, 32], strides = [1, 1]} : vector<2x128xf32> to vector<2x32xf32>
    %523 = arith.negf %522 : vector<2x32xf32>
    %524 = math.exp %523 : vector<2x32xf32>
    %cst_160 = arith.constant 1.000000e+00 : f32
    %525 = vector.broadcast %cst_160 : f32 to vector<2x32xf32>
    %526 = arith.addf %525, %524 : vector<2x32xf32>
    %527 = arith.divf %525, %526 : vector<2x32xf32>
    %528 = arith.mulf %519, %464 : vector<2x32xf32>
    %529 = arith.mulf %513, %521 : vector<2x32xf32>
    %530 = arith.addf %528, %529 : vector<2x32xf32>
    %531 = math.tanh %530 : vector<2x32xf32>
    %532 = arith.mulf %527, %531 : vector<2x32xf32>
    %c0_161 = arith.constant 0 : index
    %c0_162 = arith.constant 0 : index
    %c0_163 = arith.constant 0 : index
    %533 = vector.load %arg6[%c0_161, %c0_162, %c0_163] : memref<8x2x32xf32, #tpu.memory_space<vmem>>, vector<1x2x32xf32>
    %534 = vector.shape_cast %533 : vector<1x2x32xf32> to vector<2x32xf32>
    %535 = vector.shape_cast %532 : vector<2x32xf32> to vector<1x2x32xf32>
    tpu.vector_store %arg6[%c0_161, %c0_162, %c0_163], %535 {strides = array<i32>} : memref<8x2x32xf32, #tpu.memory_space<vmem>>, vector<1x2x32xf32>,
    %536 = arith.truncf %532 : vector<2x32xf32> to vector<2x32xbf16>
    %c0_164 = arith.constant 0 : index
    %c0_165 = arith.constant 0 : index
    %537 = vector.load %arg7[%c0_164, %c0_165] : memref<2x32xbf16, #tpu.memory_space<vmem>>, vector<2x32xbf16>
    tpu.vector_store %arg7[%c0_164, %c0_165], %503 {strides = array<i32>} : memref<2x32xbf16, #tpu.memory_space<vmem>>, vector<2x32xbf16>,
    %c0_166 = arith.constant 0 : index
    %c0_167 = arith.constant 0 : index
    %538 = vector.load %arg8[%c0_166, %c0_167] : memref<2x32xf32, #tpu.memory_space<vmem>>, vector<2x32xf32>
    tpu.vector_store %arg8[%c0_166, %c0_167], %497 {strides = array<i32>} : memref<2x32xf32, #tpu.memory_space<vmem>>, vector<2x32xf32>,
    %c0_168 = arith.constant 0 : index
    %c0_169 = arith.constant 0 : index
    %539 = vector.load %arg9[%c0_168, %c0_169] : memref<2x32xbf16, #tpu.memory_space<vmem>>, vector<2x32xbf16>
    tpu.vector_store %arg9[%c0_168, %c0_169], %536 {strides = array<i32>} : memref<2x32xbf16, #tpu.memory_space<vmem>>, vector<2x32xbf16>,
    %c0_170 = arith.constant 0 : index
    %c0_171 = arith.constant 0 : index
    %540 = vector.load %arg10[%c0_170, %c0_171] : memref<2x32xf32, #tpu.memory_space<vmem>>, vector<2x32xf32>
    tpu.vector_store %arg10[%c0_170, %c0_171], %530 {strides = array<i32>} : memref<2x32xf32, #tpu.memory_space<vmem>>, vector<2x32xf32>,
    return
  }
  func.func @transform_0(%arg0: i32) -> (i32, i32, i32) {
    %c0_i32 = arith.constant 0 : i32
    %c0_i32_0 = arith.constant 0 : i32
    %c0_i32_1 = arith.constant 0 : i32
    return %arg0, %c0_i32, %c0_i32_0 : i32, i32, i32
  }
  func.func @transform_1(%arg0: i32) -> (i32, i32, i32) {
    %c0_i32 = arith.constant 0 : i32
    %0 = arith.subi %c0_i32, %arg0 : i32
    %c0_i32_0 = arith.constant 0 : i32
    %c0_i32_1 = arith.constant 0 : i32
    %c0_i32_2 = arith.constant 0 : i32
    return %0, %c0_i32_0, %c0_i32_1 : i32, i32, i32
  }
  func.func @transform_2(%arg0: i32) -> (i32, i32) {
    %c0_i32 = arith.constant 0 : i32
    %c0_i32_0 = arith.constant 0 : i32
    %c0_i32_1 = arith.constant 0 : i32
    return %c0_i32, %c0_i32_0 : i32, i32
  }
  func.func @transform_3(%arg0: i32) -> (i32, i32) {
    %c0_i32 = arith.constant 0 : i32
    %c0_i32_0 = arith.constant 0 : i32
    %c0_i32_1 = arith.constant 0 : i32
    return %c0_i32, %c0_i32_0 : i32, i32
  }
  func.func @transform_4(%arg0: i32) -> (i32, i32, i32) {
    %c0_i32 = arith.constant 0 : i32
    %c0_i32_0 = arith.constant 0 : i32
    %c0_i32_1 = arith.constant 0 : i32
    return %arg0, %c0_i32, %c0_i32_0 : i32, i32, i32
  }
  func.func @transform_5(%arg0: i32) -> (i32, i32, i32) {
    %c0_i32 = arith.constant 0 : i32
    %0 = arith.subi %c0_i32, %arg0 : i32
    %c0_i32_0 = arith.constant 0 : i32
    %c0_i32_1 = arith.constant 0 : i32
    %c0_i32_2 = arith.constant 0 : i32
    return %0, %c0_i32_0, %c0_i32_1 : i32, i32, i32
  }
}

module attributes {stable_mosaic.version = 11 : i64} {
  func.func @_emb_hwy_kernel(%arg0: i32, %arg1: memref<24x64xbf16, #tpu.memory_space<vmem>>, %arg2: memref<64x32xbf16, #tpu.memory_space<vmem>>, %arg3: memref<32x32xbf16, #tpu.memory_space<vmem>>, %arg4: memref<1x32xf32, #tpu.memory_space<vmem>>, %arg5: memref<32x32xbf16, #tpu.memory_space<vmem>>, %arg6: memref<1x32xf32, #tpu.memory_space<vmem>>, %arg7: memref<32x32xbf16, #tpu.memory_space<vmem>>, %arg8: memref<1x32xf32, #tpu.memory_space<vmem>>, %arg9: memref<32x32xbf16, #tpu.memory_space<vmem>>, %arg10: memref<1x32xf32, #tpu.memory_space<vmem>>, %arg11: memref<24x32xf32, #tpu.memory_space<vmem>>) attributes {dimension_semantics = [#tpu.dimension_semantics<parallel>], iteration_bounds = array<i64: 1>, scalar_prefetch = 0 : i64, scratch_operands = 0 : i64, tpu.core_type = #tpu.core_type<tc>, window_params = [{transform_indices = @transform_0, window_bounds = array<i64: 24, 64>}, {pipeline_mode = #tpu.pipeline_mode<synchronous>, transform_indices = @transform_1, window_bounds = array<i64: 64, 32>}, {pipeline_mode = #tpu.pipeline_mode<synchronous>, transform_indices = @transform_2, window_bounds = array<i64: 32, 32>}, {pipeline_mode = #tpu.pipeline_mode<synchronous>, transform_indices = @transform_3, window_bounds = array<i64: 1, 32>}, {pipeline_mode = #tpu.pipeline_mode<synchronous>, transform_indices = @transform_4, window_bounds = array<i64: 32, 32>}, {pipeline_mode = #tpu.pipeline_mode<synchronous>, transform_indices = @transform_5, window_bounds = array<i64: 1, 32>}, {pipeline_mode = #tpu.pipeline_mode<synchronous>, transform_indices = @transform_6, window_bounds = array<i64: 32, 32>}, {pipeline_mode = #tpu.pipeline_mode<synchronous>, transform_indices = @transform_7, window_bounds = array<i64: 1, 32>}, {pipeline_mode = #tpu.pipeline_mode<synchronous>, transform_indices = @transform_8, window_bounds = array<i64: 32, 32>}, {pipeline_mode = #tpu.pipeline_mode<synchronous>, transform_indices = @transform_9, window_bounds = array<i64: 1, 32>}, {transform_indices = @transform_10, window_bounds = array<i64: 24, 32>}]} {
    %c0 = arith.constant 0 : index
    %c0_0 = arith.constant 0 : index
    %0 = vector.load %arg1[%c0, %c0_0] : memref<24x64xbf16, #tpu.memory_space<vmem>>, vector<24x64xbf16>
    %c0_1 = arith.constant 0 : index
    %c0_2 = arith.constant 0 : index
    %1 = vector.load %arg2[%c0_1, %c0_2] : memref<64x32xbf16, #tpu.memory_space<vmem>>, vector<64x32xbf16>
    %cst = arith.constant dense<0.000000e+00> : vector<24x32xf32>
    %2 = tpu.matmul %0, %1, %cst {dimension_numbers = #tpu.dot_dimension_numbers<[1], [0], [0], [1], [0, 0, 1, 1], [], []>} : vector<24x64xbf16>, vector<64x32xbf16>, vector<24x32xf32> -> vector<24x32xf32>
    %3 = arith.truncf %2 : vector<24x32xf32> to vector<24x32xbf16>
    %c0_3 = arith.constant 0 : index
    %c0_4 = arith.constant 0 : index
    %4 = vector.load %arg3[%c0_3, %c0_4] : memref<32x32xbf16, #tpu.memory_space<vmem>>, vector<32x32xbf16>
    %cst_5 = arith.constant dense<0.000000e+00> : vector<24x32xf32>
    %5 = tpu.matmul %3, %4, %cst_5 {dimension_numbers = #tpu.dot_dimension_numbers<[1], [0], [0], [1], [0, 0, 1, 1], [], []>} : vector<24x32xbf16>, vector<32x32xbf16>, vector<24x32xf32> -> vector<24x32xf32>
    %c0_6 = arith.constant 0 : index
    %c0_7 = arith.constant 0 : index
    %6 = vector.load %arg4[%c0_6, %c0_7] : memref<1x32xf32, #tpu.memory_space<vmem>>, vector<1x32xf32>
    %7 = vector.broadcast %6 : vector<1x32xf32> to vector<24x32xf32>
    %8 = arith.addf %5, %7 : vector<24x32xf32>
    %cst_8 = arith.constant 0.000000e+00 : f32
    %9 = vector.broadcast %cst_8 : f32 to vector<24x32xf32>
    %10 = arith.maximumf %8, %9 : vector<24x32xf32>
    %c0_9 = arith.constant 0 : index
    %c0_10 = arith.constant 0 : index
    %11 = vector.load %arg5[%c0_9, %c0_10] : memref<32x32xbf16, #tpu.memory_space<vmem>>, vector<32x32xbf16>
    %cst_11 = arith.constant dense<0.000000e+00> : vector<24x32xf32>
    %12 = tpu.matmul %3, %11, %cst_11 {dimension_numbers = #tpu.dot_dimension_numbers<[1], [0], [0], [1], [0, 0, 1, 1], [], []>} : vector<24x32xbf16>, vector<32x32xbf16>, vector<24x32xf32> -> vector<24x32xf32>
    %c0_12 = arith.constant 0 : index
    %c0_13 = arith.constant 0 : index
    %13 = vector.load %arg6[%c0_12, %c0_13] : memref<1x32xf32, #tpu.memory_space<vmem>>, vector<1x32xf32>
    %14 = vector.broadcast %13 : vector<1x32xf32> to vector<24x32xf32>
    %15 = arith.addf %12, %14 : vector<24x32xf32>
    %16 = arith.negf %15 : vector<24x32xf32>
    %17 = math.exp %16 : vector<24x32xf32>
    %cst_14 = arith.constant 1.000000e+00 : f32
    %18 = vector.broadcast %cst_14 : f32 to vector<24x32xf32>
    %19 = arith.addf %18, %17 : vector<24x32xf32>
    %20 = arith.divf %18, %19 : vector<24x32xf32>
    %21 = arith.mulf %20, %10 : vector<24x32xf32>
    %cst_15 = arith.constant 1.000000e+00 : f32
    %22 = vector.broadcast %cst_15 : f32 to vector<24x32xf32>
    %23 = arith.subf %22, %20 : vector<24x32xf32>
    %24 = arith.mulf %23, %2 : vector<24x32xf32>
    %25 = arith.addf %21, %24 : vector<24x32xf32>
    %26 = arith.truncf %25 : vector<24x32xf32> to vector<24x32xbf16>
    %c0_16 = arith.constant 0 : index
    %c0_17 = arith.constant 0 : index
    %27 = vector.load %arg7[%c0_16, %c0_17] : memref<32x32xbf16, #tpu.memory_space<vmem>>, vector<32x32xbf16>
    %cst_18 = arith.constant dense<0.000000e+00> : vector<24x32xf32>
    %28 = tpu.matmul %26, %27, %cst_18 {dimension_numbers = #tpu.dot_dimension_numbers<[1], [0], [0], [1], [0, 0, 1, 1], [], []>} : vector<24x32xbf16>, vector<32x32xbf16>, vector<24x32xf32> -> vector<24x32xf32>
    %c0_19 = arith.constant 0 : index
    %c0_20 = arith.constant 0 : index
    %29 = vector.load %arg8[%c0_19, %c0_20] : memref<1x32xf32, #tpu.memory_space<vmem>>, vector<1x32xf32>
    %30 = vector.broadcast %29 : vector<1x32xf32> to vector<24x32xf32>
    %31 = arith.addf %28, %30 : vector<24x32xf32>
    %cst_21 = arith.constant 0.000000e+00 : f32
    %32 = vector.broadcast %cst_21 : f32 to vector<24x32xf32>
    %33 = arith.maximumf %31, %32 : vector<24x32xf32>
    %c0_22 = arith.constant 0 : index
    %c0_23 = arith.constant 0 : index
    %34 = vector.load %arg9[%c0_22, %c0_23] : memref<32x32xbf16, #tpu.memory_space<vmem>>, vector<32x32xbf16>
    %cst_24 = arith.constant dense<0.000000e+00> : vector<24x32xf32>
    %35 = tpu.matmul %26, %34, %cst_24 {dimension_numbers = #tpu.dot_dimension_numbers<[1], [0], [0], [1], [0, 0, 1, 1], [], []>} : vector<24x32xbf16>, vector<32x32xbf16>, vector<24x32xf32> -> vector<24x32xf32>
    %c0_25 = arith.constant 0 : index
    %c0_26 = arith.constant 0 : index
    %36 = vector.load %arg10[%c0_25, %c0_26] : memref<1x32xf32, #tpu.memory_space<vmem>>, vector<1x32xf32>
    %37 = vector.broadcast %36 : vector<1x32xf32> to vector<24x32xf32>
    %38 = arith.addf %35, %37 : vector<24x32xf32>
    %39 = arith.negf %38 : vector<24x32xf32>
    %40 = math.exp %39 : vector<24x32xf32>
    %cst_27 = arith.constant 1.000000e+00 : f32
    %41 = vector.broadcast %cst_27 : f32 to vector<24x32xf32>
    %42 = arith.addf %41, %40 : vector<24x32xf32>
    %43 = arith.divf %41, %42 : vector<24x32xf32>
    %44 = arith.mulf %43, %33 : vector<24x32xf32>
    %cst_28 = arith.constant 1.000000e+00 : f32
    %45 = vector.broadcast %cst_28 : f32 to vector<24x32xf32>
    %46 = arith.subf %45, %43 : vector<24x32xf32>
    %47 = arith.mulf %46, %25 : vector<24x32xf32>
    %48 = arith.addf %44, %47 : vector<24x32xf32>
    %c0_29 = arith.constant 0 : index
    %c0_30 = arith.constant 0 : index
    %49 = vector.load %arg11[%c0_29, %c0_30] : memref<24x32xf32, #tpu.memory_space<vmem>>, vector<24x32xf32>
    tpu.vector_store %arg11[%c0_29, %c0_30], %48 {strides = array<i32>} : memref<24x32xf32, #tpu.memory_space<vmem>>, vector<24x32xf32>,
    return
  }
  func.func @transform_0(%arg0: i32) -> (i32, i32) {
    %c0_i32 = arith.constant 0 : i32
    %c0_i32_0 = arith.constant 0 : i32
    return %arg0, %c0_i32 : i32, i32
  }
  func.func @transform_1(%arg0: i32) -> (i32, i32) {
    %c0_i32 = arith.constant 0 : i32
    %c0_i32_0 = arith.constant 0 : i32
    %c0_i32_1 = arith.constant 0 : i32
    return %c0_i32, %c0_i32_0 : i32, i32
  }
  func.func @transform_2(%arg0: i32) -> (i32, i32) {
    %c0_i32 = arith.constant 0 : i32
    %c0_i32_0 = arith.constant 0 : i32
    %c0_i32_1 = arith.constant 0 : i32
    return %c0_i32, %c0_i32_0 : i32, i32
  }
  func.func @transform_3(%arg0: i32) -> (i32, i32) {
    %c0_i32 = arith.constant 0 : i32
    %c0_i32_0 = arith.constant 0 : i32
    %c0_i32_1 = arith.constant 0 : i32
    return %c0_i32, %c0_i32_0 : i32, i32
  }
  func.func @transform_4(%arg0: i32) -> (i32, i32) {
    %c0_i32 = arith.constant 0 : i32
    %c0_i32_0 = arith.constant 0 : i32
    %c0_i32_1 = arith.constant 0 : i32
    return %c0_i32, %c0_i32_0 : i32, i32
  }
  func.func @transform_5(%arg0: i32) -> (i32, i32) {
    %c0_i32 = arith.constant 0 : i32
    %c0_i32_0 = arith.constant 0 : i32
    %c0_i32_1 = arith.constant 0 : i32
    return %c0_i32, %c0_i32_0 : i32, i32
  }
  func.func @transform_6(%arg0: i32) -> (i32, i32) {
    %c0_i32 = arith.constant 0 : i32
    %c0_i32_0 = arith.constant 0 : i32
    %c0_i32_1 = arith.constant 0 : i32
    return %c0_i32, %c0_i32_0 : i32, i32
  }
  func.func @transform_7(%arg0: i32) -> (i32, i32) {
    %c0_i32 = arith.constant 0 : i32
    %c0_i32_0 = arith.constant 0 : i32
    %c0_i32_1 = arith.constant 0 : i32
    return %c0_i32, %c0_i32_0 : i32, i32
  }
  func.func @transform_8(%arg0: i32) -> (i32, i32) {
    %c0_i32 = arith.constant 0 : i32
    %c0_i32_0 = arith.constant 0 : i32
    %c0_i32_1 = arith.constant 0 : i32
    return %c0_i32, %c0_i32_0 : i32, i32
  }
  func.func @transform_9(%arg0: i32) -> (i32, i32) {
    %c0_i32 = arith.constant 0 : i32
    %c0_i32_0 = arith.constant 0 : i32
    %c0_i32_1 = arith.constant 0 : i32
    return %c0_i32, %c0_i32_0 : i32, i32
  }
  func.func @transform_10(%arg0: i32) -> (i32, i32) {
    %c0_i32 = arith.constant 0 : i32
    %c0_i32_0 = arith.constant 0 : i32
    return %arg0, %c0_i32 : i32, i32
  }
}

module attributes {stable_mosaic.version = 11 : i64} {
  func.func @_linear_kernel(%arg0: i32, %arg1: memref<24x34xbf16, #tpu.memory_space<vmem>>, %arg2: memref<34x256xbf16, #tpu.memory_space<vmem>>, %arg3: memref<1x256xf32, #tpu.memory_space<vmem>>, %arg4: memref<24x256xf32, #tpu.memory_space<vmem>>) attributes {dimension_semantics = [#tpu.dimension_semantics<parallel>], iteration_bounds = array<i64: 1>, scalar_prefetch = 0 : i64, scratch_operands = 0 : i64, tpu.core_type = #tpu.core_type<tc>, window_params = [{transform_indices = @transform_0, window_bounds = array<i64: 24, 34>}, {pipeline_mode = #tpu.pipeline_mode<synchronous>, transform_indices = @transform_1, window_bounds = array<i64: 34, 256>}, {pipeline_mode = #tpu.pipeline_mode<synchronous>, transform_indices = @transform_2, window_bounds = array<i64: 1, 256>}, {transform_indices = @transform_3, window_bounds = array<i64: 24, 256>}]} {
    %c0 = arith.constant 0 : index
    %c0_0 = arith.constant 0 : index
    %0 = vector.load %arg1[%c0, %c0_0] : memref<24x34xbf16, #tpu.memory_space<vmem>>, vector<24x34xbf16>
    %c0_1 = arith.constant 0 : index
    %c0_2 = arith.constant 0 : index
    %1 = vector.load %arg2[%c0_1, %c0_2] : memref<34x256xbf16, #tpu.memory_space<vmem>>, vector<34x256xbf16>
    %cst = arith.constant dense<0.000000e+00> : vector<24x256xf32>
    %2 = tpu.matmul %0, %1, %cst {dimension_numbers = #tpu.dot_dimension_numbers<[1], [0], [0], [1], [0, 0, 1, 1], [], []>} : vector<24x34xbf16>, vector<34x256xbf16>, vector<24x256xf32> -> vector<24x256xf32>
    %c0_3 = arith.constant 0 : index
    %c0_4 = arith.constant 0 : index
    %3 = vector.load %arg3[%c0_3, %c0_4] : memref<1x256xf32, #tpu.memory_space<vmem>>, vector<1x256xf32>
    %4 = vector.broadcast %3 : vector<1x256xf32> to vector<24x256xf32>
    %5 = arith.addf %2, %4 : vector<24x256xf32>
    %c0_5 = arith.constant 0 : index
    %c0_6 = arith.constant 0 : index
    %6 = vector.load %arg4[%c0_5, %c0_6] : memref<24x256xf32, #tpu.memory_space<vmem>>, vector<24x256xf32>
    tpu.vector_store %arg4[%c0_5, %c0_6], %5 {strides = array<i32>} : memref<24x256xf32, #tpu.memory_space<vmem>>, vector<24x256xf32>,
    return
  }
  func.func @transform_0(%arg0: i32) -> (i32, i32) {
    %c0_i32 = arith.constant 0 : i32
    %c0_i32_0 = arith.constant 0 : i32
    return %arg0, %c0_i32 : i32, i32
  }
  func.func @transform_1(%arg0: i32) -> (i32, i32) {
    %c0_i32 = arith.constant 0 : i32
    %c0_i32_0 = arith.constant 0 : i32
    %c0_i32_1 = arith.constant 0 : i32
    return %c0_i32, %c0_i32_0 : i32, i32
  }
  func.func @transform_2(%arg0: i32) -> (i32, i32) {
    %c0_i32 = arith.constant 0 : i32
    %c0_i32_0 = arith.constant 0 : i32
    %c0_i32_1 = arith.constant 0 : i32
    return %c0_i32, %c0_i32_0 : i32, i32
  }
  func.func @transform_3(%arg0: i32) -> (i32, i32) {
    %c0_i32 = arith.constant 0 : i32
    %c0_i32_0 = arith.constant 0 : i32
    return %arg0, %c0_i32 : i32, i32
  }
}

module attributes {stable_mosaic.version = 11 : i64} {
  func.func @_bilstm_kernel(%arg0: i32, %arg1: memref<4x2x128xf32, #tpu.memory_space<vmem>>, %arg2: memref<4x2x128xf32, #tpu.memory_space<vmem>>, %arg3: memref<32x128xbf16, #tpu.memory_space<vmem>>, %arg4: memref<32x128xbf16, #tpu.memory_space<vmem>>, %arg5: memref<4x2x32xf32, #tpu.memory_space<vmem>>, %arg6: memref<4x2x32xf32, #tpu.memory_space<vmem>>, %arg7: memref<2x32xbf16, #tpu.memory_space<vmem>>, %arg8: memref<2x32xf32, #tpu.memory_space<vmem>>, %arg9: memref<2x32xbf16, #tpu.memory_space<vmem>>, %arg10: memref<2x32xf32, #tpu.memory_space<vmem>>) attributes {dimension_semantics = [#tpu.dimension_semantics<arbitrary>], iteration_bounds = array<i64: 3>, scalar_prefetch = 0 : i64, scratch_operands = 4 : i64, tpu.core_type = #tpu.core_type<tc>, window_params = [{transform_indices = @transform_0, window_bounds = array<i64: 4, 2, 128>}, {transform_indices = @transform_1, window_bounds = array<i64: 4, 2, 128>}, {pipeline_mode = #tpu.pipeline_mode<synchronous>, transform_indices = @transform_2, window_bounds = array<i64: 32, 128>}, {pipeline_mode = #tpu.pipeline_mode<synchronous>, transform_indices = @transform_3, window_bounds = array<i64: 32, 128>}, {transform_indices = @transform_4, window_bounds = array<i64: 4, 2, 32>}, {transform_indices = @transform_5, window_bounds = array<i64: 4, 2, 32>}]} {
    %c0_i32 = arith.constant 0 : i32
    %0 = arith.cmpi eq, %arg0, %c0_i32 : i32
    %1 = arith.extui %0 : i1 to i32
    %c0_i32_0 = arith.constant 0 : i32
    %2 = arith.cmpi ne, %1, %c0_i32_0 : i32
    scf.if %2 {
      %cst_96 = arith.constant 0.000000e+00 : bf16
      %277 = vector.broadcast %cst_96 : bf16 to vector<2x32xbf16>
      %c0_97 = arith.constant 0 : index
      %c0_98 = arith.constant 0 : index
      %278 = vector.load %arg7[%c0_97, %c0_98] : memref<2x32xbf16, #tpu.memory_space<vmem>>, vector<2x32xbf16>
      tpu.vector_store %arg7[%c0_97, %c0_98], %277 {strides = array<i32>} : memref<2x32xbf16, #tpu.memory_space<vmem>>, vector<2x32xbf16>,
      %cst_99 = arith.constant 0.000000e+00 : f32
      %279 = vector.broadcast %cst_99 : f32 to vector<2x32xf32>
      %c0_100 = arith.constant 0 : index
      %c0_101 = arith.constant 0 : index
      %280 = vector.load %arg8[%c0_100, %c0_101] : memref<2x32xf32, #tpu.memory_space<vmem>>, vector<2x32xf32>
      tpu.vector_store %arg8[%c0_100, %c0_101], %279 {strides = array<i32>} : memref<2x32xf32, #tpu.memory_space<vmem>>, vector<2x32xf32>,
      %cst_102 = arith.constant 0.000000e+00 : bf16
      %281 = vector.broadcast %cst_102 : bf16 to vector<2x32xbf16>
      %c0_103 = arith.constant 0 : index
      %c0_104 = arith.constant 0 : index
      %282 = vector.load %arg9[%c0_103, %c0_104] : memref<2x32xbf16, #tpu.memory_space<vmem>>, vector<2x32xbf16>
      tpu.vector_store %arg9[%c0_103, %c0_104], %281 {strides = array<i32>} : memref<2x32xbf16, #tpu.memory_space<vmem>>, vector<2x32xbf16>,
      %cst_105 = arith.constant 0.000000e+00 : f32
      %283 = vector.broadcast %cst_105 : f32 to vector<2x32xf32>
      %c0_106 = arith.constant 0 : index
      %c0_107 = arith.constant 0 : index
      %284 = vector.load %arg10[%c0_106, %c0_107] : memref<2x32xf32, #tpu.memory_space<vmem>>, vector<2x32xf32>
      tpu.vector_store %arg10[%c0_106, %c0_107], %283 {strides = array<i32>} : memref<2x32xf32, #tpu.memory_space<vmem>>, vector<2x32xf32>,
    } else {
    }
    %c0 = arith.constant 0 : index
    %c0_1 = arith.constant 0 : index
    %3 = vector.load %arg7[%c0, %c0_1] : memref<2x32xbf16, #tpu.memory_space<vmem>>, vector<2x32xbf16>
    %c0_2 = arith.constant 0 : index
    %c0_3 = arith.constant 0 : index
    %4 = vector.load %arg8[%c0_2, %c0_3] : memref<2x32xf32, #tpu.memory_space<vmem>>, vector<2x32xf32>
    %c0_4 = arith.constant 0 : index
    %c0_5 = arith.constant 0 : index
    %5 = vector.load %arg9[%c0_4, %c0_5] : memref<2x32xbf16, #tpu.memory_space<vmem>>, vector<2x32xbf16>
    %c0_6 = arith.constant 0 : index
    %c0_7 = arith.constant 0 : index
    %6 = vector.load %arg10[%c0_6, %c0_7] : memref<2x32xf32, #tpu.memory_space<vmem>>, vector<2x32xf32>
    %c0_8 = arith.constant 0 : index
    %c0_9 = arith.constant 0 : index
    %7 = vector.load %arg3[%c0_8, %c0_9] : memref<32x128xbf16, #tpu.memory_space<vmem>>, vector<32x128xbf16>
    %c0_10 = arith.constant 0 : index
    %c0_11 = arith.constant 0 : index
    %8 = vector.load %arg4[%c0_10, %c0_11] : memref<32x128xbf16, #tpu.memory_space<vmem>>, vector<32x128xbf16>
    %c0_12 = arith.constant 0 : index
    %c0_13 = arith.constant 0 : index
    %c0_14 = arith.constant 0 : index
    %9 = vector.load %arg1[%c0_12, %c0_13, %c0_14] : memref<4x2x128xf32, #tpu.memory_space<vmem>>, vector<1x2x128xf32>
    %10 = vector.shape_cast %9 : vector<1x2x128xf32> to vector<2x128xf32>
    %cst = arith.constant dense<0.000000e+00> : vector<2x128xf32>
    %11 = tpu.matmul %3, %7, %cst {dimension_numbers = #tpu.dot_dimension_numbers<[1], [0], [0], [1], [0, 0, 1, 1], [], []>} : vector<2x32xbf16>, vector<32x128xbf16>, vector<2x128xf32> -> vector<2x128xf32>
    %12 = arith.addf %10, %11 : vector<2x128xf32>
    %13 = vector.extract_strided_slice %12 {offsets = [0, 0], sizes = [2, 32], strides = [1, 1]} : vector<2x128xf32> to vector<2x32xf32>
    %14 = arith.negf %13 : vector<2x32xf32>
    %15 = math.exp %14 : vector<2x32xf32>
    %cst_15 = arith.constant 1.000000e+00 : f32
    %16 = vector.broadcast %cst_15 : f32 to vector<2x32xf32>
    %17 = arith.addf %16, %15 : vector<2x32xf32>
    %18 = arith.divf %16, %17 : vector<2x32xf32>
    %19 = vector.extract_strided_slice %12 {offsets = [0, 32], sizes = [2, 32], strides = [1, 1]} : vector<2x128xf32> to vector<2x32xf32>
    %20 = arith.negf %19 : vector<2x32xf32>
    %21 = math.exp %20 : vector<2x32xf32>
    %cst_16 = arith.constant 1.000000e+00 : f32
    %22 = vector.broadcast %cst_16 : f32 to vector<2x32xf32>
    %23 = arith.addf %22, %21 : vector<2x32xf32>
    %24 = arith.divf %22, %23 : vector<2x32xf32>
    %25 = vector.extract_strided_slice %12 {offsets = [0, 64], sizes = [2, 32], strides = [1, 1]} : vector<2x128xf32> to vector<2x32xf32>
    %26 = math.tanh %25 : vector<2x32xf32>
    %27 = vector.extract_strided_slice %12 {offsets = [0, 96], sizes = [2, 32], strides = [1, 1]} : vector<2x128xf32> to vector<2x32xf32>
    %28 = arith.negf %27 : vector<2x32xf32>
    %29 = math.exp %28 : vector<2x32xf32>
    %cst_17 = arith.constant 1.000000e+00 : f32
    %30 = vector.broadcast %cst_17 : f32 to vector<2x32xf32>
    %31 = arith.addf %30, %29 : vector<2x32xf32>
    %32 = arith.divf %30, %31 : vector<2x32xf32>
    %33 = arith.mulf %24, %4 : vector<2x32xf32>
    %34 = arith.mulf %18, %26 : vector<2x32xf32>
    %35 = arith.addf %33, %34 : vector<2x32xf32>
    %36 = math.tanh %35 : vector<2x32xf32>
    %37 = arith.mulf %32, %36 : vector<2x32xf32>
    %c0_18 = arith.constant 0 : index
    %c0_19 = arith.constant 0 : index
    %c0_20 = arith.constant 0 : index
    %38 = vector.load %arg5[%c0_18, %c0_19, %c0_20] : memref<4x2x32xf32, #tpu.memory_space<vmem>>, vector<1x2x32xf32>
    %39 = vector.shape_cast %38 : vector<1x2x32xf32> to vector<2x32xf32>
    %40 = vector.shape_cast %37 : vector<2x32xf32> to vector<1x2x32xf32>
    tpu.vector_store %arg5[%c0_18, %c0_19, %c0_20], %40 {strides = array<i32>} : memref<4x2x32xf32, #tpu.memory_space<vmem>>, vector<1x2x32xf32>,
    %41 = arith.truncf %37 : vector<2x32xf32> to vector<2x32xbf16>
    %c3 = arith.constant 3 : index
    %c0_21 = arith.constant 0 : index
    %c0_22 = arith.constant 0 : index
    %42 = vector.load %arg2[%c3, %c0_21, %c0_22] : memref<4x2x128xf32, #tpu.memory_space<vmem>>, vector<1x2x128xf32>
    %43 = vector.shape_cast %42 : vector<1x2x128xf32> to vector<2x128xf32>
    %cst_23 = arith.constant dense<0.000000e+00> : vector<2x128xf32>
    %44 = tpu.matmul %5, %8, %cst_23 {dimension_numbers = #tpu.dot_dimension_numbers<[1], [0], [0], [1], [0, 0, 1, 1], [], []>} : vector<2x32xbf16>, vector<32x128xbf16>, vector<2x128xf32> -> vector<2x128xf32>
    %45 = arith.addf %43, %44 : vector<2x128xf32>
    %46 = vector.extract_strided_slice %45 {offsets = [0, 0], sizes = [2, 32], strides = [1, 1]} : vector<2x128xf32> to vector<2x32xf32>
    %47 = arith.negf %46 : vector<2x32xf32>
    %48 = math.exp %47 : vector<2x32xf32>
    %cst_24 = arith.constant 1.000000e+00 : f32
    %49 = vector.broadcast %cst_24 : f32 to vector<2x32xf32>
    %50 = arith.addf %49, %48 : vector<2x32xf32>
    %51 = arith.divf %49, %50 : vector<2x32xf32>
    %52 = vector.extract_strided_slice %45 {offsets = [0, 32], sizes = [2, 32], strides = [1, 1]} : vector<2x128xf32> to vector<2x32xf32>
    %53 = arith.negf %52 : vector<2x32xf32>
    %54 = math.exp %53 : vector<2x32xf32>
    %cst_25 = arith.constant 1.000000e+00 : f32
    %55 = vector.broadcast %cst_25 : f32 to vector<2x32xf32>
    %56 = arith.addf %55, %54 : vector<2x32xf32>
    %57 = arith.divf %55, %56 : vector<2x32xf32>
    %58 = vector.extract_strided_slice %45 {offsets = [0, 64], sizes = [2, 32], strides = [1, 1]} : vector<2x128xf32> to vector<2x32xf32>
    %59 = math.tanh %58 : vector<2x32xf32>
    %60 = vector.extract_strided_slice %45 {offsets = [0, 96], sizes = [2, 32], strides = [1, 1]} : vector<2x128xf32> to vector<2x32xf32>
    %61 = arith.negf %60 : vector<2x32xf32>
    %62 = math.exp %61 : vector<2x32xf32>
    %cst_26 = arith.constant 1.000000e+00 : f32
    %63 = vector.broadcast %cst_26 : f32 to vector<2x32xf32>
    %64 = arith.addf %63, %62 : vector<2x32xf32>
    %65 = arith.divf %63, %64 : vector<2x32xf32>
    %66 = arith.mulf %57, %6 : vector<2x32xf32>
    %67 = arith.mulf %51, %59 : vector<2x32xf32>
    %68 = arith.addf %66, %67 : vector<2x32xf32>
    %69 = math.tanh %68 : vector<2x32xf32>
    %70 = arith.mulf %65, %69 : vector<2x32xf32>
    %c3_27 = arith.constant 3 : index
    %c0_28 = arith.constant 0 : index
    %c0_29 = arith.constant 0 : index
    %71 = vector.load %arg6[%c3_27, %c0_28, %c0_29] : memref<4x2x32xf32, #tpu.memory_space<vmem>>, vector<1x2x32xf32>
    %72 = vector.shape_cast %71 : vector<1x2x32xf32> to vector<2x32xf32>
    %73 = vector.shape_cast %70 : vector<2x32xf32> to vector<1x2x32xf32>
    tpu.vector_store %arg6[%c3_27, %c0_28, %c0_29], %73 {strides = array<i32>} : memref<4x2x32xf32, #tpu.memory_space<vmem>>, vector<1x2x32xf32>,
    %74 = arith.truncf %70 : vector<2x32xf32> to vector<2x32xbf16>
    %c1 = arith.constant 1 : index
    %c0_30 = arith.constant 0 : index
    %c0_31 = arith.constant 0 : index
    %75 = vector.load %arg1[%c1, %c0_30, %c0_31] : memref<4x2x128xf32, #tpu.memory_space<vmem>>, vector<1x2x128xf32>
    %76 = vector.shape_cast %75 : vector<1x2x128xf32> to vector<2x128xf32>
    %cst_32 = arith.constant dense<0.000000e+00> : vector<2x128xf32>
    %77 = tpu.matmul %41, %7, %cst_32 {dimension_numbers = #tpu.dot_dimension_numbers<[1], [0], [0], [1], [0, 0, 1, 1], [], []>} : vector<2x32xbf16>, vector<32x128xbf16>, vector<2x128xf32> -> vector<2x128xf32>
    %78 = arith.addf %76, %77 : vector<2x128xf32>
    %79 = vector.extract_strided_slice %78 {offsets = [0, 0], sizes = [2, 32], strides = [1, 1]} : vector<2x128xf32> to vector<2x32xf32>
    %80 = arith.negf %79 : vector<2x32xf32>
    %81 = math.exp %80 : vector<2x32xf32>
    %cst_33 = arith.constant 1.000000e+00 : f32
    %82 = vector.broadcast %cst_33 : f32 to vector<2x32xf32>
    %83 = arith.addf %82, %81 : vector<2x32xf32>
    %84 = arith.divf %82, %83 : vector<2x32xf32>
    %85 = vector.extract_strided_slice %78 {offsets = [0, 32], sizes = [2, 32], strides = [1, 1]} : vector<2x128xf32> to vector<2x32xf32>
    %86 = arith.negf %85 : vector<2x32xf32>
    %87 = math.exp %86 : vector<2x32xf32>
    %cst_34 = arith.constant 1.000000e+00 : f32
    %88 = vector.broadcast %cst_34 : f32 to vector<2x32xf32>
    %89 = arith.addf %88, %87 : vector<2x32xf32>
    %90 = arith.divf %88, %89 : vector<2x32xf32>
    %91 = vector.extract_strided_slice %78 {offsets = [0, 64], sizes = [2, 32], strides = [1, 1]} : vector<2x128xf32> to vector<2x32xf32>
    %92 = math.tanh %91 : vector<2x32xf32>
    %93 = vector.extract_strided_slice %78 {offsets = [0, 96], sizes = [2, 32], strides = [1, 1]} : vector<2x128xf32> to vector<2x32xf32>
    %94 = arith.negf %93 : vector<2x32xf32>
    %95 = math.exp %94 : vector<2x32xf32>
    %cst_35 = arith.constant 1.000000e+00 : f32
    %96 = vector.broadcast %cst_35 : f32 to vector<2x32xf32>
    %97 = arith.addf %96, %95 : vector<2x32xf32>
    %98 = arith.divf %96, %97 : vector<2x32xf32>
    %99 = arith.mulf %90, %35 : vector<2x32xf32>
    %100 = arith.mulf %84, %92 : vector<2x32xf32>
    %101 = arith.addf %99, %100 : vector<2x32xf32>
    %102 = math.tanh %101 : vector<2x32xf32>
    %103 = arith.mulf %98, %102 : vector<2x32xf32>
    %c1_36 = arith.constant 1 : index
    %c0_37 = arith.constant 0 : index
    %c0_38 = arith.constant 0 : index
    %104 = vector.load %arg5[%c1_36, %c0_37, %c0_38] : memref<4x2x32xf32, #tpu.memory_space<vmem>>, vector<1x2x32xf32>
    %105 = vector.shape_cast %104 : vector<1x2x32xf32> to vector<2x32xf32>
    %106 = vector.shape_cast %103 : vector<2x32xf32> to vector<1x2x32xf32>
    tpu.vector_store %arg5[%c1_36, %c0_37, %c0_38], %106 {strides = array<i32>} : memref<4x2x32xf32, #tpu.memory_space<vmem>>, vector<1x2x32xf32>,
    %107 = arith.truncf %103 : vector<2x32xf32> to vector<2x32xbf16>
    %c2 = arith.constant 2 : index
    %c0_39 = arith.constant 0 : index
    %c0_40 = arith.constant 0 : index
    %108 = vector.load %arg2[%c2, %c0_39, %c0_40] : memref<4x2x128xf32, #tpu.memory_space<vmem>>, vector<1x2x128xf32>
    %109 = vector.shape_cast %108 : vector<1x2x128xf32> to vector<2x128xf32>
    %cst_41 = arith.constant dense<0.000000e+00> : vector<2x128xf32>
    %110 = tpu.matmul %74, %8, %cst_41 {dimension_numbers = #tpu.dot_dimension_numbers<[1], [0], [0], [1], [0, 0, 1, 1], [], []>} : vector<2x32xbf16>, vector<32x128xbf16>, vector<2x128xf32> -> vector<2x128xf32>
    %111 = arith.addf %109, %110 : vector<2x128xf32>
    %112 = vector.extract_strided_slice %111 {offsets = [0, 0], sizes = [2, 32], strides = [1, 1]} : vector<2x128xf32> to vector<2x32xf32>
    %113 = arith.negf %112 : vector<2x32xf32>
    %114 = math.exp %113 : vector<2x32xf32>
    %cst_42 = arith.constant 1.000000e+00 : f32
    %115 = vector.broadcast %cst_42 : f32 to vector<2x32xf32>
    %116 = arith.addf %115, %114 : vector<2x32xf32>
    %117 = arith.divf %115, %116 : vector<2x32xf32>
    %118 = vector.extract_strided_slice %111 {offsets = [0, 32], sizes = [2, 32], strides = [1, 1]} : vector<2x128xf32> to vector<2x32xf32>
    %119 = arith.negf %118 : vector<2x32xf32>
    %120 = math.exp %119 : vector<2x32xf32>
    %cst_43 = arith.constant 1.000000e+00 : f32
    %121 = vector.broadcast %cst_43 : f32 to vector<2x32xf32>
    %122 = arith.addf %121, %120 : vector<2x32xf32>
    %123 = arith.divf %121, %122 : vector<2x32xf32>
    %124 = vector.extract_strided_slice %111 {offsets = [0, 64], sizes = [2, 32], strides = [1, 1]} : vector<2x128xf32> to vector<2x32xf32>
    %125 = math.tanh %124 : vector<2x32xf32>
    %126 = vector.extract_strided_slice %111 {offsets = [0, 96], sizes = [2, 32], strides = [1, 1]} : vector<2x128xf32> to vector<2x32xf32>
    %127 = arith.negf %126 : vector<2x32xf32>
    %128 = math.exp %127 : vector<2x32xf32>
    %cst_44 = arith.constant 1.000000e+00 : f32
    %129 = vector.broadcast %cst_44 : f32 to vector<2x32xf32>
    %130 = arith.addf %129, %128 : vector<2x32xf32>
    %131 = arith.divf %129, %130 : vector<2x32xf32>
    %132 = arith.mulf %123, %68 : vector<2x32xf32>
    %133 = arith.mulf %117, %125 : vector<2x32xf32>
    %134 = arith.addf %132, %133 : vector<2x32xf32>
    %135 = math.tanh %134 : vector<2x32xf32>
    %136 = arith.mulf %131, %135 : vector<2x32xf32>
    %c2_45 = arith.constant 2 : index
    %c0_46 = arith.constant 0 : index
    %c0_47 = arith.constant 0 : index
    %137 = vector.load %arg6[%c2_45, %c0_46, %c0_47] : memref<4x2x32xf32, #tpu.memory_space<vmem>>, vector<1x2x32xf32>
    %138 = vector.shape_cast %137 : vector<1x2x32xf32> to vector<2x32xf32>
    %139 = vector.shape_cast %136 : vector<2x32xf32> to vector<1x2x32xf32>
    tpu.vector_store %arg6[%c2_45, %c0_46, %c0_47], %139 {strides = array<i32>} : memref<4x2x32xf32, #tpu.memory_space<vmem>>, vector<1x2x32xf32>,
    %140 = arith.truncf %136 : vector<2x32xf32> to vector<2x32xbf16>
    %c2_48 = arith.constant 2 : index
    %c0_49 = arith.constant 0 : index
    %c0_50 = arith.constant 0 : index
    %141 = vector.load %arg1[%c2_48, %c0_49, %c0_50] : memref<4x2x128xf32, #tpu.memory_space<vmem>>, vector<1x2x128xf32>
    %142 = vector.shape_cast %141 : vector<1x2x128xf32> to vector<2x128xf32>
    %cst_51 = arith.constant dense<0.000000e+00> : vector<2x128xf32>
    %143 = tpu.matmul %107, %7, %cst_51 {dimension_numbers = #tpu.dot_dimension_numbers<[1], [0], [0], [1], [0, 0, 1, 1], [], []>} : vector<2x32xbf16>, vector<32x128xbf16>, vector<2x128xf32> -> vector<2x128xf32>
    %144 = arith.addf %142, %143 : vector<2x128xf32>
    %145 = vector.extract_strided_slice %144 {offsets = [0, 0], sizes = [2, 32], strides = [1, 1]} : vector<2x128xf32> to vector<2x32xf32>
    %146 = arith.negf %145 : vector<2x32xf32>
    %147 = math.exp %146 : vector<2x32xf32>
    %cst_52 = arith.constant 1.000000e+00 : f32
    %148 = vector.broadcast %cst_52 : f32 to vector<2x32xf32>
    %149 = arith.addf %148, %147 : vector<2x32xf32>
    %150 = arith.divf %148, %149 : vector<2x32xf32>
    %151 = vector.extract_strided_slice %144 {offsets = [0, 32], sizes = [2, 32], strides = [1, 1]} : vector<2x128xf32> to vector<2x32xf32>
    %152 = arith.negf %151 : vector<2x32xf32>
    %153 = math.exp %152 : vector<2x32xf32>
    %cst_53 = arith.constant 1.000000e+00 : f32
    %154 = vector.broadcast %cst_53 : f32 to vector<2x32xf32>
    %155 = arith.addf %154, %153 : vector<2x32xf32>
    %156 = arith.divf %154, %155 : vector<2x32xf32>
    %157 = vector.extract_strided_slice %144 {offsets = [0, 64], sizes = [2, 32], strides = [1, 1]} : vector<2x128xf32> to vector<2x32xf32>
    %158 = math.tanh %157 : vector<2x32xf32>
    %159 = vector.extract_strided_slice %144 {offsets = [0, 96], sizes = [2, 32], strides = [1, 1]} : vector<2x128xf32> to vector<2x32xf32>
    %160 = arith.negf %159 : vector<2x32xf32>
    %161 = math.exp %160 : vector<2x32xf32>
    %cst_54 = arith.constant 1.000000e+00 : f32
    %162 = vector.broadcast %cst_54 : f32 to vector<2x32xf32>
    %163 = arith.addf %162, %161 : vector<2x32xf32>
    %164 = arith.divf %162, %163 : vector<2x32xf32>
    %165 = arith.mulf %156, %101 : vector<2x32xf32>
    %166 = arith.mulf %150, %158 : vector<2x32xf32>
    %167 = arith.addf %165, %166 : vector<2x32xf32>
    %168 = math.tanh %167 : vector<2x32xf32>
    %169 = arith.mulf %164, %168 : vector<2x32xf32>
    %c2_55 = arith.constant 2 : index
    %c0_56 = arith.constant 0 : index
    %c0_57 = arith.constant 0 : index
    %170 = vector.load %arg5[%c2_55, %c0_56, %c0_57] : memref<4x2x32xf32, #tpu.memory_space<vmem>>, vector<1x2x32xf32>
    %171 = vector.shape_cast %170 : vector<1x2x32xf32> to vector<2x32xf32>
    %172 = vector.shape_cast %169 : vector<2x32xf32> to vector<1x2x32xf32>
    tpu.vector_store %arg5[%c2_55, %c0_56, %c0_57], %172 {strides = array<i32>} : memref<4x2x32xf32, #tpu.memory_space<vmem>>, vector<1x2x32xf32>,
    %173 = arith.truncf %169 : vector<2x32xf32> to vector<2x32xbf16>
    %c1_58 = arith.constant 1 : index
    %c0_59 = arith.constant 0 : index
    %c0_60 = arith.constant 0 : index
    %174 = vector.load %arg2[%c1_58, %c0_59, %c0_60] : memref<4x2x128xf32, #tpu.memory_space<vmem>>, vector<1x2x128xf32>
    %175 = vector.shape_cast %174 : vector<1x2x128xf32> to vector<2x128xf32>
    %cst_61 = arith.constant dense<0.000000e+00> : vector<2x128xf32>
    %176 = tpu.matmul %140, %8, %cst_61 {dimension_numbers = #tpu.dot_dimension_numbers<[1], [0], [0], [1], [0, 0, 1, 1], [], []>} : vector<2x32xbf16>, vector<32x128xbf16>, vector<2x128xf32> -> vector<2x128xf32>
    %177 = arith.addf %175, %176 : vector<2x128xf32>
    %178 = vector.extract_strided_slice %177 {offsets = [0, 0], sizes = [2, 32], strides = [1, 1]} : vector<2x128xf32> to vector<2x32xf32>
    %179 = arith.negf %178 : vector<2x32xf32>
    %180 = math.exp %179 : vector<2x32xf32>
    %cst_62 = arith.constant 1.000000e+00 : f32
    %181 = vector.broadcast %cst_62 : f32 to vector<2x32xf32>
    %182 = arith.addf %181, %180 : vector<2x32xf32>
    %183 = arith.divf %181, %182 : vector<2x32xf32>
    %184 = vector.extract_strided_slice %177 {offsets = [0, 32], sizes = [2, 32], strides = [1, 1]} : vector<2x128xf32> to vector<2x32xf32>
    %185 = arith.negf %184 : vector<2x32xf32>
    %186 = math.exp %185 : vector<2x32xf32>
    %cst_63 = arith.constant 1.000000e+00 : f32
    %187 = vector.broadcast %cst_63 : f32 to vector<2x32xf32>
    %188 = arith.addf %187, %186 : vector<2x32xf32>
    %189 = arith.divf %187, %188 : vector<2x32xf32>
    %190 = vector.extract_strided_slice %177 {offsets = [0, 64], sizes = [2, 32], strides = [1, 1]} : vector<2x128xf32> to vector<2x32xf32>
    %191 = math.tanh %190 : vector<2x32xf32>
    %192 = vector.extract_strided_slice %177 {offsets = [0, 96], sizes = [2, 32], strides = [1, 1]} : vector<2x128xf32> to vector<2x32xf32>
    %193 = arith.negf %192 : vector<2x32xf32>
    %194 = math.exp %193 : vector<2x32xf32>
    %cst_64 = arith.constant 1.000000e+00 : f32
    %195 = vector.broadcast %cst_64 : f32 to vector<2x32xf32>
    %196 = arith.addf %195, %194 : vector<2x32xf32>
    %197 = arith.divf %195, %196 : vector<2x32xf32>
    %198 = arith.mulf %189, %134 : vector<2x32xf32>
    %199 = arith.mulf %183, %191 : vector<2x32xf32>
    %200 = arith.addf %198, %199 : vector<2x32xf32>
    %201 = math.tanh %200 : vector<2x32xf32>
    %202 = arith.mulf %197, %201 : vector<2x32xf32>
    %c1_65 = arith.constant 1 : index
    %c0_66 = arith.constant 0 : index
    %c0_67 = arith.constant 0 : index
    %203 = vector.load %arg6[%c1_65, %c0_66, %c0_67] : memref<4x2x32xf32, #tpu.memory_space<vmem>>, vector<1x2x32xf32>
    %204 = vector.shape_cast %203 : vector<1x2x32xf32> to vector<2x32xf32>
    %205 = vector.shape_cast %202 : vector<2x32xf32> to vector<1x2x32xf32>
    tpu.vector_store %arg6[%c1_65, %c0_66, %c0_67], %205 {strides = array<i32>} : memref<4x2x32xf32, #tpu.memory_space<vmem>>, vector<1x2x32xf32>,
    %206 = arith.truncf %202 : vector<2x32xf32> to vector<2x32xbf16>
    %c3_68 = arith.constant 3 : index
    %c0_69 = arith.constant 0 : index
    %c0_70 = arith.constant 0 : index
    %207 = vector.load %arg1[%c3_68, %c0_69, %c0_70] : memref<4x2x128xf32, #tpu.memory_space<vmem>>, vector<1x2x128xf32>
    %208 = vector.shape_cast %207 : vector<1x2x128xf32> to vector<2x128xf32>
    %cst_71 = arith.constant dense<0.000000e+00> : vector<2x128xf32>
    %209 = tpu.matmul %173, %7, %cst_71 {dimension_numbers = #tpu.dot_dimension_numbers<[1], [0], [0], [1], [0, 0, 1, 1], [], []>} : vector<2x32xbf16>, vector<32x128xbf16>, vector<2x128xf32> -> vector<2x128xf32>
    %210 = arith.addf %208, %209 : vector<2x128xf32>
    %211 = vector.extract_strided_slice %210 {offsets = [0, 0], sizes = [2, 32], strides = [1, 1]} : vector<2x128xf32> to vector<2x32xf32>
    %212 = arith.negf %211 : vector<2x32xf32>
    %213 = math.exp %212 : vector<2x32xf32>
    %cst_72 = arith.constant 1.000000e+00 : f32
    %214 = vector.broadcast %cst_72 : f32 to vector<2x32xf32>
    %215 = arith.addf %214, %213 : vector<2x32xf32>
    %216 = arith.divf %214, %215 : vector<2x32xf32>
    %217 = vector.extract_strided_slice %210 {offsets = [0, 32], sizes = [2, 32], strides = [1, 1]} : vector<2x128xf32> to vector<2x32xf32>
    %218 = arith.negf %217 : vector<2x32xf32>
    %219 = math.exp %218 : vector<2x32xf32>
    %cst_73 = arith.constant 1.000000e+00 : f32
    %220 = vector.broadcast %cst_73 : f32 to vector<2x32xf32>
    %221 = arith.addf %220, %219 : vector<2x32xf32>
    %222 = arith.divf %220, %221 : vector<2x32xf32>
    %223 = vector.extract_strided_slice %210 {offsets = [0, 64], sizes = [2, 32], strides = [1, 1]} : vector<2x128xf32> to vector<2x32xf32>
    %224 = math.tanh %223 : vector<2x32xf32>
    %225 = vector.extract_strided_slice %210 {offsets = [0, 96], sizes = [2, 32], strides = [1, 1]} : vector<2x128xf32> to vector<2x32xf32>
    %226 = arith.negf %225 : vector<2x32xf32>
    %227 = math.exp %226 : vector<2x32xf32>
    %cst_74 = arith.constant 1.000000e+00 : f32
    %228 = vector.broadcast %cst_74 : f32 to vector<2x32xf32>
    %229 = arith.addf %228, %227 : vector<2x32xf32>
    %230 = arith.divf %228, %229 : vector<2x32xf32>
    %231 = arith.mulf %222, %167 : vector<2x32xf32>
    %232 = arith.mulf %216, %224 : vector<2x32xf32>
    %233 = arith.addf %231, %232 : vector<2x32xf32>
    %234 = math.tanh %233 : vector<2x32xf32>
    %235 = arith.mulf %230, %234 : vector<2x32xf32>
    %c3_75 = arith.constant 3 : index
    %c0_76 = arith.constant 0 : index
    %c0_77 = arith.constant 0 : index
    %236 = vector.load %arg5[%c3_75, %c0_76, %c0_77] : memref<4x2x32xf32, #tpu.memory_space<vmem>>, vector<1x2x32xf32>
    %237 = vector.shape_cast %236 : vector<1x2x32xf32> to vector<2x32xf32>
    %238 = vector.shape_cast %235 : vector<2x32xf32> to vector<1x2x32xf32>
    tpu.vector_store %arg5[%c3_75, %c0_76, %c0_77], %238 {strides = array<i32>} : memref<4x2x32xf32, #tpu.memory_space<vmem>>, vector<1x2x32xf32>,
    %239 = arith.truncf %235 : vector<2x32xf32> to vector<2x32xbf16>
    %c0_78 = arith.constant 0 : index
    %c0_79 = arith.constant 0 : index
    %c0_80 = arith.constant 0 : index
    %240 = vector.load %arg2[%c0_78, %c0_79, %c0_80] : memref<4x2x128xf32, #tpu.memory_space<vmem>>, vector<1x2x128xf32>
    %241 = vector.shape_cast %240 : vector<1x2x128xf32> to vector<2x128xf32>
    %cst_81 = arith.constant dense<0.000000e+00> : vector<2x128xf32>
    %242 = tpu.matmul %206, %8, %cst_81 {dimension_numbers = #tpu.dot_dimension_numbers<[1], [0], [0], [1], [0, 0, 1, 1], [], []>} : vector<2x32xbf16>, vector<32x128xbf16>, vector<2x128xf32> -> vector<2x128xf32>
    %243 = arith.addf %241, %242 : vector<2x128xf32>
    %244 = vector.extract_strided_slice %243 {offsets = [0, 0], sizes = [2, 32], strides = [1, 1]} : vector<2x128xf32> to vector<2x32xf32>
    %245 = arith.negf %244 : vector<2x32xf32>
    %246 = math.exp %245 : vector<2x32xf32>
    %cst_82 = arith.constant 1.000000e+00 : f32
    %247 = vector.broadcast %cst_82 : f32 to vector<2x32xf32>
    %248 = arith.addf %247, %246 : vector<2x32xf32>
    %249 = arith.divf %247, %248 : vector<2x32xf32>
    %250 = vector.extract_strided_slice %243 {offsets = [0, 32], sizes = [2, 32], strides = [1, 1]} : vector<2x128xf32> to vector<2x32xf32>
    %251 = arith.negf %250 : vector<2x32xf32>
    %252 = math.exp %251 : vector<2x32xf32>
    %cst_83 = arith.constant 1.000000e+00 : f32
    %253 = vector.broadcast %cst_83 : f32 to vector<2x32xf32>
    %254 = arith.addf %253, %252 : vector<2x32xf32>
    %255 = arith.divf %253, %254 : vector<2x32xf32>
    %256 = vector.extract_strided_slice %243 {offsets = [0, 64], sizes = [2, 32], strides = [1, 1]} : vector<2x128xf32> to vector<2x32xf32>
    %257 = math.tanh %256 : vector<2x32xf32>
    %258 = vector.extract_strided_slice %243 {offsets = [0, 96], sizes = [2, 32], strides = [1, 1]} : vector<2x128xf32> to vector<2x32xf32>
    %259 = arith.negf %258 : vector<2x32xf32>
    %260 = math.exp %259 : vector<2x32xf32>
    %cst_84 = arith.constant 1.000000e+00 : f32
    %261 = vector.broadcast %cst_84 : f32 to vector<2x32xf32>
    %262 = arith.addf %261, %260 : vector<2x32xf32>
    %263 = arith.divf %261, %262 : vector<2x32xf32>
    %264 = arith.mulf %255, %200 : vector<2x32xf32>
    %265 = arith.mulf %249, %257 : vector<2x32xf32>
    %266 = arith.addf %264, %265 : vector<2x32xf32>
    %267 = math.tanh %266 : vector<2x32xf32>
    %268 = arith.mulf %263, %267 : vector<2x32xf32>
    %c0_85 = arith.constant 0 : index
    %c0_86 = arith.constant 0 : index
    %c0_87 = arith.constant 0 : index
    %269 = vector.load %arg6[%c0_85, %c0_86, %c0_87] : memref<4x2x32xf32, #tpu.memory_space<vmem>>, vector<1x2x32xf32>
    %270 = vector.shape_cast %269 : vector<1x2x32xf32> to vector<2x32xf32>
    %271 = vector.shape_cast %268 : vector<2x32xf32> to vector<1x2x32xf32>
    tpu.vector_store %arg6[%c0_85, %c0_86, %c0_87], %271 {strides = array<i32>} : memref<4x2x32xf32, #tpu.memory_space<vmem>>, vector<1x2x32xf32>,
    %272 = arith.truncf %268 : vector<2x32xf32> to vector<2x32xbf16>
    %c0_88 = arith.constant 0 : index
    %c0_89 = arith.constant 0 : index
    %273 = vector.load %arg7[%c0_88, %c0_89] : memref<2x32xbf16, #tpu.memory_space<vmem>>, vector<2x32xbf16>
    tpu.vector_store %arg7[%c0_88, %c0_89], %239 {strides = array<i32>} : memref<2x32xbf16, #tpu.memory_space<vmem>>, vector<2x32xbf16>,
    %c0_90 = arith.constant 0 : index
    %c0_91 = arith.constant 0 : index
    %274 = vector.load %arg8[%c0_90, %c0_91] : memref<2x32xf32, #tpu.memory_space<vmem>>, vector<2x32xf32>
    tpu.vector_store %arg8[%c0_90, %c0_91], %233 {strides = array<i32>} : memref<2x32xf32, #tpu.memory_space<vmem>>, vector<2x32xf32>,
    %c0_92 = arith.constant 0 : index
    %c0_93 = arith.constant 0 : index
    %275 = vector.load %arg9[%c0_92, %c0_93] : memref<2x32xbf16, #tpu.memory_space<vmem>>, vector<2x32xbf16>
    tpu.vector_store %arg9[%c0_92, %c0_93], %272 {strides = array<i32>} : memref<2x32xbf16, #tpu.memory_space<vmem>>, vector<2x32xbf16>,
    %c0_94 = arith.constant 0 : index
    %c0_95 = arith.constant 0 : index
    %276 = vector.load %arg10[%c0_94, %c0_95] : memref<2x32xf32, #tpu.memory_space<vmem>>, vector<2x32xf32>
    tpu.vector_store %arg10[%c0_94, %c0_95], %266 {strides = array<i32>} : memref<2x32xf32, #tpu.memory_space<vmem>>, vector<2x32xf32>,
    return
  }
  func.func @transform_0(%arg0: i32) -> (i32, i32, i32) {
    %c0_i32 = arith.constant 0 : i32
    %c0_i32_0 = arith.constant 0 : i32
    %c0_i32_1 = arith.constant 0 : i32
    return %arg0, %c0_i32, %c0_i32_0 : i32, i32, i32
  }
  func.func @transform_1(%arg0: i32) -> (i32, i32, i32) {
    %c2_i32 = arith.constant 2 : i32
    %0 = arith.subi %c2_i32, %arg0 : i32
    %c0_i32 = arith.constant 0 : i32
    %c0_i32_0 = arith.constant 0 : i32
    %c0_i32_1 = arith.constant 0 : i32
    return %0, %c0_i32, %c0_i32_0 : i32, i32, i32
  }
  func.func @transform_2(%arg0: i32) -> (i32, i32) {
    %c0_i32 = arith.constant 0 : i32
    %c0_i32_0 = arith.constant 0 : i32
    %c0_i32_1 = arith.constant 0 : i32
    return %c0_i32, %c0_i32_0 : i32, i32
  }
  func.func @transform_3(%arg0: i32) -> (i32, i32) {
    %c0_i32 = arith.constant 0 : i32
    %c0_i32_0 = arith.constant 0 : i32
    %c0_i32_1 = arith.constant 0 : i32
    return %c0_i32, %c0_i32_0 : i32, i32
  }
  func.func @transform_4(%arg0: i32) -> (i32, i32, i32) {
    %c0_i32 = arith.constant 0 : i32
    %c0_i32_0 = arith.constant 0 : i32
    %c0_i32_1 = arith.constant 0 : i32
    return %arg0, %c0_i32, %c0_i32_0 : i32, i32, i32
  }
  func.func @transform_5(%arg0: i32) -> (i32, i32, i32) {
    %c2_i32 = arith.constant 2 : i32
    %0 = arith.subi %c2_i32, %arg0 : i32
    %c0_i32 = arith.constant 0 : i32
    %c0_i32_0 = arith.constant 0 : i32
    %c0_i32_1 = arith.constant 0 : i32
    return %0, %c0_i32, %c0_i32_0 : i32, i32, i32
  }
}

module attributes {stable_mosaic.version = 11 : i64} {
  func.func @_bidaf_att_kernel(%arg0: i32, %arg1: memref<1x12x64xf32, #tpu.memory_space<vmem>>, %arg2: memref<1x8x64xf32, #tpu.memory_space<vmem>>, %arg3: memref<1x12x1xf32, #tpu.memory_space<vmem>>, %arg4: memref<1x1x8xf32, #tpu.memory_space<vmem>>, %arg5: memref<1x64xf32, #tpu.memory_space<vmem>>, %arg6: memref<1x64xf32, #tpu.memory_space<vmem>>, %arg7: memref<1x64xf32, #tpu.memory_space<vmem>>, %arg8: memref<1x1xf32, #tpu.memory_space<vmem>>, %arg9: memref<1x12x256xf32, #tpu.memory_space<vmem>>) attributes {dimension_semantics = [#tpu.dimension_semantics<parallel>], iteration_bounds = array<i64: 2>, scalar_prefetch = 0 : i64, scratch_operands = 0 : i64, tpu.core_type = #tpu.core_type<tc>, window_params = [{transform_indices = @transform_0, window_bounds = array<i64: 1, 12, 64>}, {transform_indices = @transform_1, window_bounds = array<i64: 1, 8, 64>}, {transform_indices = @transform_2, window_bounds = array<i64: 1, 12, 1>}, {transform_indices = @transform_3, window_bounds = array<i64: 1, 1, 8>}, {pipeline_mode = #tpu.pipeline_mode<synchronous>, transform_indices = @transform_4, window_bounds = array<i64: 1, 64>}, {pipeline_mode = #tpu.pipeline_mode<synchronous>, transform_indices = @transform_5, window_bounds = array<i64: 1, 64>}, {pipeline_mode = #tpu.pipeline_mode<synchronous>, transform_indices = @transform_6, window_bounds = array<i64: 1, 64>}, {pipeline_mode = #tpu.pipeline_mode<synchronous>, transform_indices = @transform_7, window_bounds = array<i64: 1, 1>}, {transform_indices = @transform_8, window_bounds = array<i64: 1, 12, 256>}]} {
    %c0 = arith.constant 0 : index
    %c0_0 = arith.constant 0 : index
    %c0_1 = arith.constant 0 : index
    %0 = vector.load %arg1[%c0, %c0_0, %c0_1] : memref<1x12x64xf32, #tpu.memory_space<vmem>>, vector<1x12x64xf32>
    %1 = vector.shape_cast %0 : vector<1x12x64xf32> to vector<12x64xf32>
    %c0_2 = arith.constant 0 : index
    %c0_3 = arith.constant 0 : index
    %c0_4 = arith.constant 0 : index
    %2 = vector.load %arg2[%c0_2, %c0_3, %c0_4] : memref<1x8x64xf32, #tpu.memory_space<vmem>>, vector<1x8x64xf32>
    %3 = vector.shape_cast %2 : vector<1x8x64xf32> to vector<8x64xf32>
    %c0_5 = arith.constant 0 : index
    %c0_6 = arith.constant 0 : index
    %c0_7 = arith.constant 0 : index
    %4 = vector.load %arg3[%c0_5, %c0_6, %c0_7] : memref<1x12x1xf32, #tpu.memory_space<vmem>>, vector<1x12x1xf32>
    %5 = vector.shape_cast %4 : vector<1x12x1xf32> to vector<12x1xf32>
    %c0_8 = arith.constant 0 : index
    %c0_9 = arith.constant 0 : index
    %c0_10 = arith.constant 0 : index
    %6 = vector.load %arg4[%c0_8, %c0_9, %c0_10] : memref<1x1x8xf32, #tpu.memory_space<vmem>>, vector<1x1x8xf32>
    %7 = vector.shape_cast %6 : vector<1x1x8xf32> to vector<1x8xf32>
    %c0_11 = arith.constant 0 : index
    %c0_12 = arith.constant 0 : index
    %8 = vector.load %arg5[%c0_11, %c0_12] : memref<1x64xf32, #tpu.memory_space<vmem>>, vector<1x64xf32>
    %9 = vector.broadcast %8 : vector<1x64xf32> to vector<12x64xf32>
    %10 = arith.mulf %1, %9 : vector<12x64xf32>
    %cst = arith.constant dense<0.000000e+00> : vector<12xf32>
    %11 = vector.multi_reduction <add>, %10, %cst [1] : vector<12x64xf32> to vector<12xf32>
    %12 = vector.shape_cast %11 : vector<12xf32> to vector<12x1xf32>
    %c0_13 = arith.constant 0 : index
    %c0_14 = arith.constant 0 : index
    %13 = vector.load %arg6[%c0_13, %c0_14] : memref<1x64xf32, #tpu.memory_space<vmem>>, vector<1x64xf32>
    %14 = vector.broadcast %13 : vector<1x64xf32> to vector<8x64xf32>
    %15 = arith.mulf %3, %14 : vector<8x64xf32>
    %cst_15 = arith.constant dense<0.000000e+00> : vector<8xf32>
    %16 = vector.multi_reduction <add>, %15, %cst_15 [1] : vector<8x64xf32> to vector<8xf32>
    %17 = vector.shape_cast %16 : vector<8xf32> to vector<8x1xf32>
    %18 = arith.truncf %3 : vector<8x64xf32> to vector<8x64xbf16>
    %19 = arith.truncf %1 : vector<12x64xf32> to vector<12x64xbf16>
    %c0_16 = arith.constant 0 : index
    %c0_17 = arith.constant 0 : index
    %20 = vector.load %arg7[%c0_16, %c0_17] : memref<1x64xf32, #tpu.memory_space<vmem>>, vector<1x64xf32>
    %21 = vector.broadcast %20 : vector<1x64xf32> to vector<12x64xf32>
    %22 = arith.mulf %1, %21 : vector<12x64xf32>
    %23 = arith.truncf %22 : vector<12x64xf32> to vector<12x64xbf16>
    %cst_18 = arith.constant dense<0.000000e+00> : vector<12x8xf32>
    %24 = tpu.matmul %23, %18, %cst_18 {dimension_numbers = #tpu.dot_dimension_numbers<[1], [1], [0], [0], [0, 0, 1, 0], [], []>} : vector<12x64xbf16>, vector<8x64xbf16>, vector<12x8xf32> -> vector<12x8xf32>
    %25 = tpu.transpose %17, [1, 0] : vector<8x1xf32> -> vector<1x8xf32>
    %26 = vector.broadcast %12 : vector<12x1xf32> to vector<12x8xf32>
    %27 = vector.broadcast %25 : vector<1x8xf32> to vector<12x8xf32>
    %28 = arith.addf %26, %27 : vector<12x8xf32>
    %29 = arith.addf %28, %24 : vector<12x8xf32>
    %c0_19 = arith.constant 0 : index
    %c0_20 = arith.constant 0 : index
    %30 = vector.load %arg8[%c0_19, %c0_20] : memref<1x1xf32, #tpu.memory_space<vmem>>, vector<1x1xf32>
    %31 = vector.broadcast %30 : vector<1x1xf32> to vector<12x8xf32>
    %32 = arith.addf %29, %31 : vector<12x8xf32>
    %33 = vector.broadcast %7 : vector<1x8xf32> to vector<12x8xf32>
    %34 = arith.mulf %33, %32 : vector<12x8xf32>
    %cst_21 = arith.constant 1.000000e+00 : f32
    %35 = vector.broadcast %cst_21 : f32 to vector<1x8xf32>
    %36 = arith.subf %35, %7 : vector<1x8xf32>
    %cst_22 = arith.constant -1.000000e+30 : f32
    %37 = vector.broadcast %cst_22 : f32 to vector<1x8xf32>
    %38 = arith.mulf %36, %37 : vector<1x8xf32>
    %39 = vector.broadcast %38 : vector<1x8xf32> to vector<12x8xf32>
    %40 = arith.addf %34, %39 : vector<12x8xf32>
    %cst_23 = arith.constant dense<0xFF800000> : vector<12xf32>
    %41 = vector.multi_reduction <maximumf>, %40, %cst_23 [1] : vector<12x8xf32> to vector<12xf32>
    %42 = vector.shape_cast %41 : vector<12xf32> to vector<12x1xf32>
    %43 = vector.broadcast %42 : vector<12x1xf32> to vector<12x8xf32>
    %44 = arith.subf %40, %43 : vector<12x8xf32>
    %45 = math.exp %44 : vector<12x8xf32>
    %cst_24 = arith.constant dense<0.000000e+00> : vector<12xf32>
    %46 = vector.multi_reduction <add>, %45, %cst_24 [1] : vector<12x8xf32> to vector<12xf32>
    %47 = vector.shape_cast %46 : vector<12xf32> to vector<12x1xf32>
    %48 = tpu.reciprocal %47 {approx = true} : vector<12x1xf32> -> vector<12x1xf32>
    %49 = vector.broadcast %48 : vector<12x1xf32> to vector<12x8xf32>
    %50 = arith.mulf %45, %49 : vector<12x8xf32>
    %51 = vector.broadcast %5 : vector<12x1xf32> to vector<12x8xf32>
    %52 = arith.mulf %51, %32 : vector<12x8xf32>
    %cst_25 = arith.constant 1.000000e+00 : f32
    %53 = vector.broadcast %cst_25 : f32 to vector<12x1xf32>
    %54 = arith.subf %53, %5 : vector<12x1xf32>
    %cst_26 = arith.constant -1.000000e+30 : f32
    %55 = vector.broadcast %cst_26 : f32 to vector<12x1xf32>
    %56 = arith.mulf %54, %55 : vector<12x1xf32>
    %57 = vector.broadcast %56 : vector<12x1xf32> to vector<12x8xf32>
    %58 = arith.addf %52, %57 : vector<12x8xf32>
    %cst_27 = arith.constant dense<0xFF800000> : vector<8xf32>
    %59 = vector.multi_reduction <maximumf>, %58, %cst_27 [0] : vector<12x8xf32> to vector<8xf32>
    %60 = vector.shape_cast %59 : vector<8xf32> to vector<1x8xf32>
    %61 = vector.broadcast %60 : vector<1x8xf32> to vector<12x8xf32>
    %62 = arith.subf %58, %61 : vector<12x8xf32>
    %63 = math.exp %62 : vector<12x8xf32>
    %cst_28 = arith.constant dense<0.000000e+00> : vector<8xf32>
    %64 = vector.multi_reduction <add>, %63, %cst_28 [0] : vector<12x8xf32> to vector<8xf32>
    %65 = vector.shape_cast %64 : vector<8xf32> to vector<1x8xf32>
    %66 = tpu.reciprocal %65 {approx = true} : vector<1x8xf32> -> vector<1x8xf32>
    %67 = vector.broadcast %66 : vector<1x8xf32> to vector<12x8xf32>
    %68 = arith.mulf %63, %67 : vector<12x8xf32>
    %69 = arith.truncf %50 : vector<12x8xf32> to vector<12x8xbf16>
    %cst_29 = arith.constant dense<0.000000e+00> : vector<12x64xf32>
    %70 = tpu.matmul %69, %18, %cst_29 {dimension_numbers = #tpu.dot_dimension_numbers<[1], [0], [0], [1], [0, 0, 1, 1], [], []>} : vector<12x8xbf16>, vector<8x64xbf16>, vector<12x64xf32> -> vector<12x64xf32>
    %71 = arith.truncf %68 : vector<12x8xf32> to vector<12x8xbf16>
    %cst_30 = arith.constant dense<0.000000e+00> : vector<8x64xf32>
    %72 = tpu.matmul %71, %19, %cst_30 {dimension_numbers = #tpu.dot_dimension_numbers<[0], [0], [1], [1], [0, 1, 1, 1], [], []>} : vector<12x8xbf16>, vector<12x64xbf16>, vector<8x64xf32> -> vector<8x64xf32>
    %73 = arith.truncf %72 : vector<8x64xf32> to vector<8x64xbf16>
    %cst_31 = arith.constant dense<0.000000e+00> : vector<12x64xf32>
    %74 = tpu.matmul %69, %73, %cst_31 {dimension_numbers = #tpu.dot_dimension_numbers<[1], [0], [0], [1], [0, 0, 1, 1], [], []>} : vector<12x8xbf16>, vector<8x64xbf16>, vector<12x64xf32> -> vector<12x64xf32>
    %75 = arith.mulf %1, %70 : vector<12x64xf32>
    %76 = arith.mulf %1, %74 : vector<12x64xf32>
    %77 = tpu.concatenate %1, %70, %75, %76 in 1 : vector<12x64xf32>, vector<12x64xf32>, vector<12x64xf32>, vector<12x64xf32> -> vector<12x256xf32>
    %c0_32 = arith.constant 0 : index
    %c0_33 = arith.constant 0 : index
    %c0_34 = arith.constant 0 : index
    %78 = vector.load %arg9[%c0_32, %c0_33, %c0_34] : memref<1x12x256xf32, #tpu.memory_space<vmem>>, vector<1x12x256xf32>
    %79 = vector.shape_cast %78 : vector<1x12x256xf32> to vector<12x256xf32>
    %80 = vector.shape_cast %77 : vector<12x256xf32> to vector<1x12x256xf32>
    tpu.vector_store %arg9[%c0_32, %c0_33, %c0_34], %80 {strides = array<i32>} : memref<1x12x256xf32, #tpu.memory_space<vmem>>, vector<1x12x256xf32>,
    return
  }
  func.func @transform_0(%arg0: i32) -> (i32, i32, i32) {
    %c0_i32 = arith.constant 0 : i32
    %c0_i32_0 = arith.constant 0 : i32
    %c0_i32_1 = arith.constant 0 : i32
    return %arg0, %c0_i32, %c0_i32_0 : i32, i32, i32
  }
  func.func @transform_1(%arg0: i32) -> (i32, i32, i32) {
    %c0_i32 = arith.constant 0 : i32
    %c0_i32_0 = arith.constant 0 : i32
    %c0_i32_1 = arith.constant 0 : i32
    return %arg0, %c0_i32, %c0_i32_0 : i32, i32, i32
  }
  func.func @transform_2(%arg0: i32) -> (i32, i32, i32) {
    %c0_i32 = arith.constant 0 : i32
    %c0_i32_0 = arith.constant 0 : i32
    %c0_i32_1 = arith.constant 0 : i32
    return %arg0, %c0_i32, %c0_i32_0 : i32, i32, i32
  }
  func.func @transform_3(%arg0: i32) -> (i32, i32, i32) {
    %c0_i32 = arith.constant 0 : i32
    %c0_i32_0 = arith.constant 0 : i32
    %c0_i32_1 = arith.constant 0 : i32
    return %arg0, %c0_i32, %c0_i32_0 : i32, i32, i32
  }
  func.func @transform_4(%arg0: i32) -> (i32, i32) {
    %c0_i32 = arith.constant 0 : i32
    %c0_i32_0 = arith.constant 0 : i32
    %c0_i32_1 = arith.constant 0 : i32
    return %c0_i32, %c0_i32_0 : i32, i32
  }
  func.func @transform_5(%arg0: i32) -> (i32, i32) {
    %c0_i32 = arith.constant 0 : i32
    %c0_i32_0 = arith.constant 0 : i32
    %c0_i32_1 = arith.constant 0 : i32
    return %c0_i32, %c0_i32_0 : i32, i32
  }
  func.func @transform_6(%arg0: i32) -> (i32, i32) {
    %c0_i32 = arith.constant 0 : i32
    %c0_i32_0 = arith.constant 0 : i32
    %c0_i32_1 = arith.constant 0 : i32
    return %c0_i32, %c0_i32_0 : i32, i32
  }
  func.func @transform_7(%arg0: i32) -> (i32, i32) {
    %c0_i32 = arith.constant 0 : i32
    %c0_i32_0 = arith.constant 0 : i32
    %c0_i32_1 = arith.constant 0 : i32
    return %c0_i32, %c0_i32_0 : i32, i32
  }
  func.func @transform_8(%arg0: i32) -> (i32, i32, i32) {
    %c0_i32 = arith.constant 0 : i32
    %c0_i32_0 = arith.constant 0 : i32
    %c0_i32_1 = arith.constant 0 : i32
    return %arg0, %c0_i32, %c0_i32_0 : i32, i32, i32
  }
}

module attributes {stable_mosaic.version = 11 : i64} {
  func.func @_linear_kernel(%arg0: i32, %arg1: memref<24x256xbf16, #tpu.memory_space<vmem>>, %arg2: memref<256x256xbf16, #tpu.memory_space<vmem>>, %arg3: memref<1x256xf32, #tpu.memory_space<vmem>>, %arg4: memref<24x256xf32, #tpu.memory_space<vmem>>) attributes {dimension_semantics = [#tpu.dimension_semantics<parallel>], iteration_bounds = array<i64: 1>, scalar_prefetch = 0 : i64, scratch_operands = 0 : i64, tpu.core_type = #tpu.core_type<tc>, window_params = [{transform_indices = @transform_0, window_bounds = array<i64: 24, 256>}, {pipeline_mode = #tpu.pipeline_mode<synchronous>, transform_indices = @transform_1, window_bounds = array<i64: 256, 256>}, {pipeline_mode = #tpu.pipeline_mode<synchronous>, transform_indices = @transform_2, window_bounds = array<i64: 1, 256>}, {transform_indices = @transform_3, window_bounds = array<i64: 24, 256>}]} {
    %c0 = arith.constant 0 : index
    %c0_0 = arith.constant 0 : index
    %0 = vector.load %arg1[%c0, %c0_0] : memref<24x256xbf16, #tpu.memory_space<vmem>>, vector<24x256xbf16>
    %c0_1 = arith.constant 0 : index
    %c0_2 = arith.constant 0 : index
    %1 = vector.load %arg2[%c0_1, %c0_2] : memref<256x256xbf16, #tpu.memory_space<vmem>>, vector<256x256xbf16>
    %cst = arith.constant dense<0.000000e+00> : vector<24x256xf32>
    %2 = tpu.matmul %0, %1, %cst {dimension_numbers = #tpu.dot_dimension_numbers<[1], [0], [0], [1], [0, 0, 1, 1], [], []>} : vector<24x256xbf16>, vector<256x256xbf16>, vector<24x256xf32> -> vector<24x256xf32>
    %c0_3 = arith.constant 0 : index
    %c0_4 = arith.constant 0 : index
    %3 = vector.load %arg3[%c0_3, %c0_4] : memref<1x256xf32, #tpu.memory_space<vmem>>, vector<1x256xf32>
    %4 = vector.broadcast %3 : vector<1x256xf32> to vector<24x256xf32>
    %5 = arith.addf %2, %4 : vector<24x256xf32>
    %c0_5 = arith.constant 0 : index
    %c0_6 = arith.constant 0 : index
    %6 = vector.load %arg4[%c0_5, %c0_6] : memref<24x256xf32, #tpu.memory_space<vmem>>, vector<24x256xf32>
    tpu.vector_store %arg4[%c0_5, %c0_6], %5 {strides = array<i32>} : memref<24x256xf32, #tpu.memory_space<vmem>>, vector<24x256xf32>,
    return
  }
  func.func @transform_0(%arg0: i32) -> (i32, i32) {
    %c0_i32 = arith.constant 0 : i32
    %c0_i32_0 = arith.constant 0 : i32
    return %arg0, %c0_i32 : i32, i32
  }
  func.func @transform_1(%arg0: i32) -> (i32, i32) {
    %c0_i32 = arith.constant 0 : i32
    %c0_i32_0 = arith.constant 0 : i32
    %c0_i32_1 = arith.constant 0 : i32
    return %c0_i32, %c0_i32_0 : i32, i32
  }
  func.func @transform_2(%arg0: i32) -> (i32, i32) {
    %c0_i32 = arith.constant 0 : i32
    %c0_i32_0 = arith.constant 0 : i32
    %c0_i32_1 = arith.constant 0 : i32
    return %c0_i32, %c0_i32_0 : i32, i32
  }
  func.func @transform_3(%arg0: i32) -> (i32, i32) {
    %c0_i32 = arith.constant 0 : i32
    %c0_i32_0 = arith.constant 0 : i32
    return %arg0, %c0_i32 : i32, i32
  }
}

module attributes {stable_mosaic.version = 11 : i64} {
  func.func @_output_kernel(%arg0: i32, %arg1: memref<1x12x256xf32, #tpu.memory_space<vmem>>, %arg2: memref<1x12x64xf32, #tpu.memory_space<vmem>>, %arg3: memref<1x12x64xf32, #tpu.memory_space<vmem>>, %arg4: memref<1x1x12xf32, #tpu.memory_space<vmem>>, %arg5: memref<1x256xf32, #tpu.memory_space<vmem>>, %arg6: memref<1x64xf32, #tpu.memory_space<vmem>>, %arg7: memref<1x1xf32, #tpu.memory_space<vmem>>, %arg8: memref<1x256xf32, #tpu.memory_space<vmem>>, %arg9: memref<1x64xf32, #tpu.memory_space<vmem>>, %arg10: memref<1x1xf32, #tpu.memory_space<vmem>>, %arg11: memref<1x1x12xf32, #tpu.memory_space<vmem>>, %arg12: memref<1x1x12xf32, #tpu.memory_space<vmem>>) attributes {dimension_semantics = [#tpu.dimension_semantics<parallel>], iteration_bounds = array<i64: 2>, scalar_prefetch = 0 : i64, scratch_operands = 0 : i64, tpu.core_type = #tpu.core_type<tc>, window_params = [{transform_indices = @transform_0, window_bounds = array<i64: 1, 12, 256>}, {transform_indices = @transform_1, window_bounds = array<i64: 1, 12, 64>}, {transform_indices = @transform_2, window_bounds = array<i64: 1, 12, 64>}, {transform_indices = @transform_3, window_bounds = array<i64: 1, 1, 12>}, {pipeline_mode = #tpu.pipeline_mode<synchronous>, transform_indices = @transform_4, window_bounds = array<i64: 1, 256>}, {pipeline_mode = #tpu.pipeline_mode<synchronous>, transform_indices = @transform_5, window_bounds = array<i64: 1, 64>}, {pipeline_mode = #tpu.pipeline_mode<synchronous>, transform_indices = @transform_6, window_bounds = array<i64: 1, 1>}, {pipeline_mode = #tpu.pipeline_mode<synchronous>, transform_indices = @transform_7, window_bounds = array<i64: 1, 256>}, {pipeline_mode = #tpu.pipeline_mode<synchronous>, transform_indices = @transform_8, window_bounds = array<i64: 1, 64>}, {pipeline_mode = #tpu.pipeline_mode<synchronous>, transform_indices = @transform_9, window_bounds = array<i64: 1, 1>}, {transform_indices = @transform_10, window_bounds = array<i64: 1, 1, 12>}, {transform_indices = @transform_11, window_bounds = array<i64: 1, 1, 12>}]} {
    %c0 = arith.constant 0 : index
    %c0_0 = arith.constant 0 : index
    %c0_1 = arith.constant 0 : index
    %0 = vector.load %arg1[%c0, %c0_0, %c0_1] : memref<1x12x256xf32, #tpu.memory_space<vmem>>, vector<1x12x256xf32>
    %c0_2 = arith.constant 0 : index
    %c0_3 = arith.constant 0 : index
    %c0_4 = arith.constant 0 : index
    %1 = vector.load %arg2[%c0_2, %c0_3, %c0_4] : memref<1x12x64xf32, #tpu.memory_space<vmem>>, vector<1x12x64xf32>
    %c0_5 = arith.constant 0 : index
    %c0_6 = arith.constant 0 : index
    %c0_7 = arith.constant 0 : index
    %2 = vector.load %arg3[%c0_5, %c0_6, %c0_7] : memref<1x12x64xf32, #tpu.memory_space<vmem>>, vector<1x12x64xf32>
    %c0_8 = arith.constant 0 : index
    %c0_9 = arith.constant 0 : index
    %c0_10 = arith.constant 0 : index
    %3 = vector.load %arg4[%c0_8, %c0_9, %c0_10] : memref<1x1x12xf32, #tpu.memory_space<vmem>>, vector<1x1x12xf32>
    %4 = vector.shape_cast %3 : vector<1x1x12xf32> to vector<1x12xf32>
    %c0_11 = arith.constant 0 : index
    %c0_12 = arith.constant 0 : index
    %5 = vector.load %arg5[%c0_11, %c0_12] : memref<1x256xf32, #tpu.memory_space<vmem>>, vector<1x256xf32>
    %6 = vector.shape_cast %5 : vector<1x256xf32> to vector<1x1x256xf32>
    %7 = vector.broadcast %6 : vector<1x1x256xf32> to vector<1x12x256xf32>
    %8 = arith.mulf %0, %7 : vector<1x12x256xf32>
    %cst = arith.constant dense<0.000000e+00> : vector<1x12xf32>
    %9 = vector.multi_reduction <add>, %8, %cst [2] : vector<1x12x256xf32> to vector<1x12xf32>
    %c0_13 = arith.constant 0 : index
    %c0_14 = arith.constant 0 : index
    %10 = vector.load %arg6[%c0_13, %c0_14] : memref<1x64xf32, #tpu.memory_space<vmem>>, vector<1x64xf32>
    %11 = vector.shape_cast %10 : vector<1x64xf32> to vector<1x1x64xf32>
    %12 = vector.broadcast %11 : vector<1x1x64xf32> to vector<1x12x64xf32>
    %13 = arith.mulf %1, %12 : vector<1x12x64xf32>
    %cst_15 = arith.constant dense<0.000000e+00> : vector<1x12xf32>
    %14 = vector.multi_reduction <add>, %13, %cst_15 [2] : vector<1x12x64xf32> to vector<1x12xf32>
    %15 = arith.addf %9, %14 : vector<1x12xf32>
    %c0_16 = arith.constant 0 : index
    %c0_17 = arith.constant 0 : index
    %16 = vector.load %arg7[%c0_16, %c0_17] : memref<1x1xf32, #tpu.memory_space<vmem>>, vector<1x1xf32>
    %17 = vector.broadcast %16 : vector<1x1xf32> to vector<1x12xf32>
    %18 = arith.addf %15, %17 : vector<1x12xf32>
    %c0_18 = arith.constant 0 : index
    %c0_19 = arith.constant 0 : index
    %19 = vector.load %arg8[%c0_18, %c0_19] : memref<1x256xf32, #tpu.memory_space<vmem>>, vector<1x256xf32>
    %20 = vector.shape_cast %19 : vector<1x256xf32> to vector<1x1x256xf32>
    %21 = vector.broadcast %20 : vector<1x1x256xf32> to vector<1x12x256xf32>
    %22 = arith.mulf %0, %21 : vector<1x12x256xf32>
    %cst_20 = arith.constant dense<0.000000e+00> : vector<1x12xf32>
    %23 = vector.multi_reduction <add>, %22, %cst_20 [2] : vector<1x12x256xf32> to vector<1x12xf32>
    %c0_21 = arith.constant 0 : index
    %c0_22 = arith.constant 0 : index
    %24 = vector.load %arg9[%c0_21, %c0_22] : memref<1x64xf32, #tpu.memory_space<vmem>>, vector<1x64xf32>
    %25 = vector.shape_cast %24 : vector<1x64xf32> to vector<1x1x64xf32>
    %26 = vector.broadcast %25 : vector<1x1x64xf32> to vector<1x12x64xf32>
    %27 = arith.mulf %2, %26 : vector<1x12x64xf32>
    %cst_23 = arith.constant dense<0.000000e+00> : vector<1x12xf32>
    %28 = vector.multi_reduction <add>, %27, %cst_23 [2] : vector<1x12x64xf32> to vector<1x12xf32>
    %29 = arith.addf %23, %28 : vector<1x12xf32>
    %c0_24 = arith.constant 0 : index
    %c0_25 = arith.constant 0 : index
    %30 = vector.load %arg10[%c0_24, %c0_25] : memref<1x1xf32, #tpu.memory_space<vmem>>, vector<1x1xf32>
    %31 = vector.broadcast %30 : vector<1x1xf32> to vector<1x12xf32>
    %32 = arith.addf %29, %31 : vector<1x12xf32>
    %33 = arith.mulf %4, %18 : vector<1x12xf32>
    %cst_26 = arith.constant 1.000000e+00 : f32
    %34 = vector.broadcast %cst_26 : f32 to vector<1x12xf32>
    %35 = arith.subf %34, %4 : vector<1x12xf32>
    %cst_27 = arith.constant -1.000000e+30 : f32
    %36 = vector.broadcast %cst_27 : f32 to vector<1x12xf32>
    %37 = arith.mulf %35, %36 : vector<1x12xf32>
    %38 = arith.addf %33, %37 : vector<1x12xf32>
    %cst_28 = arith.constant dense<0xFF800000> : vector<1xf32>
    %39 = vector.multi_reduction <maximumf>, %38, %cst_28 [1] : vector<1x12xf32> to vector<1xf32>
    %40 = vector.shape_cast %39 : vector<1xf32> to vector<1x1xf32>
    %41 = vector.broadcast %40 : vector<1x1xf32> to vector<1x12xf32>
    %42 = arith.subf %38, %41 : vector<1x12xf32>
    %43 = math.exp %42 : vector<1x12xf32>
    %cst_29 = arith.constant dense<0.000000e+00> : vector<1xf32>
    %44 = vector.multi_reduction <add>, %43, %cst_29 [1] : vector<1x12xf32> to vector<1xf32>
    %45 = vector.shape_cast %44 : vector<1xf32> to vector<1x1xf32>
    %46 = math.log %45 : vector<1x1xf32>
    %47 = vector.broadcast %46 : vector<1x1xf32> to vector<1x12xf32>
    %48 = arith.subf %42, %47 : vector<1x12xf32>
    %c0_30 = arith.constant 0 : index
    %c0_31 = arith.constant 0 : index
    %c0_32 = arith.constant 0 : index
    %49 = vector.load %arg11[%c0_30, %c0_31, %c0_32] : memref<1x1x12xf32, #tpu.memory_space<vmem>>, vector<1x1x12xf32>
    %50 = vector.shape_cast %49 : vector<1x1x12xf32> to vector<1x12xf32>
    %51 = vector.shape_cast %48 : vector<1x12xf32> to vector<1x1x12xf32>
    tpu.vector_store %arg11[%c0_30, %c0_31, %c0_32], %51 {strides = array<i32>} : memref<1x1x12xf32, #tpu.memory_space<vmem>>, vector<1x1x12xf32>,
    %52 = arith.mulf %4, %32 : vector<1x12xf32>
    %cst_33 = arith.constant 1.000000e+00 : f32
    %53 = vector.broadcast %cst_33 : f32 to vector<1x12xf32>
    %54 = arith.subf %53, %4 : vector<1x12xf32>
    %cst_34 = arith.constant -1.000000e+30 : f32
    %55 = vector.broadcast %cst_34 : f32 to vector<1x12xf32>
    %56 = arith.mulf %54, %55 : vector<1x12xf32>
    %57 = arith.addf %52, %56 : vector<1x12xf32>
    %cst_35 = arith.constant dense<0xFF800000> : vector<1xf32>
    %58 = vector.multi_reduction <maximumf>, %57, %cst_35 [1] : vector<1x12xf32> to vector<1xf32>
    %59 = vector.shape_cast %58 : vector<1xf32> to vector<1x1xf32>
    %60 = vector.broadcast %59 : vector<1x1xf32> to vector<1x12xf32>
    %61 = arith.subf %57, %60 : vector<1x12xf32>
    %62 = math.exp %61 : vector<1x12xf32>
    %cst_36 = arith.constant dense<0.000000e+00> : vector<1xf32>
    %63 = vector.multi_reduction <add>, %62, %cst_36 [1] : vector<1x12xf32> to vector<1xf32>
    %64 = vector.shape_cast %63 : vector<1xf32> to vector<1x1xf32>
    %65 = math.log %64 : vector<1x1xf32>
    %66 = vector.broadcast %65 : vector<1x1xf32> to vector<1x12xf32>
    %67 = arith.subf %61, %66 : vector<1x12xf32>
    %c0_37 = arith.constant 0 : index
    %c0_38 = arith.constant 0 : index
    %c0_39 = arith.constant 0 : index
    %68 = vector.load %arg12[%c0_37, %c0_38, %c0_39] : memref<1x1x12xf32, #tpu.memory_space<vmem>>, vector<1x1x12xf32>
    %69 = vector.shape_cast %68 : vector<1x1x12xf32> to vector<1x12xf32>
    %70 = vector.shape_cast %67 : vector<1x12xf32> to vector<1x1x12xf32>
    tpu.vector_store %arg12[%c0_37, %c0_38, %c0_39], %70 {strides = array<i32>} : memref<1x1x12xf32, #tpu.memory_space<vmem>>, vector<1x1x12xf32>,
    return
  }
  func.func @transform_0(%arg0: i32) -> (i32, i32, i32) {
    %c0_i32 = arith.constant 0 : i32
    %c0_i32_0 = arith.constant 0 : i32
    %c0_i32_1 = arith.constant 0 : i32
    return %arg0, %c0_i32, %c0_i32_0 : i32, i32, i32
  }
  func.func @transform_1(%arg0: i32) -> (i32, i32, i32) {
    %c0_i32 = arith.constant 0 : i32
    %c0_i32_0 = arith.constant 0 : i32
    %c0_i32_1 = arith.constant 0 : i32
    return %arg0, %c0_i32, %c0_i32_0 : i32, i32, i32
  }
  func.func @transform_2(%arg0: i32) -> (i32, i32, i32) {
    %c0_i32 = arith.constant 0 : i32
    %c0_i32_0 = arith.constant 0 : i32
    %c0_i32_1 = arith.constant 0 : i32
    return %arg0, %c0_i32, %c0_i32_0 : i32, i32, i32
  }
  func.func @transform_3(%arg0: i32) -> (i32, i32, i32) {
    %c0_i32 = arith.constant 0 : i32
    %c0_i32_0 = arith.constant 0 : i32
    %c0_i32_1 = arith.constant 0 : i32
    return %arg0, %c0_i32, %c0_i32_0 : i32, i32, i32
  }
  func.func @transform_4(%arg0: i32) -> (i32, i32) {
    %c0_i32 = arith.constant 0 : i32
    %c0_i32_0 = arith.constant 0 : i32
    %c0_i32_1 = arith.constant 0 : i32
    return %c0_i32, %c0_i32_0 : i32, i32
  }
  func.func @transform_5(%arg0: i32) -> (i32, i32) {
    %c0_i32 = arith.constant 0 : i32
    %c0_i32_0 = arith.constant 0 : i32
    %c0_i32_1 = arith.constant 0 : i32
    return %c0_i32, %c0_i32_0 : i32, i32
  }
  func.func @transform_6(%arg0: i32) -> (i32, i32) {
    %c0_i32 = arith.constant 0 : i32
    %c0_i32_0 = arith.constant 0 : i32
    %c0_i32_1 = arith.constant 0 : i32
    return %c0_i32, %c0_i32_0 : i32, i32
  }
  func.func @transform_7(%arg0: i32) -> (i32, i32) {
    %c0_i32 = arith.constant 0 : i32
    %c0_i32_0 = arith.constant 0 : i32
    %c0_i32_1 = arith.constant 0 : i32
    return %c0_i32, %c0_i32_0 : i32, i32
  }
  func.func @transform_8(%arg0: i32) -> (i32, i32) {
    %c0_i32 = arith.constant 0 : i32
    %c0_i32_0 = arith.constant 0 : i32
    %c0_i32_1 = arith.constant 0 : i32
    return %c0_i32, %c0_i32_0 : i32, i32
  }
  func.func @transform_9(%arg0: i32) -> (i32, i32) {
    %c0_i32 = arith.constant 0 : i32
    %c0_i32_0 = arith.constant 0 : i32
    %c0_i32_1 = arith.constant 0 : i32
    return %c0_i32, %c0_i32_0 : i32, i32
  }
  func.func @transform_10(%arg0: i32) -> (i32, i32, i32) {
    %c0_i32 = arith.constant 0 : i32
    %c0_i32_0 = arith.constant 0 : i32
    %c0_i32_1 = arith.constant 0 : i32
    return %arg0, %c0_i32, %c0_i32_0 : i32, i32, i32
  }
  func.func @transform_11(%arg0: i32) -> (i32, i32, i32) {
    %c0_i32 = arith.constant 0 : i32
    %c0_i32_0 = arith.constant 0 : i32
    %c0_i32_1 = arith.constant 0 : i32
    return %arg0, %c0_i32, %c0_i32_0 : i32, i32, i32
  }
}

module attributes {stable_mosaic.version = 11 : i64} {
  func.func @_linear_kernel(%arg0: i32, %arg1: memref<24x64xbf16, #tpu.memory_space<vmem>>, %arg2: memref<64x256xbf16, #tpu.memory_space<vmem>>, %arg3: memref<1x256xf32, #tpu.memory_space<vmem>>, %arg4: memref<24x256xf32, #tpu.memory_space<vmem>>) attributes {dimension_semantics = [#tpu.dimension_semantics<parallel>], iteration_bounds = array<i64: 1>, scalar_prefetch = 0 : i64, scratch_operands = 0 : i64, tpu.core_type = #tpu.core_type<tc>, window_params = [{transform_indices = @transform_0, window_bounds = array<i64: 24, 64>}, {pipeline_mode = #tpu.pipeline_mode<synchronous>, transform_indices = @transform_1, window_bounds = array<i64: 64, 256>}, {pipeline_mode = #tpu.pipeline_mode<synchronous>, transform_indices = @transform_2, window_bounds = array<i64: 1, 256>}, {transform_indices = @transform_3, window_bounds = array<i64: 24, 256>}]} {
    %c0 = arith.constant 0 : index
    %c0_0 = arith.constant 0 : index
    %0 = vector.load %arg1[%c0, %c0_0] : memref<24x64xbf16, #tpu.memory_space<vmem>>, vector<24x64xbf16>
    %c0_1 = arith.constant 0 : index
    %c0_2 = arith.constant 0 : index
    %1 = vector.load %arg2[%c0_1, %c0_2] : memref<64x256xbf16, #tpu.memory_space<vmem>>, vector<64x256xbf16>
    %cst = arith.constant dense<0.000000e+00> : vector<24x256xf32>
    %2 = tpu.matmul %0, %1, %cst {dimension_numbers = #tpu.dot_dimension_numbers<[1], [0], [0], [1], [0, 0, 1, 1], [], []>} : vector<24x64xbf16>, vector<64x256xbf16>, vector<24x256xf32> -> vector<24x256xf32>
    %c0_3 = arith.constant 0 : index
    %c0_4 = arith.constant 0 : index
    %3 = vector.load %arg3[%c0_3, %c0_4] : memref<1x256xf32, #tpu.memory_space<vmem>>, vector<1x256xf32>
    %4 = vector.broadcast %3 : vector<1x256xf32> to vector<24x256xf32>
    %5 = arith.addf %2, %4 : vector<24x256xf32>
    %c0_5 = arith.constant 0 : index
    %c0_6 = arith.constant 0 : index
    %6 = vector.load %arg4[%c0_5, %c0_6] : memref<24x256xf32, #tpu.memory_space<vmem>>, vector<24x256xf32>
    tpu.vector_store %arg4[%c0_5, %c0_6], %5 {strides = array<i32>} : memref<24x256xf32, #tpu.memory_space<vmem>>, vector<24x256xf32>,
    return
  }
  func.func @transform_0(%arg0: i32) -> (i32, i32) {
    %c0_i32 = arith.constant 0 : i32
    %c0_i32_0 = arith.constant 0 : i32
    return %arg0, %c0_i32 : i32, i32
  }
  func.func @transform_1(%arg0: i32) -> (i32, i32) {
    %c0_i32 = arith.constant 0 : i32
    %c0_i32_0 = arith.constant 0 : i32
    %c0_i32_1 = arith.constant 0 : i32
    return %c0_i32, %c0_i32_0 : i32, i32
  }
  func.func @transform_2(%arg0: i32) -> (i32, i32) {
    %c0_i32 = arith.constant 0 : i32
    %c0_i32_0 = arith.constant 0 : i32
    %c0_i32_1 = arith.constant 0 : i32
    return %c0_i32, %c0_i32_0 : i32, i32
  }
  func.func @transform_3(%arg0: i32) -> (i32, i32) {
    %c0_i32 = arith.constant 0 : i32
    %c0_i32_0 = arith.constant 0 : i32
    return %arg0, %c0_i32 : i32, i32
  }
}

</mosaic_0001>

<llo_original>
// kernel: bidaf_forward.18
$region0: #{bidaf_forward.18}
  #allocation0 [shape = 'u32[]', space=smem, size = 0x4, offset = 0x4, fixed_abs, tag = 'smem constant byte address 0x4 - core index']
  #allocation1 [shape = 'u32[144,128]{1,0:T(1,128)}', space=vmem, size = 0x12000, scoped, tag = 'internal scratch']
  %s0 = inlined_call_operand.vmem [shape: bf16[16,34], index: 0, kind: input, shape index: {}]
  %s1 = inlined_call_operand.vmem [shape: bf16[34,256], index: 1, kind: input, shape index: {}]
  %s2 = inlined_call_operand.vmem [shape: f32[1,256], index: 2, kind: input, shape index: {}]
  %s3 = inlined_call_operand.vmem [shape: f32[16,256], index: 3, kind: output, shape index: {}]
  %s4 = sld [smem:[#allocation0]]
  $region22: #{bidaf_forward.18} parent=0
    _
  %s6 = ssub.s32 1, %s4
  %s7 = scalar_select 0, %s6, %s4
  // Predicated region
  $region2: #{bidaf_forward.18} parent=0 // pred_check
    _
  $region3: #{bidaf_forward.18} parent=0 // pred_check_branch
    %9 = sbr.rel (0) target = $region5
  $region4: #{bidaf_forward.18} parent=0 // pred_region
    _
  $region5: #{bidaf_forward.18} parent=0 // pred_fallthru
    _
  // Predicated region
  $region6: #{bidaf_forward.18} parent=0 // pred_check
    _
  $region7: #{bidaf_forward.18} parent=0 // pred_check_branch
    %11 = sbr.rel (0) target = $region9
  $region8: #{bidaf_forward.18} parent=0 // pred_region
    _
  $region9: #{bidaf_forward.18} parent=0 // pred_fallthru
    _
  // Predicated region
  $region10: #{bidaf_forward.18} parent=0 // pred_check
    _
  $region11: #{bidaf_forward.18} parent=0 // pred_check_branch
    %13 = sbr.rel (0) target = $region13
  $region12: #{bidaf_forward.18} parent=0 // pred_region
    _
  $region13: #{bidaf_forward.18} parent=0 // pred_fallthru
    _
  %v15 = vld [vmem:[%s0] sm:$0xf]
  %v16 = vld [vmem:[%s0 + $0x4] sm:$0xf]
  %v17 = vld [vmem:[%s1] sm:$0xff]
  %v18 = vld [vmem:[%s1 + $0x8] sm:$0xff]
  %v19 = vld [vmem:[%s1 + $0x10] sm:$0xff]
  %v20 = vld [vmem:[%s1 + $0x18] sm:$0xff]
  %v21 = vld [vmem:[%s1 + $0x20] sm:$0x11]
  %v22 = vld [vmem:[%s2] sm:$0x3]
  %v24 = vlaneseq
  %v25 = vshrl.u32 %v24, 7
  %v26 = vsub.s32 0, %v25
  %v27 = vrot.slane %v22, %v26
  %v28 = vlaneseq
  %v29 = vshrl.u32 %v28, 7
  %v30 = vsub.s32 1, %v29
  %v31 = vrot.slane %v22, %v30
  %v36 = vunpack.c.l.b16 %v15
  %v37 = vunpack.c.l.b16 %v16
  %v38 = vpack.c.b16 %v37, %v36
  %v44 = vunpack.c.l.b16 %v17
  %v45 = vunpack.c.h.b16 %v17
  %v46 = vunpack.c.l.b16 %v18
  %v47 = vunpack.c.h.b16 %v18
  %v48 = vunpack.c.l.b16 %v19
  %v49 = vunpack.c.h.b16 %v19
  %v50 = vunpack.c.l.b16 %v20
  %v51 = vunpack.c.h.b16 %v20
  %v52 = vunpack.c.l.b16 %v21
  %v53 = vunpack.c.h.b16 %v21
  %v54 = vpack.c.b16 %v46, %v44
  %v55 = vpack.c.b16 %v47, %v45
  %v56 = vpack.c.b16 %v50, %v48
  %v57 = vpack.c.b16 %v51, %v49
  %v58 = vpack.c.b16 %v52, %v52
  %v59 = vpack.c.b16 %v53, %v53
  %vm64 = vcmask 277504
  %v66 = vsel %vm64, %v38, 0
  %vm68 = vcmask 1040384
  %v70 = vsel %vm68, %v58, 0
  %v73 = vsel %vm68, %v59, 0
  %75 = vmatprep.subr.bf16.mxu0 %v55
  %76 = vmatpush1.bf16.msra.mxu0 %v54
  %77 = vmatprep.subr.bf16.mxu0 %v57
  %78 = vmatpush1.bf16.msra.mxu0 %v56
  %79 = vmatprep.subr.bf16.mxu0 %v73
  %80 = vmatpush1.bf16.msra.mxu0 %v70
  %81 = vmatprep.subr.bf16.mxu0 0
  %82 = vmatpush1.bf16.msra.mxu0 0
  %83 = vmatprep.subr.bf16.mxu0 0
  %84 = vmatpush1.bf16.msra.mxu0 0
  %85 = vmatprep.subr.bf16.mxu0 0
  %86 = vmatpush1.bf16.msra.mxu0 0
  %87 = vmatprep.subr.bf16.mxu0 0
  %88 = vmatpush1.bf16.msra.mxu0 0
  %89 = vmatprep.subr.bf16.mxu0 0
  %90 = vmatpush1.bf16.msra.mxu0 0
  %91 = vmatprep.subr.bf16.mxu0 0
  %92 = vmatpush1.bf16.msra.mxu0 0
  %93 = vmatprep.subr.bf16.mxu0 0
  %94 = vmatpush1.bf16.msra.mxu0 0
  %95 = vmatprep.subr.bf16.mxu0 0
  %96 = vmatpush1.bf16.msra.mxu0 0
  %97 = vmatprep.subr.bf16.mxu0 0
  %98 = vmatpush1.bf16.msra.mxu0 0
  %99 = vmatprep.subr.bf16.mxu0 0
  %100 = vmatpush1.bf16.msra.mxu0 0
  %101 = vmatprep.subr.bf16.mxu0 0
  %102 = vmatpush1.bf16.msra.mxu0 0
  %103 = vmatprep.subr.bf16.mxu0 0
  %104 = vmatpush1.bf16.msra.mxu0 0
  %105 = vmatprep.subr.bf16.mxu0 0
  %106 = vmatpush1.bf16.msra.mxu0 0
  %107 = vmatprep.mubr.bf16.mxu0 0
  %108 = vmatmul.mubr.bf16.gmra.mrb[0].mxu0 %v66
  %v109 = vpop.f32.mrb[0].mxu0
  %v110 = vadd.f32 %v27, %v109
  %v111 = vpop.f32.mrb[0].mxu0
  %v112 = vadd.f32 %v31, %v111
  %v113 = vpop.f32.mrb[0].mxu0
  %v114 = vadd.f32 %v27, %v113
  %v115 = vpop.f32.mrb[0].mxu0
  %v116 = vadd.f32 %v31, %v115
  %117 = vdwg.mxu0
  %118 = vst [vmem:[%s3] sm:$0xff] %v110
  %119 = vst [vmem:[%s3 + $0x8] sm:$0xff] %v112
  %120 = vst [vmem:[%s3 + $0x10] sm:$0xff] %v114
  %121 = vst [vmem:[%s3 + $0x18] sm:$0xff] %v116
  // Predicated region
  $region14: #{bidaf_forward.18} parent=0 // pred_check
    _
  $region15: #{bidaf_forward.18} parent=0 // pred_check_branch
    %123 = sbr.rel (0) target = $region17
  $region16: #{bidaf_forward.18} parent=0 // pred_region
    _
  $region17: #{bidaf_forward.18} parent=0 // pred_fallthru
    _
  // Predicated region
  $region18: #{bidaf_forward.18} parent=0 // pred_check
    _
  $region19: #{bidaf_forward.18} parent=0 // pred_check_branch
    %125 = sbr.rel (0) target = $region21
  $region20: #{bidaf_forward.18} parent=0 // pred_region
    _
  $region21: #{bidaf_forward.18} parent=0 // pred_fallthru
    _

// kernel: bidaf_forward.15
$region0: #{bidaf_forward.15}
  #allocation0 [shape = 'u32[]', space=smem, size = 0x4, offset = 0x4, fixed_abs, tag = 'smem constant byte address 0x4 - core index']
  #allocation1 [shape = 'u32[144,128]{1,0:T(1,128)}', space=vmem, size = 0x12000, scoped, tag = 'internal scratch']
  %s0 = inlined_call_operand.vmem [shape: bf16[16,64], index: 0, kind: input, shape index: {}]
  %s1 = inlined_call_operand.vmem [shape: bf16[64,32], index: 1, kind: input, shape index: {}]
  %s2 = inlined_call_operand.vmem [shape: bf16[32,32], index: 2, kind: input, shape index: {}]
  %s3 = inlined_call_operand.vmem [shape: f32[1,32], index: 3, kind: input, shape index: {}]
  %s4 = inlined_call_operand.vmem [shape: bf16[32,32], index: 4, kind: input, shape index: {}]
  %s5 = inlined_call_operand.vmem [shape: f32[1,32], index: 5, kind: input, shape index: {}]
  %s6 = inlined_call_operand.vmem [shape: bf16[32,32], index: 6, kind: input, shape index: {}]
  %s7 = inlined_call_operand.vmem [shape: f32[1,32], index: 7, kind: input, shape index: {}]
  %s8 = inlined_call_operand.vmem [shape: bf16[32,32], index: 8, kind: input, shape index: {}]
  %s9 = inlined_call_operand.vmem [shape: f32[1,32], index: 9, kind: input, shape index: {}]
  %s10 = inlined_call_operand.vmem [shape: f32[16,32], index: 10, kind: output, shape index: {}]
  %s11 = sld [smem:[#allocation0]]
  $region50: #{bidaf_forward.15} parent=0
    _
  %s13 = ssub.s32 1, %s11
  %s14 = scalar_select 0, %s13, %s11
  // Predicated region
  $region2: #{bidaf_forward.15} parent=0 // pred_check
    _
  $region3: #{bidaf_forward.15} parent=0 // pred_check_branch
    %16 = sbr.rel (0) target = $region5
  $region4: #{bidaf_forward.15} parent=0 // pred_region
    _
  $region5: #{bidaf_forward.15} parent=0 // pred_fallthru
    _
  // Predicated region
  $region6: #{bidaf_forward.15} parent=0 // pred_check
    _
  $region7: #{bidaf_forward.15} parent=0 // pred_check_branch
    %18 = sbr.rel (0) target = $region9
  $region8: #{bidaf_forward.15} parent=0 // pred_region
    _
  $region9: #{bidaf_forward.15} parent=0 // pred_fallthru
    _
  // Predicated region
  $region10: #{bidaf_forward.15} parent=0 // pred_check
    _
  $region11: #{bidaf_forward.15} parent=0 // pred_check_branch
    %20 = sbr.rel (0) target = $region13
  $region12: #{bidaf_forward.15} parent=0 // pred_region
    _
  $region13: #{bidaf_forward.15} parent=0 // pred_fallthru
    _
  // Predicated region
  $region14: #{bidaf_forward.15} parent=0 // pred_check
    _
  $region15: #{bidaf_forward.15} parent=0 // pred_check_branch
    %22 = sbr.rel (0) target = $region17
  $region16: #{bidaf_forward.15} parent=0 // pred_region
    _
  $region17: #{bidaf_forward.15} parent=0 // pred_fallthru
    _
  // Predicated region
  $region18: #{bidaf_forward.15} parent=0 // pred_check
    _
  $region19: #{bidaf_forward.15} parent=0 // pred_check_branch
    %24 = sbr.rel (0) target = $region21
  $region20: #{bidaf_forward.15} parent=0 // pred_region
    _
  $region21: #{bidaf_forward.15} parent=0 // pred_fallthru
    _
  // Predicated region
  $region22: #{bidaf_forward.15} parent=0 // pred_check
    _
  $region23: #{bidaf_forward.15} parent=0 // pred_check_branch
    %26 = sbr.rel (0) target = $region25
  $region24: #{bidaf_forward.15} parent=0 // pred_region
    _
  $region25: #{bidaf_forward.15} parent=0 // pred_fallthru
    _
  // Predicated region
  $region26: #{bidaf_forward.15} parent=0 // pred_check
    _
  $region27: #{bidaf_forward.15} parent=0 // pred_check_branch
    %28 = sbr.rel (0) target = $region29
  $region28: #{bidaf_forward.15} parent=0 // pred_region
    _
  $region29: #{bidaf_forward.15} parent=0 // pred_fallthru
    _
  // Predicated region
  $region30: #{bidaf_forward.15} parent=0 // pred_check
    _
  $region31: #{bidaf_forward.15} parent=0 // pred_check_branch
    %30 = sbr.rel (0) target = $region33
  $region32: #{bidaf_forward.15} parent=0 // pred_region
    _
  $region33: #{bidaf_forward.15} parent=0 // pred_fallthru
    _
  // Predicated region
  $region34: #{bidaf_forward.15} parent=0 // pred_check
    _
  $region35: #{bidaf_forward.15} parent=0 // pred_check_branch
    %32 = sbr.rel (0) target = $region37
  $region36: #{bidaf_forward.15} parent=0 // pred_region
    _
  $region37: #{bidaf_forward.15} parent=0 // pred_fallthru
    _
  // Predicated region
  $region38: #{bidaf_forward.15} parent=0 // pred_check
    _
  $region39: #{bidaf_forward.15} parent=0 // pred_check_branch
    %34 = sbr.rel (0) target = $region41
  $region40: #{bidaf_forward.15} parent=0 // pred_region
    _
  $region41: #{bidaf_forward.15} parent=0 // pred_fallthru
    _
  %v36 = vld [vmem:[%s0] sm:$0xf]
  %v37 = vld [vmem:[%s0 + $0x4] sm:$0xf]
  %v38 = vld [vmem:[%s1] sm:$0xf]
  %v39 = vld [vmem:[%s1 + $0x4] sm:$0xf]
  %v40 = vld [vmem:[%s1 + $0x8] sm:$0xf]
  %v41 = vld [vmem:[%s1 + $0xc] sm:$0xf]
  %v42 = vld [vmem:[%s1 + $0x10] sm:$0xf]
  %v43 = vld [vmem:[%s1 + $0x14] sm:$0xf]
  %v44 = vld [vmem:[%s1 + $0x18] sm:$0xf]
  %v45 = vld [vmem:[%s1 + $0x1c] sm:$0xf]
  %v48 = vunpack.c.l.b16 %v36
  %v49 = vunpack.c.l.b16 %v37
  %v50 = vpack.c.b16 %v49, %v48
  %v59 = vunpack.c.l.b16 %v38
  %v60 = vunpack.c.l.b16 %v39
  %v61 = vunpack.c.l.b16 %v40
  %v62 = vunpack.c.l.b16 %v41
  %v63 = vunpack.c.l.b16 %v42
  %v64 = vunpack.c.l.b16 %v43
  %v65 = vunpack.c.l.b16 %v44
  %v66 = vunpack.c.l.b16 %v45
  %v67 = vpack.c.b16 %v60, %v59
  %v68 = vpack.c.b16 %v62, %v61
  %v69 = vpack.c.b16 %v64, %v63
  %v70 = vpack.c.b16 %v66, %v65
  %vm75 = vcmask 523264
  %v77 = vsel %vm75, %v50, 0
  %79 = vmatprep.subr.bf16.mxu0 0
  %80 = vmatpush1.bf16.msra.mxu0 %v67
  %81 = vmatprep.subr.bf16.mxu0 0
  %82 = vmatpush1.bf16.msra.mxu0 %v68
  %83 = vmatprep.subr.bf16.mxu0 0
  %84 = vmatpush1.bf16.msra.mxu0 %v69
  %85 = vmatprep.subr.bf16.mxu0 0
  %86 = vmatpush1.bf16.msra.mxu0 %v70
  %87 = vmatprep.subr.bf16.mxu0 0
  %88 = vmatpush1.bf16.msra.mxu0 0
  %89 = vmatprep.subr.bf16.mxu0 0
  %90 = vmatpush1.bf16.msra.mxu0 0
  %91 = vmatprep.subr.bf16.mxu0 0
  %92 = vmatpush1.bf16.msra.mxu0 0
  %93 = vmatprep.subr.bf16.mxu0 0
  %94 = vmatpush1.bf16.msra.mxu0 0
  %95 = vmatprep.subr.bf16.mxu0 0
  %96 = vmatpush1.bf16.msra.mxu0 0
  %97 = vmatprep.subr.bf16.mxu0 0
  %98 = vmatpush1.bf16.msra.mxu0 0
  %99 = vmatprep.subr.bf16.mxu0 0
  %100 = vmatpush1.bf16.msra.mxu0 0
  %101 = vmatprep.subr.bf16.mxu0 0
  %102 = vmatpush1.bf16.msra.mxu0 0
  %103 = vmatprep.subr.bf16.mxu0 0
  %104 = vmatpush1.bf16.msra.mxu0 0
  %105 = vmatprep.subr.bf16.mxu0 0
  %106 = vmatpush1.bf16.msra.mxu0 0
  %107 = vmatprep.subr.bf16.mxu0 0
  %108 = vmatpush1.bf16.msra.mxu0 0
  %109 = vmatprep.subr.bf16.mxu0 0
  %110 = vmatpush1.bf16.msra.mxu0 0
  %111 = vmatprep.mubr.bf16.mxu0 0
  %112 = vmatmul.mubr.bf16.gmra.mrb[0].mxu0 %v77
  %v113 = vpop.f32.mrb[0].mxu0
  %v114 = vadd.f32 0.0, %v113
  %v115 = vpop.f32.mrb[0].mxu0
  %v116 = vpop.f32.mrb[0].mxu0
  %v117 = vadd.f32 0.0, %v116
  %v118 = vpop.f32.mrb[0].mxu0
  %119 = vdwg.mxu0
  %v120 = vpack.c.bf16 %v117, %v114
  %v121 = vld [vmem:[%s2] sm:$0xf]
  %v122 = vld [vmem:[%s2 + $0x4] sm:$0xf]
  %v123 = vld [vmem:[%s2 + $0x8] sm:$0xf]
  %v124 = vld [vmem:[%s2 + $0xc] sm:$0xf]
  %v125 = vld [vmem:[%s3] sm:$0x1]
  %v127 = vlaneseq
  %v128 = vshrl.u32 %v127, 7
  %v129 = vsub.s32 0, %v128
  %v130 = vrot.slane %v125, %v129
  %v136 = vunpack.c.l.b16 %v121
  %v137 = vunpack.c.l.b16 %v122
  %v138 = vunpack.c.l.b16 %v123
  %v139 = vunpack.c.l.b16 %v124
  %v140 = vpack.c.b16 %v137, %v136
  %v141 = vpack.c.b16 %v139, %v138
  %vm144 = vcmask 261120
  %v146 = vsel %vm144, %v120, 0
  %148 = vmatprep.subr.bf16.mxu0 0
  %149 = vmatpush1.bf16.msra.mxu0 %v140
  %150 = vmatprep.subr.bf16.mxu0 0
  %151 = vmatpush1.bf16.msra.mxu0 %v141
  %152 = vmatprep.subr.bf16.mxu0 0
  %153 = vmatpush1.bf16.msra.mxu0 0
  %154 = vmatprep.subr.bf16.mxu0 0
  %155 = vmatpush1.bf16.msra.mxu0 0
  %156 = vmatprep.subr.bf16.mxu0 0
  %157 = vmatpush1.bf16.msra.mxu0 0
  %158 = vmatprep.subr.bf16.mxu0 0
  %159 = vmatpush1.bf16.msra.mxu0 0
  %160 = vmatprep.subr.bf16.mxu0 0
  %161 = vmatpush1.bf16.msra.mxu0 0
  %162 = vmatprep.subr.bf16.mxu0 0
  %163 = vmatpush1.bf16.msra.mxu0 0
  %164 = vmatprep.subr.bf16.mxu0 0
  %165 = vmatpush1.bf16.msra.mxu0 0
  %166 = vmatprep.subr.bf16.mxu0 0
  %167 = vmatpush1.bf16.msra.mxu0 0
  %168 = vmatprep.subr.bf16.mxu0 0
  %169 = vmatpush1.bf16.msra.mxu0 0
  %170 = vmatprep.subr.bf16.mxu0 0
  %171 = vmatpush1.bf16.msra.mxu0 0
  %172 = vmatprep.subr.bf16.mxu0 0
  %173 = vmatpush1.bf16.msra.mxu0 0
  %174 = vmatprep.subr.bf16.mxu0 0
  %175 = vmatpush1.bf16.msra.mxu0 0
  %176 = vmatprep.subr.bf16.mxu0 0
  %177 = vmatpush1.bf16.msra.mxu0 0
  %178 = vmatprep.subr.bf16.mxu0 0
  %179 = vmatpush1.bf16.msra.mxu0 0
  %180 = vmatprep.mubr.bf16.mxu0 0
  %181 = vmatmul.mubr.bf16.gmra.mrb[0].mxu0 %v146
  %v182 = vpop.f32.mrb[0].mxu0
  %v183 = vadd.f32 %v130, %v182
  %v184 = vpop.f32.mrb[0].mxu0
  %v185 = vpop.f32.mrb[0].mxu0
  %v186 = vadd.f32 %v130, %v185
  %v187 = vpop.f32.mrb[0].mxu0
  %188 = vdwg.mxu0
  %v189 = vmax.f32 %v183, 0.0
  %v190 = vmax.f32 %v186, 0.0
  %v191 = vld [vmem:[%s4] sm:$0xf]
  %v192 = vld [vmem:[%s4 + $0x4] sm:$0xf]
  %v193 = vld [vmem:[%s4 + $0x8] sm:$0xf]
  %v194 = vld [vmem:[%s4 + $0xc] sm:$0xf]
  %v195 = vld [vmem:[%s5] sm:$0x1]
  %v197 = vlaneseq
  %v198 = vshrl.u32 %v197, 7
  %v199 = vsub.s32 0, %v198
  %v200 = vrot.slane %v195, %v199
  %v206 = vunpack.c.l.b16 %v191
  %v207 = vunpack.c.l.b16 %v192
  %v208 = vunpack.c.l.b16 %v193
  %v209 = vunpack.c.l.b16 %v194
  %v210 = vpack.c.b16 %v207, %v206
  %v211 = vpack.c.b16 %v209, %v208
  %214 = vmatprep.subr.bf16.mxu0 0
  %215 = vmatpush1.bf16.msra.mxu0 %v210
  %216 = vmatprep.subr.bf16.mxu0 0
  %217 = vmatpush1.bf16.msra.mxu0 %v211
  %218 = vmatprep.subr.bf16.mxu0 0
  %219 = vmatpush1.bf16.msra.mxu0 0
  %220 = vmatprep.subr.bf16.mxu0 0
  %221 = vmatpush1.bf16.msra.mxu0 0
  %222 = vmatprep.subr.bf16.mxu0 0
  %223 = vmatpush1.bf16.msra.mxu0 0
  %224 = vmatprep.subr.bf16.mxu0 0
  %225 = vmatpush1.bf16.msra.mxu0 0
  %226 = vmatprep.subr.bf16.mxu0 0
  %227 = vmatpush1.bf16.msra.mxu0 0
  %228 = vmatprep.subr.bf16.mxu0 0
  %229 = vmatpush1.bf16.msra.mxu0 0
  %230 = vmatprep.subr.bf16.mxu0 0
  %231 = vmatpush1.bf16.msra.mxu0 0
  %232 = vmatprep.subr.bf16.mxu0 0
  %233 = vmatpush1.bf16.msra.mxu0 0
  %234 = vmatprep.subr.bf16.mxu0 0
  %235 = vmatpush1.bf16.msra.mxu0 0
  %236 = vmatprep.subr.bf16.mxu0 0
  %237 = vmatpush1.bf16.msra.mxu0 0
  %238 = vmatprep.subr.bf16.mxu0 0
  %239 = vmatpush1.bf16.msra.mxu0 0
  %240 = vmatprep.subr.bf16.mxu0 0
  %241 = vmatpush1.bf16.msra.mxu0 0
  %242 = vmatprep.subr.bf16.mxu0 0
  %243 = vmatpush1.bf16.msra.mxu0 0
  %244 = vmatprep.subr.bf16.mxu0 0
  %245 = vmatpush1.bf16.msra.mxu0 0
  %246 = vmatprep.mubr.bf16.mxu0 0
  %247 = vmatmul.mubr.bf16.gmra.mrb[0].mxu0 %v146
  %v248 = vpop.f32.mrb[0].mxu0
  %v249 = vadd.f32 %v200, %v248
  %v250 = vpop.f32.mrb[0].mxu0
  %v251 = vpop.f32.mrb[0].mxu0
  %v252 = vadd.f32 %v200, %v251
  %v253 = vpop.f32.mrb[0].mxu0
  %254 = vdwg.mxu0
  %v255 = vxor.u32 %v249, 2147483648
  %v256 = vxor.u32 %v252, 2147483648
  %v257 = vmul.f32 %v255, 1.442695
  %v258 = vpow.pop %v257
  %v259 = vmul.f32 %v256, 1.442695
  %v260 = vpow.pop %v259
  %v261 = vadd.f32 %v258, 1.0
  %v262 = vadd.f32 %v260, 1.0
  %v263 = vrcp.pop %v261
  %v264 = vmul.f32 1.0, %v263
  %v265 = vrcp.pop %v262
  %v266 = vmul.f32 1.0, %v265
  %v267 = vmul.f32 %v264, %v189
  %v268 = vmul.f32 %v266, %v190
  %v269 = vsub.f32 1.0, %v264
  %v270 = vsub.f32 1.0, %v266
  %v271 = vmul.f32 %v269, %v114
  %v272 = vmul.f32 %v270, %v117
  %v273 = vadd.f32 %v267, %v271
  %v274 = vadd.f32 %v268, %v272
  %v275 = vpack.c.bf16 %v274, %v273
  %v276 = vld [vmem:[%s6] sm:$0xf]
  %v277 = vld [vmem:[%s6 + $0x4] sm:$0xf]
  %v278 = vld [vmem:[%s6 + $0x8] sm:$0xf]
  %v279 = vld [vmem:[%s6 + $0xc] sm:$0xf]
  %v280 = vld [vmem:[%s7] sm:$0x1]
  %v282 = vlaneseq
  %v283 = vshrl.u32 %v282, 7
  %v284 = vsub.s32 0, %v283
  %v285 = vrot.slane %v280, %v284
  %v291 = vunpack.c.l.b16 %v276
  %v292 = vunpack.c.l.b16 %v277
  %v293 = vunpack.c.l.b16 %v278
  %v294 = vunpack.c.l.b16 %v279
  %v295 = vpack.c.b16 %v292, %v291
  %v296 = vpack.c.b16 %v294, %v293
  %v300 = vsel %vm144, %v275, 0
  %302 = vmatprep.subr.bf16.mxu0 0
  %303 = vmatpush1.bf16.msra.mxu0 %v295
  %304 = vmatprep.subr.bf16.mxu0 0
  %305 = vmatpush1.bf16.msra.mxu0 %v296
  %306 = vmatprep.subr.bf16.mxu0 0
  %307 = vmatpush1.bf16.msra.mxu0 0
  %308 = vmatprep.subr.bf16.mxu0 0
  %309 = vmatpush1.bf16.msra.mxu0 0
  %310 = vmatprep.subr.bf16.mxu0 0
  %311 = vmatpush1.bf16.msra.mxu0 0
  %312 = vmatprep.subr.bf16.mxu0 0
  %313 = vmatpush1.bf16.msra.mxu0 0
  %314 = vmatprep.subr.bf16.mxu0 0
  %315 = vmatpush1.bf16.msra.mxu0 0
  %316 = vmatprep.subr.bf16.mxu0 0
  %317 = vmatpush1.bf16.msra.mxu0 0
  %318 = vmatprep.subr.bf16.mxu0 0
  %319 = vmatpush1.bf16.msra.mxu0 0
  %320 = vmatprep.subr.bf16.mxu0 0
  %321 = vmatpush1.bf16.msra.mxu0 0
  %322 = vmatprep.subr.bf16.mxu0 0
  %323 = vmatpush1.bf16.msra.mxu0 0
  %324 = vmatprep.subr.bf16.mxu0 0
  %325 = vmatpush1.bf16.msra.mxu0 0
  %326 = vmatprep.subr.bf16.mxu0 0
  %327 = vmatpush1.bf16.msra.mxu0 0
  %328 = vmatprep.subr.bf16.mxu0 0
  %329 = vmatpush1.bf16.msra.mxu0 0
  %330 = vmatprep.subr.bf16.mxu0 0
  %331 = vmatpush1.bf16.msra.mxu0 0
  %332 = vmatprep.subr.bf16.mxu0 0
  %333 = vmatpush1.bf16.msra.mxu0 0
  %334 = vmatprep.mubr.bf16.mxu0 0
  %335 = vmatmul.mubr.bf16.gmra.mrb[0].mxu0 %v300
  %v336 = vpop.f32.mrb[0].mxu0
  %v337 = vadd.f32 %v285, %v336
  %v338 = vpop.f32.mrb[0].mxu0
  %v339 = vpop.f32.mrb[0].mxu0
  %v340 = vadd.f32 %v285, %v339
  %v341 = vpop.f32.mrb[0].mxu0
  %342 = vdwg.mxu0
  %v343 = vmax.f32 %v337, 0.0
  %v344 = vmax.f32 %v340, 0.0
  %v345 = vld [vmem:[%s8] sm:$0xf]
  %v346 = vld [vmem:[%s8 + $0x4] sm:$0xf]
  %v347 = vld [vmem:[%s8 + $0x8] sm:$0xf]
  %v348 = vld [vmem:[%s8 + $0xc] sm:$0xf]
  %v349 = vld [vmem:[%s9] sm:$0x1]
  %v351 = vlaneseq
  %v352 = vshrl.u32 %v351, 7
  %v353 = vsub.s32 0, %v352
  %v354 = vrot.slane %v349, %v353
  %v360 = vunpack.c.l.b16 %v345
  %v361 = vunpack.c.l.b16 %v346
  %v362 = vunpack.c.l.b16 %v347
  %v363 = vunpack.c.l.b16 %v348
  %v364 = vpack.c.b16 %v361, %v360
  %v365 = vpack.c.b16 %v363, %v362
  %368 = vmatprep.subr.bf16.mxu0 0
  %369 = vmatpush1.bf16.msra.mxu0 %v364
  %370 = vmatprep.subr.bf16.mxu0 0
  %371 = vmatpush1.bf16.msra.mxu0 %v365
  %372 = vmatprep.subr.bf16.mxu0 0
  %373 = vmatpush1.bf16.msra.mxu0 0
  %374 = vmatprep.subr.bf16.mxu0 0
  %375 = vmatpush1.bf16.msra.mxu0 0
  %376 = vmatprep.subr.bf16.mxu0 0
  %377 = vmatpush1.bf16.msra.mxu0 0
  %378 = vmatprep.subr.bf16.mxu0 0
  %379 = vmatpush1.bf16.msra.mxu0 0
  %380 = vmatprep.subr.bf16.mxu0 0
  %381 = vmatpush1.bf16.msra.mxu0 0
  %382 = vmatprep.subr.bf16.mxu0 0
  %383 = vmatpush1.bf16.msra.mxu0 0
  %384 = vmatprep.subr.bf16.mxu0 0
  %385 = vmatpush1.bf16.msra.mxu0 0
  %386 = vmatprep.subr.bf16.mxu0 0
  %387 = vmatpush1.bf16.msra.mxu0 0
  %388 = vmatprep.subr.bf16.mxu0 0
  %389 = vmatpush1.bf16.msra.mxu0 0
  %390 = vmatprep.subr.bf16.mxu0 0
  %391 = vmatpush1.bf16.msra.mxu0 0
  %392 = vmatprep.subr.bf16.mxu0 0
  %393 = vmatpush1.bf16.msra.mxu0 0
  %394 = vmatprep.subr.bf16.mxu0 0
  %395 = vmatpush1.bf16.msra.mxu0 0
  %396 = vmatprep.subr.bf16.mxu0 0
  %397 = vmatpush1.bf16.msra.mxu0 0
  %398 = vmatprep.subr.bf16.mxu0 0
  %399 = vmatpush1.bf16.msra.mxu0 0
  %400 = vmatprep.mubr.bf16.mxu0 0
  %401 = vmatmul.mubr.bf16.gmra.mrb[0].mxu0 %v300
  %v402 = vpop.f32.mrb[0].mxu0
  %v403 = vadd.f32 %v354, %v402
  %v404 = vpop.f32.mrb[0].mxu0
  %v405 = vpop.f32.mrb[0].mxu0
  %v406 = vadd.f32 %v354, %v405
  %v407 = vpop.f32.mrb[0].mxu0
  %408 = vdwg.mxu0
  %v409 = vxor.u32 %v403, 2147483648
  %v410 = vxor.u32 %v406, 2147483648
  %v411 = vmul.f32 %v409, 1.442695
  %v412 = vpow.pop %v411
  %v413 = vmul.f32 %v410, 1.442695
  %v414 = vpow.pop %v413
  %v415 = vadd.f32 %v412, 1.0
  %v416 = vadd.f32 %v414, 1.0
  %v417 = vrcp.pop %v415
  %v418 = vmul.f32 1.0, %v417
  %v419 = vrcp.pop %v416
  %v420 = vmul.f32 1.0, %v419
  %v421 = vmul.f32 %v418, %v343
  %v422 = vmul.f32 %v420, %v344
  %v423 = vsub.f32 1.0, %v418
  %v424 = vsub.f32 1.0, %v420
  %v425 = vmul.f32 %v423, %v273
  %v426 = vmul.f32 %v424, %v274
  %v427 = vadd.f32 %v421, %v425
  %v428 = vadd.f32 %v422, %v426
  %429 = vst.msk [vmem:[%s10] sm:$0xff] %vm144, %v427
  %430 = vst.msk [vmem:[%s10 + $0x8] sm:$0xff] %vm144, %v428
  // Predicated region
  $region42: #{bidaf_forward.15} parent=0 // pred_check
    _
  $region43: #{bidaf_forward.15} parent=0 // pred_check_branch
    %432 = sbr.rel (0) target = $region45
  $region44: #{bidaf_forward.15} parent=0 // pred_region
    _
  $region45: #{bidaf_forward.15} parent=0 // pred_fallthru
    _
  // Predicated region
  $region46: #{bidaf_forward.15} parent=0 // pred_check
    _
  $region47: #{bidaf_forward.15} parent=0 // pred_check_branch
    %434 = sbr.rel (0) target = $region49
  $region48: #{bidaf_forward.15} parent=0 // pred_region
    _
  $region49: #{bidaf_forward.15} parent=0 // pred_fallthru
    _

// kernel: bidaf_forward.14
$region0: #{bidaf_forward.14}
  #allocation0 [shape = 'u32[]', space=smem, size = 0x4, offset = 0x4, fixed_abs, tag = 'smem constant byte address 0x4 - core index']
  #allocation1 [shape = 'u32[144,128]{1,0:T(1,128)}', space=vmem, size = 0x12000, scoped, tag = 'internal scratch']
  %s0 = inlined_call_operand.vmem [shape: bf16[24,64], index: 0, kind: input, shape index: {}]
  %s1 = inlined_call_operand.vmem [shape: bf16[64,32], index: 1, kind: input, shape index: {}]
  %s2 = inlined_call_operand.vmem [shape: bf16[32,32], index: 2, kind: input, shape index: {}]
  %s3 = inlined_call_operand.vmem [shape: f32[1,32], index: 3, kind: input, shape index: {}]
  %s4 = inlined_call_operand.vmem [shape: bf16[32,32], index: 4, kind: input, shape index: {}]
  %s5 = inlined_call_operand.vmem [shape: f32[1,32], index: 5, kind: input, shape index: {}]
  %s6 = inlined_call_operand.vmem [shape: bf16[32,32], index: 6, kind: input, shape index: {}]
  %s7 = inlined_call_operand.vmem [shape: f32[1,32], index: 7, kind: input, shape index: {}]
  %s8 = inlined_call_operand.vmem [shape: bf16[32,32], index: 8, kind: input, shape index: {}]
  %s9 = inlined_call_operand.vmem [shape: f32[1,32], index: 9, kind: input, shape index: {}]
  %s10 = inlined_call_operand.vmem [shape: f32[24,32], index: 10, kind: output, shape index: {}]
  %s11 = sld [smem:[#allocation0]]
  $region50: #{bidaf_forward.14} parent=0
    _
  %s13 = ssub.s32 1, %s11
  %s14 = scalar_select 0, %s13, %s11
  // Predicated region
  $region2: #{bidaf_forward.14} parent=0 // pred_check
    _
  $region3: #{bidaf_forward.14} parent=0 // pred_check_branch
    %16 = sbr.rel (0) target = $region5
  $region4: #{bidaf_forward.14} parent=0 // pred_region
    _
  $region5: #{bidaf_forward.14} parent=0 // pred_fallthru
    _
  // Predicated region
  $region6: #{bidaf_forward.14} parent=0 // pred_check
    _
  $region7: #{bidaf_forward.14} parent=0 // pred_check_branch
    %18 = sbr.rel (0) target = $region9
  $region8: #{bidaf_forward.14} parent=0 // pred_region
    _
  $region9: #{bidaf_forward.14} parent=0 // pred_fallthru
    _
  // Predicated region
  $region10: #{bidaf_forward.14} parent=0 // pred_check
    _
  $region11: #{bidaf_forward.14} parent=0 // pred_check_branch
    %20 = sbr.rel (0) target = $region13
  $region12: #{bidaf_forward.14} parent=0 // pred_region
    _
  $region13: #{bidaf_forward.14} parent=0 // pred_fallthru
    _
  // Predicated region
  $region14: #{bidaf_forward.14} parent=0 // pred_check
    _
  $region15: #{bidaf_forward.14} parent=0 // pred_check_branch
    %22 = sbr.rel (0) target = $region17
  $region16: #{bidaf_forward.14} parent=0 // pred_region
    _
  $region17: #{bidaf_forward.14} parent=0 // pred_fallthru
    _
  // Predicated region
  $region18: #{bidaf_forward.14} parent=0 // pred_check
    _
  $region19: #{bidaf_forward.14} parent=0 // pred_check_branch
    %24 = sbr.rel (0) target = $region21
  $region20: #{bidaf_forward.14} parent=0 // pred_region
    _
  $region21: #{bidaf_forward.14} parent=0 // pred_fallthru
    _
  // Predicated region
  $region22: #{bidaf_forward.14} parent=0 // pred_check
    _
  $region23: #{bidaf_forward.14} parent=0 // pred_check_branch
    %26 = sbr.rel (0) target = $region25
  $region24: #{bidaf_forward.14} parent=0 // pred_region
    _
  $region25: #{bidaf_forward.14} parent=0 // pred_fallthru
    _
  // Predicated region
  $region26: #{bidaf_forward.14} parent=0 // pred_check
    _
  $region27: #{bidaf_forward.14} parent=0 // pred_check_branch
    %28 = sbr.rel (0) target = $region29
  $region28: #{bidaf_forward.14} parent=0 // pred_region
    _
  $region29: #{bidaf_forward.14} parent=0 // pred_fallthru
    _
  // Predicated region
  $region30: #{bidaf_forward.14} parent=0 // pred_check
    _
  $region31: #{bidaf_forward.14} parent=0 // pred_check_branch
    %30 = sbr.rel (0) target = $region33
  $region32: #{bidaf_forward.14} parent=0 // pred_region
    _
  $region33: #{bidaf_forward.14} parent=0 // pred_fallthru
    _
  // Predicated region
  $region34: #{bidaf_forward.14} parent=0 // pred_check
    _
  $region35: #{bidaf_forward.14} parent=0 // pred_check_branch
    %32 = sbr.rel (0) target = $region37
  $region36: #{bidaf_forward.14} parent=0 // pred_region
    _
  $region37: #{bidaf_forward.14} parent=0 // pred_fallthru
    _
  // Predicated region
  $region38: #{bidaf_forward.14} parent=0 // pred_check
    _
  $region39: #{bidaf_forward.14} parent=0 // pred_check_branch
    %34 = sbr.rel (0) target = $region41
  $region40: #{bidaf_forward.14} parent=0 // pred_region
    _
  $region41: #{bidaf_forward.14} parent=0 // pred_fallthru
    _
  %v36 = vld [vmem:[%s0] sm:$0xf]
  %v37 = vld [vmem:[%s0 + $0x4] sm:$0xf]
  %v38 = vld [vmem:[%s0 + $0x8] sm:$0xf]
  %v39 = vld [vmem:[%s1] sm:$0xf]
  %v40 = vld [vmem:[%s1 + $0x4] sm:$0xf]
  %v41 = vld [vmem:[%s1 + $0x8] sm:$0xf]
  %v42 = vld [vmem:[%s1 + $0xc] sm:$0xf]
  %v43 = vld [vmem:[%s1 + $0x10] sm:$0xf]
  %v44 = vld [vmem:[%s1 + $0x14] sm:$0xf]
  %v45 = vld [vmem:[%s1 + $0x18] sm:$0xf]
  %v46 = vld [vmem:[%s1 + $0x1c] sm:$0xf]
  %v50 = vunpack.c.l.b16 %v36
  %v51 = vunpack.c.l.b16 %v37
  %v52 = vunpack.c.l.b16 %v38
  %v53 = vpack.c.b16 %v51, %v50
  %v54 = vpack.c.b16 %v52, %v52
  %v63 = vunpack.c.l.b16 %v39
  %v64 = vunpack.c.l.b16 %v40
  %v65 = vunpack.c.l.b16 %v41
  %v66 = vunpack.c.l.b16 %v42
  %v67 = vunpack.c.l.b16 %v43
  %v68 = vunpack.c.l.b16 %v44
  %v69 = vunpack.c.l.b16 %v45
  %v70 = vunpack.c.l.b16 %v46
  %v71 = vpack.c.b16 %v64, %v63
  %v72 = vpack.c.b16 %v66, %v65
  %v73 = vpack.c.b16 %v68, %v67
  %v74 = vpack.c.b16 %v70, %v69
  %vm79 = vcmask 523264
  %v81 = vsel %vm79, %v53, 0
  %v84 = vsel %vm79, %v54, 0
  %86 = vmatprep.subr.bf16.mxu0 0
  %87 = vmatpush1.bf16.msra.mxu0 %v71
  %88 = vmatprep.subr.bf16.mxu0 0
  %89 = vmatpush1.bf16.msra.mxu0 %v72
  %90 = vmatprep.subr.bf16.mxu0 0
  %91 = vmatpush1.bf16.msra.mxu0 %v73
  %92 = vmatprep.subr.bf16.mxu0 0
  %93 = vmatpush1.bf16.msra.mxu0 %v74
  %94 = vmatprep.subr.bf16.mxu0 0
  %95 = vmatpush1.bf16.msra.mxu0 0
  %96 = vmatprep.subr.bf16.mxu0 0
  %97 = vmatpush1.bf16.msra.mxu0 0
  %98 = vmatprep.subr.bf16.mxu0 0
  %99 = vmatpush1.bf16.msra.mxu0 0
  %100 = vmatprep.subr.bf16.mxu0 0
  %101 = vmatpush1.bf16.msra.mxu0 0
  %102 = vmatprep.subr.bf16.mxu0 0
  %103 = vmatpush1.bf16.msra.mxu0 0
  %104 = vmatprep.subr.bf16.mxu0 0
  %105 = vmatpush1.bf16.msra.mxu0 0
  %106 = vmatprep.subr.bf16.mxu0 0
  %107 = vmatpush1.bf16.msra.mxu0 0
  %108 = vmatprep.subr.bf16.mxu0 0
  %109 = vmatpush1.bf16.msra.mxu0 0
  %110 = vmatprep.subr.bf16.mxu0 0
  %111 = vmatpush1.bf16.msra.mxu0 0
  %112 = vmatprep.subr.bf16.mxu0 0
  %113 = vmatpush1.bf16.msra.mxu0 0
  %114 = vmatprep.subr.bf16.mxu0 0
  %115 = vmatpush1.bf16.msra.mxu0 0
  %116 = vmatprep.subr.bf16.mxu0 0
  %117 = vmatpush1.bf16.msra.mxu0 0
  %118 = vmatprep.mubr.bf16.mxu0 0
  %119 = vmatmul.mubr.bf16.gmra.mrb[0].mxu0 %v81
  %v120 = vpop.f32.mrb[0].mxu0
  %v121 = vadd.f32 0.0, %v120
  %v122 = vpop.f32.mrb[0].mxu0
  %v123 = vpop.f32.mrb[0].mxu0
  %v124 = vadd.f32 0.0, %v123
  %v125 = vpop.f32.mrb[0].mxu0
  %126 = vmatprep.mubr.bf16.mxu0 0
  %127 = vmatmul.mubr.bf16.gmra.mrb[0].mxu0 %v84
  %v128 = vpop.f32.mrb[0].mxu0
  %v129 = vadd.f32 0.0, %v128
  %v130 = vpop.f32.mrb[0].mxu0
  %v131 = vpop.f32.mrb[0].mxu0
  %v132 = vpop.f32.mrb[0].mxu0
  %133 = vdwg.mxu0
  %v134 = vpack.c.bf16 %v124, %v121
  %v135 = vpack.c.bf16 %v129, %v129
  %v136 = vld [vmem:[%s2] sm:$0xf]
  %v137 = vld [vmem:[%s2 + $0x4] sm:$0xf]
  %v138 = vld [vmem:[%s2 + $0x8] sm:$0xf]
  %v139 = vld [vmem:[%s2 + $0xc] sm:$0xf]
  %v140 = vld [vmem:[%s3] sm:$0x1]
  %v142 = vlaneseq
  %v143 = vshrl.u32 %v142, 7
  %v144 = vsub.s32 0, %v143
  %v145 = vrot.slane %v140, %v144
  %v151 = vunpack.c.l.b16 %v136
  %v152 = vunpack.c.l.b16 %v137
  %v153 = vunpack.c.l.b16 %v138
  %v154 = vunpack.c.l.b16 %v139
  %v155 = vpack.c.b16 %v152, %v151
  %v156 = vpack.c.b16 %v154, %v153
  %vm159 = vcmask 261120
  %v161 = vsel %vm159, %v134, 0
  %v164 = vsel %vm159, %v135, 0
  %166 = vmatprep.subr.bf16.mxu0 0
  %167 = vmatpush1.bf16.msra.mxu0 %v155
  %168 = vmatprep.subr.bf16.mxu0 0
  %169 = vmatpush1.bf16.msra.mxu0 %v156
  %170 = vmatprep.subr.bf16.mxu0 0
  %171 = vmatpush1.bf16.msra.mxu0 0
  %172 = vmatprep.subr.bf16.mxu0 0
  %173 = vmatpush1.bf16.msra.mxu0 0
  %174 = vmatprep.subr.bf16.mxu0 0
  %175 = vmatpush1.bf16.msra.mxu0 0
  %176 = vmatprep.subr.bf16.mxu0 0
  %177 = vmatpush1.bf16.msra.mxu0 0
  %178 = vmatprep.subr.bf16.mxu0 0
  %179 = vmatpush1.bf16.msra.mxu0 0
  %180 = vmatprep.subr.bf16.mxu0 0
  %181 = vmatpush1.bf16.msra.mxu0 0
  %182 = vmatprep.subr.bf16.mxu0 0
  %183 = vmatpush1.bf16.msra.mxu0 0
  %184 = vmatprep.subr.bf16.mxu0 0
  %185 = vmatpush1.bf16.msra.mxu0 0
  %186 = vmatprep.subr.bf16.mxu0 0
  %187 = vmatpush1.bf16.msra.mxu0 0
  %188 = vmatprep.subr.bf16.mxu0 0
  %189 = vmatpush1.bf16.msra.mxu0 0
  %190 = vmatprep.subr.bf16.mxu0 0
  %191 = vmatpush1.bf16.msra.mxu0 0
  %192 = vmatprep.subr.bf16.mxu0 0
  %193 = vmatpush1.bf16.msra.mxu0 0
  %194 = vmatprep.subr.bf16.mxu0 0
  %195 = vmatpush1.bf16.msra.mxu0 0
  %196 = vmatprep.subr.bf16.mxu0 0
  %197 = vmatpush1.bf16.msra.mxu0 0
  %198 = vmatprep.mubr.bf16.mxu0 0
  %199 = vmatmul.mubr.bf16.gmra.mrb[0].mxu0 %v161
  %v200 = vpop.f32.mrb[0].mxu0
  %v201 = vadd.f32 %v145, %v200
  %v202 = vpop.f32.mrb[0].mxu0
  %v203 = vpop.f32.mrb[0].mxu0
  %v204 = vadd.f32 %v145, %v203
  %v205 = vpop.f32.mrb[0].mxu0
  %206 = vmatprep.mubr.bf16.mxu0 0
  %207 = vmatmul.mubr.bf16.gmra.mrb[0].mxu0 %v164
  %v208 = vpop.f32.mrb[0].mxu0
  %v209 = vadd.f32 %v145, %v208
  %v210 = vpop.f32.mrb[0].mxu0
  %v211 = vpop.f32.mrb[0].mxu0
  %v212 = vpop.f32.mrb[0].mxu0
  %213 = vdwg.mxu0
  %v214 = vmax.f32 %v201, 0.0
  %v215 = vmax.f32 %v204, 0.0
  %v216 = vmax.f32 %v209, 0.0
  %v217 = vld [vmem:[%s4] sm:$0xf]
  %v218 = vld [vmem:[%s4 + $0x4] sm:$0xf]
  %v219 = vld [vmem:[%s4 + $0x8] sm:$0xf]
  %v220 = vld [vmem:[%s4 + $0xc] sm:$0xf]
  %v221 = vld [vmem:[%s5] sm:$0x1]
  %v223 = vlaneseq
  %v224 = vshrl.u32 %v223, 7
  %v225 = vsub.s32 0, %v224
  %v226 = vrot.slane %v221, %v225
  %v232 = vunpack.c.l.b16 %v217
  %v233 = vunpack.c.l.b16 %v218
  %v234 = vunpack.c.l.b16 %v219
  %v235 = vunpack.c.l.b16 %v220
  %v236 = vpack.c.b16 %v233, %v232
  %v237 = vpack.c.b16 %v235, %v234
  %240 = vmatprep.subr.bf16.mxu0 0
  %241 = vmatpush1.bf16.msra.mxu0 %v236
  %242 = vmatprep.subr.bf16.mxu0 0
  %243 = vmatpush1.bf16.msra.mxu0 %v237
  %244 = vmatprep.subr.bf16.mxu0 0
  %245 = vmatpush1.bf16.msra.mxu0 0
  %246 = vmatprep.subr.bf16.mxu0 0
  %247 = vmatpush1.bf16.msra.mxu0 0
  %248 = vmatprep.subr.bf16.mxu0 0
  %249 = vmatpush1.bf16.msra.mxu0 0
  %250 = vmatprep.subr.bf16.mxu0 0
  %251 = vmatpush1.bf16.msra.mxu0 0
  %252 = vmatprep.subr.bf16.mxu0 0
  %253 = vmatpush1.bf16.msra.mxu0 0
  %254 = vmatprep.subr.bf16.mxu0 0
  %255 = vmatpush1.bf16.msra.mxu0 0
  %256 = vmatprep.subr.bf16.mxu0 0
  %257 = vmatpush1.bf16.msra.mxu0 0
  %258 = vmatprep.subr.bf16.mxu0 0
  %259 = vmatpush1.bf16.msra.mxu0 0
  %260 = vmatprep.subr.bf16.mxu0 0
  %261 = vmatpush1.bf16.msra.mxu0 0
  %262 = vmatprep.subr.bf16.mxu0 0
  %263 = vmatpush1.bf16.msra.mxu0 0
  %264 = vmatprep.subr.bf16.mxu0 0
  %265 = vmatpush1.bf16.msra.mxu0 0
  %266 = vmatprep.subr.bf16.mxu0 0
  %267 = vmatpush1.bf16.msra.mxu0 0
  %268 = vmatprep.subr.bf16.mxu0 0
  %269 = vmatpush1.bf16.msra.mxu0 0
  %270 = vmatprep.subr.bf16.mxu0 0
  %271 = vmatpush1.bf16.msra.mxu0 0
  %272 = vmatprep.mubr.bf16.mxu0 0
  %273 = vmatmul.mubr.bf16.gmra.mrb[0].mxu0 %v161
  %v274 = vpop.f32.mrb[0].mxu0
  %v275 = vadd.f32 %v226, %v274
  %v276 = vpop.f32.mrb[0].mxu0
  %v277 = vpop.f32.mrb[0].mxu0
  %v278 = vadd.f32 %v226, %v277
  %v279 = vpop.f32.mrb[0].mxu0
  %280 = vmatprep.mubr.bf16.mxu0 0
  %281 = vmatmul.mubr.bf16.gmra.mrb[0].mxu0 %v164
  %v282 = vpop.f32.mrb[0].mxu0
  %v283 = vadd.f32 %v226, %v282
  %v284 = vpop.f32.mrb[0].mxu0
  %v285 = vpop.f32.mrb[0].mxu0
  %v286 = vpop.f32.mrb[0].mxu0
  %287 = vdwg.mxu0
  %v288 = vxor.u32 %v275, 2147483648
  %v289 = vxor.u32 %v278, 2147483648
  %v290 = vxor.u32 %v283, 2147483648
  %v291 = vmul.f32 %v288, 1.442695
  %v292 = vpow.pop %v291
  %v293 = vmul.f32 %v289, 1.442695
  %v294 = vpow.pop %v293
  %v295 = vmul.f32 %v290, 1.442695
  %v296 = vpow.pop %v295
  %v297 = vadd.f32 %v292, 1.0
  %v298 = vadd.f32 %v294, 1.0
  %v299 = vadd.f32 %v296, 1.0
  %v300 = vrcp.pop %v297
  %v301 = vmul.f32 1.0, %v300
  %v302 = vrcp.pop %v298
  %v303 = vmul.f32 1.0, %v302
  %v304 = vrcp.pop %v299
  %v305 = vmul.f32 1.0, %v304
  %v306 = vmul.f32 %v301, %v214
  %v307 = vmul.f32 %v303, %v215
  %v308 = vmul.f32 %v305, %v216
  %v309 = vsub.f32 1.0, %v301
  %v310 = vsub.f32 1.0, %v303
  %v311 = vsub.f32 1.0, %v305
  %v312 = vmul.f32 %v309, %v121
  %v313 = vmul.f32 %v310, %v124
  %v314 = vmul.f32 %v311, %v129
  %v315 = vadd.f32 %v306, %v312
  %v316 = vadd.f32 %v307, %v313
  %v317 = vadd.f32 %v308, %v314
  %v318 = vpack.c.bf16 %v316, %v315
  %v319 = vpack.c.bf16 %v317, %v317
  %v320 = vld [vmem:[%s6] sm:$0xf]
  %v321 = vld [vmem:[%s6 + $0x4] sm:$0xf]
  %v322 = vld [vmem:[%s6 + $0x8] sm:$0xf]
  %v323 = vld [vmem:[%s6 + $0xc] sm:$0xf]
  %v324 = vld [vmem:[%s7] sm:$0x1]
  %v326 = vlaneseq
  %v327 = vshrl.u32 %v326, 7
  %v328 = vsub.s32 0, %v327
  %v329 = vrot.slane %v324, %v328
  %v335 = vunpack.c.l.b16 %v320
  %v336 = vunpack.c.l.b16 %v321
  %v337 = vunpack.c.l.b16 %v322
  %v338 = vunpack.c.l.b16 %v323
  %v339 = vpack.c.b16 %v336, %v335
  %v340 = vpack.c.b16 %v338, %v337
  %v344 = vsel %vm159, %v318, 0
  %v347 = vsel %vm159, %v319, 0
  %349 = vmatprep.subr.bf16.mxu0 0
  %350 = vmatpush1.bf16.msra.mxu0 %v339
  %351 = vmatprep.subr.bf16.mxu0 0
  %352 = vmatpush1.bf16.msra.mxu0 %v340
  %353 = vmatprep.subr.bf16.mxu0 0
  %354 = vmatpush1.bf16.msra.mxu0 0
  %355 = vmatprep.subr.bf16.mxu0 0
  %356 = vmatpush1.bf16.msra.mxu0 0
  %357 = vmatprep.subr.bf16.mxu0 0
  %358 = vmatpush1.bf16.msra.mxu0 0
  %359 = vmatprep.subr.bf16.mxu0 0
  %360 = vmatpush1.bf16.msra.mxu0 0
  %361 = vmatprep.subr.bf16.mxu0 0
  %362 = vmatpush1.bf16.msra.mxu0 0
  %363 = vmatprep.subr.bf16.mxu0 0
  %364 = vmatpush1.bf16.msra.mxu0 0
  %365 = vmatprep.subr.bf16.mxu0 0
  %366 = vmatpush1.bf16.msra.mxu0 0
  %367 = vmatprep.subr.bf16.mxu0 0
  %368 = vmatpush1.bf16.msra.mxu0 0
  %369 = vmatprep.subr.bf16.mxu0 0
  %370 = vmatpush1.bf16.msra.mxu0 0
  %371 = vmatprep.subr.bf16.mxu0 0
  %372 = vmatpush1.bf16.msra.mxu0 0
  %373 = vmatprep.subr.bf16.mxu0 0
  %374 = vmatpush1.bf16.msra.mxu0 0
  %375 = vmatprep.subr.bf16.mxu0 0
  %376 = vmatpush1.bf16.msra.mxu0 0
  %377 = vmatprep.subr.bf16.mxu0 0
  %378 = vmatpush1.bf16.msra.mxu0 0
  %379 = vmatprep.subr.bf16.mxu0 0
  %380 = vmatpush1.bf16.msra.mxu0 0
  %381 = vmatprep.mubr.bf16.mxu0 0
  %382 = vmatmul.mubr.bf16.gmra.mrb[0].mxu0 %v344
  %v383 = vpop.f32.mrb[0].mxu0
  %v384 = vadd.f32 %v329, %v383
  %v385 = vpop.f32.mrb[0].mxu0
  %v386 = vpop.f32.mrb[0].mxu0
  %v387 = vadd.f32 %v329, %v386
  %v388 = vpop.f32.mrb[0].mxu0
  %389 = vmatprep.mubr.bf16.mxu0 0
  %390 = vmatmul.mubr.bf16.gmra.mrb[0].mxu0 %v347
  %v391 = vpop.f32.mrb[0].mxu0
  %v392 = vadd.f32 %v329, %v391
  %v393 = vpop.f32.mrb[0].mxu0
  %v394 = vpop.f32.mrb[0].mxu0
  %v395 = vpop.f32.mrb[0].mxu0
  %396 = vdwg.mxu0
  %v397 = vmax.f32 %v384, 0.0
  %v398 = vmax.f32 %v387, 0.0
  %v399 = vmax.f32 %v392, 0.0
  %v400 = vld [vmem:[%s8] sm:$0xf]
  %v401 = vld [vmem:[%s8 + $0x4] sm:$0xf]
  %v402 = vld [vmem:[%s8 + $0x8] sm:$0xf]
  %v403 = vld [vmem:[%s8 + $0xc] sm:$0xf]
  %v404 = vld [vmem:[%s9] sm:$0x1]
  %v406 = vlaneseq
  %v407 = vshrl.u32 %v406, 7
  %v408 = vsub.s32 0, %v407
  %v409 = vrot.slane %v404, %v408
  %v415 = vunpack.c.l.b16 %v400
  %v416 = vunpack.c.l.b16 %v401
  %v417 = vunpack.c.l.b16 %v402
  %v418 = vunpack.c.l.b16 %v403
  %v419 = vpack.c.b16 %v416, %v415
  %v420 = vpack.c.b16 %v418, %v417
  %423 = vmatprep.subr.bf16.mxu0 0
  %424 = vmatpush1.bf16.msra.mxu0 %v419
  %425 = vmatprep.subr.bf16.mxu0 0
  %426 = vmatpush1.bf16.msra.mxu0 %v420
  %427 = vmatprep.subr.bf16.mxu0 0
  %428 = vmatpush1.bf16.msra.mxu0 0
  %429 = vmatprep.subr.bf16.mxu0 0
  %430 = vmatpush1.bf16.msra.mxu0 0
  %431 = vmatprep.subr.bf16.mxu0 0
  %432 = vmatpush1.bf16.msra.mxu0 0
  %433 = vmatprep.subr.bf16.mxu0 0
  %434 = vmatpush1.bf16.msra.mxu0 0
  %435 = vmatprep.subr.bf16.mxu0 0
  %436 = vmatpush1.bf16.msra.mxu0 0
  %437 = vmatprep.subr.bf16.mxu0 0
  %438 = vmatpush1.bf16.msra.mxu0 0
  %439 = vmatprep.subr.bf16.mxu0 0
  %440 = vmatpush1.bf16.msra.mxu0 0
  %441 = vmatprep.subr.bf16.mxu0 0
  %442 = vmatpush1.bf16.msra.mxu0 0
  %443 = vmatprep.subr.bf16.mxu0 0
  %444 = vmatpush1.bf16.msra.mxu0 0
  %445 = vmatprep.subr.bf16.mxu0 0
  %446 = vmatpush1.bf16.msra.mxu0 0
  %447 = vmatprep.subr.bf16.mxu0 0
  %448 = vmatpush1.bf16.msra.mxu0 0
  %449 = vmatprep.subr.bf16.mxu0 0
  %450 = vmatpush1.bf16.msra.mxu0 0
  %451 = vmatprep.subr.bf16.mxu0 0
  %452 = vmatpush1.bf16.msra.mxu0 0
  %453 = vmatprep.subr.bf16.mxu0 0
  %454 = vmatpush1.bf16.msra.mxu0 0
  %455 = vmatprep.mubr.bf16.mxu0 0
  %456 = vmatmul.mubr.bf16.gmra.mrb[0].mxu0 %v344
  %v457 = vpop.f32.mrb[0].mxu0
  %v458 = vadd.f32 %v409, %v457
  %v459 = vpop.f32.mrb[0].mxu0
  %v460 = vpop.f32.mrb[0].mxu0
  %v461 = vadd.f32 %v409, %v460
  %v462 = vpop.f32.mrb[0].mxu0
  %463 = vmatprep.mubr.bf16.mxu0 0
  %464 = vmatmul.mubr.bf16.gmra.mrb[0].mxu0 %v347
  %v465 = vpop.f32.mrb[0].mxu0
  %v466 = vadd.f32 %v409, %v465
  %v467 = vpop.f32.mrb[0].mxu0
  %v468 = vpop.f32.mrb[0].mxu0
  %v469 = vpop.f32.mrb[0].mxu0
  %470 = vdwg.mxu0
  %v471 = vxor.u32 %v458, 2147483648
  %v472 = vxor.u32 %v461, 2147483648
  %v473 = vxor.u32 %v466, 2147483648
  %v474 = vmul.f32 %v471, 1.442695
  %v475 = vpow.pop %v474
  %v476 = vmul.f32 %v472, 1.442695
  %v477 = vpow.pop %v476
  %v478 = vmul.f32 %v473, 1.442695
  %v479 = vpow.pop %v478
  %v480 = vadd.f32 %v475, 1.0
  %v481 = vadd.f32 %v477, 1.0
  %v482 = vadd.f32 %v479, 1.0
  %v483 = vrcp.pop %v480
  %v484 = vmul.f32 1.0, %v483
  %v485 = vrcp.pop %v481
  %v486 = vmul.f32 1.0, %v485
  %v487 = vrcp.pop %v482
  %v488 = vmul.f32 1.0, %v487
  %v489 = vmul.f32 %v484, %v397
  %v490 = vmul.f32 %v486, %v398
  %v491 = vmul.f32 %v488, %v399
  %v492 = vsub.f32 1.0, %v484
  %v493 = vsub.f32 1.0, %v486
  %v494 = vsub.f32 1.0, %v488
  %v495 = vmul.f32 %v492, %v315
  %v496 = vmul.f32 %v493, %v316
  %v497 = vmul.f32 %v494, %v317
  %v498 = vadd.f32 %v489, %v495
  %v499 = vadd.f32 %v490, %v496
  %v500 = vadd.f32 %v491, %v497
  %501 = vst.msk [vmem:[%s10] sm:$0xff] %vm159, %v498
  %502 = vst.msk [vmem:[%s10 + $0x8] sm:$0xff] %vm159, %v499
  %503 = vst.msk [vmem:[%s10 + $0x10] sm:$0xff] %vm159, %v500
  // Predicated region
  $region42: #{bidaf_forward.14} parent=0 // pred_check
    _
  $region43: #{bidaf_forward.14} parent=0 // pred_check_branch
    %505 = sbr.rel (0) target = $region45
  $region44: #{bidaf_forward.14} parent=0 // pred_region
    _
  $region45: #{bidaf_forward.14} parent=0 // pred_fallthru
    _
  // Predicated region
  $region46: #{bidaf_forward.14} parent=0 // pred_check
    _
  $region47: #{bidaf_forward.14} parent=0 // pred_check_branch
    %507 = sbr.rel (0) target = $region49
  $region48: #{bidaf_forward.14} parent=0 // pred_region
    _
  $region49: #{bidaf_forward.14} parent=0 // pred_fallthru
    _

// kernel: bidaf_forward.19
$region0: #{bidaf_forward.19}
  #allocation0 [shape = 'u32[]', space=smem, size = 0x4, offset = 0x4, fixed_abs, tag = 'smem constant byte address 0x4 - core index']
  #allocation1 [shape = 'u32[144,128]{1,0:T(1,128)}', space=vmem, size = 0x12000, scoped, tag = 'internal scratch']
  #allocation2 [shape = 'bf16[2,32]{1,0:T(2,128)(2,1)}', space=vmem, size = 0x200, scoped, tag = 'scratch operand']
  #allocation3 [shape = 'f32[2,32]{1,0:T(2,128)}', space=vmem, size = 0x400, scoped, tag = 'scratch operand']
  #allocation4 [shape = 'bf16[2,32]{1,0:T(2,128)(2,1)}', space=vmem, size = 0x200, scoped, tag = 'scratch operand']
  #allocation5 [shape = 'f32[2,32]{1,0:T(2,128)}', space=vmem, size = 0x400, scoped, tag = 'scratch operand']
  %s0 = inlined_call_operand.vmem [shape: f32[8,2,128], index: 0, kind: input, shape index: {}]
  %s1 = inlined_call_operand.vmem [shape: f32[8,2,128], index: 1, kind: input, shape index: {}]
  %s2 = inlined_call_operand.vmem [shape: bf16[32,128], index: 2, kind: input, shape index: {}]
  %s3 = inlined_call_operand.vmem [shape: bf16[32,128], index: 3, kind: input, shape index: {}]
  %s4 = inlined_call_operand.vmem [shape: f32[8,2,32], index: 4, kind: output, shape index: {0}]
  %s5 = inlined_call_operand.vmem [shape: f32[8,2,32], index: 5, kind: output, shape index: {1}]
  %6 = xla_tuple %s4, %s5
  %s7 = sld [smem:[#allocation0]]
  $region38: #{bidaf_forward.19} parent=0
    _
  %s9 = ssub.s32 1, %s7
  %s10 = scalar_select 0, %s9, %s7
  // Predicated region
  $region2: #{bidaf_forward.19} parent=0 // pred_check
    _
  $region3: #{bidaf_forward.19} parent=0 // pred_check_branch
    %12 = sbr.rel (0) target = $region5
  $region4: #{bidaf_forward.19} parent=0 // pred_region
    _
  $region5: #{bidaf_forward.19} parent=0 // pred_fallthru
    _
  // Predicated region
  $region6: #{bidaf_forward.19} parent=0 // pred_check
    _
  $region7: #{bidaf_forward.19} parent=0 // pred_check_branch
    %14 = sbr.rel (0) target = $region9
  $region8: #{bidaf_forward.19} parent=0 // pred_region
    %s15 = ssub.s32 0, 0
    %s16 = smul.u32 8, %s15
    %p17 = scmp.lt.s32.totalorder %s16, 7
    %s18 = scalar_select %p17, %s16, 7
    %s19 = smul.addr %s18, 2
    %s20 = scalar_lea.vmem %s1, %s19
    %s21 = ssub.s32 0, 0
    %s22 = smul.u32 8, %s21
  $region9: #{bidaf_forward.19} parent=0 // pred_fallthru
    _
  // Predicated region
  $region10: #{bidaf_forward.19} parent=0 // pred_check
    _
  $region11: #{bidaf_forward.19} parent=0 // pred_check_branch
    %24 = sbr.rel (0) target = $region13
  $region12: #{bidaf_forward.19} parent=0 // pred_region
    _
  $region13: #{bidaf_forward.19} parent=0 // pred_fallthru
    _
  // Predicated region
  $region14: #{bidaf_forward.19} parent=0 // pred_check
    _
  $region15: #{bidaf_forward.19} parent=0 // pred_check_branch
    %26 = sbr.rel (0) target = $region17
  $region16: #{bidaf_forward.19} parent=0 // pred_region
    _
  $region17: #{bidaf_forward.19} parent=0 // pred_fallthru
    _
  %s27 = ssub.s32 0, 0
  %s28 = smul.u32 8, %s27
  %p29 = scmp.lt.s32.totalorder %s28, 7
  %s30 = scalar_select %p29, %s28, 7
  %s31 = smul.addr %s30, 2
  %s32 = scalar_lea.vmem %s1, %s31
  %s33 = ssub.s32 0, 0
  %s34 = smul.u32 8, %s33
  %p35 = scmp.lt.s32.totalorder %s34, 7
  %s36 = scalar_select %p35, %s34, 7
  %s37 = smul.addr %s36, 2
  %s38 = scalar_lea.vmem %s5, %s37
  %s39 = ssub.s32 0, 0
  %s40 = smul.u32 8, %s39
  %p41 = scmp.lt.s32.totalorder %s40, 7
  %s42 = scalar_select %p41, %s40, 7
  %s43 = smul.addr %s42, 2
  %s44 = scalar_lea.vmem %s1, %s43
  %s45 = ssub.s32 0, 0
  %s46 = smul.u32 8, %s45
  %s47 = ssub.s32 0, 0
  %s48 = smul.u32 8, %s47
  %p49 = scmp.lt.s32.totalorder %s48, 7
  %s50 = scalar_select %p49, %s48, 7
  %s51 = smul.addr %s50, 2
  %s52 = scalar_lea.vmem %s5, %s51
  %s53 = ssub.s32 0, 0
  %s54 = smul.u32 8, %s53
  %p56 = scmp.eq.s32.totalorder 0, 0
  // Predicated region
  $region18: #{bidaf_forward.19} parent=0 // pred_check
    %p57 = pneg %p56
  $region19: #{bidaf_forward.19} parent=0 // pred_check_branch
    %59 = sbr.rel (%p57) target = $region21
  $region20: #{bidaf_forward.19} parent=0 // pred_region
    %vm60 = vcmask 253952
    %61 = vst.msk [vmem:[#allocation2] sm:$0x1] %vm60, 0
    %vm62 = vcmask 254976
    %63 = vst.msk [vmem:[#allocation3] sm:$0x3] %vm62, 0.0
    %64 = vst.msk [vmem:[#allocation4] sm:$0x1] %vm60, 0
    %65 = vst.msk [vmem:[#allocation5] sm:$0x3] %vm62, 0.0
  $region21: #{bidaf_forward.19} parent=0 // pred_fallthru
    _
  %v66 = vld [vmem:[#allocation2] sm:$0x1]
  %v67 = vld [vmem:[#allocation3] sm:$0x3]
  %v68 = vld [vmem:[#allocation4] sm:$0x1]
  %v69 = vld [vmem:[#allocation5] sm:$0x3]
  %v70 = vld [vmem:[%s2] sm:$0xf]
  %v71 = vld [vmem:[%s2 + $0x4] sm:$0xf]
  %v72 = vld [vmem:[%s2 + $0x8] sm:$0xf]
  %v73 = vld [vmem:[%s2 + $0xc] sm:$0xf]
  %v74 = vld [vmem:[%s3] sm:$0xf]
  %v75 = vld [vmem:[%s3 + $0x4] sm:$0xf]
  %v76 = vld [vmem:[%s3 + $0x8] sm:$0xf]
  %v77 = vld [vmem:[%s3 + $0xc] sm:$0xf]
  %v78 = vld [vmem:[%s0] sm:$0x3]
  %v83 = vunpack.c.l.b16 %v70
  %v84 = vunpack.c.l.b16 %v71
  %v85 = vunpack.c.l.b16 %v72
  %v86 = vunpack.c.l.b16 %v73
  %v87 = vpack.c.b16 %v84, %v83
  %v88 = vpack.c.b16 %v86, %v85
  %vm91 = vcmask 261120
  %v93 = vsel %vm91, %v66, 0
  %95 = vmatprep.subr.bf16.mxu0 0
  %96 = vmatpush1.bf16.msra.mxu0 %v87
  %97 = vmatprep.subr.bf16.mxu0 0
  %98 = vmatpush1.bf16.msra.mxu0 %v88
  %99 = vmatprep.subr.bf16.mxu0 0
  %100 = vmatpush1.bf16.msra.mxu0 0
  %101 = vmatprep.subr.bf16.mxu0 0
  %102 = vmatpush1.bf16.msra.mxu0 0
  %103 = vmatprep.subr.bf16.mxu0 0
  %104 = vmatpush1.bf16.msra.mxu0 0
  %105 = vmatprep.subr.bf16.mxu0 0
  %106 = vmatpush1.bf16.msra.mxu0 0
  %107 = vmatprep.subr.bf16.mxu0 0
  %108 = vmatpush1.bf16.msra.mxu0 0
  %109 = vmatprep.subr.bf16.mxu0 0
  %110 = vmatpush1.bf16.msra.mxu0 0
  %111 = vmatprep.subr.bf16.mxu0 0
  %112 = vmatpush1.bf16.msra.mxu0 0
  %113 = vmatprep.subr.bf16.mxu0 0
  %114 = vmatpush1.bf16.msra.mxu0 0
  %115 = vmatprep.subr.bf16.mxu0 0
  %116 = vmatpush1.bf16.msra.mxu0 0
  %117 = vmatprep.subr.bf16.mxu0 0
  %118 = vmatpush1.bf16.msra.mxu0 0
  %119 = vmatprep.subr.bf16.mxu0 0
  %120 = vmatpush1.bf16.msra.mxu0 0
  %121 = vmatprep.subr.bf16.mxu0 0
  %122 = vmatpush1.bf16.msra.mxu0 0
  %123 = vmatprep.subr.bf16.mxu0 0
  %124 = vmatpush1.bf16.msra.mxu0 0
  %125 = vmatprep.subr.bf16.mxu0 0
  %126 = vmatpush1.bf16.msra.mxu0 0
  %127 = vmatprep.mubr.bf16.mxu0 0
  %128 = vmatmul.mubr.bf16.gmra.mrb[0].mxu0 %v93
  %v129 = vpop.f32.mrb[0].mxu0
  %v130 = vadd.f32 0.0, %v129
  %v131 = vpop.f32.mrb[0].mxu0
  %v132 = vpop.f32.mrb[0].mxu0
  %v133 = vpop.f32.mrb[0].mxu0
  %134 = vdwg.mxu0
  %v135 = vadd.f32 %v78, %v130
  %v136 = vxor.u32 %v135, 2147483648
  %v137 = vmul.f32 %v136, 1.442695
  %v138 = vpow.pop %v137
  %v139 = vadd.f32 %v138, 1.0
  %v140 = vrcp.pop %v139
  %v141 = vmul.f32 1.0, %v140
  %v142 = vtanh.pop %v135
  %144 = vrot.lane.b32.xlu0 %v67, 32
  %v145 = vpop.permute.xlu0 %144
  %v147 = vmul.f32 %v141, %v145
  %149 = vrot.lane.b32.xlu0 %v142, 64
  %v150 = vpop.permute.xlu0 %149
  %v152 = vmul.f32 %v141, %v150
  %154 = vrot.lane.b32.xlu0 %v152, 32
  %v155 = vpop.permute.xlu0 %154
  %v157 = vadd.f32 %v147, %v155
  %v158 = vtanh.pop %v157
  %160 = vrot.lane.b32.xlu0 %v158, 64
  %v161 = vpop.permute.xlu0 %160
  %v163 = vmul.f32 %v141, %v161
  %165 = vrot.lane.b32.xlu0 %v163, 32
  %v166 = vpop.permute.xlu0 %165
  %vm168 = vcmask 254976
  %169 = vst.msk [vmem:[%s4] sm:$0x3] %vm168, %v166
  %v170 = vpack.c.bf16 %v163, %v163
  %s171 = scalar_lea.vmem %s44, 14
  %v172 = vld [vmem:[%s171] sm:$0x3]
  %v177 = vunpack.c.l.b16 %v74
  %v178 = vunpack.c.l.b16 %v75
  %v179 = vunpack.c.l.b16 %v76
  %v180 = vunpack.c.l.b16 %v77
  %v181 = vpack.c.b16 %v178, %v177
  %v182 = vpack.c.b16 %v180, %v179
  %v186 = vsel %vm91, %v68, 0
  %188 = vmatprep.subr.bf16.mxu0 0
  %189 = vmatpush1.bf16.msra.mxu0 %v181
  %190 = vmatprep.subr.bf16.mxu0 0
  %191 = vmatpush1.bf16.msra.mxu0 %v182
  %192 = vmatprep.subr.bf16.mxu0 0
  %193 = vmatpush1.bf16.msra.mxu0 0
  %194 = vmatprep.subr.bf16.mxu0 0
  %195 = vmatpush1.bf16.msra.mxu0 0
  %196 = vmatprep.subr.bf16.mxu0 0
  %197 = vmatpush1.bf16.msra.mxu0 0
  %198 = vmatprep.subr.bf16.mxu0 0
  %199 = vmatpush1.bf16.msra.mxu0 0
  %200 = vmatprep.subr.bf16.mxu0 0
  %201 = vmatpush1.bf16.msra.mxu0 0
  %202 = vmatprep.subr.bf16.mxu0 0
  %203 = vmatpush1.bf16.msra.mxu0 0
  %204 = vmatprep.subr.bf16.mxu0 0
  %205 = vmatpush1.bf16.msra.mxu0 0
  %206 = vmatprep.subr.bf16.mxu0 0
  %207 = vmatpush1.bf16.msra.mxu0 0
  %208 = vmatprep.subr.bf16.mxu0 0
  %209 = vmatpush1.bf16.msra.mxu0 0
  %210 = vmatprep.subr.bf16.mxu0 0
  %211 = vmatpush1.bf16.msra.mxu0 0
  %212 = vmatprep.subr.bf16.mxu0 0
  %213 = vmatpush1.bf16.msra.mxu0 0
  %214 = vmatprep.subr.bf16.mxu0 0
  %215 = vmatpush1.bf16.msra.mxu0 0
  %216 = vmatprep.subr.bf16.mxu0 0
  %217 = vmatpush1.bf16.msra.mxu0 0
  %218 = vmatprep.subr.bf16.mxu0 0
  %219 = vmatpush1.bf16.msra.mxu0 0
  %220 = vmatprep.mubr.bf16.mxu0 0
  %221 = vmatmul.mubr.bf16.gmra.mrb[0].mxu0 %v186
  %v222 = vpop.f32.mrb[0].mxu0
  %v223 = vadd.f32 0.0, %v222
  %v224 = vpop.f32.mrb[0].mxu0
  %v225 = vpop.f32.mrb[0].mxu0
  %v226 = vpop.f32.mrb[0].mxu0
  %227 = vdwg.mxu0
  %v228 = vadd.f32 %v172, %v223
  %v229 = vxor.u32 %v228, 2147483648
  %v230 = vmul.f32 %v229, 1.442695
  %v231 = vpow.pop %v230
  %v232 = vadd.f32 %v231, 1.0
  %v233 = vrcp.pop %v232
  %v234 = vmul.f32 1.0, %v233
  %v235 = vtanh.pop %v228
  %237 = vrot.lane.b32.xlu0 %v69, 32
  %v238 = vpop.permute.xlu0 %237
  %v240 = vmul.f32 %v234, %v238
  %242 = vrot.lane.b32.xlu0 %v235, 64
  %v243 = vpop.permute.xlu0 %242
  %v245 = vmul.f32 %v234, %v243
  %247 = vrot.lane.b32.xlu0 %v245, 32
  %v248 = vpop.permute.xlu0 %247
  %v250 = vadd.f32 %v240, %v248
  %v251 = vtanh.pop %v250
  %253 = vrot.lane.b32.xlu0 %v251, 64
  %v254 = vpop.permute.xlu0 %253
  %v256 = vmul.f32 %v234, %v254
  %258 = vrot.lane.b32.xlu0 %v256, 32
  %v259 = vpop.permute.xlu0 %258
  %s261 = scalar_lea.vmem %s52, 14
  %262 = vst.msk [vmem:[%s261] sm:$0x3] %vm168, %v259
  %v263 = vpack.c.bf16 %v256, %v256
  %s264 = scalar_lea.vmem %s0, 2
  %v265 = vld [vmem:[%s264] sm:$0x3]
  %267 = vrot.lane.b32.xlu0 %v170, 32
  %v268 = vpop.permute.xlu0 %267
  %v270 = vsel %vm91, %v268, 0
  %272 = vmatprep.subr.bf16.mxu0 0
  %273 = vmatpush1.bf16.msra.mxu0 %v87
  %274 = vmatprep.subr.bf16.mxu0 0
  %275 = vmatpush1.bf16.msra.mxu0 %v88
  %276 = vmatprep.subr.bf16.mxu0 0
  %277 = vmatpush1.bf16.msra.mxu0 0
  %278 = vmatprep.subr.bf16.mxu0 0
  %279 = vmatpush1.bf16.msra.mxu0 0
  %280 = vmatprep.subr.bf16.mxu0 0
  %281 = vmatpush1.bf16.msra.mxu0 0
  %282 = vmatprep.subr.bf16.mxu0 0
  %283 = vmatpush1.bf16.msra.mxu0 0
  %284 = vmatprep.subr.bf16.mxu0 0
  %285 = vmatpush1.bf16.msra.mxu0 0
  %286 = vmatprep.subr.bf16.mxu0 0
  %287 = vmatpush1.bf16.msra.mxu0 0
  %288 = vmatprep.subr.bf16.mxu0 0
  %289 = vmatpush1.bf16.msra.mxu0 0
  %290 = vmatprep.subr.bf16.mxu0 0
  %291 = vmatpush1.bf16.msra.mxu0 0
  %292 = vmatprep.subr.bf16.mxu0 0
  %293 = vmatpush1.bf16.msra.mxu0 0
  %294 = vmatprep.subr.bf16.mxu0 0
  %295 = vmatpush1.bf16.msra.mxu0 0
  %296 = vmatprep.subr.bf16.mxu0 0
  %297 = vmatpush1.bf16.msra.mxu0 0
  %298 = vmatprep.subr.bf16.mxu0 0
  %299 = vmatpush1.bf16.msra.mxu0 0
  %300 = vmatprep.subr.bf16.mxu0 0
  %301 = vmatpush1.bf16.msra.mxu0 0
  %302 = vmatprep.subr.bf16.mxu0 0
  %303 = vmatpush1.bf16.msra.mxu0 0
  %304 = vmatprep.mubr.bf16.mxu0 0
  %305 = vmatmul.mubr.bf16.gmra.mrb[0].mxu0 %v270
  %v306 = vpop.f32.mrb[0].mxu0
  %v307 = vadd.f32 0.0, %v306
  %v308 = vpop.f32.mrb[0].mxu0
  %v309 = vpop.f32.mrb[0].mxu0
  %v310 = vpop.f32.mrb[0].mxu0
  %311 = vdwg.mxu0
  %v312 = vadd.f32 %v265, %v307
  %v313 = vxor.u32 %v312, 2147483648
  %v314 = vmul.f32 %v313, 1.442695
  %v315 = vpow.pop %v314
  %v316 = vadd.f32 %v315, 1.0
  %v317 = vrcp.pop %v316
  %v318 = vmul.f32 1.0, %v317
  %v319 = vtanh.pop %v312
  %v320 = vmul.f32 %v318, %v157
  %322 = vrot.lane.b32.xlu0 %v319, 64
  %v323 = vpop.permute.xlu0 %322
  %v325 = vmul.f32 %v318, %v323
  %327 = vrot.lane.b32.xlu0 %v325, 32
  %v328 = vpop.permute.xlu0 %327
  %v330 = vadd.f32 %v320, %v328
  %v331 = vtanh.pop %v330
  %333 = vrot.lane.b32.xlu0 %v331, 64
  %v334 = vpop.permute.xlu0 %333
  %v336 = vmul.f32 %v318, %v334
  %338 = vrot.lane.b32.xlu0 %v336, 32
  %v339 = vpop.permute.xlu0 %338
  %s341 = scalar_lea.vmem %s4, 2
  %342 = vst.msk [vmem:[%s341] sm:$0x3] %vm168, %v339
  %v343 = vpack.c.bf16 %v336, %v336
  %s344 = scalar_lea.vmem %s44, 12
  %v345 = vld [vmem:[%s344] sm:$0x3]
  %347 = vrot.lane.b32.xlu0 %v263, 32
  %v348 = vpop.permute.xlu0 %347
  %v350 = vsel %vm91, %v348, 0
  %352 = vmatprep.subr.bf16.mxu0 0
  %353 = vmatpush1.bf16.msra.mxu0 %v181
  %354 = vmatprep.subr.bf16.mxu0 0
  %355 = vmatpush1.bf16.msra.mxu0 %v182
  %356 = vmatprep.subr.bf16.mxu0 0
  %357 = vmatpush1.bf16.msra.mxu0 0
  %358 = vmatprep.subr.bf16.mxu0 0
  %359 = vmatpush1.bf16.msra.mxu0 0
  %360 = vmatprep.subr.bf16.mxu0 0
  %361 = vmatpush1.bf16.msra.mxu0 0
  %362 = vmatprep.subr.bf16.mxu0 0
  %363 = vmatpush1.bf16.msra.mxu0 0
  %364 = vmatprep.subr.bf16.mxu0 0
  %365 = vmatpush1.bf16.msra.mxu0 0
  %366 = vmatprep.subr.bf16.mxu0 0
  %367 = vmatpush1.bf16.msra.mxu0 0
  %368 = vmatprep.subr.bf16.mxu0 0
  %369 = vmatpush1.bf16.msra.mxu0 0
  %370 = vmatprep.subr.bf16.mxu0 0
  %371 = vmatpush1.bf16.msra.mxu0 0
  %372 = vmatprep.subr.bf16.mxu0 0
  %373 = vmatpush1.bf16.msra.mxu0 0
  %374 = vmatprep.subr.bf16.mxu0 0
  %375 = vmatpush1.bf16.msra.mxu0 0
  %376 = vmatprep.subr.bf16.mxu0 0
  %377 = vmatpush1.bf16.msra.mxu0 0
  %378 = vmatprep.subr.bf16.mxu0 0
  %379 = vmatpush1.bf16.msra.mxu0 0
  %380 = vmatprep.subr.bf16.mxu0 0
  %381 = vmatpush1.bf16.msra.mxu0 0
  %382 = vmatprep.subr.bf16.mxu0 0
  %383 = vmatpush1.bf16.msra.mxu0 0
  %384 = vmatprep.mubr.bf16.mxu0 0
  %385 = vmatmul.mubr.bf16.gmra.mrb[0].mxu0 %v350
  %v386 = vpop.f32.mrb[0].mxu0
  %v387 = vadd.f32 0.0, %v386
  %v388 = vpop.f32.mrb[0].mxu0
  %v389 = vpop.f32.mrb[0].mxu0
  %v390 = vpop.f32.mrb[0].mxu0
  %391 = vdwg.mxu0
  %v392 = vadd.f32 %v345, %v387
  %v393 = vxor.u32 %v392, 2147483648
  %v394 = vmul.f32 %v393, 1.442695
  %v395 = vpow.pop %v394
  %v396 = vadd.f32 %v395, 1.0
  %v397 = vrcp.pop %v396
  %v398 = vmul.f32 1.0, %v397
  %v399 = vtanh.pop %v392
  %v400 = vmul.f32 %v398, %v250
  %402 = vrot.lane.b32.xlu0 %v399, 64
  %v403 = vpop.permute.xlu0 %402
  %v405 = vmul.f32 %v398, %v403
  %407 = vrot.lane.b32.xlu0 %v405, 32
  %v408 = vpop.permute.xlu0 %407
  %v410 = vadd.f32 %v400, %v408
  %v411 = vtanh.pop %v410
  %413 = vrot.lane.b32.xlu0 %v411, 64
  %v414 = vpop.permute.xlu0 %413
  %v416 = vmul.f32 %v398, %v414
  %418 = vrot.lane.b32.xlu0 %v416, 32
  %v419 = vpop.permute.xlu0 %418
  %s421 = scalar_lea.vmem %s52, 12
  %422 = vst.msk [vmem:[%s421] sm:$0x3] %vm168, %v419
  %v423 = vpack.c.bf16 %v416, %v416
  %s424 = scalar_lea.vmem %s0, 4
  %v425 = vld [vmem:[%s424] sm:$0x3]
  %427 = vrot.lane.b32.xlu0 %v343, 32
  %v428 = vpop.permute.xlu0 %427
  %v430 = vsel %vm91, %v428, 0
  %432 = vmatprep.subr.bf16.mxu0 0
  %433 = vmatpush1.bf16.msra.mxu0 %v87
  %434 = vmatprep.subr.bf16.mxu0 0
  %435 = vmatpush1.bf16.msra.mxu0 %v88
  %436 = vmatprep.subr.bf16.mxu0 0
  %437 = vmatpush1.bf16.msra.mxu0 0
  %438 = vmatprep.subr.bf16.mxu0 0
  %439 = vmatpush1.bf16.msra.mxu0 0
  %440 = vmatprep.subr.bf16.mxu0 0
  %441 = vmatpush1.bf16.msra.mxu0 0
  %442 = vmatprep.subr.bf16.mxu0 0
  %443 = vmatpush1.bf16.msra.mxu0 0
  %444 = vmatprep.subr.bf16.mxu0 0
  %445 = vmatpush1.bf16.msra.mxu0 0
  %446 = vmatprep.subr.bf16.mxu0 0
  %447 = vmatpush1.bf16.msra.mxu0 0
  %448 = vmatprep.subr.bf16.mxu0 0
  %449 = vmatpush1.bf16.msra.mxu0 0
  %450 = vmatprep.subr.bf16.mxu0 0
  %451 = vmatpush1.bf16.msra.mxu0 0
  %452 = vmatprep.subr.bf16.mxu0 0
  %453 = vmatpush1.bf16.msra.mxu0 0
  %454 = vmatprep.subr.bf16.mxu0 0
  %455 = vmatpush1.bf16.msra.mxu0 0
  %456 = vmatprep.subr.bf16.mxu0 0
  %457 = vmatpush1.bf16.msra.mxu0 0
  %458 = vmatprep.subr.bf16.mxu0 0
  %459 = vmatpush1.bf16.msra.mxu0 0
  %460 = vmatprep.subr.bf16.mxu0 0
  %461 = vmatpush1.bf16.msra.mxu0 0
  %462 = vmatprep.subr.bf16.mxu0 0
  %463 = vmatpush1.bf16.msra.mxu0 0
  %464 = vmatprep.mubr.bf16.mxu0 0
  %465 = vmatmul.mubr.bf16.gmra.mrb[0].mxu0 %v430
  %v466 = vpop.f32.mrb[0].mxu0
  %v467 = vadd.f32 0.0, %v466
  %v468 = vpop.f32.mrb[0].mxu0
  %v469 = vpop.f32.mrb[0].mxu0
  %v470 = vpop.f32.mrb[0].mxu0
  %471 = vdwg.mxu0
  %v472 = vadd.f32 %v425, %v467
  %v473 = vxor.u32 %v472, 2147483648
  %v474 = vmul.f32 %v473, 1.442695
  %v475 = vpow.pop %v474
  %v476 = vadd.f32 %v475, 1.0
  %v477 = vrcp.pop %v476
  %v478 = vmul.f32 1.0, %v477
  %v479 = vtanh.pop %v472
  %v480 = vmul.f32 %v478, %v330
  %482 = vrot.lane.b32.xlu0 %v479, 64
  %v483 = vpop.permute.xlu0 %482
  %v485 = vmul.f32 %v478, %v483
  %487 = vrot.lane.b32.xlu0 %v485, 32
  %v488 = vpop.permute.xlu0 %487
  %v490 = vadd.f32 %v480, %v488
  %v491 = vtanh.pop %v490
  %493 = vrot.lane.b32.xlu0 %v491, 64
  %v494 = vpop.permute.xlu0 %493
  %v496 = vmul.f32 %v478, %v494
  %498 = vrot.lane.b32.xlu0 %v496, 32
  %v499 = vpop.permute.xlu0 %498
  %s501 = scalar_lea.vmem %s4, 4
  %502 = vst.msk [vmem:[%s501] sm:$0x3] %vm168, %v499
  %v503 = vpack.c.bf16 %v496, %v496
  %s504 = scalar_lea.vmem %s44, 10
  %v505 = vld [vmem:[%s504] sm:$0x3]
  %507 = vrot.lane.b32.xlu0 %v423, 32
  %v508 = vpop.permute.xlu0 %507
  %v510 = vsel %vm91, %v508, 0
  %512 = vmatprep.subr.bf16.mxu0 0
  %513 = vmatpush1.bf16.msra.mxu0 %v181
  %514 = vmatprep.subr.bf16.mxu0 0
  %515 = vmatpush1.bf16.msra.mxu0 %v182
  %516 = vmatprep.subr.bf16.mxu0 0
  %517 = vmatpush1.bf16.msra.mxu0 0
  %518 = vmatprep.subr.bf16.mxu0 0
  %519 = vmatpush1.bf16.msra.mxu0 0
  %520 = vmatprep.subr.bf16.mxu0 0
  %521 = vmatpush1.bf16.msra.mxu0 0
  %522 = vmatprep.subr.bf16.mxu0 0
  %523 = vmatpush1.bf16.msra.mxu0 0
  %524 = vmatprep.subr.bf16.mxu0 0
  %525 = vmatpush1.bf16.msra.mxu0 0
  %526 = vmatprep.subr.bf16.mxu0 0
  %527 = vmatpush1.bf16.msra.mxu0 0
  %528 = vmatprep.subr.bf16.mxu0 0
  %529 = vmatpush1.bf16.msra.mxu0 0
  %530 = vmatprep.subr.bf16.mxu0 0
  %531 = vmatpush1.bf16.msra.mxu0 0
  %532 = vmatprep.subr.bf16.mxu0 0
  %533 = vmatpush1.bf16.msra.mxu0 0
  %534 = vmatprep.subr.bf16.mxu0 0
  %535 = vmatpush1.bf16.msra.mxu0 0
  %536 = vmatprep.subr.bf16.mxu0 0
  %537 = vmatpush1.bf16.msra.mxu0 0
  %538 = vmatprep.subr.bf16.mxu0 0
  %539 = vmatpush1.bf16.msra.mxu0 0
  %540 = vmatprep.subr.bf16.mxu0 0
  %541 = vmatpush1.bf16.msra.mxu0 0
  %542 = vmatprep.subr.bf16.mxu0 0
  %543 = vmatpush1.bf16.msra.mxu0 0
  %544 = vmatprep.mubr.bf16.mxu0 0
  %545 = vmatmul.mubr.bf16.gmra.mrb[0].mxu0 %v510
  %v546 = vpop.f32.mrb[0].mxu0
  %v547 = vadd.f32 0.0, %v546
  %v548 = vpop.f32.mrb[0].mxu0
  %v549 = vpop.f32.mrb[0].mxu0
  %v550 = vpop.f32.mrb[0].mxu0
  %551 = vdwg.mxu0
  %v552 = vadd.f32 %v505, %v547
  %v553 = vxor.u32 %v552, 2147483648
  %v554 = vmul.f32 %v553, 1.442695
  %v555 = vpow.pop %v554
  %v556 = vadd.f32 %v555, 1.0
  %v557 = vrcp.pop %v556
  %v558 = vmul.f32 1.0, %v557
  %v559 = vtanh.pop %v552
  %v560 = vmul.f32 %v558, %v410
  %562 = vrot.lane.b32.xlu0 %v559, 64
  %v563 = vpop.permute.xlu0 %562
  %v565 = vmul.f32 %v558, %v563
  %567 = vrot.lane.b32.xlu0 %v565, 32
  %v568 = vpop.permute.xlu0 %567
  %v570 = vadd.f32 %v560, %v568
  %v571 = vtanh.pop %v570
  %573 = vrot.lane.b32.xlu0 %v571, 64
  %v574 = vpop.permute.xlu0 %573
  %v576 = vmul.f32 %v558, %v574
  %578 = vrot.lane.b32.xlu0 %v576, 32
  %v579 = vpop.permute.xlu0 %578
  %s581 = scalar_lea.vmem %s52, 10
  %582 = vst.msk [vmem:[%s581] sm:$0x3] %vm168, %v579
  %v583 = vpack.c.bf16 %v576, %v576
  %s584 = scalar_lea.vmem %s0, 6
  %v585 = vld [vmem:[%s584] sm:$0x3]
  %587 = vrot.lane.b32.xlu0 %v503, 32
  %v588 = vpop.permute.xlu0 %587
  %v590 = vsel %vm91, %v588, 0
  %592 = vmatprep.subr.bf16.mxu0 0
  %593 = vmatpush1.bf16.msra.mxu0 %v87
  %594 = vmatprep.subr.bf16.mxu0 0
  %595 = vmatpush1.bf16.msra.mxu0 %v88
  %596 = vmatprep.subr.bf16.mxu0 0
  %597 = vmatpush1.bf16.msra.mxu0 0
  %598 = vmatprep.subr.bf16.mxu0 0
  %599 = vmatpush1.bf16.msra.mxu0 0
  %600 = vmatprep.subr.bf16.mxu0 0
  %601 = vmatpush1.bf16.msra.mxu0 0
  %602 = vmatprep.subr.bf16.mxu0 0
  %603 = vmatpush1.bf16.msra.mxu0 0
  %604 = vmatprep.subr.bf16.mxu0 0
  %605 = vmatpush1.bf16.msra.mxu0 0
  %606 = vmatprep.subr.bf16.mxu0 0
  %607 = vmatpush1.bf16.msra.mxu0 0
  %608 = vmatprep.subr.bf16.mxu0 0
  %609 = vmatpush1.bf16.msra.mxu0 0
  %610 = vmatprep.subr.bf16.mxu0 0
  %611 = vmatpush1.bf16.msra.mxu0 0
  %612 = vmatprep.subr.bf16.mxu0 0
  %613 = vmatpush1.bf16.msra.mxu0 0
  %614 = vmatprep.subr.bf16.mxu0 0
  %615 = vmatpush1.bf16.msra.mxu0 0
  %616 = vmatprep.subr.bf16.mxu0 0
  %617 = vmatpush1.bf16.msra.mxu0 0
  %618 = vmatprep.subr.bf16.mxu0 0
  %619 = vmatpush1.bf16.msra.mxu0 0
  %620 = vmatprep.subr.bf16.mxu0 0
  %621 = vmatpush1.bf16.msra.mxu0 0
  %622 = vmatprep.subr.bf16.mxu0 0
  %623 = vmatpush1.bf16.msra.mxu0 0
  %624 = vmatprep.mubr.bf16.mxu0 0
  %625 = vmatmul.mubr.bf16.gmra.mrb[0].mxu0 %v590
  %v626 = vpop.f32.mrb[0].mxu0
  %v627 = vadd.f32 0.0, %v626
  %v628 = vpop.f32.mrb[0].mxu0
  %v629 = vpop.f32.mrb[0].mxu0
  %v630 = vpop.f32.mrb[0].mxu0
  %631 = vdwg.mxu0
  %v632 = vadd.f32 %v585, %v627
  %v633 = vxor.u32 %v632, 2147483648
  %v634 = vmul.f32 %v633, 1.442695
  %v635 = vpow.pop %v634
  %v636 = vadd.f32 %v635, 1.0
  %v637 = vrcp.pop %v636
  %v638 = vmul.f32 1.0, %v637
  %v639 = vtanh.pop %v632
  %v640 = vmul.f32 %v638, %v490
  %642 = vrot.lane.b32.xlu0 %v639, 64
  %v643 = vpop.permute.xlu0 %642
  %v645 = vmul.f32 %v638, %v643
  %647 = vrot.lane.b32.xlu0 %v645, 32
  %v648 = vpop.permute.xlu0 %647
  %v650 = vadd.f32 %v640, %v648
  %v651 = vtanh.pop %v650
  %653 = vrot.lane.b32.xlu0 %v651, 64
  %v654 = vpop.permute.xlu0 %653
  %v656 = vmul.f32 %v638, %v654
  %658 = vrot.lane.b32.xlu0 %v656, 32
  %v659 = vpop.permute.xlu0 %658
  %s661 = scalar_lea.vmem %s4, 6
  %662 = vst.msk [vmem:[%s661] sm:$0x3] %vm168, %v659
  %v663 = vpack.c.bf16 %v656, %v656
  %s664 = scalar_lea.vmem %s44, 8
  %v665 = vld [vmem:[%s664] sm:$0x3]
  %667 = vrot.lane.b32.xlu0 %v583, 32
  %v668 = vpop.permute.xlu0 %667
  %v670 = vsel %vm91, %v668, 0
  %672 = vmatprep.subr.bf16.mxu0 0
  %673 = vmatpush1.bf16.msra.mxu0 %v181
  %674 = vmatprep.subr.bf16.mxu0 0
  %675 = vmatpush1.bf16.msra.mxu0 %v182
  %676 = vmatprep.subr.bf16.mxu0 0
  %677 = vmatpush1.bf16.msra.mxu0 0
  %678 = vmatprep.subr.bf16.mxu0 0
  %679 = vmatpush1.bf16.msra.mxu0 0
  %680 = vmatprep.subr.bf16.mxu0 0
  %681 = vmatpush1.bf16.msra.mxu0 0
  %682 = vmatprep.subr.bf16.mxu0 0
  %683 = vmatpush1.bf16.msra.mxu0 0
  %684 = vmatprep.subr.bf16.mxu0 0
  %685 = vmatpush1.bf16.msra.mxu0 0
  %686 = vmatprep.subr.bf16.mxu0 0
  %687 = vmatpush1.bf16.msra.mxu0 0
  %688 = vmatprep.subr.bf16.mxu0 0
  %689 = vmatpush1.bf16.msra.mxu0 0
  %690 = vmatprep.subr.bf16.mxu0 0
  %691 = vmatpush1.bf16.msra.mxu0 0
  %692 = vmatprep.subr.bf16.mxu0 0
  %693 = vmatpush1.bf16.msra.mxu0 0
  %694 = vmatprep.subr.bf16.mxu0 0
  %695 = vmatpush1.bf16.msra.mxu0 0
  %696 = vmatprep.subr.bf16.mxu0 0
  %697 = vmatpush1.bf16.msra.mxu0 0
  %698 = vmatprep.subr.bf16.mxu0 0
  %699 = vmatpush1.bf16.msra.mxu0 0
  %700 = vmatprep.subr.bf16.mxu0 0
  %701 = vmatpush1.bf16.msra.mxu0 0
  %702 = vmatprep.subr.bf16.mxu0 0
  %703 = vmatpush1.bf16.msra.mxu0 0
  %704 = vmatprep.mubr.bf16.mxu0 0
  %705 = vmatmul.mubr.bf16.gmra.mrb[0].mxu0 %v670
  %v706 = vpop.f32.mrb[0].mxu0
  %v707 = vadd.f32 0.0, %v706
  %v708 = vpop.f32.mrb[0].mxu0
  %v709 = vpop.f32.mrb[0].mxu0
  %v710 = vpop.f32.mrb[0].mxu0
  %711 = vdwg.mxu0
  %v712 = vadd.f32 %v665, %v707
  %v713 = vxor.u32 %v712, 2147483648
  %v714 = vmul.f32 %v713, 1.442695
  %v715 = vpow.pop %v714
  %v716 = vadd.f32 %v715, 1.0
  %v717 = vrcp.pop %v716
  %v718 = vmul.f32 1.0, %v717
  %v719 = vtanh.pop %v712
  %v720 = vmul.f32 %v718, %v570
  %722 = vrot.lane.b32.xlu0 %v719, 64
  %v723 = vpop.permute.xlu0 %722
  %v725 = vmul.f32 %v718, %v723
  %727 = vrot.lane.b32.xlu0 %v725, 32
  %v728 = vpop.permute.xlu0 %727
  %v730 = vadd.f32 %v720, %v728
  %v731 = vtanh.pop %v730
  %733 = vrot.lane.b32.xlu0 %v731, 64
  %v734 = vpop.permute.xlu0 %733
  %v736 = vmul.f32 %v718, %v734
  %738 = vrot.lane.b32.xlu0 %v736, 32
  %v739 = vpop.permute.xlu0 %738
  %s741 = scalar_lea.vmem %s52, 8
  %742 = vst.msk [vmem:[%s741] sm:$0x3] %vm168, %v739
  %v743 = vpack.c.bf16 %v736, %v736
  %s744 = scalar_lea.vmem %s0, 8
  %v745 = vld [vmem:[%s744] sm:$0x3]
  %747 = vrot.lane.b32.xlu0 %v663, 32
  %v748 = vpop.permute.xlu0 %747
  %v750 = vsel %vm91, %v748, 0
  %752 = vmatprep.subr.bf16.mxu0 0
  %753 = vmatpush1.bf16.msra.mxu0 %v87
  %754 = vmatprep.subr.bf16.mxu0 0
  %755 = vmatpush1.bf16.msra.mxu0 %v88
  %756 = vmatprep.subr.bf16.mxu0 0
  %757 = vmatpush1.bf16.msra.mxu0 0
  %758 = vmatprep.subr.bf16.mxu0 0
  %759 = vmatpush1.bf16.msra.mxu0 0
  %760 = vmatprep.subr.bf16.mxu0 0
  %761 = vmatpush1.bf16.msra.mxu0 0
  %762 = vmatprep.subr.bf16.mxu0 0
  %763 = vmatpush1.bf16.msra.mxu0 0
  %764 = vmatprep.subr.bf16.mxu0 0
  %765 = vmatpush1.bf16.msra.mxu0 0
  %766 = vmatprep.subr.bf16.mxu0 0
  %767 = vmatpush1.bf16.msra.mxu0 0
  %768 = vmatprep.subr.bf16.mxu0 0
  %769 = vmatpush1.bf16.msra.mxu0 0
  %770 = vmatprep.subr.bf16.mxu0 0
  %771 = vmatpush1.bf16.msra.mxu0 0
  %772 = vmatprep.subr.bf16.mxu0 0
  %773 = vmatpush1.bf16.msra.mxu0 0
  %774 = vmatprep.subr.bf16.mxu0 0
  %775 = vmatpush1.bf16.msra.mxu0 0
  %776 = vmatprep.subr.bf16.mxu0 0
  %777 = vmatpush1.bf16.msra.mxu0 0
  %778 = vmatprep.subr.bf16.mxu0 0
  %779 = vmatpush1.bf16.msra.mxu0 0
  %780 = vmatprep.subr.bf16.mxu0 0
  %781 = vmatpush1.bf16.msra.mxu0 0
  %782 = vmatprep.subr.bf16.mxu0 0
  %783 = vmatpush1.bf16.msra.mxu0 0
  %784 = vmatprep.mubr.bf16.mxu0 0
  %785 = vmatmul.mubr.bf16.gmra.mrb[0].mxu0 %v750
  %v786 = vpop.f32.mrb[0].mxu0
  %v787 = vadd.f32 0.0, %v786
  %v788 = vpop.f32.mrb[0].mxu0
  %v789 = vpop.f32.mrb[0].mxu0
  %v790 = vpop.f32.mrb[0].mxu0
  %791 = vdwg.mxu0
  %v792 = vadd.f32 %v745, %v787
  %v793 = vxor.u32 %v792, 2147483648
  %v794 = vmul.f32 %v793, 1.442695
  %v795 = vpow.pop %v794
  %v796 = vadd.f32 %v795, 1.0
  %v797 = vrcp.pop %v796
  %v798 = vmul.f32 1.0, %v797
  %v799 = vtanh.pop %v792
  %v800 = vmul.f32 %v798, %v650
  %802 = vrot.lane.b32.xlu0 %v799, 64
  %v803 = vpop.permute.xlu0 %802
  %v805 = vmul.f32 %v798, %v803
  %807 = vrot.lane.b32.xlu0 %v805, 32
  %v808 = vpop.permute.xlu0 %807
  %v810 = vadd.f32 %v800, %v808
  %v811 = vtanh.pop %v810
  %813 = vrot.lane.b32.xlu0 %v811, 64
  %v814 = vpop.permute.xlu0 %813
  %v816 = vmul.f32 %v798, %v814
  %818 = vrot.lane.b32.xlu0 %v816, 32
  %v819 = vpop.permute.xlu0 %818
  %s821 = scalar_lea.vmem %s4, 8
  %822 = vst.msk [vmem:[%s821] sm:$0x3] %vm168, %v819
  %v823 = vpack.c.bf16 %v816, %v816
  %s824 = scalar_lea.vmem %s44, 6
  %v825 = vld [vmem:[%s824] sm:$0x3]
  %827 = vrot.lane.b32.xlu0 %v743, 32
  %v828 = vpop.permute.xlu0 %827
  %v830 = vsel %vm91, %v828, 0
  %832 = vmatprep.subr.bf16.mxu0 0
  %833 = vmatpush1.bf16.msra.mxu0 %v181
  %834 = vmatprep.subr.bf16.mxu0 0
  %835 = vmatpush1.bf16.msra.mxu0 %v182
  %836 = vmatprep.subr.bf16.mxu0 0
  %837 = vmatpush1.bf16.msra.mxu0 0
  %838 = vmatprep.subr.bf16.mxu0 0
  %839 = vmatpush1.bf16.msra.mxu0 0
  %840 = vmatprep.subr.bf16.mxu0 0
  %841 = vmatpush1.bf16.msra.mxu0 0
  %842 = vmatprep.subr.bf16.mxu0 0
  %843 = vmatpush1.bf16.msra.mxu0 0
  %844 = vmatprep.subr.bf16.mxu0 0
  %845 = vmatpush1.bf16.msra.mxu0 0
  %846 = vmatprep.subr.bf16.mxu0 0
  %847 = vmatpush1.bf16.msra.mxu0 0
  %848 = vmatprep.subr.bf16.mxu0 0
  %849 = vmatpush1.bf16.msra.mxu0 0
  %850 = vmatprep.subr.bf16.mxu0 0
  %851 = vmatpush1.bf16.msra.mxu0 0
  %852 = vmatprep.subr.bf16.mxu0 0
  %853 = vmatpush1.bf16.msra.mxu0 0
  %854 = vmatprep.subr.bf16.mxu0 0
  %855 = vmatpush1.bf16.msra.mxu0 0
  %856 = vmatprep.subr.bf16.mxu0 0
  %857 = vmatpush1.bf16.msra.mxu0 0
  %858 = vmatprep.subr.bf16.mxu0 0
  %859 = vmatpush1.bf16.msra.mxu0 0
  %860 = vmatprep.subr.bf16.mxu0 0
  %861 = vmatpush1.bf16.msra.mxu0 0
  %862 = vmatprep.subr.bf16.mxu0 0
  %863 = vmatpush1.bf16.msra.mxu0 0
  %864 = vmatprep.mubr.bf16.mxu0 0
  %865 = vmatmul.mubr.bf16.gmra.mrb[0].mxu0 %v830
  %v866 = vpop.f32.mrb[0].mxu0
  %v867 = vadd.f32 0.0, %v866
  %v868 = vpop.f32.mrb[0].mxu0
  %v869 = vpop.f32.mrb[0].mxu0
  %v870 = vpop.f32.mrb[0].mxu0
  %871 = vdwg.mxu0
  %v872 = vadd.f32 %v825, %v867
  %v873 = vxor.u32 %v872, 2147483648
  %v874 = vmul.f32 %v873, 1.442695
  %v875 = vpow.pop %v874
  %v876 = vadd.f32 %v875, 1.0
  %v877 = vrcp.pop %v876
  %v878 = vmul.f32 1.0, %v877
  %v879 = vtanh.pop %v872
  %v880 = vmul.f32 %v878, %v730
  %882 = vrot.lane.b32.xlu0 %v879, 64
  %v883 = vpop.permute.xlu0 %882
  %v885 = vmul.f32 %v878, %v883
  %887 = vrot.lane.b32.xlu0 %v885, 32
  %v888 = vpop.permute.xlu0 %887
  %v890 = vadd.f32 %v880, %v888
  %v891 = vtanh.pop %v890
  %893 = vrot.lane.b32.xlu0 %v891, 64
  %v894 = vpop.permute.xlu0 %893
  %v896 = vmul.f32 %v878, %v894
  %898 = vrot.lane.b32.xlu0 %v896, 32
  %v899 = vpop.permute.xlu0 %898
  %s901 = scalar_lea.vmem %s52, 6
  %902 = vst.msk [vmem:[%s901] sm:$0x3] %vm168, %v899
  %v903 = vpack.c.bf16 %v896, %v896
  %s904 = scalar_lea.vmem %s0, 10
  %v905 = vld [vmem:[%s904] sm:$0x3]
  %907 = vrot.lane.b32.xlu0 %v823, 32
  %v908 = vpop.permute.xlu0 %907
  %v910 = vsel %vm91, %v908, 0
  %912 = vmatprep.subr.bf16.mxu0 0
  %913 = vmatpush1.bf16.msra.mxu0 %v87
  %914 = vmatprep.subr.bf16.mxu0 0
  %915 = vmatpush1.bf16.msra.mxu0 %v88
  %916 = vmatprep.subr.bf16.mxu0 0
  %917 = vmatpush1.bf16.msra.mxu0 0
  %918 = vmatprep.subr.bf16.mxu0 0
  %919 = vmatpush1.bf16.msra.mxu0 0
  %920 = vmatprep.subr.bf16.mxu0 0
  %921 = vmatpush1.bf16.msra.mxu0 0
  %922 = vmatprep.subr.bf16.mxu0 0
  %923 = vmatpush1.bf16.msra.mxu0 0
  %924 = vmatprep.subr.bf16.mxu0 0
  %925 = vmatpush1.bf16.msra.mxu0 0
  %926 = vmatprep.subr.bf16.mxu0 0
  %927 = vmatpush1.bf16.msra.mxu0 0
  %928 = vmatprep.subr.bf16.mxu0 0
  %929 = vmatpush1.bf16.msra.mxu0 0
  %930 = vmatprep.subr.bf16.mxu0 0
  %931 = vmatpush1.bf16.msra.mxu0 0
  %932 = vmatprep.subr.bf16.mxu0 0
  %933 = vmatpush1.bf16.msra.mxu0 0
  %934 = vmatprep.subr.bf16.mxu0 0
  %935 = vmatpush1.bf16.msra.mxu0 0
  %936 = vmatprep.subr.bf16.mxu0 0
  %937 = vmatpush1.bf16.msra.mxu0 0
  %938 = vmatprep.subr.bf16.mxu0 0
  %939 = vmatpush1.bf16.msra.mxu0 0
  %940 = vmatprep.subr.bf16.mxu0 0
  %941 = vmatpush1.bf16.msra.mxu0 0
  %942 = vmatprep.subr.bf16.mxu0 0
  %943 = vmatpush1.bf16.msra.mxu0 0
  %944 = vmatprep.mubr.bf16.mxu0 0
  %945 = vmatmul.mubr.bf16.gmra.mrb[0].mxu0 %v910
  %v946 = vpop.f32.mrb[0].mxu0
  %v947 = vadd.f32 0.0, %v946
  %v948 = vpop.f32.mrb[0].mxu0
  %v949 = vpop.f32.mrb[0].mxu0
  %v950 = vpop.f32.mrb[0].mxu0
  %951 = vdwg.mxu0
  %v952 = vadd.f32 %v905, %v947
  %v953 = vxor.u32 %v952, 2147483648
  %v954 = vmul.f32 %v953, 1.442695
  %v955 = vpow.pop %v954
  %v956 = vadd.f32 %v955, 1.0
  %v957 = vrcp.pop %v956
  %v958 = vmul.f32 1.0, %v957
  %v959 = vtanh.pop %v952
  %v960 = vmul.f32 %v958, %v810
  %962 = vrot.lane.b32.xlu0 %v959, 64
  %v963 = vpop.permute.xlu0 %962
  %v965 = vmul.f32 %v958, %v963
  %967 = vrot.lane.b32.xlu0 %v965, 32
  %v968 = vpop.permute.xlu0 %967
  %v970 = vadd.f32 %v960, %v968
  %v971 = vtanh.pop %v970
  %973 = vrot.lane.b32.xlu0 %v971, 64
  %v974 = vpop.permute.xlu0 %973
  %v976 = vmul.f32 %v958, %v974
  %978 = vrot.lane.b32.xlu0 %v976, 32
  %v979 = vpop.permute.xlu0 %978
  %s981 = scalar_lea.vmem %s4, 10
  %982 = vst.msk [vmem:[%s981] sm:$0x3] %vm168, %v979
  %v983 = vpack.c.bf16 %v976, %v976
  %s984 = scalar_lea.vmem %s44, 4
  %v985 = vld [vmem:[%s984] sm:$0x3]
  %987 = vrot.lane.b32.xlu0 %v903, 32
  %v988 = vpop.permute.xlu0 %987
  %v990 = vsel %vm91, %v988, 0
  %992 = vmatprep.subr.bf16.mxu0 0
  %993 = vmatpush1.bf16.msra.mxu0 %v181
  %994 = vmatprep.subr.bf16.mxu0 0
  %995 = vmatpush1.bf16.msra.mxu0 %v182
  %996 = vmatprep.subr.bf16.mxu0 0
  %997 = vmatpush1.bf16.msra.mxu0 0
  %998 = vmatprep.subr.bf16.mxu0 0
  %999 = vmatpush1.bf16.msra.mxu0 0
  %1000 = vmatprep.subr.bf16.mxu0 0
  %1001 = vmatpush1.bf16.msra.mxu0 0
  %1002 = vmatprep.subr.bf16.mxu0 0
  %1003 = vmatpush1.bf16.msra.mxu0 0
  %1004 = vmatprep.subr.bf16.mxu0 0
  %1005 = vmatpush1.bf16.msra.mxu0 0
  %1006 = vmatprep.subr.bf16.mxu0 0
  %1007 = vmatpush1.bf16.msra.mxu0 0
  %1008 = vmatprep.subr.bf16.mxu0 0
  %1009 = vmatpush1.bf16.msra.mxu0 0
  %1010 = vmatprep.subr.bf16.mxu0 0
  %1011 = vmatpush1.bf16.msra.mxu0 0
  %1012 = vmatprep.subr.bf16.mxu0 0
  %1013 = vmatpush1.bf16.msra.mxu0 0
  %1014 = vmatprep.subr.bf16.mxu0 0
  %1015 = vmatpush1.bf16.msra.mxu0 0
  %1016 = vmatprep.subr.bf16.mxu0 0
  %1017 = vmatpush1.bf16.msra.mxu0 0
  %1018 = vmatprep.subr.bf16.mxu0 0
  %1019 = vmatpush1.bf16.msra.mxu0 0
  %1020 = vmatprep.subr.bf16.mxu0 0
  %1021 = vmatpush1.bf16.msra.mxu0 0
  %1022 = vmatprep.subr.bf16.mxu0 0
  %1023 = vmatpush1.bf16.msra.mxu0 0
  %1024 = vmatprep.mubr.bf16.mxu0 0
  %1025 = vmatmul.mubr.bf16.gmra.mrb[0].mxu0 %v990
  %v1026 = vpop.f32.mrb[0].mxu0
  %v1027 = vadd.f32 0.0, %v1026
  %v1028 = vpop.f32.mrb[0].mxu0
  %v1029 = vpop.f32.mrb[0].mxu0
  %v1030 = vpop.f32.mrb[0].mxu0
  %1031 = vdwg.mxu0
  %v1032 = vadd.f32 %v985, %v1027
  %v1033 = vxor.u32 %v1032, 2147483648
  %v1034 = vmul.f32 %v1033, 1.442695
  %v1035 = vpow.pop %v1034
  %v1036 = vadd.f32 %v1035, 1.0
  %v1037 = vrcp.pop %v1036
  %v1038 = vmul.f32 1.0, %v1037
  %v1039 = vtanh.pop %v1032
  %v1040 = vmul.f32 %v1038, %v890
  %1042 = vrot.lane.b32.xlu0 %v1039, 64
  %v1043 = vpop.permute.xlu0 %1042
  %v1045 = vmul.f32 %v1038, %v1043
  %1047 = vrot.lane.b32.xlu0 %v1045, 32
  %v1048 = vpop.permute.xlu0 %1047
  %v1050 = vadd.f32 %v1040, %v1048
  %v1051 = vtanh.pop %v1050
  %1053 = vrot.lane.b32.xlu0 %v1051, 64
  %v1054 = vpop.permute.xlu0 %1053
  %v1056 = vmul.f32 %v1038, %v1054
  %1058 = vrot.lane.b32.xlu0 %v1056, 32
  %v1059 = vpop.permute.xlu0 %1058
  %s1061 = scalar_lea.vmem %s52, 4
  %1062 = vst.msk [vmem:[%s1061] sm:$0x3] %vm168, %v1059
  %v1063 = vpack.c.bf16 %v1056, %v1056
  %s1064 = scalar_lea.vmem %s0, 12
  %v1065 = vld [vmem:[%s1064] sm:$0x3]
  %1067 = vrot.lane.b32.xlu0 %v983, 32
  %v1068 = vpop.permute.xlu0 %1067
  %v1070 = vsel %vm91, %v1068, 0
  %1072 = vmatprep.subr.bf16.mxu0 0
  %1073 = vmatpush1.bf16.msra.mxu0 %v87
  %1074 = vmatprep.subr.bf16.mxu0 0
  %1075 = vmatpush1.bf16.msra.mxu0 %v88
  %1076 = vmatprep.subr.bf16.mxu0 0
  %1077 = vmatpush1.bf16.msra.mxu0 0
  %1078 = vmatprep.subr.bf16.mxu0 0
  %1079 = vmatpush1.bf16.msra.mxu0 0
  %1080 = vmatprep.subr.bf16.mxu0 0
  %1081 = vmatpush1.bf16.msra.mxu0 0
  %1082 = vmatprep.subr.bf16.mxu0 0
  %1083 = vmatpush1.bf16.msra.mxu0 0
  %1084 = vmatprep.subr.bf16.mxu0 0
  %1085 = vmatpush1.bf16.msra.mxu0 0
  %1086 = vmatprep.subr.bf16.mxu0 0
  %1087 = vmatpush1.bf16.msra.mxu0 0
  %1088 = vmatprep.subr.bf16.mxu0 0
  %1089 = vmatpush1.bf16.msra.mxu0 0
  %1090 = vmatprep.subr.bf16.mxu0 0
  %1091 = vmatpush1.bf16.msra.mxu0 0
  %1092 = vmatprep.subr.bf16.mxu0 0
  %1093 = vmatpush1.bf16.msra.mxu0 0
  %1094 = vmatprep.subr.bf16.mxu0 0
  %1095 = vmatpush1.bf16.msra.mxu0 0
  %1096 = vmatprep.subr.bf16.mxu0 0
  %1097 = vmatpush1.bf16.msra.mxu0 0
  %1098 = vmatprep.subr.bf16.mxu0 0
  %1099 = vmatpush1.bf16.msra.mxu0 0
  %1100 = vmatprep.subr.bf16.mxu0 0
  %1101 = vmatpush1.bf16.msra.mxu0 0
  %1102 = vmatprep.subr.bf16.mxu0 0
  %1103 = vmatpush1.bf16.msra.mxu0 0
  %1104 = vmatprep.mubr.bf16.mxu0 0
  %1105 = vmatmul.mubr.bf16.gmra.mrb[0].mxu0 %v1070
  %v1106 = vpop.f32.mrb[0].mxu0
  %v1107 = vadd.f32 0.0, %v1106
  %v1108 = vpop.f32.mrb[0].mxu0
  %v1109 = vpop.f32.mrb[0].mxu0
  %v1110 = vpop.f32.mrb[0].mxu0
  %1111 = vdwg.mxu0
  %v1112 = vadd.f32 %v1065, %v1107
  %v1113 = vxor.u32 %v1112, 2147483648
  %v1114 = vmul.f32 %v1113, 1.442695
  %v1115 = vpow.pop %v1114
  %v1116 = vadd.f32 %v1115, 1.0
  %v1117 = vrcp.pop %v1116
  %v1118 = vmul.f32 1.0, %v1117
  %v1119 = vtanh.pop %v1112
  %v1120 = vmul.f32 %v1118, %v970
  %1122 = vrot.lane.b32.xlu0 %v1119, 64
  %v1123 = vpop.permute.xlu0 %1122
  %v1125 = vmul.f32 %v1118, %v1123
  %1127 = vrot.lane.b32.xlu0 %v1125, 32
  %v1128 = vpop.permute.xlu0 %1127
  %v1130 = vadd.f32 %v1120, %v1128
  %v1131 = vtanh.pop %v1130
  %1133 = vrot.lane.b32.xlu0 %v1131, 64
  %v1134 = vpop.permute.xlu0 %1133
  %v1136 = vmul.f32 %v1118, %v1134
  %1138 = vrot.lane.b32.xlu0 %v1136, 32
  %v1139 = vpop.permute.xlu0 %1138
  %s1141 = scalar_lea.vmem %s4, 12
  %1142 = vst.msk [vmem:[%s1141] sm:$0x3] %vm168, %v1139
  %v1143 = vpack.c.bf16 %v1136, %v1136
  %s1144 = scalar_lea.vmem %s44, 2
  %v1145 = vld [vmem:[%s1144] sm:$0x3]
  %1147 = vrot.lane.b32.xlu0 %v1063, 32
  %v1148 = vpop.permute.xlu0 %1147
  %v1150 = vsel %vm91, %v1148, 0
  %1152 = vmatprep.subr.bf16.mxu0 0
  %1153 = vmatpush1.bf16.msra.mxu0 %v181
  %1154 = vmatprep.subr.bf16.mxu0 0
  %1155 = vmatpush1.bf16.msra.mxu0 %v182
  %1156 = vmatprep.subr.bf16.mxu0 0
  %1157 = vmatpush1.bf16.msra.mxu0 0
  %1158 = vmatprep.subr.bf16.mxu0 0
  %1159 = vmatpush1.bf16.msra.mxu0 0
  %1160 = vmatprep.subr.bf16.mxu0 0
  %1161 = vmatpush1.bf16.msra.mxu0 0
  %1162 = vmatprep.subr.bf16.mxu0 0
  %1163 = vmatpush1.bf16.msra.mxu0 0
  %1164 = vmatprep.subr.bf16.mxu0 0
  %1165 = vmatpush1.bf16.msra.mxu0 0
  %1166 = vmatprep.subr.bf16.mxu0 0
  %1167 = vmatpush1.bf16.msra.mxu0 0
  %1168 = vmatprep.subr.bf16.mxu0 0
  %1169 = vmatpush1.bf16.msra.mxu0 0
  %1170 = vmatprep.subr.bf16.mxu0 0
  %1171 = vmatpush1.bf16.msra.mxu0 0
  %1172 = vmatprep.subr.bf16.mxu0 0
  %1173 = vmatpush1.bf16.msra.mxu0 0
  %1174 = vmatprep.subr.bf16.mxu0 0
  %1175 = vmatpush1.bf16.msra.mxu0 0
  %1176 = vmatprep.subr.bf16.mxu0 0
  %1177 = vmatpush1.bf16.msra.mxu0 0
  %1178 = vmatprep.subr.bf16.mxu0 0
  %1179 = vmatpush1.bf16.msra.mxu0 0
  %1180 = vmatprep.subr.bf16.mxu0 0
  %1181 = vmatpush1.bf16.msra.mxu0 0
  %1182 = vmatprep.subr.bf16.mxu0 0
  %1183 = vmatpush1.bf16.msra.mxu0 0
  %1184 = vmatprep.mubr.bf16.mxu0 0
  %1185 = vmatmul.mubr.bf16.gmra.mrb[0].mxu0 %v1150
  %v1186 = vpop.f32.mrb[0].mxu0
  %v1187 = vadd.f32 0.0, %v1186
  %v1188 = vpop.f32.mrb[0].mxu0
  %v1189 = vpop.f32.mrb[0].mxu0
  %v1190 = vpop.f32.mrb[0].mxu0
  %1191 = vdwg.mxu0
  %v1192 = vadd.f32 %v1145, %v1187
  %v1193 = vxor.u32 %v1192, 2147483648
  %v1194 = vmul.f32 %v1193, 1.442695
  %v1195 = vpow.pop %v1194
  %v1196 = vadd.f32 %v1195, 1.0
  %v1197 = vrcp.pop %v1196
  %v1198 = vmul.f32 1.0, %v1197
  %v1199 = vtanh.pop %v1192
  %v1200 = vmul.f32 %v1198, %v1050
  %1202 = vrot.lane.b32.xlu0 %v1199, 64
  %v1203 = vpop.permute.xlu0 %1202
  %v1205 = vmul.f32 %v1198, %v1203
  %1207 = vrot.lane.b32.xlu0 %v1205, 32
  %v1208 = vpop.permute.xlu0 %1207
  %v1210 = vadd.f32 %v1200, %v1208
  %v1211 = vtanh.pop %v1210
  %1213 = vrot.lane.b32.xlu0 %v1211, 64
  %v1214 = vpop.permute.xlu0 %1213
  %v1216 = vmul.f32 %v1198, %v1214
  %1218 = vrot.lane.b32.xlu0 %v1216, 32
  %v1219 = vpop.permute.xlu0 %1218
  %s1221 = scalar_lea.vmem %s52, 2
  %1222 = vst.msk [vmem:[%s1221] sm:$0x3] %vm168, %v1219
  %v1223 = vpack.c.bf16 %v1216, %v1216
  %s1224 = scalar_lea.vmem %s0, 14
  %v1225 = vld [vmem:[%s1224] sm:$0x3]
  %1227 = vrot.lane.b32.xlu0 %v1143, 32
  %v1228 = vpop.permute.xlu0 %1227
  %v1230 = vsel %vm91, %v1228, 0
  %1232 = vmatprep.subr.bf16.mxu0 0
  %1233 = vmatpush1.bf16.msra.mxu0 %v87
  %1234 = vmatprep.subr.bf16.mxu0 0
  %1235 = vmatpush1.bf16.msra.mxu0 %v88
  %1236 = vmatprep.subr.bf16.mxu0 0
  %1237 = vmatpush1.bf16.msra.mxu0 0
  %1238 = vmatprep.subr.bf16.mxu0 0
  %1239 = vmatpush1.bf16.msra.mxu0 0
  %1240 = vmatprep.subr.bf16.mxu0 0
  %1241 = vmatpush1.bf16.msra.mxu0 0
  %1242 = vmatprep.subr.bf16.mxu0 0
  %1243 = vmatpush1.bf16.msra.mxu0 0
  %1244 = vmatprep.subr.bf16.mxu0 0
  %1245 = vmatpush1.bf16.msra.mxu0 0
  %1246 = vmatprep.subr.bf16.mxu0 0
  %1247 = vmatpush1.bf16.msra.mxu0 0
  %1248 = vmatprep.subr.bf16.mxu0 0
  %1249 = vmatpush1.bf16.msra.mxu0 0
  %1250 = vmatprep.subr.bf16.mxu0 0
  %1251 = vmatpush1.bf16.msra.mxu0 0
  %1252 = vmatprep.subr.bf16.mxu0 0
  %1253 = vmatpush1.bf16.msra.mxu0 0
  %1254 = vmatprep.subr.bf16.mxu0 0
  %1255 = vmatpush1.bf16.msra.mxu0 0
  %1256 = vmatprep.subr.bf16.mxu0 0
  %1257 = vmatpush1.bf16.msra.mxu0 0
  %1258 = vmatprep.subr.bf16.mxu0 0
  %1259 = vmatpush1.bf16.msra.mxu0 0
  %1260 = vmatprep.subr.bf16.mxu0 0
  %1261 = vmatpush1.bf16.msra.mxu0 0
  %1262 = vmatprep.subr.bf16.mxu0 0
  %1263 = vmatpush1.bf16.msra.mxu0 0
  %1264 = vmatprep.mubr.bf16.mxu0 0
  %1265 = vmatmul.mubr.bf16.gmra.mrb[0].mxu0 %v1230
  %v1266 = vpop.f32.mrb[0].mxu0
  %v1267 = vadd.f32 0.0, %v1266
  %v1268 = vpop.f32.mrb[0].mxu0
  %v1269 = vpop.f32.mrb[0].mxu0
  %v1270 = vpop.f32.mrb[0].mxu0
  %1271 = vdwg.mxu0
  %v1272 = vadd.f32 %v1225, %v1267
  %v1273 = vxor.u32 %v1272, 2147483648
  %v1274 = vmul.f32 %v1273, 1.442695
  %v1275 = vpow.pop %v1274
  %v1276 = vadd.f32 %v1275, 1.0
  %v1277 = vrcp.pop %v1276
  %v1278 = vmul.f32 1.0, %v1277
  %v1279 = vtanh.pop %v1272
  %v1280 = vmul.f32 %v1278, %v1130
  %1282 = vrot.lane.b32.xlu0 %v1279, 64
  %v1283 = vpop.permute.xlu0 %1282
  %v1285 = vmul.f32 %v1278, %v1283
  %1287 = vrot.lane.b32.xlu0 %v1285, 32
  %v1288 = vpop.permute.xlu0 %1287
  %v1290 = vadd.f32 %v1280, %v1288
  %v1291 = vtanh.pop %v1290
  %1293 = vrot.lane.b32.xlu0 %v1291, 64
  %v1294 = vpop.permute.xlu0 %1293
  %v1296 = vmul.f32 %v1278, %v1294
  %1298 = vrot.lane.b32.xlu0 %v1296, 32
  %v1299 = vpop.permute.xlu0 %1298
  %s1301 = scalar_lea.vmem %s4, 14
  %1302 = vst.msk [vmem:[%s1301] sm:$0x3] %vm168, %v1299
  %v1303 = vpack.c.bf16 %v1296, %v1296
  %v1304 = vld [vmem:[%s44] sm:$0x3]
  %1306 = vrot.lane.b32.xlu0 %v1223, 32
  %v1307 = vpop.permute.xlu0 %1306
  %v1309 = vsel %vm91, %v1307, 0
  %1311 = vmatprep.subr.bf16.mxu0 0
  %1312 = vmatpush1.bf16.msra.mxu0 %v181
  %1313 = vmatprep.subr.bf16.mxu0 0
  %1314 = vmatpush1.bf16.msra.mxu0 %v182
  %1315 = vmatprep.subr.bf16.mxu0 0
  %1316 = vmatpush1.bf16.msra.mxu0 0
  %1317 = vmatprep.subr.bf16.mxu0 0
  %1318 = vmatpush1.bf16.msra.mxu0 0
  %1319 = vmatprep.subr.bf16.mxu0 0
  %1320 = vmatpush1.bf16.msra.mxu0 0
  %1321 = vmatprep.subr.bf16.mxu0 0
  %1322 = vmatpush1.bf16.msra.mxu0 0
  %1323 = vmatprep.subr.bf16.mxu0 0
  %1324 = vmatpush1.bf16.msra.mxu0 0
  %1325 = vmatprep.subr.bf16.mxu0 0
  %1326 = vmatpush1.bf16.msra.mxu0 0
  %1327 = vmatprep.subr.bf16.mxu0 0
  %1328 = vmatpush1.bf16.msra.mxu0 0
  %1329 = vmatprep.subr.bf16.mxu0 0
  %1330 = vmatpush1.bf16.msra.mxu0 0
  %1331 = vmatprep.subr.bf16.mxu0 0
  %1332 = vmatpush1.bf16.msra.mxu0 0
  %1333 = vmatprep.subr.bf16.mxu0 0
  %1334 = vmatpush1.bf16.msra.mxu0 0
  %1335 = vmatprep.subr.bf16.mxu0 0
  %1336 = vmatpush1.bf16.msra.mxu0 0
  %1337 = vmatprep.subr.bf16.mxu0 0
  %1338 = vmatpush1.bf16.msra.mxu0 0
  %1339 = vmatprep.subr.bf16.mxu0 0
  %1340 = vmatpush1.bf16.msra.mxu0 0
  %1341 = vmatprep.subr.bf16.mxu0 0
  %1342 = vmatpush1.bf16.msra.mxu0 0
  %1343 = vmatprep.mubr.bf16.mxu0 0
  %1344 = vmatmul.mubr.bf16.gmra.mrb[0].mxu0 %v1309
  %v1345 = vpop.f32.mrb[0].mxu0
  %v1346 = vadd.f32 0.0, %v1345
  %v1347 = vpop.f32.mrb[0].mxu0
  %v1348 = vpop.f32.mrb[0].mxu0
  %v1349 = vpop.f32.mrb[0].mxu0
  %1350 = vdwg.mxu0
  %v1351 = vadd.f32 %v1304, %v1346
  %v1352 = vxor.u32 %v1351, 2147483648
  %v1353 = vmul.f32 %v1352, 1.442695
  %v1354 = vpow.pop %v1353
  %v1355 = vadd.f32 %v1354, 1.0
  %v1356 = vrcp.pop %v1355
  %v1357 = vmul.f32 1.0, %v1356
  %v1358 = vtanh.pop %v1351
  %v1359 = vmul.f32 %v1357, %v1210
  %1361 = vrot.lane.b32.xlu0 %v1358, 64
  %v1362 = vpop.permute.xlu0 %1361
  %v1364 = vmul.f32 %v1357, %v1362
  %1366 = vrot.lane.b32.xlu0 %v1364, 32
  %v1367 = vpop.permute.xlu0 %1366
  %v1369 = vadd.f32 %v1359, %v1367
  %v1370 = vtanh.pop %v1369
  %1372 = vrot.lane.b32.xlu0 %v1370, 64
  %v1373 = vpop.permute.xlu0 %1372
  %v1375 = vmul.f32 %v1357, %v1373
  %1377 = vrot.lane.b32.xlu0 %v1375, 32
  %v1378 = vpop.permute.xlu0 %1377
  %1380 = vst.msk [vmem:[%s52] sm:$0x3] %vm168, %v1378
  %v1381 = vpack.c.bf16 %v1375, %v1375
  %v1384 = vunpack.c.l.s4 1966171168
  %v1385 = vunpack.c.0.s8 %v1384
  %v1386 = vlaneseq
  %v1387 = vshrl.u32 %v1386, 7
  %v1388 = vsub.s32 %v1385, %v1387
  %v1389 = vrot.slane %v1303, %v1388
  %v1391 = vunpack.c.l.s4 1966171168
  %v1392 = vunpack.c.0.s8 %v1391
  %v1393 = vlaneseq
  %v1394 = vshrl.u32 %v1393, 7
  %v1395 = vsub.s32 %v1392, %v1394
  %v1396 = vrot.slane %v1389, %v1395
  %1397 = vrot.lane.b32.xlu0 %v1396, 32
  %v1398 = vpop.permute.xlu0 %1397
  %vm1400 = vcmask 253952
  %1401 = vst.msk [vmem:[#allocation2] sm:$0x1] %vm1400, %v1398
  %1403 = vrot.lane.b32.xlu0 %v1290, 96
  %v1404 = vpop.permute.xlu0 %1403
  %1406 = vst.msk [vmem:[#allocation3] sm:$0x3] %vm168, %v1404
  %v1409 = vunpack.c.l.s4 1966171168
  %v1410 = vunpack.c.0.s8 %v1409
  %v1411 = vlaneseq
  %v1412 = vshrl.u32 %v1411, 7
  %v1413 = vsub.s32 %v1410, %v1412
  %v1414 = vrot.slane %v1381, %v1413
  %v1416 = vunpack.c.l.s4 1966171168
  %v1417 = vunpack.c.0.s8 %v1416
  %v1418 = vlaneseq
  %v1419 = vshrl.u32 %v1418, 7
  %v1420 = vsub.s32 %v1417, %v1419
  %v1421 = vrot.slane %v1414, %v1420
  %1422 = vrot.lane.b32.xlu0 %v1421, 32
  %v1423 = vpop.permute.xlu0 %1422
  %1425 = vst.msk [vmem:[#allocation4] sm:$0x1] %vm1400, %v1423
  %1427 = vrot.lane.b32.xlu0 %v1369, 96
  %v1428 = vpop.permute.xlu0 %1427
  %1430 = vst.msk [vmem:[#allocation5] sm:$0x3] %vm168, %v1428
  %s1431 = ssub.s32 0, 0
  %s1432 = smul.u32 8, %s1431
  %p1433 = scmp.lt.s32.totalorder %s1432, 7
  %s1434 = scalar_select %p1433, %s1432, 7
  %s1435 = smul.addr %s1434, 2
  %s1436 = scalar_lea.vmem %s5, %s1435
  // Predicated region
  $region22: #{bidaf_forward.19} parent=0 // pred_check
    _
  $region23: #{bidaf_forward.19} parent=0 // pred_check_branch
    %1438 = sbr.rel (0) target = $region25
  $region24: #{bidaf_forward.19} parent=0 // pred_region
    _
  $region25: #{bidaf_forward.19} parent=0 // pred_fallthru
    _
  // Predicated region
  $region26: #{bidaf_forward.19} parent=0 // pred_check
    _
  $region27: #{bidaf_forward.19} parent=0 // pred_check_branch
    %1440 = sbr.rel (0) target = $region29
  $region28: #{bidaf_forward.19} parent=0 // pred_region
    %s1441 = ssub.s32 0, 0
    %s1442 = smul.u32 8, %s1441
  $region29: #{bidaf_forward.19} parent=0 // pred_fallthru
    _
  // Predicated region
  $region30: #{bidaf_forward.19} parent=0 // pred_check
    _
  $region31: #{bidaf_forward.19} parent=0 // pred_check_branch
    %1444 = sbr.rel (0) target = $region33
  $region32: #{bidaf_forward.19} parent=0 // pred_region
    _
  $region33: #{bidaf_forward.19} parent=0 // pred_fallthru
    _
  // Predicated region
  $region34: #{bidaf_forward.19} parent=0 // pred_check
    _
  $region35: #{bidaf_forward.19} parent=0 // pred_check_branch
    %1446 = sbr.rel (0) target = $region37
  $region36: #{bidaf_forward.19} parent=0 // pred_region
    %s1447 = ssub.s32 0, 0
    %s1448 = smul.u32 8, %s1447
    %p1449 = scmp.lt.s32.totalorder %s1448, 7
    %s1450 = scalar_select %p1449, %s1448, 7
    %s1451 = smul.addr %s1450, 2
    %s1452 = scalar_lea.vmem %s5, %s1451
  $region37: #{bidaf_forward.19} parent=0 // pred_fallthru
    _

// kernel: bidaf_forward.16
$region0: #{bidaf_forward.16}
  #allocation0 [shape = 'u32[]', space=smem, size = 0x4, offset = 0x4, fixed_abs, tag = 'smem constant byte address 0x4 - core index']
  #allocation1 [shape = 'u32[144,128]{1,0:T(1,128)}', space=vmem, size = 0x12000, scoped, tag = 'internal scratch']
  %s0 = inlined_call_operand.vmem [shape: bf16[24,34], index: 0, kind: input, shape index: {}]
  %s1 = inlined_call_operand.vmem [shape: bf16[34,256], index: 1, kind: input, shape index: {}]
  %s2 = inlined_call_operand.vmem [shape: f32[1,256], index: 2, kind: input, shape index: {}]
  %s3 = inlined_call_operand.vmem [shape: f32[24,256], index: 3, kind: output, shape index: {}]
  %s4 = sld [smem:[#allocation0]]
  $region22: #{bidaf_forward.16} parent=0
    _
  %s6 = ssub.s32 1, %s4
  %s7 = scalar_select 0, %s6, %s4
  // Predicated region
  $region2: #{bidaf_forward.16} parent=0 // pred_check
    _
  $region3: #{bidaf_forward.16} parent=0 // pred_check_branch
    %9 = sbr.rel (0) target = $region5
  $region4: #{bidaf_forward.16} parent=0 // pred_region
    _
  $region5: #{bidaf_forward.16} parent=0 // pred_fallthru
    _
  // Predicated region
  $region6: #{bidaf_forward.16} parent=0 // pred_check
    _
  $region7: #{bidaf_forward.16} parent=0 // pred_check_branch
    %11 = sbr.rel (0) target = $region9
  $region8: #{bidaf_forward.16} parent=0 // pred_region
    _
  $region9: #{bidaf_forward.16} parent=0 // pred_fallthru
    _
  // Predicated region
  $region10: #{bidaf_forward.16} parent=0 // pred_check
    _
  $region11: #{bidaf_forward.16} parent=0 // pred_check_branch
    %13 = sbr.rel (0) target = $region13
  $region12: #{bidaf_forward.16} parent=0 // pred_region
    _
  $region13: #{bidaf_forward.16} parent=0 // pred_fallthru
    _
  %v15 = vld [vmem:[%s0] sm:$0xf]
  %v16 = vld [vmem:[%s0 + $0x4] sm:$0xf]
  %v17 = vld [vmem:[%s0 + $0x8] sm:$0xf]
  %v18 = vld [vmem:[%s1] sm:$0xff]
  %v19 = vld [vmem:[%s1 + $0x8] sm:$0xff]
  %v20 = vld [vmem:[%s1 + $0x10] sm:$0xff]
  %v21 = vld [vmem:[%s1 + $0x18] sm:$0xff]
  %v22 = vld [vmem:[%s1 + $0x20] sm:$0x11]
  %v23 = vld [vmem:[%s2] sm:$0x3]
  %v25 = vlaneseq
  %v26 = vshrl.u32 %v25, 7
  %v27 = vsub.s32 0, %v26
  %v28 = vrot.slane %v23, %v27
  %v29 = vlaneseq
  %v30 = vshrl.u32 %v29, 7
  %v31 = vsub.s32 1, %v30
  %v32 = vrot.slane %v23, %v31
  %v38 = vunpack.c.l.b16 %v15
  %v39 = vunpack.c.l.b16 %v16
  %v40 = vunpack.c.l.b16 %v17
  %v41 = vpack.c.b16 %v39, %v38
  %v42 = vpack.c.b16 %v40, %v40
  %v48 = vunpack.c.l.b16 %v18
  %v49 = vunpack.c.h.b16 %v18
  %v50 = vunpack.c.l.b16 %v19
  %v51 = vunpack.c.h.b16 %v19
  %v52 = vunpack.c.l.b16 %v20
  %v53 = vunpack.c.h.b16 %v20
  %v54 = vunpack.c.l.b16 %v21
  %v55 = vunpack.c.h.b16 %v21
  %v56 = vunpack.c.l.b16 %v22
  %v57 = vunpack.c.h.b16 %v22
  %v58 = vpack.c.b16 %v50, %v48
  %v59 = vpack.c.b16 %v51, %v49
  %v60 = vpack.c.b16 %v54, %v52
  %v61 = vpack.c.b16 %v55, %v53
  %v62 = vpack.c.b16 %v56, %v56
  %v63 = vpack.c.b16 %v57, %v57
  %vm68 = vcmask 277504
  %v70 = vsel %vm68, %v41, 0
  %v73 = vsel %vm68, %v42, 0
  %vm75 = vcmask 1040384
  %v77 = vsel %vm75, %v62, 0
  %v80 = vsel %vm75, %v63, 0
  %82 = vmatprep.subr.bf16.mxu0 %v59
  %83 = vmatpush1.bf16.msra.mxu0 %v58
  %84 = vmatprep.subr.bf16.mxu0 %v61
  %85 = vmatpush1.bf16.msra.mxu0 %v60
  %86 = vmatprep.subr.bf16.mxu0 %v80
  %87 = vmatpush1.bf16.msra.mxu0 %v77
  %88 = vmatprep.subr.bf16.mxu0 0
  %89 = vmatpush1.bf16.msra.mxu0 0
  %90 = vmatprep.subr.bf16.mxu0 0
  %91 = vmatpush1.bf16.msra.mxu0 0
  %92 = vmatprep.subr.bf16.mxu0 0
  %93 = vmatpush1.bf16.msra.mxu0 0
  %94 = vmatprep.subr.bf16.mxu0 0
  %95 = vmatpush1.bf16.msra.mxu0 0
  %96 = vmatprep.subr.bf16.mxu0 0
  %97 = vmatpush1.bf16.msra.mxu0 0
  %98 = vmatprep.subr.bf16.mxu0 0
  %99 = vmatpush1.bf16.msra.mxu0 0
  %100 = vmatprep.subr.bf16.mxu0 0
  %101 = vmatpush1.bf16.msra.mxu0 0
  %102 = vmatprep.subr.bf16.mxu0 0
  %103 = vmatpush1.bf16.msra.mxu0 0
  %104 = vmatprep.subr.bf16.mxu0 0
  %105 = vmatpush1.bf16.msra.mxu0 0
  %106 = vmatprep.subr.bf16.mxu0 0
  %107 = vmatpush1.bf16.msra.mxu0 0
  %108 = vmatprep.subr.bf16.mxu0 0
  %109 = vmatpush1.bf16.msra.mxu0 0
  %110 = vmatprep.subr.bf16.mxu0 0
  %111 = vmatpush1.bf16.msra.mxu0 0
  %112 = vmatprep.subr.bf16.mxu0 0
  %113 = vmatpush1.bf16.msra.mxu0 0
  %114 = vmatprep.mubr.bf16.mxu0 0
  %115 = vmatmul.mubr.bf16.gmra.mrb[0].mxu0 %v70
  %v116 = vpop.f32.mrb[0].mxu0
  %v117 = vadd.f32 %v28, %v116
  %v118 = vpop.f32.mrb[0].mxu0
  %v119 = vadd.f32 %v32, %v118
  %v120 = vpop.f32.mrb[0].mxu0
  %v121 = vadd.f32 %v28, %v120
  %v122 = vpop.f32.mrb[0].mxu0
  %v123 = vadd.f32 %v32, %v122
  %124 = vmatprep.mubr.bf16.mxu0 0
  %125 = vmatmul.mubr.bf16.gmra.mrb[0].mxu0 %v73
  %v126 = vpop.f32.mrb[0].mxu0
  %v127 = vadd.f32 %v28, %v126
  %v128 = vpop.f32.mrb[0].mxu0
  %v129 = vadd.f32 %v32, %v128
  %v130 = vpop.f32.mrb[0].mxu0
  %v131 = vpop.f32.mrb[0].mxu0
  %132 = vdwg.mxu0
  %133 = vst [vmem:[%s3] sm:$0xff] %v117
  %134 = vst [vmem:[%s3 + $0x8] sm:$0xff] %v119
  %135 = vst [vmem:[%s3 + $0x10] sm:$0xff] %v121
  %136 = vst [vmem:[%s3 + $0x18] sm:$0xff] %v123
  %137 = vst [vmem:[%s3 + $0x20] sm:$0xff] %v127
  %138 = vst [vmem:[%s3 + $0x28] sm:$0xff] %v129
  // Predicated region
  $region14: #{bidaf_forward.16} parent=0 // pred_check
    _
  $region15: #{bidaf_forward.16} parent=0 // pred_check_branch
    %140 = sbr.rel (0) target = $region17
  $region16: #{bidaf_forward.16} parent=0 // pred_region
    _
  $region17: #{bidaf_forward.16} parent=0 // pred_fallthru
    _
  // Predicated region
  $region18: #{bidaf_forward.16} parent=0 // pred_check
    _
  $region19: #{bidaf_forward.16} parent=0 // pred_check_branch
    %142 = sbr.rel (0) target = $region21
  $region20: #{bidaf_forward.16} parent=0 // pred_region
    _
  $region21: #{bidaf_forward.16} parent=0 // pred_fallthru
    _

// kernel: bidaf_forward.17
$region0: #{bidaf_forward.17}
  #allocation0 [shape = 'u32[]', space=smem, size = 0x4, offset = 0x4, fixed_abs, tag = 'smem constant byte address 0x4 - core index']
  #allocation1 [shape = 'u32[144,128]{1,0:T(1,128)}', space=vmem, size = 0x12000, scoped, tag = 'internal scratch']
  #allocation2 [shape = 'bf16[2,32]{1,0:T(2,128)(2,1)}', space=vmem, size = 0x200, scoped, tag = 'scratch operand']
  #allocation3 [shape = 'f32[2,32]{1,0:T(2,128)}', space=vmem, size = 0x400, scoped, tag = 'scratch operand']
  #allocation4 [shape = 'bf16[2,32]{1,0:T(2,128)(2,1)}', space=vmem, size = 0x200, scoped, tag = 'scratch operand']
  #allocation5 [shape = 'f32[2,32]{1,0:T(2,128)}', space=vmem, size = 0x400, scoped, tag = 'scratch operand']
  %s0 = inlined_call_operand.vmem [shape: f32[12,2,128], index: 0, kind: input, shape index: {}]
  %s1 = inlined_call_operand.vmem [shape: f32[12,2,128], index: 1, kind: input, shape index: {}]
  %s2 = inlined_call_operand.vmem [shape: bf16[32,128], index: 2, kind: input, shape index: {}]
  %s3 = inlined_call_operand.vmem [shape: bf16[32,128], index: 3, kind: input, shape index: {}]
  %s4 = inlined_call_operand.vmem [shape: f32[12,2,32], index: 4, kind: output, shape index: {0}]
  %s5 = inlined_call_operand.vmem [shape: f32[12,2,32], index: 5, kind: output, shape index: {1}]
  %6 = xla_tuple %s4, %s5
  %s7 = sld [smem:[#allocation0]]
  $region61: #{bidaf_forward.17} parent=0
    _
  %s9 = ssub.s32 1, %s7
  %s10 = scalar_select 0, %s9, %s7
  loop: start=0, step=1, limit=5
  $region2: #{bidaf_forward.17} parent=0 // loop_pre_header
    _
  $region3: #{bidaf_forward.17} parent=0 // loop_header
    %s12 = sphi 0, %s16
    %p13 = scmp.ge.s32.totalorder %s12, 5
    %s22 = sphi 0, %s24
    %s25 = sphi 0, %s22
    %s26 = sphi 0, %s25
    %s42 = sphi 0, %s26
    %s50 = sphi 0, %s52
    %s53 = sphi 0, %s50
    %s54 = sphi 0, %s53
    %s70 = sphi 0, %s54
    %s74 = sphi 0, %s74
    %s76 = sphi 0, %s74
    %s77 = sphi 0, %s76
    %s91 = sphi 0, %s77
    %s95 = sphi 0, %s95
    %s97 = sphi 0, %s95
    %s98 = sphi 0, %s97
    %s112 = sphi 0, %s98
    %s118 = sphi 0, %s120
    %s121 = sphi 0, %s118
    %s122 = sphi 0, %s121
    %s138 = sphi 0, %s122
    %s146 = sphi 0, %s148
    %s149 = sphi 0, %s146
    %s150 = sphi 0, %s149
    %s166 = sphi 0, %s150
  $region4: #{bidaf_forward.17} parent=0 // loop_header_branch
    %15 = sbr.rel (%p13) target = $region8
  $region5: #{bidaf_forward.17} parent=0 // loop_body
    %s17 = ssub.s32 %s12, 1
    %s18 = ssub.s32 %s12, 2
    %s19 = sadd.s32 %s12, 1
    %s20 = ssub.s32 %s12, %s19
    %p21 = scmp.eq.s32.totalorder %s20, 0
    %s23 = sadd.s32 %s22, 1
    %s24 = scalar_select %p21, %s22, %s23
    %p27 = pneg %p21
    %p28 = scmp.eq.s32.totalorder %s12, 2
    %p29 = por %p27, %p28
    %p30 = scmp.ne.s32.totalorder %s22, %s25
    %p31 = scmp.eq.s32.totalorder %s12, 0
    %p32 = por %p30, %p31
    %p33 = scmp.ne.s32.totalorder %s22, %s25
    %p34 = scmp.eq.s32.totalorder %s17, 2
    %p35 = por %p33, %p34
    %p36 = scmp.ne.s32.totalorder %s25, %s26
    %p37 = scmp.eq.s32.totalorder %s17, 0
    %p38 = por %p36, %p37
    %p39 = scmp.ne.s32.totalorder %s25, %s26
    %p40 = scmp.eq.s32.totalorder %s18, 2
    %p41 = por %p39, %p40
    %p43 = scmp.ne.s32.totalorder %s26, %s42
    %p44 = scmp.eq.s32.totalorder %s18, 0
    %p45 = por %p43, %p44
    %s46 = ssub.s32 2, %s12
    %s47 = ssub.s32 2, %s19
    %s48 = ssub.s32 %s46, %s47
    %p49 = scmp.eq.s32.totalorder %s48, 0
    %s51 = sadd.s32 %s50, 1
    %s52 = scalar_select %p49, %s50, %s51
    %p55 = pneg %p49
    %p56 = scmp.eq.s32.totalorder %s12, 2
    %p57 = por %p55, %p56
    %p58 = scmp.ne.s32.totalorder %s50, %s53
    %p59 = scmp.eq.s32.totalorder %s12, 0
    %p60 = por %p58, %p59
    %p61 = scmp.ne.s32.totalorder %s50, %s53
    %p62 = scmp.eq.s32.totalorder %s17, 2
    %p63 = por %p61, %p62
    %p64 = scmp.ne.s32.totalorder %s53, %s54
    %p65 = scmp.eq.s32.totalorder %s17, 0
    %p66 = por %p64, %p65
    %p67 = scmp.ne.s32.totalorder %s53, %s54
    %p68 = scmp.eq.s32.totalorder %s18, 2
    %p69 = por %p67, %p68
    %p71 = scmp.ne.s32.totalorder %s54, %s70
    %p72 = scmp.eq.s32.totalorder %s18, 0
    %p73 = por %p71, %p72
    %s75 = sadd.s32 %s74, 1
    %p78 = scmp.eq.s32.totalorder %s12, 2
    %p79 = scmp.ne.s32.totalorder %s74, %s76
    %p80 = scmp.eq.s32.totalorder %s12, 0
    %p81 = por %p79, %p80
    %p82 = scmp.ne.s32.totalorder %s74, %s76
    %p83 = scmp.eq.s32.totalorder %s17, 2
    %p84 = por %p82, %p83
    %p85 = scmp.ne.s32.totalorder %s76, %s77
    %p86 = scmp.eq.s32.totalorder %s17, 0
    %p87 = por %p85, %p86
    %p88 = scmp.ne.s32.totalorder %s76, %s77
    %p89 = scmp.eq.s32.totalorder %s18, 2
    %p90 = por %p88, %p89
    %p92 = scmp.ne.s32.totalorder %s77, %s91
    %p93 = scmp.eq.s32.totalorder %s18, 0
    %p94 = por %p92, %p93
    %s96 = sadd.s32 %s95, 1
    %p99 = scmp.eq.s32.totalorder %s12, 2
    %p100 = scmp.ne.s32.totalorder %s95, %s97
    %p101 = scmp.eq.s32.totalorder %s12, 0
    %p102 = por %p100, %p101
    %p103 = scmp.ne.s32.totalorder %s95, %s97
    %p104 = scmp.eq.s32.totalorder %s17, 2
    %p105 = por %p103, %p104
    %p106 = scmp.ne.s32.totalorder %s97, %s98
    %p107 = scmp.eq.s32.totalorder %s17, 0
    %p108 = por %p106, %p107
    %p109 = scmp.ne.s32.totalorder %s97, %s98
    %p110 = scmp.eq.s32.totalorder %s18, 2
    %p111 = por %p109, %p110
    %p113 = scmp.ne.s32.totalorder %s98, %s112
    %p114 = scmp.eq.s32.totalorder %s18, 0
    %p115 = por %p113, %p114
    %s116 = ssub.s32 %s12, %s19
    %p117 = scmp.eq.s32.totalorder %s116, 0
    %s119 = sadd.s32 %s118, 1
    %s120 = scalar_select %p117, %s118, %s119
    %p123 = pneg %p117
    %p124 = scmp.eq.s32.totalorder %s12, 2
    %p125 = por %p123, %p124
    %p126 = scmp.ne.s32.totalorder %s118, %s121
    %p127 = scmp.eq.s32.totalorder %s12, 0
    %p128 = por %p126, %p127
    %p129 = scmp.ne.s32.totalorder %s118, %s121
    %p130 = scmp.eq.s32.totalorder %s17, 2
    %p131 = por %p129, %p130
    %p132 = scmp.ne.s32.totalorder %s121, %s122
    %p133 = scmp.eq.s32.totalorder %s17, 0
    %p134 = por %p132, %p133
    %p135 = scmp.ne.s32.totalorder %s121, %s122
    %p136 = scmp.eq.s32.totalorder %s18, 2
    %p137 = por %p135, %p136
    %p139 = scmp.ne.s32.totalorder %s122, %s138
    %p140 = scmp.eq.s32.totalorder %s18, 0
    %p141 = por %p139, %p140
    %s142 = ssub.s32 2, %s12
    %s143 = ssub.s32 2, %s19
    %s144 = ssub.s32 %s142, %s143
    %p145 = scmp.eq.s32.totalorder %s144, 0
    %s147 = sadd.s32 %s146, 1
    %s148 = scalar_select %p145, %s146, %s147
    %p151 = pneg %p145
    %p152 = scmp.eq.s32.totalorder %s12, 2
    %p153 = por %p151, %p152
    %p154 = scmp.ne.s32.totalorder %s146, %s149
    %p155 = scmp.eq.s32.totalorder %s12, 0
    %p156 = por %p154, %p155
    %p157 = scmp.ne.s32.totalorder %s146, %s149
    %p158 = scmp.eq.s32.totalorder %s17, 2
    %p159 = por %p157, %p158
    %p160 = scmp.ne.s32.totalorder %s149, %s150
    %p161 = scmp.eq.s32.totalorder %s17, 0
    %p162 = por %p160, %p161
    %p163 = scmp.ne.s32.totalorder %s149, %s150
    %p164 = scmp.eq.s32.totalorder %s18, 2
    %p165 = por %p163, %p164
    %p167 = scmp.ne.s32.totalorder %s150, %s166
    %p168 = scmp.eq.s32.totalorder %s18, 0
    %p169 = por %p167, %p168
    %p170 = scmp.le.s32.totalorder 1, %s12
    %p171 = scmp.lt.s32.totalorder %s12, 4
    %p172 = pnand %p170, %p171
    %p173 = pneg %p172
    // Predicated region
    $region9: #{bidaf_forward.17} parent=5 // pred_check
      _
    $region10: #{bidaf_forward.17} parent=5 // pred_check_branch
      %175 = sbr.rel (%p172) target = $region12
    $region11: #{bidaf_forward.17} parent=5 // pred_region
      %s176 = ssub.s32 %s12, 1
      // Predicated region
      $region13: #{bidaf_forward.17} parent=11 // pred_check
        %p177 = pneg %p87
      $region14: #{bidaf_forward.17} parent=11 // pred_check_branch
        %179 = sbr.rel (%p177) target = $region16
      $region15: #{bidaf_forward.17} parent=11 // pred_region
        _
      $region16: #{bidaf_forward.17} parent=11 // pred_fallthru
        _
      // Predicated region
      $region17: #{bidaf_forward.17} parent=11 // pred_check
        %p180 = pneg %p108
      $region18: #{bidaf_forward.17} parent=11 // pred_check_branch
        %182 = sbr.rel (%p180) target = $region20
      $region19: #{bidaf_forward.17} parent=11 // pred_region
        _
      $region20: #{bidaf_forward.17} parent=11 // pred_fallthru
        _
    $region12: #{bidaf_forward.17} parent=5 // pred_fallthru
      _
    %p183 = scmp.lt.s32.totalorder %s12, 3
    // Predicated region
    $region21: #{bidaf_forward.17} parent=5 // pred_check
      %p184 = pneg %p183
    $region22: #{bidaf_forward.17} parent=5 // pred_check_branch
      %186 = sbr.rel (%p184) target = $region24
    $region23: #{bidaf_forward.17} parent=5 // pred_region
      // Predicated region
      $region25: #{bidaf_forward.17} parent=23 // pred_check
        %p187 = pneg %p32
      $region26: #{bidaf_forward.17} parent=23 // pred_check_branch
        %189 = sbr.rel (%p187) target = $region28
      $region27: #{bidaf_forward.17} parent=23 // pred_region
        %s190 = smul.u32 4, %s12
        %p191 = scmp.lt.s32.totalorder %s190, 11
        %s192 = scalar_select %p191, %s190, 11
        %s193 = smul.addr %s192, 2
        %s194 = scalar_lea.vmem %s0, %s193
        %s195 = smul.u32 4, %s12
      $region28: #{bidaf_forward.17} parent=23 // pred_fallthru
        _
      // Predicated region
      $region29: #{bidaf_forward.17} parent=23 // pred_check
        %p196 = pneg %p60
      $region30: #{bidaf_forward.17} parent=23 // pred_check_branch
        %198 = sbr.rel (%p196) target = $region32
      $region31: #{bidaf_forward.17} parent=23 // pred_region
        %s199 = ssub.s32 2, %s12
        %s200 = smul.u32 4, %s199
        %p201 = scmp.lt.s32.totalorder %s200, 11
        %s202 = scalar_select %p201, %s200, 11
        %s203 = smul.addr %s202, 2
        %s204 = scalar_lea.vmem %s1, %s203
        %s205 = ssub.s32 2, %s12
        %s206 = smul.u32 4, %s205
      $region32: #{bidaf_forward.17} parent=23 // pred_fallthru
        _
    $region24: #{bidaf_forward.17} parent=5 // pred_fallthru
      _
    %p207 = scmp.le.s32.totalorder 1, %s12
    %p208 = scmp.lt.s32.totalorder %s12, 4
    %p209 = pnand %p207, %p208
    %p210 = pneg %p209
    // Predicated region
    $region33: #{bidaf_forward.17} parent=5 // pred_check
      _
    $region34: #{bidaf_forward.17} parent=5 // pred_check_branch
      %212 = sbr.rel (%p209) target = $region36
    $region35: #{bidaf_forward.17} parent=5 // pred_region
      %s213 = ssub.s32 %s12, 1
      %s214 = smul.u32 4, %s17
      %p215 = scmp.lt.s32.totalorder %s214, 11
      %s216 = scalar_select %p215, %s214, 11
      %s217 = smul.addr %s216, 2
      %s218 = scalar_lea.vmem %s0, %s217
      %p219 = pneg %p38
      %p220 = pneg %p35
      %s221 = ssub.s32 2, %s17
      %s222 = smul.u32 4, %s221
      %p223 = scmp.lt.s32.totalorder %s222, 11
      %s224 = scalar_select %p223, %s222, 11
      %s225 = smul.addr %s224, 2
      %s226 = scalar_lea.vmem %s1, %s225
      %p227 = pneg %p66
      %p228 = pneg %p63
      %p229 = pneg %p87
      %p230 = pneg %p84
      %p231 = pneg %p108
      %p232 = pneg %p105
      %p233 = pneg %p134
      %p234 = pneg %p131
      %s235 = smul.u32 4, %s17
      %p236 = scmp.lt.s32.totalorder %s235, 11
      %s237 = scalar_select %p236, %s235, 11
      %s238 = smul.addr %s237, 2
      %s239 = scalar_lea.vmem %s4, %s238
      %p240 = pneg %p162
      %p241 = pneg %p159
      %s242 = ssub.s32 2, %s17
      %s243 = smul.u32 4, %s242
      %p244 = scmp.lt.s32.totalorder %s243, 11
      %s245 = scalar_select %p244, %s243, 11
      %s246 = smul.addr %s245, 2
      %s247 = scalar_lea.vmem %s5, %s246
      %s248 = smul.u32 4, %s17
      %p249 = scmp.lt.s32.totalorder %s248, 11
      %s250 = scalar_select %p249, %s248, 11
      %s251 = smul.addr %s250, 2
      %s252 = scalar_lea.vmem %s0, %s251
      %s253 = smul.u32 4, %s17
      %s254 = ssub.s32 2, %s17
      %s255 = smul.u32 4, %s254
      %p256 = scmp.lt.s32.totalorder %s255, 11
      %s257 = scalar_select %p256, %s255, 11
      %s258 = smul.addr %s257, 2
      %s259 = scalar_lea.vmem %s1, %s258
      %s260 = ssub.s32 2, %s17
      %s261 = smul.u32 4, %s260
      %s262 = smul.u32 4, %s17
      %p263 = scmp.lt.s32.totalorder %s262, 11
      %s264 = scalar_select %p263, %s262, 11
      %s265 = smul.addr %s264, 2
      %s266 = scalar_lea.vmem %s4, %s265
      %s267 = smul.u32 4, %s17
      %s268 = ssub.s32 2, %s17
      %s269 = smul.u32 4, %s268
      %p270 = scmp.lt.s32.totalorder %s269, 11
      %s271 = scalar_select %p270, %s269, 11
      %s272 = smul.addr %s271, 2
      %s273 = scalar_lea.vmem %s5, %s272
      %s274 = ssub.s32 2, %s17
      %s275 = smul.u32 4, %s274
      %p277 = scmp.eq.s32.totalorder %s17, 0
      // Predicated region
      $region37: #{bidaf_forward.17} parent=35 // pred_check
        %p278 = pneg %p277
      $region38: #{bidaf_forward.17} parent=35 // pred_check_branch
        %280 = sbr.rel (%p278) target = $region40
      $region39: #{bidaf_forward.17} parent=35 // pred_region
        %vm281 = vcmask 253952
        %282 = vst.msk [vmem:[#allocation2] sm:$0x1] %vm281, 0
        %vm283 = vcmask 254976
        %284 = vst.msk [vmem:[#allocation3] sm:$0x3] %vm283, 0.0
        %285 = vst.msk [vmem:[#allocation4] sm:$0x1] %vm281, 0
        %286 = vst.msk [vmem:[#allocation5] sm:$0x3] %vm283, 0.0
      $region40: #{bidaf_forward.17} parent=35 // pred_fallthru
        _
      %v287 = vld [vmem:[#allocation2] sm:$0x1]
      %v288 = vld [vmem:[#allocation3] sm:$0x3]
      %v289 = vld [vmem:[#allocation4] sm:$0x1]
      %v290 = vld [vmem:[#allocation5] sm:$0x3]
      %v291 = vld [vmem:[%s2] sm:$0xf]
      %v292 = vld [vmem:[%s2 + $0x4] sm:$0xf]
      %v293 = vld [vmem:[%s2 + $0x8] sm:$0xf]
      %v294 = vld [vmem:[%s2 + $0xc] sm:$0xf]
      %v295 = vld [vmem:[%s3] sm:$0xf]
      %v296 = vld [vmem:[%s3 + $0x4] sm:$0xf]
      %v297 = vld [vmem:[%s3 + $0x8] sm:$0xf]
      %v298 = vld [vmem:[%s3 + $0xc] sm:$0xf]
      %v299 = vld [vmem:[%s252] sm:$0x3]
      %v304 = vunpack.c.l.b16 %v291
      %v305 = vunpack.c.l.b16 %v292
      %v306 = vunpack.c.l.b16 %v293
      %v307 = vunpack.c.l.b16 %v294
      %v308 = vpack.c.b16 %v305, %v304
      %v309 = vpack.c.b16 %v307, %v306
      %vm312 = vcmask 261120
      %v314 = vsel %vm312, %v287, 0
      %316 = vmatprep.subr.bf16.mxu0 0
      %317 = vmatpush1.bf16.msra.mxu0 %v308
      %318 = vmatprep.subr.bf16.mxu0 0
      %319 = vmatpush1.bf16.msra.mxu0 %v309
      %320 = vmatprep.subr.bf16.mxu0 0
      %321 = vmatpush1.bf16.msra.mxu0 0
      %322 = vmatprep.subr.bf16.mxu0 0
      %323 = vmatpush1.bf16.msra.mxu0 0
      %324 = vmatprep.subr.bf16.mxu0 0
      %325 = vmatpush1.bf16.msra.mxu0 0
      %326 = vmatprep.subr.bf16.mxu0 0
      %327 = vmatpush1.bf16.msra.mxu0 0
      %328 = vmatprep.subr.bf16.mxu0 0
      %329 = vmatpush1.bf16.msra.mxu0 0
      %330 = vmatprep.subr.bf16.mxu0 0
      %331 = vmatpush1.bf16.msra.mxu0 0
      %332 = vmatprep.subr.bf16.mxu0 0
      %333 = vmatpush1.bf16.msra.mxu0 0
      %334 = vmatprep.subr.bf16.mxu0 0
      %335 = vmatpush1.bf16.msra.mxu0 0
      %336 = vmatprep.subr.bf16.mxu0 0
      %337 = vmatpush1.bf16.msra.mxu0 0
      %338 = vmatprep.subr.bf16.mxu0 0
      %339 = vmatpush1.bf16.msra.mxu0 0
      %340 = vmatprep.subr.bf16.mxu0 0
      %341 = vmatpush1.bf16.msra.mxu0 0
      %342 = vmatprep.subr.bf16.mxu0 0
      %343 = vmatpush1.bf16.msra.mxu0 0
      %344 = vmatprep.subr.bf16.mxu0 0
      %345 = vmatpush1.bf16.msra.mxu0 0
      %346 = vmatprep.subr.bf16.mxu0 0
      %347 = vmatpush1.bf16.msra.mxu0 0
      %348 = vmatprep.mubr.bf16.mxu0 0
      %349 = vmatmul.mubr.bf16.gmra.mrb[0].mxu0 %v314
      %v350 = vpop.f32.mrb[0].mxu0
      %v351 = vadd.f32 0.0, %v350
      %v352 = vpop.f32.mrb[0].mxu0
      %v353 = vpop.f32.mrb[0].mxu0
      %v354 = vpop.f32.mrb[0].mxu0
      %355 = vdwg.mxu0
      %v356 = vadd.f32 %v299, %v351
      %v357 = vxor.u32 %v356, 2147483648
      %v358 = vmul.f32 %v357, 1.442695
      %v359 = vpow.pop %v358
      %v360 = vadd.f32 %v359, 1.0
      %v361 = vrcp.pop %v360
      %v362 = vmul.f32 1.0, %v361
      %v363 = vtanh.pop %v356
      %365 = vrot.lane.b32.xlu0 %v288, 32
      %v366 = vpop.permute.xlu0 %365
      %v368 = vmul.f32 %v362, %v366
      %370 = vrot.lane.b32.xlu0 %v363, 64
      %v371 = vpop.permute.xlu0 %370
      %v373 = vmul.f32 %v362, %v371
      %375 = vrot.lane.b32.xlu0 %v373, 32
      %v376 = vpop.permute.xlu0 %375
      %v378 = vadd.f32 %v368, %v376
      %v379 = vtanh.pop %v378
      %381 = vrot.lane.b32.xlu0 %v379, 64
      %v382 = vpop.permute.xlu0 %381
      %v384 = vmul.f32 %v362, %v382
      %386 = vrot.lane.b32.xlu0 %v384, 32
      %v387 = vpop.permute.xlu0 %386
      %vm389 = vcmask 254976
      %390 = vst.msk [vmem:[%s266] sm:$0x3] %vm389, %v387
      %v391 = vpack.c.bf16 %v384, %v384
      %s392 = scalar_lea.vmem %s259, 6
      %v393 = vld [vmem:[%s392] sm:$0x3]
      %v398 = vunpack.c.l.b16 %v295
      %v399 = vunpack.c.l.b16 %v296
      %v400 = vunpack.c.l.b16 %v297
      %v401 = vunpack.c.l.b16 %v298
      %v402 = vpack.c.b16 %v399, %v398
      %v403 = vpack.c.b16 %v401, %v400
      %v407 = vsel %vm312, %v289, 0
      %409 = vmatprep.subr.bf16.mxu0 0
      %410 = vmatpush1.bf16.msra.mxu0 %v402
      %411 = vmatprep.subr.bf16.mxu0 0
      %412 = vmatpush1.bf16.msra.mxu0 %v403
      %413 = vmatprep.subr.bf16.mxu0 0
      %414 = vmatpush1.bf16.msra.mxu0 0
      %415 = vmatprep.subr.bf16.mxu0 0
      %416 = vmatpush1.bf16.msra.mxu0 0
      %417 = vmatprep.subr.bf16.mxu0 0
      %418 = vmatpush1.bf16.msra.mxu0 0
      %419 = vmatprep.subr.bf16.mxu0 0
      %420 = vmatpush1.bf16.msra.mxu0 0
      %421 = vmatprep.subr.bf16.mxu0 0
      %422 = vmatpush1.bf16.msra.mxu0 0
      %423 = vmatprep.subr.bf16.mxu0 0
      %424 = vmatpush1.bf16.msra.mxu0 0
      %425 = vmatprep.subr.bf16.mxu0 0
      %426 = vmatpush1.bf16.msra.mxu0 0
      %427 = vmatprep.subr.bf16.mxu0 0
      %428 = vmatpush1.bf16.msra.mxu0 0
      %429 = vmatprep.subr.bf16.mxu0 0
      %430 = vmatpush1.bf16.msra.mxu0 0
      %431 = vmatprep.subr.bf16.mxu0 0
      %432 = vmatpush1.bf16.msra.mxu0 0
      %433 = vmatprep.subr.bf16.mxu0 0
      %434 = vmatpush1.bf16.msra.mxu0 0
      %435 = vmatprep.subr.bf16.mxu0 0
      %436 = vmatpush1.bf16.msra.mxu0 0
      %437 = vmatprep.subr.bf16.mxu0 0
      %438 = vmatpush1.bf16.msra.mxu0 0
      %439 = vmatprep.subr.bf16.mxu0 0
      %440 = vmatpush1.bf16.msra.mxu0 0
      %441 = vmatprep.mubr.bf16.mxu0 0
      %442 = vmatmul.mubr.bf16.gmra.mrb[0].mxu0 %v407
      %v443 = vpop.f32.mrb[0].mxu0
      %v444 = vadd.f32 0.0, %v443
      %v445 = vpop.f32.mrb[0].mxu0
      %v446 = vpop.f32.mrb[0].mxu0
      %v447 = vpop.f32.mrb[0].mxu0
      %448 = vdwg.mxu0
      %v449 = vadd.f32 %v393, %v444
      %v450 = vxor.u32 %v449, 2147483648
      %v451 = vmul.f32 %v450, 1.442695
      %v452 = vpow.pop %v451
      %v453 = vadd.f32 %v452, 1.0
      %v454 = vrcp.pop %v453
      %v455 = vmul.f32 1.0, %v454
      %v456 = vtanh.pop %v449
      %458 = vrot.lane.b32.xlu0 %v290, 32
      %v459 = vpop.permute.xlu0 %458
      %v461 = vmul.f32 %v455, %v459
      %463 = vrot.lane.b32.xlu0 %v456, 64
      %v464 = vpop.permute.xlu0 %463
      %v466 = vmul.f32 %v455, %v464
      %468 = vrot.lane.b32.xlu0 %v466, 32
      %v469 = vpop.permute.xlu0 %468
      %v471 = vadd.f32 %v461, %v469
      %v472 = vtanh.pop %v471
      %474 = vrot.lane.b32.xlu0 %v472, 64
      %v475 = vpop.permute.xlu0 %474
      %v477 = vmul.f32 %v455, %v475
      %479 = vrot.lane.b32.xlu0 %v477, 32
      %v480 = vpop.permute.xlu0 %479
      %s482 = scalar_lea.vmem %s273, 6
      %483 = vst.msk [vmem:[%s482] sm:$0x3] %vm389, %v480
      %v484 = vpack.c.bf16 %v477, %v477
      %s485 = scalar_lea.vmem %s252, 2
      %v486 = vld [vmem:[%s485] sm:$0x3]
      %488 = vrot.lane.b32.xlu0 %v391, 32
      %v489 = vpop.permute.xlu0 %488
      %v491 = vsel %vm312, %v489, 0
      %493 = vmatprep.subr.bf16.mxu0 0
      %494 = vmatpush1.bf16.msra.mxu0 %v308
      %495 = vmatprep.subr.bf16.mxu0 0
      %496 = vmatpush1.bf16.msra.mxu0 %v309
      %497 = vmatprep.subr.bf16.mxu0 0
      %498 = vmatpush1.bf16.msra.mxu0 0
      %499 = vmatprep.subr.bf16.mxu0 0
      %500 = vmatpush1.bf16.msra.mxu0 0
      %501 = vmatprep.subr.bf16.mxu0 0
      %502 = vmatpush1.bf16.msra.mxu0 0
      %503 = vmatprep.subr.bf16.mxu0 0
      %504 = vmatpush1.bf16.msra.mxu0 0
      %505 = vmatprep.subr.bf16.mxu0 0
      %506 = vmatpush1.bf16.msra.mxu0 0
      %507 = vmatprep.subr.bf16.mxu0 0
      %508 = vmatpush1.bf16.msra.mxu0 0
      %509 = vmatprep.subr.bf16.mxu0 0
      %510 = vmatpush1.bf16.msra.mxu0 0
      %511 = vmatprep.subr.bf16.mxu0 0
      %512 = vmatpush1.bf16.msra.mxu0 0
      %513 = vmatprep.subr.bf16.mxu0 0
      %514 = vmatpush1.bf16.msra.mxu0 0
      %515 = vmatprep.subr.bf16.mxu0 0
      %516 = vmatpush1.bf16.msra.mxu0 0
      %517 = vmatprep.subr.bf16.mxu0 0
      %518 = vmatpush1.bf16.msra.mxu0 0
      %519 = vmatprep.subr.bf16.mxu0 0
      %520 = vmatpush1.bf16.msra.mxu0 0
      %521 = vmatprep.subr.bf16.mxu0 0
      %522 = vmatpush1.bf16.msra.mxu0 0
      %523 = vmatprep.subr.bf16.mxu0 0
      %524 = vmatpush1.bf16.msra.mxu0 0
      %525 = vmatprep.mubr.bf16.mxu0 0
      %526 = vmatmul.mubr.bf16.gmra.mrb[0].mxu0 %v491
      %v527 = vpop.f32.mrb[0].mxu0
      %v528 = vadd.f32 0.0, %v527
      %v529 = vpop.f32.mrb[0].mxu0
      %v530 = vpop.f32.mrb[0].mxu0
      %v531 = vpop.f32.mrb[0].mxu0
      %532 = vdwg.mxu0
      %v533 = vadd.f32 %v486, %v528
      %v534 = vxor.u32 %v533, 2147483648
      %v535 = vmul.f32 %v534, 1.442695
      %v536 = vpow.pop %v535
      %v537 = vadd.f32 %v536, 1.0
      %v538 = vrcp.pop %v537
      %v539 = vmul.f32 1.0, %v538
      %v540 = vtanh.pop %v533
      %v541 = vmul.f32 %v539, %v378
      %543 = vrot.lane.b32.xlu0 %v540, 64
      %v544 = vpop.permute.xlu0 %543
      %v546 = vmul.f32 %v539, %v544
      %548 = vrot.lane.b32.xlu0 %v546, 32
      %v549 = vpop.permute.xlu0 %548
      %v551 = vadd.f32 %v541, %v549
      %v552 = vtanh.pop %v551
      %554 = vrot.lane.b32.xlu0 %v552, 64
      %v555 = vpop.permute.xlu0 %554
      %v557 = vmul.f32 %v539, %v555
      %559 = vrot.lane.b32.xlu0 %v557, 32
      %v560 = vpop.permute.xlu0 %559
      %s562 = scalar_lea.vmem %s266, 2
      %563 = vst.msk [vmem:[%s562] sm:$0x3] %vm389, %v560
      %v564 = vpack.c.bf16 %v557, %v557
      %s565 = scalar_lea.vmem %s259, 4
      %v566 = vld [vmem:[%s565] sm:$0x3]
      %568 = vrot.lane.b32.xlu0 %v484, 32
      %v569 = vpop.permute.xlu0 %568
      %v571 = vsel %vm312, %v569, 0
      %573 = vmatprep.subr.bf16.mxu0 0
      %574 = vmatpush1.bf16.msra.mxu0 %v402
      %575 = vmatprep.subr.bf16.mxu0 0
      %576 = vmatpush1.bf16.msra.mxu0 %v403
      %577 = vmatprep.subr.bf16.mxu0 0
      %578 = vmatpush1.bf16.msra.mxu0 0
      %579 = vmatprep.subr.bf16.mxu0 0
      %580 = vmatpush1.bf16.msra.mxu0 0
      %581 = vmatprep.subr.bf16.mxu0 0
      %582 = vmatpush1.bf16.msra.mxu0 0
      %583 = vmatprep.subr.bf16.mxu0 0
      %584 = vmatpush1.bf16.msra.mxu0 0
      %585 = vmatprep.subr.bf16.mxu0 0
      %586 = vmatpush1.bf16.msra.mxu0 0
      %587 = vmatprep.subr.bf16.mxu0 0
      %588 = vmatpush1.bf16.msra.mxu0 0
      %589 = vmatprep.subr.bf16.mxu0 0
      %590 = vmatpush1.bf16.msra.mxu0 0
      %591 = vmatprep.subr.bf16.mxu0 0
      %592 = vmatpush1.bf16.msra.mxu0 0
      %593 = vmatprep.subr.bf16.mxu0 0
      %594 = vmatpush1.bf16.msra.mxu0 0
      %595 = vmatprep.subr.bf16.mxu0 0
      %596 = vmatpush1.bf16.msra.mxu0 0
      %597 = vmatprep.subr.bf16.mxu0 0
      %598 = vmatpush1.bf16.msra.mxu0 0
      %599 = vmatprep.subr.bf16.mxu0 0
      %600 = vmatpush1.bf16.msra.mxu0 0
      %601 = vmatprep.subr.bf16.mxu0 0
      %602 = vmatpush1.bf16.msra.mxu0 0
      %603 = vmatprep.subr.bf16.mxu0 0
      %604 = vmatpush1.bf16.msra.mxu0 0
      %605 = vmatprep.mubr.bf16.mxu0 0
      %606 = vmatmul.mubr.bf16.gmra.mrb[0].mxu0 %v571
      %v607 = vpop.f32.mrb[0].mxu0
      %v608 = vadd.f32 0.0, %v607
      %v609 = vpop.f32.mrb[0].mxu0
      %v610 = vpop.f32.mrb[0].mxu0
      %v611 = vpop.f32.mrb[0].mxu0
      %612 = vdwg.mxu0
      %v613 = vadd.f32 %v566, %v608
      %v614 = vxor.u32 %v613, 2147483648
      %v615 = vmul.f32 %v614, 1.442695
      %v616 = vpow.pop %v615
      %v617 = vadd.f32 %v616, 1.0
      %v618 = vrcp.pop %v617
      %v619 = vmul.f32 1.0, %v618
      %v620 = vtanh.pop %v613
      %v621 = vmul.f32 %v619, %v471
      %623 = vrot.lane.b32.xlu0 %v620, 64
      %v624 = vpop.permute.xlu0 %623
      %v626 = vmul.f32 %v619, %v624
      %628 = vrot.lane.b32.xlu0 %v626, 32
      %v629 = vpop.permute.xlu0 %628
      %v631 = vadd.f32 %v621, %v629
      %v632 = vtanh.pop %v631
      %634 = vrot.lane.b32.xlu0 %v632, 64
      %v635 = vpop.permute.xlu0 %634
      %v637 = vmul.f32 %v619, %v635
      %639 = vrot.lane.b32.xlu0 %v637, 32
      %v640 = vpop.permute.xlu0 %639
      %s642 = scalar_lea.vmem %s273, 4
      %643 = vst.msk [vmem:[%s642] sm:$0x3] %vm389, %v640
      %v644 = vpack.c.bf16 %v637, %v637
      %s645 = scalar_lea.vmem %s252, 4
      %v646 = vld [vmem:[%s645] sm:$0x3]
      %648 = vrot.lane.b32.xlu0 %v564, 32
      %v649 = vpop.permute.xlu0 %648
      %v651 = vsel %vm312, %v649, 0
      %653 = vmatprep.subr.bf16.mxu0 0
      %654 = vmatpush1.bf16.msra.mxu0 %v308
      %655 = vmatprep.subr.bf16.mxu0 0
      %656 = vmatpush1.bf16.msra.mxu0 %v309
      %657 = vmatprep.subr.bf16.mxu0 0
      %658 = vmatpush1.bf16.msra.mxu0 0
      %659 = vmatprep.subr.bf16.mxu0 0
      %660 = vmatpush1.bf16.msra.mxu0 0
      %661 = vmatprep.subr.bf16.mxu0 0
      %662 = vmatpush1.bf16.msra.mxu0 0
      %663 = vmatprep.subr.bf16.mxu0 0
      %664 = vmatpush1.bf16.msra.mxu0 0
      %665 = vmatprep.subr.bf16.mxu0 0
      %666 = vmatpush1.bf16.msra.mxu0 0
      %667 = vmatprep.subr.bf16.mxu0 0
      %668 = vmatpush1.bf16.msra.mxu0 0
      %669 = vmatprep.subr.bf16.mxu0 0
      %670 = vmatpush1.bf16.msra.mxu0 0
      %671 = vmatprep.subr.bf16.mxu0 0
      %672 = vmatpush1.bf16.msra.mxu0 0
      %673 = vmatprep.subr.bf16.mxu0 0
      %674 = vmatpush1.bf16.msra.mxu0 0
      %675 = vmatprep.subr.bf16.mxu0 0
      %676 = vmatpush1.bf16.msra.mxu0 0
      %677 = vmatprep.subr.bf16.mxu0 0
      %678 = vmatpush1.bf16.msra.mxu0 0
      %679 = vmatprep.subr.bf16.mxu0 0
      %680 = vmatpush1.bf16.msra.mxu0 0
      %681 = vmatprep.subr.bf16.mxu0 0
      %682 = vmatpush1.bf16.msra.mxu0 0
      %683 = vmatprep.subr.bf16.mxu0 0
      %684 = vmatpush1.bf16.msra.mxu0 0
      %685 = vmatprep.mubr.bf16.mxu0 0
      %686 = vmatmul.mubr.bf16.gmra.mrb[0].mxu0 %v651
      %v687 = vpop.f32.mrb[0].mxu0
      %v688 = vadd.f32 0.0, %v687
      %v689 = vpop.f32.mrb[0].mxu0
      %v690 = vpop.f32.mrb[0].mxu0
      %v691 = vpop.f32.mrb[0].mxu0
      %692 = vdwg.mxu0
      %v693 = vadd.f32 %v646, %v688
      %v694 = vxor.u32 %v693, 2147483648
      %v695 = vmul.f32 %v694, 1.442695
      %v696 = vpow.pop %v695
      %v697 = vadd.f32 %v696, 1.0
      %v698 = vrcp.pop %v697
      %v699 = vmul.f32 1.0, %v698
      %v700 = vtanh.pop %v693
      %v701 = vmul.f32 %v699, %v551
      %703 = vrot.lane.b32.xlu0 %v700, 64
      %v704 = vpop.permute.xlu0 %703
      %v706 = vmul.f32 %v699, %v704
      %708 = vrot.lane.b32.xlu0 %v706, 32
      %v709 = vpop.permute.xlu0 %708
      %v711 = vadd.f32 %v701, %v709
      %v712 = vtanh.pop %v711
      %714 = vrot.lane.b32.xlu0 %v712, 64
      %v715 = vpop.permute.xlu0 %714
      %v717 = vmul.f32 %v699, %v715
      %719 = vrot.lane.b32.xlu0 %v717, 32
      %v720 = vpop.permute.xlu0 %719
      %s722 = scalar_lea.vmem %s266, 4
      %723 = vst.msk [vmem:[%s722] sm:$0x3] %vm389, %v720
      %v724 = vpack.c.bf16 %v717, %v717
      %s725 = scalar_lea.vmem %s259, 2
      %v726 = vld [vmem:[%s725] sm:$0x3]
      %728 = vrot.lane.b32.xlu0 %v644, 32
      %v729 = vpop.permute.xlu0 %728
      %v731 = vsel %vm312, %v729, 0
      %733 = vmatprep.subr.bf16.mxu0 0
      %734 = vmatpush1.bf16.msra.mxu0 %v402
      %735 = vmatprep.subr.bf16.mxu0 0
      %736 = vmatpush1.bf16.msra.mxu0 %v403
      %737 = vmatprep.subr.bf16.mxu0 0
      %738 = vmatpush1.bf16.msra.mxu0 0
      %739 = vmatprep.subr.bf16.mxu0 0
      %740 = vmatpush1.bf16.msra.mxu0 0
      %741 = vmatprep.subr.bf16.mxu0 0
      %742 = vmatpush1.bf16.msra.mxu0 0
      %743 = vmatprep.subr.bf16.mxu0 0
      %744 = vmatpush1.bf16.msra.mxu0 0
      %745 = vmatprep.subr.bf16.mxu0 0
      %746 = vmatpush1.bf16.msra.mxu0 0
      %747 = vmatprep.subr.bf16.mxu0 0
      %748 = vmatpush1.bf16.msra.mxu0 0
      %749 = vmatprep.subr.bf16.mxu0 0
      %750 = vmatpush1.bf16.msra.mxu0 0
      %751 = vmatprep.subr.bf16.mxu0 0
      %752 = vmatpush1.bf16.msra.mxu0 0
      %753 = vmatprep.subr.bf16.mxu0 0
      %754 = vmatpush1.bf16.msra.mxu0 0
      %755 = vmatprep.subr.bf16.mxu0 0
      %756 = vmatpush1.bf16.msra.mxu0 0
      %757 = vmatprep.subr.bf16.mxu0 0
      %758 = vmatpush1.bf16.msra.mxu0 0
      %759 = vmatprep.subr.bf16.mxu0 0
      %760 = vmatpush1.bf16.msra.mxu0 0
      %761 = vmatprep.subr.bf16.mxu0 0
      %762 = vmatpush1.bf16.msra.mxu0 0
      %763 = vmatprep.subr.bf16.mxu0 0
      %764 = vmatpush1.bf16.msra.mxu0 0
      %765 = vmatprep.mubr.bf16.mxu0 0
      %766 = vmatmul.mubr.bf16.gmra.mrb[0].mxu0 %v731
      %v767 = vpop.f32.mrb[0].mxu0
      %v768 = vadd.f32 0.0, %v767
      %v769 = vpop.f32.mrb[0].mxu0
      %v770 = vpop.f32.mrb[0].mxu0
      %v771 = vpop.f32.mrb[0].mxu0
      %772 = vdwg.mxu0
      %v773 = vadd.f32 %v726, %v768
      %v774 = vxor.u32 %v773, 2147483648
      %v775 = vmul.f32 %v774, 1.442695
      %v776 = vpow.pop %v775
      %v777 = vadd.f32 %v776, 1.0
      %v778 = vrcp.pop %v777
      %v779 = vmul.f32 1.0, %v778
      %v780 = vtanh.pop %v773
      %v781 = vmul.f32 %v779, %v631
      %783 = vrot.lane.b32.xlu0 %v780, 64
      %v784 = vpop.permute.xlu0 %783
      %v786 = vmul.f32 %v779, %v784
      %788 = vrot.lane.b32.xlu0 %v786, 32
      %v789 = vpop.permute.xlu0 %788
      %v791 = vadd.f32 %v781, %v789
      %v792 = vtanh.pop %v791
      %794 = vrot.lane.b32.xlu0 %v792, 64
      %v795 = vpop.permute.xlu0 %794
      %v797 = vmul.f32 %v779, %v795
      %799 = vrot.lane.b32.xlu0 %v797, 32
      %v800 = vpop.permute.xlu0 %799
      %s802 = scalar_lea.vmem %s273, 2
      %803 = vst.msk [vmem:[%s802] sm:$0x3] %vm389, %v800
      %v804 = vpack.c.bf16 %v797, %v797
      %s805 = scalar_lea.vmem %s252, 6
      %v806 = vld [vmem:[%s805] sm:$0x3]
      %808 = vrot.lane.b32.xlu0 %v724, 32
      %v809 = vpop.permute.xlu0 %808
      %v811 = vsel %vm312, %v809, 0
      %813 = vmatprep.subr.bf16.mxu0 0
      %814 = vmatpush1.bf16.msra.mxu0 %v308
      %815 = vmatprep.subr.bf16.mxu0 0
      %816 = vmatpush1.bf16.msra.mxu0 %v309
      %817 = vmatprep.subr.bf16.mxu0 0
      %818 = vmatpush1.bf16.msra.mxu0 0
      %819 = vmatprep.subr.bf16.mxu0 0
      %820 = vmatpush1.bf16.msra.mxu0 0
      %821 = vmatprep.subr.bf16.mxu0 0
      %822 = vmatpush1.bf16.msra.mxu0 0
      %823 = vmatprep.subr.bf16.mxu0 0
      %824 = vmatpush1.bf16.msra.mxu0 0
      %825 = vmatprep.subr.bf16.mxu0 0
      %826 = vmatpush1.bf16.msra.mxu0 0
      %827 = vmatprep.subr.bf16.mxu0 0
      %828 = vmatpush1.bf16.msra.mxu0 0
      %829 = vmatprep.subr.bf16.mxu0 0
      %830 = vmatpush1.bf16.msra.mxu0 0
      %831 = vmatprep.subr.bf16.mxu0 0
      %832 = vmatpush1.bf16.msra.mxu0 0
      %833 = vmatprep.subr.bf16.mxu0 0
      %834 = vmatpush1.bf16.msra.mxu0 0
      %835 = vmatprep.subr.bf16.mxu0 0
      %836 = vmatpush1.bf16.msra.mxu0 0
      %837 = vmatprep.subr.bf16.mxu0 0
      %838 = vmatpush1.bf16.msra.mxu0 0
      %839 = vmatprep.subr.bf16.mxu0 0
      %840 = vmatpush1.bf16.msra.mxu0 0
      %841 = vmatprep.subr.bf16.mxu0 0
      %842 = vmatpush1.bf16.msra.mxu0 0
      %843 = vmatprep.subr.bf16.mxu0 0
      %844 = vmatpush1.bf16.msra.mxu0 0
      %845 = vmatprep.mubr.bf16.mxu0 0
      %846 = vmatmul.mubr.bf16.gmra.mrb[0].mxu0 %v811
      %v847 = vpop.f32.mrb[0].mxu0
      %v848 = vadd.f32 0.0, %v847
      %v849 = vpop.f32.mrb[0].mxu0
      %v850 = vpop.f32.mrb[0].mxu0
      %v851 = vpop.f32.mrb[0].mxu0
      %852 = vdwg.mxu0
      %v853 = vadd.f32 %v806, %v848
      %v854 = vxor.u32 %v853, 2147483648
      %v855 = vmul.f32 %v854, 1.442695
      %v856 = vpow.pop %v855
      %v857 = vadd.f32 %v856, 1.0
      %v858 = vrcp.pop %v857
      %v859 = vmul.f32 1.0, %v858
      %v860 = vtanh.pop %v853
      %v861 = vmul.f32 %v859, %v711
      %863 = vrot.lane.b32.xlu0 %v860, 64
      %v864 = vpop.permute.xlu0 %863
      %v866 = vmul.f32 %v859, %v864
      %868 = vrot.lane.b32.xlu0 %v866, 32
      %v869 = vpop.permute.xlu0 %868
      %v871 = vadd.f32 %v861, %v869
      %v872 = vtanh.pop %v871
      %874 = vrot.lane.b32.xlu0 %v872, 64
      %v875 = vpop.permute.xlu0 %874
      %v877 = vmul.f32 %v859, %v875
      %879 = vrot.lane.b32.xlu0 %v877, 32
      %v880 = vpop.permute.xlu0 %879
      %s882 = scalar_lea.vmem %s266, 6
      %883 = vst.msk [vmem:[%s882] sm:$0x3] %vm389, %v880
      %v884 = vpack.c.bf16 %v877, %v877
      %v885 = vld [vmem:[%s259] sm:$0x3]
      %887 = vrot.lane.b32.xlu0 %v804, 32
      %v888 = vpop.permute.xlu0 %887
      %v890 = vsel %vm312, %v888, 0
      %892 = vmatprep.subr.bf16.mxu0 0
      %893 = vmatpush1.bf16.msra.mxu0 %v402
      %894 = vmatprep.subr.bf16.mxu0 0
      %895 = vmatpush1.bf16.msra.mxu0 %v403
      %896 = vmatprep.subr.bf16.mxu0 0
      %897 = vmatpush1.bf16.msra.mxu0 0
      %898 = vmatprep.subr.bf16.mxu0 0
      %899 = vmatpush1.bf16.msra.mxu0 0
      %900 = vmatprep.subr.bf16.mxu0 0
      %901 = vmatpush1.bf16.msra.mxu0 0
      %902 = vmatprep.subr.bf16.mxu0 0
      %903 = vmatpush1.bf16.msra.mxu0 0
      %904 = vmatprep.subr.bf16.mxu0 0
      %905 = vmatpush1.bf16.msra.mxu0 0
      %906 = vmatprep.subr.bf16.mxu0 0
      %907 = vmatpush1.bf16.msra.mxu0 0
      %908 = vmatprep.subr.bf16.mxu0 0
      %909 = vmatpush1.bf16.msra.mxu0 0
      %910 = vmatprep.subr.bf16.mxu0 0
      %911 = vmatpush1.bf16.msra.mxu0 0
      %912 = vmatprep.subr.bf16.mxu0 0
      %913 = vmatpush1.bf16.msra.mxu0 0
      %914 = vmatprep.subr.bf16.mxu0 0
      %915 = vmatpush1.bf16.msra.mxu0 0
      %916 = vmatprep.subr.bf16.mxu0 0
      %917 = vmatpush1.bf16.msra.mxu0 0
      %918 = vmatprep.subr.bf16.mxu0 0
      %919 = vmatpush1.bf16.msra.mxu0 0
      %920 = vmatprep.subr.bf16.mxu0 0
      %921 = vmatpush1.bf16.msra.mxu0 0
      %922 = vmatprep.subr.bf16.mxu0 0
      %923 = vmatpush1.bf16.msra.mxu0 0
      %924 = vmatprep.mubr.bf16.mxu0 0
      %925 = vmatmul.mubr.bf16.gmra.mrb[0].mxu0 %v890
      %v926 = vpop.f32.mrb[0].mxu0
      %v927 = vadd.f32 0.0, %v926
      %v928 = vpop.f32.mrb[0].mxu0
      %v929 = vpop.f32.mrb[0].mxu0
      %v930 = vpop.f32.mrb[0].mxu0
      %931 = vdwg.mxu0
      %v932 = vadd.f32 %v885, %v927
      %v933 = vxor.u32 %v932, 2147483648
      %v934 = vmul.f32 %v933, 1.442695
      %v935 = vpow.pop %v934
      %v936 = vadd.f32 %v935, 1.0
      %v937 = vrcp.pop %v936
      %v938 = vmul.f32 1.0, %v937
      %v939 = vtanh.pop %v932
      %v940 = vmul.f32 %v938, %v791
      %942 = vrot.lane.b32.xlu0 %v939, 64
      %v943 = vpop.permute.xlu0 %942
      %v945 = vmul.f32 %v938, %v943
      %947 = vrot.lane.b32.xlu0 %v945, 32
      %v948 = vpop.permute.xlu0 %947
      %v950 = vadd.f32 %v940, %v948
      %v951 = vtanh.pop %v950
      %953 = vrot.lane.b32.xlu0 %v951, 64
      %v954 = vpop.permute.xlu0 %953
      %v956 = vmul.f32 %v938, %v954
      %958 = vrot.lane.b32.xlu0 %v956, 32
      %v959 = vpop.permute.xlu0 %958
      %961 = vst.msk [vmem:[%s273] sm:$0x3] %vm389, %v959
      %v962 = vpack.c.bf16 %v956, %v956
      %v965 = vunpack.c.l.s4 1966171168
      %v966 = vunpack.c.0.s8 %v965
      %v967 = vlaneseq
      %v968 = vshrl.u32 %v967, 7
      %v969 = vsub.s32 %v966, %v968
      %v970 = vrot.slane %v884, %v969
      %v972 = vunpack.c.l.s4 1966171168
      %v973 = vunpack.c.0.s8 %v972
      %v974 = vlaneseq
      %v975 = vshrl.u32 %v974, 7
      %v976 = vsub.s32 %v973, %v975
      %v977 = vrot.slane %v970, %v976
      %978 = vrot.lane.b32.xlu0 %v977, 32
      %v979 = vpop.permute.xlu0 %978
      %vm981 = vcmask 253952
      %982 = vst.msk [vmem:[#allocation2] sm:$0x1] %vm981, %v979
      %984 = vrot.lane.b32.xlu0 %v871, 96
      %v985 = vpop.permute.xlu0 %984
      %987 = vst.msk [vmem:[#allocation3] sm:$0x3] %vm389, %v985
      %v990 = vunpack.c.l.s4 1966171168
      %v991 = vunpack.c.0.s8 %v990
      %v992 = vlaneseq
      %v993 = vshrl.u32 %v992, 7
      %v994 = vsub.s32 %v991, %v993
      %v995 = vrot.slane %v962, %v994
      %v997 = vunpack.c.l.s4 1966171168
      %v998 = vunpack.c.0.s8 %v997
      %v999 = vlaneseq
      %v1000 = vshrl.u32 %v999, 7
      %v1001 = vsub.s32 %v998, %v1000
      %v1002 = vrot.slane %v995, %v1001
      %1003 = vrot.lane.b32.xlu0 %v1002, 32
      %v1004 = vpop.permute.xlu0 %1003
      %1006 = vst.msk [vmem:[#allocation4] sm:$0x1] %vm981, %v1004
      %1008 = vrot.lane.b32.xlu0 %v950, 96
      %v1009 = vpop.permute.xlu0 %1008
      %1011 = vst.msk [vmem:[#allocation5] sm:$0x3] %vm389, %v1009
      %s1012 = smul.u32 4, %s17
      %p1013 = scmp.lt.s32.totalorder %s1012, 11
      %s1014 = scalar_select %p1013, %s1012, 11
      %s1015 = smul.addr %s1014, 2
      %s1016 = scalar_lea.vmem %s4, %s1015
      %s1017 = ssub.s32 2, %s17
      %s1018 = smul.u32 4, %s1017
      %p1019 = scmp.lt.s32.totalorder %s1018, 11
      %s1020 = scalar_select %p1019, %s1018, 11
      %s1021 = smul.addr %s1020, 2
      %s1022 = scalar_lea.vmem %s5, %s1021
      // Predicated region
      $region41: #{bidaf_forward.17} parent=35 // pred_check
        %p1023 = pneg %p131
      $region42: #{bidaf_forward.17} parent=35 // pred_check_branch
        %1025 = sbr.rel (%p1023) target = $region44
      $region43: #{bidaf_forward.17} parent=35 // pred_region
        %s1026 = smul.u32 4, %s17
      $region44: #{bidaf_forward.17} parent=35 // pred_fallthru
        _
      // Predicated region
      $region45: #{bidaf_forward.17} parent=35 // pred_check
        %p1027 = pneg %p159
      $region46: #{bidaf_forward.17} parent=35 // pred_check_branch
        %1029 = sbr.rel (%p1027) target = $region48
      $region47: #{bidaf_forward.17} parent=35 // pred_region
        %s1030 = ssub.s32 2, %s17
        %s1031 = smul.u32 4, %s1030
      $region48: #{bidaf_forward.17} parent=35 // pred_fallthru
        _
    $region36: #{bidaf_forward.17} parent=5 // pred_fallthru
      _
    %p1032 = scmp.le.s32.totalorder 2, %s12
    // Predicated region
    $region49: #{bidaf_forward.17} parent=5 // pred_check
      %p1033 = pneg %p1032
    $region50: #{bidaf_forward.17} parent=5 // pred_check_branch
      %1035 = sbr.rel (%p1033) target = $region52
    $region51: #{bidaf_forward.17} parent=5 // pred_region
      %s1036 = ssub.s32 %s12, 2
      // Predicated region
      $region53: #{bidaf_forward.17} parent=51 // pred_check
        %p1037 = pneg %p137
      $region54: #{bidaf_forward.17} parent=51 // pred_check_branch
        %1039 = sbr.rel (%p1037) target = $region56
      $region55: #{bidaf_forward.17} parent=51 // pred_region
        %s1040 = smul.u32 4, %s18
        %p1041 = scmp.lt.s32.totalorder %s1040, 11
        %s1042 = scalar_select %p1041, %s1040, 11
        %s1043 = smul.addr %s1042, 2
        %s1044 = scalar_lea.vmem %s4, %s1043
      $region56: #{bidaf_forward.17} parent=51 // pred_fallthru
        _
      // Predicated region
      $region57: #{bidaf_forward.17} parent=51 // pred_check
        %p1045 = pneg %p165
      $region58: #{bidaf_forward.17} parent=51 // pred_check_branch
        %1047 = sbr.rel (%p1045) target = $region60
      $region59: #{bidaf_forward.17} parent=51 // pred_region
        %s1048 = ssub.s32 2, %s18
        %s1049 = smul.u32 4, %s1048
        %p1050 = scmp.lt.s32.totalorder %s1049, 11
        %s1051 = scalar_select %p1050, %s1049, 11
        %s1052 = smul.addr %s1051, 2
        %s1053 = scalar_lea.vmem %s5, %s1052
      $region60: #{bidaf_forward.17} parent=51 // pred_fallthru
        _
    $region52: #{bidaf_forward.17} parent=5 // pred_fallthru
      _
  $region6: #{bidaf_forward.17} parent=0 // loop_footer
    %s16 = sadd.s32 1, %s12
  $region7: #{bidaf_forward.17} parent=0 // loop_footer_branch
    %11 = sbr.rel target = $region3
  $region8: #{bidaf_forward.17} parent=0 // loop_exit
    _

// kernel: bidaf_forward.20
$region0: #{bidaf_forward.20}
  #allocation0 [shape = 'u32[]', space=smem, size = 0x4, offset = 0x4, fixed_abs, tag = 'smem constant byte address 0x4 - core index']
  #allocation1 [shape = 'u32[144,128]{1,0:T(1,128)}', space=vmem, size = 0x12000, scoped, tag = 'internal scratch']
  #allocation2 [shape = 'f32[1,1]{1,0:T(1,128)S(1)}', space=vmem, size = 0x200, scoped, tag = 'scoped memory for bidaf_forward.20']
  %s0 = inlined_call_operand.vmem [shape: f32[2,12,64], index: 0, kind: input, shape index: {}]
  %s1 = inlined_call_operand.vmem [shape: f32[2,8,64], index: 1, kind: input, shape index: {}]
  %s2 = inlined_call_operand.vmem [shape: f32[2,12,1], index: 2, kind: input, shape index: {}]
  %s3 = inlined_call_operand.vmem [shape: f32[2,1,8], index: 3, kind: input, shape index: {}]
  %s4 = inlined_call_operand.vmem [shape: f32[1,64], index: 4, kind: input, shape index: {}]
  %s5 = inlined_call_operand.vmem [shape: f32[1,64], index: 5, kind: input, shape index: {}]
  %s6 = inlined_call_operand.vmem [shape: f32[1,64], index: 6, kind: input, shape index: {}]
  %s7 = inlined_call_operand.<no memory space> [shape: f32[1,1], index: 7, kind: input, shape index: {}]
  %s8 = inlined_call_operand.vmem [shape: f32[2,12,256], index: 8, kind: output, shape index: {}]
  %s9 = sld [smem:[#allocation0]]
  $region65: #{bidaf_forward.20} parent=0
    _
  %s11 = ssub.s32 1, %s9
  %s12 = scalar_select 0, %s11, %s9
  %v13 = vstv %s7
  %14 = vst [vmem:[#allocation2] sm:$0x1] %v13
  loop: start=0, step=1, limit=4
  $region2: #{bidaf_forward.20} parent=0 // loop_pre_header
    _
  $region3: #{bidaf_forward.20} parent=0 // loop_header
    %s16 = sphi 0, %s20
    %p17 = scmp.ge.s32.totalorder %s16, 4
    %s26 = sphi 0, %s28
    %s29 = sphi 0, %s26
    %s30 = sphi 0, %s29
    %s46 = sphi 0, %s30
    %s52 = sphi 0, %s54
    %s55 = sphi 0, %s52
    %s56 = sphi 0, %s55
    %s72 = sphi 0, %s56
    %s78 = sphi 0, %s80
    %s81 = sphi 0, %s78
    %s82 = sphi 0, %s81
    %s98 = sphi 0, %s82
    %s104 = sphi 0, %s106
    %s107 = sphi 0, %s104
    %s108 = sphi 0, %s107
    %s124 = sphi 0, %s108
    %s128 = sphi 0, %s128
    %s130 = sphi 0, %s128
    %s131 = sphi 0, %s130
    %s145 = sphi 0, %s131
    %s149 = sphi 0, %s149
    %s151 = sphi 0, %s149
    %s152 = sphi 0, %s151
    %s166 = sphi 0, %s152
    %s170 = sphi 0, %s170
    %s172 = sphi 0, %s170
    %s173 = sphi 0, %s172
    %s187 = sphi 0, %s173
    %s191 = sphi 0, %s191
    %s193 = sphi 0, %s191
    %s194 = sphi 0, %s193
    %s208 = sphi 0, %s194
    %s214 = sphi 0, %s216
    %s217 = sphi 0, %s214
    %s218 = sphi 0, %s217
    %s234 = sphi 0, %s218
  $region4: #{bidaf_forward.20} parent=0 // loop_header_branch
    %19 = sbr.rel (%p17) target = $region8
  $region5: #{bidaf_forward.20} parent=0 // loop_body
    %s21 = ssub.s32 %s16, 1
    %s22 = ssub.s32 %s16, 2
    %s23 = sadd.s32 %s16, 1
    %s24 = ssub.s32 %s16, %s23
    %p25 = scmp.eq.s32.totalorder %s24, 0
    %s27 = sadd.s32 %s26, 1
    %s28 = scalar_select %p25, %s26, %s27
    %p31 = pneg %p25
    %p32 = scmp.eq.s32.totalorder %s16, 1
    %p33 = por %p31, %p32
    %p34 = scmp.ne.s32.totalorder %s26, %s29
    %p35 = scmp.eq.s32.totalorder %s16, 0
    %p36 = por %p34, %p35
    %p37 = scmp.ne.s32.totalorder %s26, %s29
    %p38 = scmp.eq.s32.totalorder %s21, 1
    %p39 = por %p37, %p38
    %p40 = scmp.ne.s32.totalorder %s29, %s30
    %p41 = scmp.eq.s32.totalorder %s21, 0
    %p42 = por %p40, %p41
    %p43 = scmp.ne.s32.totalorder %s29, %s30
    %p44 = scmp.eq.s32.totalorder %s22, 1
    %p45 = por %p43, %p44
    %p47 = scmp.ne.s32.totalorder %s30, %s46
    %p48 = scmp.eq.s32.totalorder %s22, 0
    %p49 = por %p47, %p48
    %s50 = ssub.s32 %s16, %s23
    %p51 = scmp.eq.s32.totalorder %s50, 0
    %s53 = sadd.s32 %s52, 1
    %s54 = scalar_select %p51, %s52, %s53
    %p57 = pneg %p51
    %p58 = scmp.eq.s32.totalorder %s16, 1
    %p59 = por %p57, %p58
    %p60 = scmp.ne.s32.totalorder %s52, %s55
    %p61 = scmp.eq.s32.totalorder %s16, 0
    %p62 = por %p60, %p61
    %p63 = scmp.ne.s32.totalorder %s52, %s55
    %p64 = scmp.eq.s32.totalorder %s21, 1
    %p65 = por %p63, %p64
    %p66 = scmp.ne.s32.totalorder %s55, %s56
    %p67 = scmp.eq.s32.totalorder %s21, 0
    %p68 = por %p66, %p67
    %p69 = scmp.ne.s32.totalorder %s55, %s56
    %p70 = scmp.eq.s32.totalorder %s22, 1
    %p71 = por %p69, %p70
    %p73 = scmp.ne.s32.totalorder %s56, %s72
    %p74 = scmp.eq.s32.totalorder %s22, 0
    %p75 = por %p73, %p74
    %s76 = ssub.s32 %s16, %s23
    %p77 = scmp.eq.s32.totalorder %s76, 0
    %s79 = sadd.s32 %s78, 1
    %s80 = scalar_select %p77, %s78, %s79
    %p83 = pneg %p77
    %p84 = scmp.eq.s32.totalorder %s16, 1
    %p85 = por %p83, %p84
    %p86 = scmp.ne.s32.totalorder %s78, %s81
    %p87 = scmp.eq.s32.totalorder %s16, 0
    %p88 = por %p86, %p87
    %p89 = scmp.ne.s32.totalorder %s78, %s81
    %p90 = scmp.eq.s32.totalorder %s21, 1
    %p91 = por %p89, %p90
    %p92 = scmp.ne.s32.totalorder %s81, %s82
    %p93 = scmp.eq.s32.totalorder %s21, 0
    %p94 = por %p92, %p93
    %p95 = scmp.ne.s32.totalorder %s81, %s82
    %p96 = scmp.eq.s32.totalorder %s22, 1
    %p97 = por %p95, %p96
    %p99 = scmp.ne.s32.totalorder %s82, %s98
    %p100 = scmp.eq.s32.totalorder %s22, 0
    %p101 = por %p99, %p100
    %s102 = ssub.s32 %s16, %s23
    %p103 = scmp.eq.s32.totalorder %s102, 0
    %s105 = sadd.s32 %s104, 1
    %s106 = scalar_select %p103, %s104, %s105
    %p109 = pneg %p103
    %p110 = scmp.eq.s32.totalorder %s16, 1
    %p111 = por %p109, %p110
    %p112 = scmp.ne.s32.totalorder %s104, %s107
    %p113 = scmp.eq.s32.totalorder %s16, 0
    %p114 = por %p112, %p113
    %p115 = scmp.ne.s32.totalorder %s104, %s107
    %p116 = scmp.eq.s32.totalorder %s21, 1
    %p117 = por %p115, %p116
    %p118 = scmp.ne.s32.totalorder %s107, %s108
    %p119 = scmp.eq.s32.totalorder %s21, 0
    %p120 = por %p118, %p119
    %p121 = scmp.ne.s32.totalorder %s107, %s108
    %p122 = scmp.eq.s32.totalorder %s22, 1
    %p123 = por %p121, %p122
    %p125 = scmp.ne.s32.totalorder %s108, %s124
    %p126 = scmp.eq.s32.totalorder %s22, 0
    %p127 = por %p125, %p126
    %s129 = sadd.s32 %s128, 1
    %p132 = scmp.eq.s32.totalorder %s16, 1
    %p133 = scmp.ne.s32.totalorder %s128, %s130
    %p134 = scmp.eq.s32.totalorder %s16, 0
    %p135 = por %p133, %p134
    %p136 = scmp.ne.s32.totalorder %s128, %s130
    %p137 = scmp.eq.s32.totalorder %s21, 1
    %p138 = por %p136, %p137
    %p139 = scmp.ne.s32.totalorder %s130, %s131
    %p140 = scmp.eq.s32.totalorder %s21, 0
    %p141 = por %p139, %p140
    %p142 = scmp.ne.s32.totalorder %s130, %s131
    %p143 = scmp.eq.s32.totalorder %s22, 1
    %p144 = por %p142, %p143
    %p146 = scmp.ne.s32.totalorder %s131, %s145
    %p147 = scmp.eq.s32.totalorder %s22, 0
    %p148 = por %p146, %p147
    %s150 = sadd.s32 %s149, 1
    %p153 = scmp.eq.s32.totalorder %s16, 1
    %p154 = scmp.ne.s32.totalorder %s149, %s151
    %p155 = scmp.eq.s32.totalorder %s16, 0
    %p156 = por %p154, %p155
    %p157 = scmp.ne.s32.totalorder %s149, %s151
    %p158 = scmp.eq.s32.totalorder %s21, 1
    %p159 = por %p157, %p158
    %p160 = scmp.ne.s32.totalorder %s151, %s152
    %p161 = scmp.eq.s32.totalorder %s21, 0
    %p162 = por %p160, %p161
    %p163 = scmp.ne.s32.totalorder %s151, %s152
    %p164 = scmp.eq.s32.totalorder %s22, 1
    %p165 = por %p163, %p164
    %p167 = scmp.ne.s32.totalorder %s152, %s166
    %p168 = scmp.eq.s32.totalorder %s22, 0
    %p169 = por %p167, %p168
    %s171 = sadd.s32 %s170, 1
    %p174 = scmp.eq.s32.totalorder %s16, 1
    %p175 = scmp.ne.s32.totalorder %s170, %s172
    %p176 = scmp.eq.s32.totalorder %s16, 0
    %p177 = por %p175, %p176
    %p178 = scmp.ne.s32.totalorder %s170, %s172
    %p179 = scmp.eq.s32.totalorder %s21, 1
    %p180 = por %p178, %p179
    %p181 = scmp.ne.s32.totalorder %s172, %s173
    %p182 = scmp.eq.s32.totalorder %s21, 0
    %p183 = por %p181, %p182
    %p184 = scmp.ne.s32.totalorder %s172, %s173
    %p185 = scmp.eq.s32.totalorder %s22, 1
    %p186 = por %p184, %p185
    %p188 = scmp.ne.s32.totalorder %s173, %s187
    %p189 = scmp.eq.s32.totalorder %s22, 0
    %p190 = por %p188, %p189
    %s192 = sadd.s32 %s191, 1
    %p195 = scmp.eq.s32.totalorder %s16, 1
    %p196 = scmp.ne.s32.totalorder %s191, %s193
    %p197 = scmp.eq.s32.totalorder %s16, 0
    %p198 = por %p196, %p197
    %p199 = scmp.ne.s32.totalorder %s191, %s193
    %p200 = scmp.eq.s32.totalorder %s21, 1
    %p201 = por %p199, %p200
    %p202 = scmp.ne.s32.totalorder %s193, %s194
    %p203 = scmp.eq.s32.totalorder %s21, 0
    %p204 = por %p202, %p203
    %p205 = scmp.ne.s32.totalorder %s193, %s194
    %p206 = scmp.eq.s32.totalorder %s22, 1
    %p207 = por %p205, %p206
    %p209 = scmp.ne.s32.totalorder %s194, %s208
    %p210 = scmp.eq.s32.totalorder %s22, 0
    %p211 = por %p209, %p210
    %s212 = ssub.s32 %s16, %s23
    %p213 = scmp.eq.s32.totalorder %s212, 0
    %s215 = sadd.s32 %s214, 1
    %s216 = scalar_select %p213, %s214, %s215
    %p219 = pneg %p213
    %p220 = scmp.eq.s32.totalorder %s16, 1
    %p221 = por %p219, %p220
    %p222 = scmp.ne.s32.totalorder %s214, %s217
    %p223 = scmp.eq.s32.totalorder %s16, 0
    %p224 = por %p222, %p223
    %p225 = scmp.ne.s32.totalorder %s214, %s217
    %p226 = scmp.eq.s32.totalorder %s21, 1
    %p227 = por %p225, %p226
    %p228 = scmp.ne.s32.totalorder %s217, %s218
    %p229 = scmp.eq.s32.totalorder %s21, 0
    %p230 = por %p228, %p229
    %p231 = scmp.ne.s32.totalorder %s217, %s218
    %p232 = scmp.eq.s32.totalorder %s22, 1
    %p233 = por %p231, %p232
    %p235 = scmp.ne.s32.totalorder %s218, %s234
    %p236 = scmp.eq.s32.totalorder %s22, 0
    %p237 = por %p235, %p236
    %p238 = scmp.le.s32.totalorder 1, %s16
    %p239 = scmp.lt.s32.totalorder %s16, 3
    %p240 = pnand %p238, %p239
    %p241 = pneg %p240
    // Predicated region
    $region9: #{bidaf_forward.20} parent=5 // pred_check
      _
    $region10: #{bidaf_forward.20} parent=5 // pred_check_branch
      %243 = sbr.rel (%p240) target = $region12
    $region11: #{bidaf_forward.20} parent=5 // pred_region
      %s244 = ssub.s32 %s16, 1
      // Predicated region
      $region13: #{bidaf_forward.20} parent=11 // pred_check
        %p245 = pneg %p141
      $region14: #{bidaf_forward.20} parent=11 // pred_check_branch
        %247 = sbr.rel (%p245) target = $region16
      $region15: #{bidaf_forward.20} parent=11 // pred_region
        _
      $region16: #{bidaf_forward.20} parent=11 // pred_fallthru
        _
      // Predicated region
      $region17: #{bidaf_forward.20} parent=11 // pred_check
        %p248 = pneg %p162
      $region18: #{bidaf_forward.20} parent=11 // pred_check_branch
        %250 = sbr.rel (%p248) target = $region20
      $region19: #{bidaf_forward.20} parent=11 // pred_region
        _
      $region20: #{bidaf_forward.20} parent=11 // pred_fallthru
        _
      // Predicated region
      $region21: #{bidaf_forward.20} parent=11 // pred_check
        %p251 = pneg %p183
      $region22: #{bidaf_forward.20} parent=11 // pred_check_branch
        %253 = sbr.rel (%p251) target = $region24
      $region23: #{bidaf_forward.20} parent=11 // pred_region
        _
      $region24: #{bidaf_forward.20} parent=11 // pred_fallthru
        _
      // Predicated region
      $region25: #{bidaf_forward.20} parent=11 // pred_check
        %p254 = pneg %p204
      $region26: #{bidaf_forward.20} parent=11 // pred_check_branch
        %256 = sbr.rel (%p254) target = $region28
      $region27: #{bidaf_forward.20} parent=11 // pred_region
        _
      $region28: #{bidaf_forward.20} parent=11 // pred_fallthru
        _
    $region12: #{bidaf_forward.20} parent=5 // pred_fallthru
      _
    %p257 = scmp.lt.s32.totalorder %s16, 2
    // Predicated region
    $region29: #{bidaf_forward.20} parent=5 // pred_check
      %p258 = pneg %p257
    $region30: #{bidaf_forward.20} parent=5 // pred_check_branch
      %260 = sbr.rel (%p258) target = $region32
    $region31: #{bidaf_forward.20} parent=5 // pred_region
      // Predicated region
      $region33: #{bidaf_forward.20} parent=31 // pred_check
        %p261 = pneg %p36
      $region34: #{bidaf_forward.20} parent=31 // pred_check_branch
        %263 = sbr.rel (%p261) target = $region36
      $region35: #{bidaf_forward.20} parent=31 // pred_region
        %p264 = scmp.lt.s32.totalorder %s16, 1
        %s265 = scalar_select %p264, %s16, 1
        %s266 = smul.addr %s265, 2
        %s267 = smul.addr %s266, 8
        %s268 = scalar_lea.vmem %s0, %s267
      $region36: #{bidaf_forward.20} parent=31 // pred_fallthru
        _
      // Predicated region
      $region37: #{bidaf_forward.20} parent=31 // pred_check
        %p269 = pneg %p62
      $region38: #{bidaf_forward.20} parent=31 // pred_check_branch
        %271 = sbr.rel (%p269) target = $region40
      $region39: #{bidaf_forward.20} parent=31 // pred_region
        %p272 = scmp.lt.s32.totalorder %s16, 1
        %s273 = scalar_select %p272, %s16, 1
        %s274 = smul.addr %s273, 8
        %s275 = scalar_lea.vmem %s1, %s274
      $region40: #{bidaf_forward.20} parent=31 // pred_fallthru
        _
      // Predicated region
      $region41: #{bidaf_forward.20} parent=31 // pred_check
        %p276 = pneg %p88
      $region42: #{bidaf_forward.20} parent=31 // pred_check_branch
        %278 = sbr.rel (%p276) target = $region44
      $region43: #{bidaf_forward.20} parent=31 // pred_region
        %p279 = scmp.lt.s32.totalorder %s16, 1
        %s280 = scalar_select %p279, %s16, 1
        %s281 = smul.addr %s280, 2
        %s282 = smul.addr %s281, 8
        %s283 = scalar_lea.vmem %s2, %s282
      $region44: #{bidaf_forward.20} parent=31 // pred_fallthru
        _
      // Predicated region
      $region45: #{bidaf_forward.20} parent=31 // pred_check
        %p284 = pneg %p114
      $region46: #{bidaf_forward.20} parent=31 // pred_check_branch
        %286 = sbr.rel (%p284) target = $region48
      $region47: #{bidaf_forward.20} parent=31 // pred_region
        %p287 = scmp.lt.s32.totalorder %s16, 1
        %s288 = scalar_select %p287, %s16, 1
        %s289 = scalar_lea.vmem %s3, %s288
      $region48: #{bidaf_forward.20} parent=31 // pred_fallthru
        _
    $region32: #{bidaf_forward.20} parent=5 // pred_fallthru
      _
    %p290 = scmp.le.s32.totalorder 1, %s16
    %p291 = scmp.lt.s32.totalorder %s16, 3
    %p292 = pnand %p290, %p291
    %p293 = pneg %p292
    // Predicated region
    $region49: #{bidaf_forward.20} parent=5 // pred_check
      _
    $region50: #{bidaf_forward.20} parent=5 // pred_check_branch
      %295 = sbr.rel (%p292) target = $region52
    $region51: #{bidaf_forward.20} parent=5 // pred_region
      %s296 = ssub.s32 %s16, 1
      %p297 = scmp.lt.s32.totalorder %s21, 1
      %s298 = scalar_select %p297, %s21, 1
      %s299 = smul.addr %s298, 2
      %s300 = smul.addr %s299, 8
      %s301 = scalar_lea.vmem %s0, %s300
      %p302 = pneg %p42
      %p303 = pneg %p39
      %p304 = scmp.lt.s32.totalorder %s21, 1
      %s305 = scalar_select %p304, %s21, 1
      %s306 = smul.addr %s305, 8
      %s307 = scalar_lea.vmem %s1, %s306
      %p308 = pneg %p68
      %p309 = pneg %p65
      %p310 = scmp.lt.s32.totalorder %s21, 1
      %s311 = scalar_select %p310, %s21, 1
      %s312 = smul.addr %s311, 2
      %s313 = smul.addr %s312, 8
      %s314 = scalar_lea.vmem %s2, %s313
      %p315 = pneg %p94
      %p316 = pneg %p91
      %p317 = scmp.lt.s32.totalorder %s21, 1
      %s318 = scalar_select %p317, %s21, 1
      %s319 = scalar_lea.vmem %s3, %s318
      %p320 = pneg %p120
      %p321 = pneg %p117
      %p322 = pneg %p141
      %p323 = pneg %p138
      %p324 = pneg %p162
      %p325 = pneg %p159
      %p326 = pneg %p183
      %p327 = pneg %p180
      %p328 = pneg %p204
      %p329 = pneg %p201
      %p330 = pneg %p230
      %p331 = pneg %p227
      %p332 = scmp.lt.s32.totalorder %s21, 1
      %s333 = scalar_select %p332, %s21, 1
      %s334 = smul.addr %s333, 4
      %s335 = smul.addr %s334, 8
      %s336 = scalar_lea.vmem %s8, %s335
      %p337 = scmp.lt.s32.totalorder %s21, 1
      %s338 = scalar_select %p337, %s21, 1
      %s339 = smul.addr %s338, 2
      %s340 = smul.addr %s339, 8
      %s341 = scalar_lea.vmem %s0, %s340
      %p342 = scmp.lt.s32.totalorder %s21, 1
      %s343 = scalar_select %p342, %s21, 1
      %s344 = smul.addr %s343, 8
      %s345 = scalar_lea.vmem %s1, %s344
      %p346 = scmp.lt.s32.totalorder %s21, 1
      %s347 = scalar_select %p346, %s21, 1
      %s348 = smul.addr %s347, 2
      %s349 = smul.addr %s348, 8
      %s350 = scalar_lea.vmem %s2, %s349
      %p351 = scmp.lt.s32.totalorder %s21, 1
      %s352 = scalar_select %p351, %s21, 1
      %s353 = scalar_lea.vmem %s3, %s352
      %p354 = scmp.lt.s32.totalorder %s21, 1
      %s355 = scalar_select %p354, %s21, 1
      %s356 = smul.addr %s355, 4
      %s357 = smul.addr %s356, 8
      %s358 = scalar_lea.vmem %s8, %s357
      %v360 = vld [vmem:[%s341] sm:$0xff]
      %v361 = vld [vmem:[%s341 + $0x8] sm:$0xf]
      %v362 = vld [vmem:[%s345] sm:$0xff]
      %v363 = vld [vmem:[%s350] sm:$0xff]
      %v364 = vld [vmem:[%s350 + $0x8] sm:$0xf]
      %v365 = vld [vmem:[%s353] sm:$0x1]
      %v366 = vld [vmem:[%s4] sm:$0x1]
      %v368 = vlaneseq
      %v369 = vshrl.u32 %v368, 7
      %v370 = vsub.s32 0, %v369
      %v371 = vrot.slane %v366, %v370
      %v373 = vmul.f32 %v360, %v371
      %v374 = vmul.f32 %v361, %v371
      %vm375 = vcmask 523264
      %v376 = vsel %vm375, %v373, 0.0
      %377 = vadd.xlane.f32.xlu0 %v376
      %v378 = vpop.xlane.xlu0 %377
      %vm379 = vcmask 519168
      %v380 = vsel %vm379, %v374, 0.0
      %381 = vadd.xlane.f32.xlu0 %v380
      %v382 = vpop.xlane.xlu0 %381
      %v383 = vld [vmem:[%s5] sm:$0x1]
      %v385 = vlaneseq
      %v386 = vshrl.u32 %v385, 7
      %v387 = vsub.s32 0, %v386
      %v388 = vrot.slane %v383, %v387
      %v390 = vmul.f32 %v362, %v388
      %v391 = vsel %vm375, %v390, 0.0
      %392 = vadd.xlane.f32.xlu0 %v391
      %v393 = vpop.xlane.xlu0 %392
      %v394 = vpack.c.bf16 %v362, %v362
      %v395 = vpack.c.bf16 %v361, %v360
      %v396 = vld [vmem:[%s6] sm:$0x1]
      %v398 = vlaneseq
      %v399 = vshrl.u32 %v398, 7
      %v400 = vsub.s32 0, %v399
      %v401 = vrot.slane %v396, %v400
      %v403 = vmul.f32 %v360, %v401
      %v404 = vmul.f32 %v361, %v401
      %v405 = vpack.c.bf16 %v404, %v403
      %v407 = vsel %vm375, %v405, 0
      %v410 = vsel %vm375, %v394, 0
      %412 = vmatprep.subr.bf16.mxu0 0
      %413 = vmatpush1.bf16.xpose.msra.mxu0 %v410
      %414 = vmatprep.subr.bf16.mxu0 0
      %415 = vmatpush1.bf16.xpose.msra.mxu0 0
      %416 = vmatprep.subr.bf16.mxu0 0
      %417 = vmatpush1.bf16.xpose.msra.mxu0 0
      %418 = vmatprep.subr.bf16.mxu0 0
      %419 = vmatpush1.bf16.xpose.msra.mxu0 0
      %420 = vmatprep.subr.bf16.mxu0 0
      %421 = vmatpush1.bf16.xpose.msra.mxu0 0
      %422 = vmatprep.subr.bf16.mxu0 0
      %423 = vmatpush1.bf16.xpose.msra.mxu0 0
      %424 = vmatprep.subr.bf16.mxu0 0
      %425 = vmatpush1.bf16.xpose.msra.mxu0 0
      %426 = vmatprep.subr.bf16.mxu0 0
      %427 = vmatpush1.bf16.xpose.msra.mxu0 0
      %428 = vmatprep.subr.bf16.mxu0 0
      %429 = vmatpush1.bf16.xpose.msra.mxu0 0
      %430 = vmatprep.subr.bf16.mxu0 0
      %431 = vmatpush1.bf16.xpose.msra.mxu0 0
      %432 = vmatprep.subr.bf16.mxu0 0
      %433 = vmatpush1.bf16.xpose.msra.mxu0 0
      %434 = vmatprep.subr.bf16.mxu0 0
      %435 = vmatpush1.bf16.xpose.msra.mxu0 0
      %436 = vmatprep.subr.bf16.mxu0 0
      %437 = vmatpush1.bf16.xpose.msra.mxu0 0
      %438 = vmatprep.subr.bf16.mxu0 0
      %439 = vmatpush1.bf16.xpose.msra.mxu0 0
      %440 = vmatprep.subr.bf16.mxu0 0
      %441 = vmatpush1.bf16.xpose.msra.mxu0 0
      %442 = vmatprep.subr.bf16.mxu0 0
      %443 = vmatpush1.bf16.xpose.msra.mxu0 0
      %444 = vmatprep.mubr.bf16.mxu0 0
      %445 = vmatmul.mubr.bf16.gmra.mrb[0].mxu0 %v407
      %v446 = vpop.f32.mrb[0].mxu0
      %v447 = vadd.f32 0.0, %v446
      %v448 = vpop.f32.mrb[0].mxu0
      %v449 = vpop.f32.mrb[0].mxu0
      %v450 = vadd.f32 0.0, %v449
      %v451 = vpop.f32.mrb[0].mxu0
      %452 = vdwg.mxu0
      %453 = vxpose.xlu0.b32.start [1/16] %v393, 128
      %454 = vxpose.xlu0.b32.cont [2/16] 0.0, 128
      %455 = vxpose.xlu0.b32.cont [3/16] 0.0, 128
      %456 = vxpose.xlu0.b32.cont [4/16] 0.0, 128
      %457 = vxpose.xlu0.b32.cont [5/16] 0.0, 128
      %458 = vxpose.xlu0.b32.cont [6/16] 0.0, 128
      %459 = vxpose.xlu0.b32.cont [7/16] 0.0, 128
      %460 = vxpose.xlu0.b32.cont [8/16] 0.0, 128
      %461 = vxpose.xlu0.b32.cont [9/16] 0.0, 128
      %462 = vxpose.xlu0.b32.cont [10/16] 0.0, 128
      %463 = vxpose.xlu0.b32.cont [11/16] 0.0, 128
      %464 = vxpose.xlu0.b32.cont [12/16] 0.0, 128
      %465 = vxpose.xlu0.b32.cont [13/16] 0.0, 128
      %466 = vxpose.xlu0.b32.cont [14/16] 0.0, 128
      %467 = vxpose.xlu0.b32.cont [15/16] 0.0, 128
      %468 = vxpose.xlu0.b32.end [16/16] 0.0, 128
      %v469 = vpop.trf.xlu0
      %v470 = vpop.trf.xlu0
      %v471 = vpop.trf.xlu0
      %v472 = vpop.trf.xlu0
      %v473 = vpop.trf.xlu0
      %v474 = vpop.trf.xlu0
      %v475 = vpop.trf.xlu0
      %v476 = vpop.trf.xlu0
      %v477 = vpop.trf.xlu0
      %v478 = vpop.trf.xlu0
      %v479 = vpop.trf.xlu0
      %v480 = vpop.trf.xlu0
      %v481 = vpop.trf.xlu0
      %v482 = vpop.trf.xlu0
      %v483 = vpop.trf.xlu0
      %v484 = vpop.trf.xlu0
      %v485 = vlaneseq
      %v486 = vshrl.u32 %v485, 7
      %v487 = vsub.s32 0, %v486
      %v488 = vrot.slane %v469, %v487
      %v489 = vadd.f32 %v378, %v488
      %v490 = vadd.f32 %v382, %v488
      %v491 = vadd.f32 %v489, %v447
      %v492 = vadd.f32 %v490, %v450
      %v493 = vld [vmem:[#allocation2] sm:$0x1]
      %v495 = vlaneseq
      %v496 = vshrl.u32 %v495, 7
      %v497 = vsub.s32 0, %v496
      %v498 = vrot.slane %v493, %v497
      %499 = vset.pattern.permute.xlu0 0
      %500 = vperm.xlu0 %499, %v498
      %v501 = vpop.permute.xlu0 %500
      %v503 = vadd.f32 %v491, %v501
      %v504 = vadd.f32 %v492, %v501
      %v506 = vlaneseq
      %v507 = vshrl.u32 %v506, 7
      %v508 = vsub.s32 0, %v507
      %v509 = vrot.slane %v365, %v508
      %v511 = vmul.f32 %v509, %v503
      %v512 = vmul.f32 %v509, %v504
      %v513 = vsub.f32 1.0, %v365
      %v514 = vmul.f32 %v513, -1e+30
      %v516 = vlaneseq
      %v517 = vshrl.u32 %v516, 7
      %v518 = vsub.s32 0, %v517
      %v519 = vrot.slane %v514, %v518
      %v521 = vadd.f32 %v511, %v519
      %v522 = vadd.f32 %v512, %v519
      %vm523 = vcmask 64512
      %v524 = vsel %vm523, %v521, -inf
      %525 = vmax.xlane.f32.xlu0 %v524
      %v526 = vpop.xlane.xlu0 %525
      %vm527 = vcmask 60416
      %v528 = vsel %vm527, %v522, -inf
      %529 = vmax.xlane.f32.xlu0 %v528
      %v530 = vpop.xlane.xlu0 %529
      %v531 = vsub.f32 %v521, %v526
      %v532 = vsub.f32 %v522, %v530
      %v533 = vmul.f32 %v531, 1.442695
      %v534 = vpow.pop %v533
      %v535 = vmul.f32 %v532, 1.442695
      %v536 = vpow.pop %v535
      %v537 = vsel %vm523, %v534, 0.0
      %538 = vadd.xlane.f32.xlu0 %v537
      %v539 = vpop.xlane.xlu0 %538
      %v540 = vsel %vm527, %v536, 0.0
      %541 = vadd.xlane.f32.xlu0 %v540
      %v542 = vpop.xlane.xlu0 %541
      %v543 = vrcp.pop %v539
      %v544 = vrcp.pop %v542
      %v545 = vmul.f32 %v534, %v543
      %v546 = vmul.f32 %v536, %v544
      %548 = vset.pattern.permute.xlu0 0
      %549 = vperm.xlu0 %548, %v363
      %v550 = vpop.permute.xlu0 %549
      %553 = vset.pattern.permute.xlu0 0
      %554 = vperm.xlu0 %553, %v364
      %v555 = vpop.permute.xlu0 %554
      %v557 = vmul.f32 %v550, %v503
      %v558 = vmul.f32 %v555, %v504
      %v559 = vsub.f32 1.0, %v363
      %v560 = vsub.f32 1.0, %v364
      %v561 = vmul.f32 %v559, -1e+30
      %v562 = vmul.f32 %v560, -1e+30
      %564 = vset.pattern.permute.xlu0 0
      %565 = vperm.xlu0 %564, %v561
      %v566 = vpop.permute.xlu0 %565
      %569 = vset.pattern.permute.xlu0 0
      %570 = vperm.xlu0 %569, %v562
      %v571 = vpop.permute.xlu0 %570
      %v573 = vadd.f32 %v557, %v566
      %v574 = vadd.f32 %v558, %v571
      %v575 = vsel %vm523, %v573, -inf
      %v576 = vsel %vm527, %v574, -inf
      %v577 = vmax.f32 %v575, %v576
      %v578 = vrot.slane %v577, 4
      %v579 = vmax.f32 %v577, %v578
      %v580 = vrot.slane %v579, 2
      %v581 = vmax.f32 %v579, %v580
      %v582 = vrot.slane %v581, 1
      %v583 = vmax.f32 %v581, %v582
      %v584 = vsub.f32 %v573, %v583
      %v585 = vsub.f32 %v574, %v583
      %v586 = vmul.f32 %v584, 1.442695
      %v587 = vpow.pop %v586
      %v588 = vmul.f32 %v585, 1.442695
      %v589 = vpow.pop %v588
      %v590 = vsel %vm523, %v587, 0.0
      %v591 = vsel %vm527, %v589, 0.0
      %v592 = vadd.f32 %v590, %v591
      %v593 = vrot.slane %v592, 4
      %v594 = vadd.f32 %v592, %v593
      %v595 = vrot.slane %v594, 2
      %v596 = vadd.f32 %v594, %v595
      %v597 = vrot.slane %v596, 1
      %v598 = vadd.f32 %v596, %v597
      %v599 = vrcp.pop %v598
      %v600 = vmul.f32 %v587, %v599
      %v601 = vmul.f32 %v589, %v599
      %v602 = vpack.c.bf16 %v546, %v545
      %v604 = vsel %vm523, %v602, 0
      %vm606 = vcmask 1043456
      %v607 = vsel %vm606, %v394, 0
      %609 = vmatprep.subr.bf16.mxu0 0
      %610 = vmatpush1.bf16.msra.mxu0 %v607
      %611 = vmatprep.subr.bf16.mxu0 0
      %612 = vmatpush1.bf16.msra.mxu0 0
      %613 = vmatprep.subr.bf16.mxu0 0
      %614 = vmatpush1.bf16.msra.mxu0 0
      %615 = vmatprep.subr.bf16.mxu0 0
      %616 = vmatpush1.bf16.msra.mxu0 0
      %617 = vmatprep.subr.bf16.mxu0 0
      %618 = vmatpush1.bf16.msra.mxu0 0
      %619 = vmatprep.subr.bf16.mxu0 0
      %620 = vmatpush1.bf16.msra.mxu0 0
      %621 = vmatprep.subr.bf16.mxu0 0
      %622 = vmatpush1.bf16.msra.mxu0 0
      %623 = vmatprep.subr.bf16.mxu0 0
      %624 = vmatpush1.bf16.msra.mxu0 0
      %625 = vmatprep.subr.bf16.mxu0 0
      %626 = vmatpush1.bf16.msra.mxu0 0
      %627 = vmatprep.subr.bf16.mxu0 0
      %628 = vmatpush1.bf16.msra.mxu0 0
      %629 = vmatprep.subr.bf16.mxu0 0
      %630 = vmatpush1.bf16.msra.mxu0 0
      %631 = vmatprep.subr.bf16.mxu0 0
      %632 = vmatpush1.bf16.msra.mxu0 0
      %633 = vmatprep.subr.bf16.mxu0 0
      %634 = vmatpush1.bf16.msra.mxu0 0
      %635 = vmatprep.subr.bf16.mxu0 0
      %636 = vmatpush1.bf16.msra.mxu0 0
      %637 = vmatprep.subr.bf16.mxu0 0
      %638 = vmatpush1.bf16.msra.mxu0 0
      %639 = vmatprep.subr.bf16.mxu0 0
      %640 = vmatpush1.bf16.msra.mxu0 0
      %641 = vmatprep.mubr.bf16.mxu0 0
      %642 = vmatmul.mubr.bf16.gmra.mrb[0].mxu0 %v604
      %v643 = vpop.f32.mrb[0].mxu0
      %v644 = vadd.f32 0.0, %v643
      %v645 = vpop.f32.mrb[0].mxu0
      %v646 = vpop.f32.mrb[0].mxu0
      %v647 = vadd.f32 0.0, %v646
      %v648 = vpop.f32.mrb[0].mxu0
      %649 = vdwg.mxu0
      %v650 = vpack.c.bf16 %v601, %v600
      %651 = vxpose.xlu0.c.b16.start [1/8] %v650, 128
      %652 = vxpose.xlu0.c.b16.cont [2/8] 0, 128
      %653 = vxpose.xlu0.c.b16.cont [3/8] 0, 128
      %654 = vxpose.xlu0.c.b16.cont [4/8] 0, 128
      %655 = vxpose.xlu0.c.b16.cont [5/8] 0, 128
      %656 = vxpose.xlu0.c.b16.cont [6/8] 0, 128
      %657 = vxpose.xlu0.c.b16.cont [7/8] 0, 128
      %658 = vxpose.xlu0.c.b16.end [8/8] 0, 128
      %v659 = vpop.trf.xlu0
      %v660 = vpop.trf.xlu0
      %v661 = vpop.trf.xlu0
      %v662 = vpop.trf.xlu0
      %v663 = vpop.trf.xlu0
      %v664 = vpop.trf.xlu0
      %v665 = vpop.trf.xlu0
      %v666 = vpop.trf.xlu0
      %vm667 = vcmask 97280
      %v669 = vsel %vm667, %v659, 0
      %vm671 = vcmask 1045504
      %v673 = vsel %vm671, %v395, 0
      %675 = vmatprep.subr.bf16.mxu0 0
      %676 = vmatpush1.bf16.msra.mxu0 %v673
      %677 = vmatprep.subr.bf16.mxu0 0
      %678 = vmatpush1.bf16.msra.mxu0 0
      %679 = vmatprep.subr.bf16.mxu0 0
      %680 = vmatpush1.bf16.msra.mxu0 0
      %681 = vmatprep.subr.bf16.mxu0 0
      %682 = vmatpush1.bf16.msra.mxu0 0
      %683 = vmatprep.subr.bf16.mxu0 0
      %684 = vmatpush1.bf16.msra.mxu0 0
      %685 = vmatprep.subr.bf16.mxu0 0
      %686 = vmatpush1.bf16.msra.mxu0 0
      %687 = vmatprep.subr.bf16.mxu0 0
      %688 = vmatpush1.bf16.msra.mxu0 0
      %689 = vmatprep.subr.bf16.mxu0 0
      %690 = vmatpush1.bf16.msra.mxu0 0
      %691 = vmatprep.subr.bf16.mxu0 0
      %692 = vmatpush1.bf16.msra.mxu0 0
      %693 = vmatprep.subr.bf16.mxu0 0
      %694 = vmatpush1.bf16.msra.mxu0 0
      %695 = vmatprep.subr.bf16.mxu0 0
      %696 = vmatpush1.bf16.msra.mxu0 0
      %697 = vmatprep.subr.bf16.mxu0 0
      %698 = vmatpush1.bf16.msra.mxu0 0
      %699 = vmatprep.subr.bf16.mxu0 0
      %700 = vmatpush1.bf16.msra.mxu0 0
      %701 = vmatprep.subr.bf16.mxu0 0
      %702 = vmatpush1.bf16.msra.mxu0 0
      %703 = vmatprep.subr.bf16.mxu0 0
      %704 = vmatpush1.bf16.msra.mxu0 0
      %705 = vmatprep.subr.bf16.mxu0 0
      %706 = vmatpush1.bf16.msra.mxu0 0
      %707 = vmatprep.mubr.bf16.mxu0 0
      %708 = vmatmul.mubr.bf16.gmra.mrb[0].mxu0 %v669
      %v709 = vpop.f32.mrb[0].mxu0
      %v710 = vadd.f32 0.0, %v709
      %v711 = vpop.f32.mrb[0].mxu0
      %v712 = vpop.f32.mrb[0].mxu0
      %v713 = vpop.f32.mrb[0].mxu0
      %714 = vdwg.mxu0
      %v715 = vpack.c.bf16 %v710, %v710
      %v717 = vsel %vm606, %v715, 0
      %719 = vmatprep.subr.bf16.mxu0 0
      %720 = vmatpush1.bf16.msra.mxu0 %v717
      %721 = vmatprep.subr.bf16.mxu0 0
      %722 = vmatpush1.bf16.msra.mxu0 0
      %723 = vmatprep.subr.bf16.mxu0 0
      %724 = vmatpush1.bf16.msra.mxu0 0
      %725 = vmatprep.subr.bf16.mxu0 0
      %726 = vmatpush1.bf16.msra.mxu0 0
      %727 = vmatprep.subr.bf16.mxu0 0
      %728 = vmatpush1.bf16.msra.mxu0 0
      %729 = vmatprep.subr.bf16.mxu0 0
      %730 = vmatpush1.bf16.msra.mxu0 0
      %731 = vmatprep.subr.bf16.mxu0 0
      %732 = vmatpush1.bf16.msra.mxu0 0
      %733 = vmatprep.subr.bf16.mxu0 0
      %734 = vmatpush1.bf16.msra.mxu0 0
      %735 = vmatprep.subr.bf16.mxu0 0
      %736 = vmatpush1.bf16.msra.mxu0 0
      %737 = vmatprep.subr.bf16.mxu0 0
      %738 = vmatpush1.bf16.msra.mxu0 0
      %739 = vmatprep.subr.bf16.mxu0 0
      %740 = vmatpush1.bf16.msra.mxu0 0
      %741 = vmatprep.subr.bf16.mxu0 0
      %742 = vmatpush1.bf16.msra.mxu0 0
      %743 = vmatprep.subr.bf16.mxu0 0
      %744 = vmatpush1.bf16.msra.mxu0 0
      %745 = vmatprep.subr.bf16.mxu0 0
      %746 = vmatpush1.bf16.msra.mxu0 0
      %747 = vmatprep.subr.bf16.mxu0 0
      %748 = vmatpush1.bf16.msra.mxu0 0
      %749 = vmatprep.subr.bf16.mxu0 0
      %750 = vmatpush1.bf16.msra.mxu0 0
      %751 = vmatprep.mubr.bf16.mxu0 0
      %752 = vmatmul.mubr.bf16.gmra.mrb[0].mxu0 %v604
      %v753 = vpop.f32.mrb[0].mxu0
      %v754 = vadd.f32 0.0, %v753
      %v755 = vpop.f32.mrb[0].mxu0
      %v756 = vpop.f32.mrb[0].mxu0
      %v757 = vadd.f32 0.0, %v756
      %v758 = vpop.f32.mrb[0].mxu0
      %759 = vdwg.mxu0
      %v760 = vmul.f32 %v360, %v644
      %v761 = vmul.f32 %v361, %v647
      %v762 = vmul.f32 %v360, %v754
      %v763 = vmul.f32 %v361, %v757
      %766 = vrot.lane.b32.xlu0 %v644, 64
      %v767 = vpop.permute.xlu0 %766
      %768 = vrot.lane.b32.xlu0 %v647, 64
      %v769 = vpop.permute.xlu0 %768
      %774 = vrot.lane.b32.xlu0 %v762, 64
      %v775 = vpop.permute.xlu0 %774
      %776 = vrot.lane.b32.xlu0 %v763, 64
      %v777 = vpop.permute.xlu0 %776
      %v780 = vsel %vm375, %v360, %v767
      %v781 = vsel %vm375, %v361, %v769
      %v782 = vsel %vm375, %v760, %v775
      %v783 = vsel %vm375, %v761, %v777
      %784 = vst [vmem:[%s358] sm:$0xff] %v780
      %785 = vst [vmem:[%s358 + $0x8] sm:$0xff] %v782
      %786 = vst [vmem:[%s358 + $0x10] sm:$0xf] %v781
      %787 = vst [vmem:[%s358 + $0x18] sm:$0xf] %v783
      %p788 = scmp.lt.s32.totalorder %s21, 1
      %s789 = scalar_select %p788, %s21, 1
      %s790 = smul.addr %s789, 4
      %s791 = smul.addr %s790, 8
      %s792 = scalar_lea.vmem %s8, %s791
      // Predicated region
      $region53: #{bidaf_forward.20} parent=51 // pred_check
        %p793 = pneg %p227
      $region54: #{bidaf_forward.20} parent=51 // pred_check_branch
        %795 = sbr.rel (%p793) target = $region56
      $region55: #{bidaf_forward.20} parent=51 // pred_region
        _
      $region56: #{bidaf_forward.20} parent=51 // pred_fallthru
        _
    $region52: #{bidaf_forward.20} parent=5 // pred_fallthru
      _
    %p796 = scmp.le.s32.totalorder 2, %s16
    // Predicated region
    $region57: #{bidaf_forward.20} parent=5 // pred_check
      %p797 = pneg %p796
    $region58: #{bidaf_forward.20} parent=5 // pred_check_branch
      %799 = sbr.rel (%p797) target = $region60
    $region59: #{bidaf_forward.20} parent=5 // pred_region
      %s800 = ssub.s32 %s16, 2
      // Predicated region
      $region61: #{bidaf_forward.20} parent=59 // pred_check
        %p801 = pneg %p233
      $region62: #{bidaf_forward.20} parent=59 // pred_check_branch
        %803 = sbr.rel (%p801) target = $region64
      $region63: #{bidaf_forward.20} parent=59 // pred_region
        %p804 = scmp.lt.s32.totalorder %s22, 1
        %s805 = scalar_select %p804, %s22, 1
        %s806 = smul.addr %s805, 4
        %s807 = smul.addr %s806, 8
        %s808 = scalar_lea.vmem %s8, %s807
      $region64: #{bidaf_forward.20} parent=59 // pred_fallthru
        _
    $region60: #{bidaf_forward.20} parent=5 // pred_fallthru
      _
  $region6: #{bidaf_forward.20} parent=0 // loop_footer
    %s20 = sadd.s32 1, %s16
  $region7: #{bidaf_forward.20} parent=0 // loop_footer_branch
    %15 = sbr.rel target = $region3
  $region8: #{bidaf_forward.20} parent=0 // loop_exit
    _

// kernel: bidaf_forward.21
$region0: #{bidaf_forward.21}
  #allocation0 [shape = 'u32[]', space=smem, size = 0x4, offset = 0x4, fixed_abs, tag = 'smem constant byte address 0x4 - core index']
  #allocation1 [shape = 'u32[144,128]{1,0:T(1,128)}', space=vmem, size = 0x12000, scoped, tag = 'internal scratch']
  %s0 = inlined_call_operand.vmem [shape: bf16[24,256], index: 0, kind: input, shape index: {}]
  %s1 = inlined_call_operand.vmem [shape: bf16[256,256], index: 1, kind: input, shape index: {}]
  %s2 = inlined_call_operand.vmem [shape: f32[1,256], index: 2, kind: input, shape index: {}]
  %s3 = inlined_call_operand.vmem [shape: f32[24,256], index: 3, kind: output, shape index: {}]
  %s4 = sld [smem:[#allocation0]]
  $region22: #{bidaf_forward.21} parent=0
    _
  %s6 = ssub.s32 1, %s4
  %s7 = scalar_select 0, %s6, %s4
  // Predicated region
  $region2: #{bidaf_forward.21} parent=0 // pred_check
    _
  $region3: #{bidaf_forward.21} parent=0 // pred_check_branch
    %9 = sbr.rel (0) target = $region5
  $region4: #{bidaf_forward.21} parent=0 // pred_region
    _
  $region5: #{bidaf_forward.21} parent=0 // pred_fallthru
    _
  // Predicated region
  $region6: #{bidaf_forward.21} parent=0 // pred_check
    _
  $region7: #{bidaf_forward.21} parent=0 // pred_check_branch
    %11 = sbr.rel (0) target = $region9
  $region8: #{bidaf_forward.21} parent=0 // pred_region
    _
  $region9: #{bidaf_forward.21} parent=0 // pred_fallthru
    _
  // Predicated region
  $region10: #{bidaf_forward.21} parent=0 // pred_check
    _
  $region11: #{bidaf_forward.21} parent=0 // pred_check_branch
    %13 = sbr.rel (0) target = $region13
  $region12: #{bidaf_forward.21} parent=0 // pred_region
    _
  $region13: #{bidaf_forward.21} parent=0 // pred_fallthru
    _
  %v14 = vld [vmem:[%s0] sm:$0xff]
  %v15 = vld [vmem:[%s0 + $0x8] sm:$0xff]
  %v16 = vld [vmem:[%s0 + $0x10] sm:$0xff]
  %v17 = vld [vmem:[%s1] sm:$0xff]
  %v18 = vld [vmem:[%s1 + $0x8] sm:$0xff]
  %v19 = vld [vmem:[%s1 + $0x10] sm:$0xff]
  %v20 = vld [vmem:[%s1 + $0x18] sm:$0xff]
  %v21 = vld [vmem:[%s1 + $0x20] sm:$0xff]
  %v22 = vld [vmem:[%s1 + $0x28] sm:$0xff]
  %v23 = vld [vmem:[%s1 + $0x30] sm:$0xff]
  %v24 = vld [vmem:[%s1 + $0x38] sm:$0xff]
  %v25 = vld [vmem:[%s1 + $0x40] sm:$0xff]
  %v26 = vld [vmem:[%s1 + $0x48] sm:$0xff]
  %v27 = vld [vmem:[%s1 + $0x50] sm:$0xff]
  %v28 = vld [vmem:[%s1 + $0x58] sm:$0xff]
  %v29 = vld [vmem:[%s1 + $0x60] sm:$0xff]
  %v30 = vld [vmem:[%s1 + $0x68] sm:$0xff]
  %v31 = vld [vmem:[%s1 + $0x70] sm:$0xff]
  %v32 = vld [vmem:[%s1 + $0x78] sm:$0xff]
  %v33 = vld [vmem:[%s1 + $0x80] sm:$0xff]
  %v34 = vld [vmem:[%s1 + $0x88] sm:$0xff]
  %v35 = vld [vmem:[%s1 + $0x90] sm:$0xff]
  %v36 = vld [vmem:[%s1 + $0x98] sm:$0xff]
  %v37 = vld [vmem:[%s1 + $0xa0] sm:$0xff]
  %v38 = vld [vmem:[%s1 + $0xa8] sm:$0xff]
  %v39 = vld [vmem:[%s1 + $0xb0] sm:$0xff]
  %v40 = vld [vmem:[%s1 + $0xb8] sm:$0xff]
  %v41 = vld [vmem:[%s1 + $0xc0] sm:$0xff]
  %v42 = vld [vmem:[%s1 + $0xc8] sm:$0xff]
  %v43 = vld [vmem:[%s1 + $0xd0] sm:$0xff]
  %v44 = vld [vmem:[%s1 + $0xd8] sm:$0xff]
  %v45 = vld [vmem:[%s1 + $0xe0] sm:$0xff]
  %v46 = vld [vmem:[%s1 + $0xe8] sm:$0xff]
  %v47 = vld [vmem:[%s1 + $0xf0] sm:$0xff]
  %v48 = vld [vmem:[%s1 + $0xf8] sm:$0xff]
  %v49 = vld [vmem:[%s2] sm:$0x3]
  %v51 = vlaneseq
  %v52 = vshrl.u32 %v51, 7
  %v53 = vsub.s32 0, %v52
  %v54 = vrot.slane %v49, %v53
  %v55 = vlaneseq
  %v56 = vshrl.u32 %v55, 7
  %v57 = vsub.s32 1, %v56
  %v58 = vrot.slane %v49, %v57
  %v64 = vunpack.c.l.b16 %v14
  %v65 = vunpack.c.h.b16 %v14
  %v66 = vunpack.c.l.b16 %v15
  %v67 = vunpack.c.h.b16 %v15
  %v68 = vunpack.c.l.b16 %v16
  %v69 = vunpack.c.h.b16 %v16
  %v70 = vpack.c.b16 %v66, %v64
  %v71 = vpack.c.b16 %v67, %v65
  %v72 = vpack.c.b16 %v68, %v68
  %v73 = vpack.c.b16 %v69, %v69
  %v110 = vunpack.c.l.b16 %v17
  %v111 = vunpack.c.h.b16 %v17
  %v112 = vunpack.c.l.b16 %v18
  %v113 = vunpack.c.h.b16 %v18
  %v114 = vunpack.c.l.b16 %v19
  %v115 = vunpack.c.h.b16 %v19
  %v116 = vunpack.c.l.b16 %v20
  %v117 = vunpack.c.h.b16 %v20
  %v118 = vunpack.c.l.b16 %v21
  %v119 = vunpack.c.h.b16 %v21
  %v120 = vunpack.c.l.b16 %v22
  %v121 = vunpack.c.h.b16 %v22
  %v122 = vunpack.c.l.b16 %v23
  %v123 = vunpack.c.h.b16 %v23
  %v124 = vunpack.c.l.b16 %v24
  %v125 = vunpack.c.h.b16 %v24
  %v126 = vunpack.c.l.b16 %v25
  %v127 = vunpack.c.h.b16 %v25
  %v128 = vunpack.c.l.b16 %v26
  %v129 = vunpack.c.h.b16 %v26
  %v130 = vunpack.c.l.b16 %v27
  %v131 = vunpack.c.h.b16 %v27
  %v132 = vunpack.c.l.b16 %v28
  %v133 = vunpack.c.h.b16 %v28
  %v134 = vunpack.c.l.b16 %v29
  %v135 = vunpack.c.h.b16 %v29
  %v136 = vunpack.c.l.b16 %v30
  %v137 = vunpack.c.h.b16 %v30
  %v138 = vunpack.c.l.b16 %v31
  %v139 = vunpack.c.h.b16 %v31
  %v140 = vunpack.c.l.b16 %v32
  %v141 = vunpack.c.h.b16 %v32
  %v142 = vunpack.c.l.b16 %v33
  %v143 = vunpack.c.h.b16 %v33
  %v144 = vunpack.c.l.b16 %v34
  %v145 = vunpack.c.h.b16 %v34
  %v146 = vunpack.c.l.b16 %v35
  %v147 = vunpack.c.h.b16 %v35
  %v148 = vunpack.c.l.b16 %v36
  %v149 = vunpack.c.h.b16 %v36
  %v150 = vunpack.c.l.b16 %v37
  %v151 = vunpack.c.h.b16 %v37
  %v152 = vunpack.c.l.b16 %v38
  %v153 = vunpack.c.h.b16 %v38
  %v154 = vunpack.c.l.b16 %v39
  %v155 = vunpack.c.h.b16 %v39
  %v156 = vunpack.c.l.b16 %v40
  %v157 = vunpack.c.h.b16 %v40
  %v158 = vunpack.c.l.b16 %v41
  %v159 = vunpack.c.h.b16 %v41
  %v160 = vunpack.c.l.b16 %v42
  %v161 = vunpack.c.h.b16 %v42
  %v162 = vunpack.c.l.b16 %v43
  %v163 = vunpack.c.h.b16 %v43
  %v164 = vunpack.c.l.b16 %v44
  %v165 = vunpack.c.h.b16 %v44
  %v166 = vunpack.c.l.b16 %v45
  %v167 = vunpack.c.h.b16 %v45
  %v168 = vunpack.c.l.b16 %v46
  %v169 = vunpack.c.h.b16 %v46
  %v170 = vunpack.c.l.b16 %v47
  %v171 = vunpack.c.h.b16 %v47
  %v172 = vunpack.c.l.b16 %v48
  %v173 = vunpack.c.h.b16 %v48
  %v174 = vpack.c.b16 %v112, %v110
  %v175 = vpack.c.b16 %v113, %v111
  %v176 = vpack.c.b16 %v116, %v114
  %v177 = vpack.c.b16 %v117, %v115
  %v178 = vpack.c.b16 %v120, %v118
  %v179 = vpack.c.b16 %v121, %v119
  %v180 = vpack.c.b16 %v124, %v122
  %v181 = vpack.c.b16 %v125, %v123
  %v182 = vpack.c.b16 %v128, %v126
  %v183 = vpack.c.b16 %v129, %v127
  %v184 = vpack.c.b16 %v132, %v130
  %v185 = vpack.c.b16 %v133, %v131
  %v186 = vpack.c.b16 %v136, %v134
  %v187 = vpack.c.b16 %v137, %v135
  %v188 = vpack.c.b16 %v140, %v138
  %v189 = vpack.c.b16 %v141, %v139
  %v190 = vpack.c.b16 %v144, %v142
  %v191 = vpack.c.b16 %v145, %v143
  %v192 = vpack.c.b16 %v148, %v146
  %v193 = vpack.c.b16 %v149, %v147
  %v194 = vpack.c.b16 %v152, %v150
  %v195 = vpack.c.b16 %v153, %v151
  %v196 = vpack.c.b16 %v156, %v154
  %v197 = vpack.c.b16 %v157, %v155
  %v198 = vpack.c.b16 %v160, %v158
  %v199 = vpack.c.b16 %v161, %v159
  %v200 = vpack.c.b16 %v164, %v162
  %v201 = vpack.c.b16 %v165, %v163
  %v202 = vpack.c.b16 %v168, %v166
  %v203 = vpack.c.b16 %v169, %v167
  %v204 = vpack.c.b16 %v172, %v170
  %v205 = vpack.c.b16 %v173, %v171
  %238 = vmatprep.subr.bf16.mxu0 %v175
  %239 = vmatpush1.bf16.msra.mxu0 %v174
  %240 = vmatprep.subr.bf16.mxu0 %v177
  %241 = vmatpush1.bf16.msra.mxu0 %v176
  %242 = vmatprep.subr.bf16.mxu0 %v179
  %243 = vmatpush1.bf16.msra.mxu0 %v178
  %244 = vmatprep.subr.bf16.mxu0 %v181
  %245 = vmatpush1.bf16.msra.mxu0 %v180
  %246 = vmatprep.subr.bf16.mxu0 %v183
  %247 = vmatpush1.bf16.msra.mxu0 %v182
  %248 = vmatprep.subr.bf16.mxu0 %v185
  %249 = vmatpush1.bf16.msra.mxu0 %v184
  %250 = vmatprep.subr.bf16.mxu0 %v187
  %251 = vmatpush1.bf16.msra.mxu0 %v186
  %252 = vmatprep.subr.bf16.mxu0 %v189
  %253 = vmatpush1.bf16.msra.mxu0 %v188
  %254 = vmatprep.subr.bf16.mxu0 %v191
  %255 = vmatpush1.bf16.msra.mxu0 %v190
  %256 = vmatprep.subr.bf16.mxu0 %v193
  %257 = vmatpush1.bf16.msra.mxu0 %v192
  %258 = vmatprep.subr.bf16.mxu0 %v195
  %259 = vmatpush1.bf16.msra.mxu0 %v194
  %260 = vmatprep.subr.bf16.mxu0 %v197
  %261 = vmatpush1.bf16.msra.mxu0 %v196
  %262 = vmatprep.subr.bf16.mxu0 %v199
  %263 = vmatpush1.bf16.msra.mxu0 %v198
  %264 = vmatprep.subr.bf16.mxu0 %v201
  %265 = vmatpush1.bf16.msra.mxu0 %v200
  %266 = vmatprep.subr.bf16.mxu0 %v203
  %267 = vmatpush1.bf16.msra.mxu0 %v202
  %268 = vmatprep.subr.bf16.mxu0 %v205
  %269 = vmatpush1.bf16.msra.mxu0 %v204
  %270 = vmatprep.mubr.bf16.mxu0 %v71
  %271 = vmatmul.mubr.bf16.gmra.mrb[0].mxu0 %v70
  %v272 = vpop.f32.mrb[0].mxu0
  %v273 = vadd.f32 %v54, %v272
  %v274 = vpop.f32.mrb[0].mxu0
  %v275 = vadd.f32 %v58, %v274
  %v276 = vpop.f32.mrb[0].mxu0
  %v277 = vadd.f32 %v54, %v276
  %v278 = vpop.f32.mrb[0].mxu0
  %v279 = vadd.f32 %v58, %v278
  %280 = vmatprep.mubr.bf16.mxu0 %v73
  %281 = vmatmul.mubr.bf16.gmra.mrb[0].mxu0 %v72
  %v282 = vpop.f32.mrb[0].mxu0
  %v283 = vadd.f32 %v54, %v282
  %v284 = vpop.f32.mrb[0].mxu0
  %v285 = vadd.f32 %v58, %v284
  %v286 = vpop.f32.mrb[0].mxu0
  %v287 = vpop.f32.mrb[0].mxu0
  %288 = vdwg.mxu0
  %289 = vst [vmem:[%s3] sm:$0xff] %v273
  %290 = vst [vmem:[%s3 + $0x8] sm:$0xff] %v275
  %291 = vst [vmem:[%s3 + $0x10] sm:$0xff] %v277
  %292 = vst [vmem:[%s3 + $0x18] sm:$0xff] %v279
  %293 = vst [vmem:[%s3 + $0x20] sm:$0xff] %v283
  %294 = vst [vmem:[%s3 + $0x28] sm:$0xff] %v285
  // Predicated region
  $region14: #{bidaf_forward.21} parent=0 // pred_check
    _
  $region15: #{bidaf_forward.21} parent=0 // pred_check_branch
    %296 = sbr.rel (0) target = $region17
  $region16: #{bidaf_forward.21} parent=0 // pred_region
    _
  $region17: #{bidaf_forward.21} parent=0 // pred_fallthru
    _
  // Predicated region
  $region18: #{bidaf_forward.21} parent=0 // pred_check
    _
  $region19: #{bidaf_forward.21} parent=0 // pred_check_branch
    %298 = sbr.rel (0) target = $region21
  $region20: #{bidaf_forward.21} parent=0 // pred_region
    _
  $region21: #{bidaf_forward.21} parent=0 // pred_fallthru
    _

// kernel: bidaf_forward.23
$region0: #{bidaf_forward.23}
  #allocation0 [shape = 'u32[]', space=smem, size = 0x4, offset = 0x4, fixed_abs, tag = 'smem constant byte address 0x4 - core index']
  #allocation1 [shape = 'u32[144,128]{1,0:T(1,128)}', space=vmem, size = 0x12000, scoped, tag = 'internal scratch']
  %s0 = inlined_call_operand.vmem [shape: bf16[24,64], index: 0, kind: input, shape index: {}]
  %s1 = inlined_call_operand.vmem [shape: bf16[64,256], index: 1, kind: input, shape index: {}]
  %s2 = inlined_call_operand.vmem [shape: f32[1,256], index: 2, kind: input, shape index: {}]
  %s3 = inlined_call_operand.vmem [shape: f32[24,256], index: 3, kind: output, shape index: {}]
  %s4 = sld [smem:[#allocation0]]
  $region22: #{bidaf_forward.23} parent=0
    _
  %s6 = ssub.s32 1, %s4
  %s7 = scalar_select 0, %s6, %s4
  // Predicated region
  $region2: #{bidaf_forward.23} parent=0 // pred_check
    _
  $region3: #{bidaf_forward.23} parent=0 // pred_check_branch
    %9 = sbr.rel (0) target = $region5
  $region4: #{bidaf_forward.23} parent=0 // pred_region
    _
  $region5: #{bidaf_forward.23} parent=0 // pred_fallthru
    _
  // Predicated region
  $region6: #{bidaf_forward.23} parent=0 // pred_check
    _
  $region7: #{bidaf_forward.23} parent=0 // pred_check_branch
    %11 = sbr.rel (0) target = $region9
  $region8: #{bidaf_forward.23} parent=0 // pred_region
    _
  $region9: #{bidaf_forward.23} parent=0 // pred_fallthru
    _
  // Predicated region
  $region10: #{bidaf_forward.23} parent=0 // pred_check
    _
  $region11: #{bidaf_forward.23} parent=0 // pred_check_branch
    %13 = sbr.rel (0) target = $region13
  $region12: #{bidaf_forward.23} parent=0 // pred_region
    _
  $region13: #{bidaf_forward.23} parent=0 // pred_fallthru
    _
  %v15 = vld [vmem:[%s0] sm:$0xf]
  %v16 = vld [vmem:[%s0 + $0x4] sm:$0xf]
  %v17 = vld [vmem:[%s0 + $0x8] sm:$0xf]
  %v18 = vld [vmem:[%s1] sm:$0xff]
  %v19 = vld [vmem:[%s1 + $0x8] sm:$0xff]
  %v20 = vld [vmem:[%s1 + $0x10] sm:$0xff]
  %v21 = vld [vmem:[%s1 + $0x18] sm:$0xff]
  %v22 = vld [vmem:[%s1 + $0x20] sm:$0xff]
  %v23 = vld [vmem:[%s1 + $0x28] sm:$0xff]
  %v24 = vld [vmem:[%s1 + $0x30] sm:$0xff]
  %v25 = vld [vmem:[%s1 + $0x38] sm:$0xff]
  %v26 = vld [vmem:[%s2] sm:$0x3]
  %v28 = vlaneseq
  %v29 = vshrl.u32 %v28, 7
  %v30 = vsub.s32 0, %v29
  %v31 = vrot.slane %v26, %v30
  %v32 = vlaneseq
  %v33 = vshrl.u32 %v32, 7
  %v34 = vsub.s32 1, %v33
  %v35 = vrot.slane %v26, %v34
  %v41 = vunpack.c.l.b16 %v15
  %v42 = vunpack.c.l.b16 %v16
  %v43 = vunpack.c.l.b16 %v17
  %v44 = vpack.c.b16 %v42, %v41
  %v45 = vpack.c.b16 %v43, %v43
  %v54 = vunpack.c.l.b16 %v18
  %v55 = vunpack.c.h.b16 %v18
  %v56 = vunpack.c.l.b16 %v19
  %v57 = vunpack.c.h.b16 %v19
  %v58 = vunpack.c.l.b16 %v20
  %v59 = vunpack.c.h.b16 %v20
  %v60 = vunpack.c.l.b16 %v21
  %v61 = vunpack.c.h.b16 %v21
  %v62 = vunpack.c.l.b16 %v22
  %v63 = vunpack.c.h.b16 %v22
  %v64 = vunpack.c.l.b16 %v23
  %v65 = vunpack.c.h.b16 %v23
  %v66 = vunpack.c.l.b16 %v24
  %v67 = vunpack.c.h.b16 %v24
  %v68 = vunpack.c.l.b16 %v25
  %v69 = vunpack.c.h.b16 %v25
  %v70 = vpack.c.b16 %v56, %v54
  %v71 = vpack.c.b16 %v57, %v55
  %v72 = vpack.c.b16 %v60, %v58
  %v73 = vpack.c.b16 %v61, %v59
  %v74 = vpack.c.b16 %v64, %v62
  %v75 = vpack.c.b16 %v65, %v63
  %v76 = vpack.c.b16 %v68, %v66
  %v77 = vpack.c.b16 %v69, %v67
  %vm86 = vcmask 523264
  %v88 = vsel %vm86, %v44, 0
  %v91 = vsel %vm86, %v45, 0
  %93 = vmatprep.subr.bf16.mxu0 %v71
  %94 = vmatpush1.bf16.msra.mxu0 %v70
  %95 = vmatprep.subr.bf16.mxu0 %v73
  %96 = vmatpush1.bf16.msra.mxu0 %v72
  %97 = vmatprep.subr.bf16.mxu0 %v75
  %98 = vmatpush1.bf16.msra.mxu0 %v74
  %99 = vmatprep.subr.bf16.mxu0 %v77
  %100 = vmatpush1.bf16.msra.mxu0 %v76
  %101 = vmatprep.subr.bf16.mxu0 0
  %102 = vmatpush1.bf16.msra.mxu0 0
  %103 = vmatprep.subr.bf16.mxu0 0
  %104 = vmatpush1.bf16.msra.mxu0 0
  %105 = vmatprep.subr.bf16.mxu0 0
  %106 = vmatpush1.bf16.msra.mxu0 0
  %107 = vmatprep.subr.bf16.mxu0 0
  %108 = vmatpush1.bf16.msra.mxu0 0
  %109 = vmatprep.subr.bf16.mxu0 0
  %110 = vmatpush1.bf16.msra.mxu0 0
  %111 = vmatprep.subr.bf16.mxu0 0
  %112 = vmatpush1.bf16.msra.mxu0 0
  %113 = vmatprep.subr.bf16.mxu0 0
  %114 = vmatpush1.bf16.msra.mxu0 0
  %115 = vmatprep.subr.bf16.mxu0 0
  %116 = vmatpush1.bf16.msra.mxu0 0
  %117 = vmatprep.subr.bf16.mxu0 0
  %118 = vmatpush1.bf16.msra.mxu0 0
  %119 = vmatprep.subr.bf16.mxu0 0
  %120 = vmatpush1.bf16.msra.mxu0 0
  %121 = vmatprep.subr.bf16.mxu0 0
  %122 = vmatpush1.bf16.msra.mxu0 0
  %123 = vmatprep.subr.bf16.mxu0 0
  %124 = vmatpush1.bf16.msra.mxu0 0
  %125 = vmatprep.mubr.bf16.mxu0 0
  %126 = vmatmul.mubr.bf16.gmra.mrb[0].mxu0 %v88
  %v127 = vpop.f32.mrb[0].mxu0
  %v128 = vadd.f32 %v31, %v127
  %v129 = vpop.f32.mrb[0].mxu0
  %v130 = vadd.f32 %v35, %v129
  %v131 = vpop.f32.mrb[0].mxu0
  %v132 = vadd.f32 %v31, %v131
  %v133 = vpop.f32.mrb[0].mxu0
  %v134 = vadd.f32 %v35, %v133
  %135 = vmatprep.mubr.bf16.mxu0 0
  %136 = vmatmul.mubr.bf16.gmra.mrb[0].mxu0 %v91
  %v137 = vpop.f32.mrb[0].mxu0
  %v138 = vadd.f32 %v31, %v137
  %v139 = vpop.f32.mrb[0].mxu0
  %v140 = vadd.f32 %v35, %v139
  %v141 = vpop.f32.mrb[0].mxu0
  %v142 = vpop.f32.mrb[0].mxu0
  %143 = vdwg.mxu0
  %144 = vst [vmem:[%s3] sm:$0xff] %v128
  %145 = vst [vmem:[%s3 + $0x8] sm:$0xff] %v130
  %146 = vst [vmem:[%s3 + $0x10] sm:$0xff] %v132
  %147 = vst [vmem:[%s3 + $0x18] sm:$0xff] %v134
  %148 = vst [vmem:[%s3 + $0x20] sm:$0xff] %v138
  %149 = vst [vmem:[%s3 + $0x28] sm:$0xff] %v140
  // Predicated region
  $region14: #{bidaf_forward.23} parent=0 // pred_check
    _
  $region15: #{bidaf_forward.23} parent=0 // pred_check_branch
    %151 = sbr.rel (0) target = $region17
  $region16: #{bidaf_forward.23} parent=0 // pred_region
    _
  $region17: #{bidaf_forward.23} parent=0 // pred_fallthru
    _
  // Predicated region
  $region18: #{bidaf_forward.23} parent=0 // pred_check
    _
  $region19: #{bidaf_forward.23} parent=0 // pred_check_branch
    %153 = sbr.rel (0) target = $region21
  $region20: #{bidaf_forward.23} parent=0 // pred_region
    _
  $region21: #{bidaf_forward.23} parent=0 // pred_fallthru
    _

// kernel: bidaf_forward.27
$region0: #{bidaf_forward.27}
  #allocation0 [shape = 'u32[]', space=smem, size = 0x4, offset = 0x4, fixed_abs, tag = 'smem constant byte address 0x4 - core index']
  #allocation1 [shape = 'u32[144,128]{1,0:T(1,128)}', space=vmem, size = 0x12000, scoped, tag = 'internal scratch']
  #allocation2 [shape = 'f32[1,1]{1,0:T(1,128)S(1)}', space=vmem, size = 0x200, scoped, tag = 'scoped memory for bidaf_forward.27']
  #allocation3 [shape = 'f32[1,1]{1,0:T(1,128)S(1)}', space=vmem, size = 0x200, scoped, tag = 'scoped memory for bidaf_forward.27']
  %s0 = inlined_call_operand.vmem [shape: f32[2,12,256], index: 0, kind: input, shape index: {}]
  %s1 = inlined_call_operand.vmem [shape: f32[2,12,64], index: 1, kind: input, shape index: {}]
  %s2 = inlined_call_operand.vmem [shape: f32[2,12,64], index: 2, kind: input, shape index: {}]
  %s3 = inlined_call_operand.vmem [shape: f32[2,1,12], index: 3, kind: input, shape index: {}]
  %s4 = inlined_call_operand.vmem [shape: f32[1,256], index: 4, kind: input, shape index: {}]
  %s5 = inlined_call_operand.vmem [shape: f32[1,64], index: 5, kind: input, shape index: {}]
  %s6 = inlined_call_operand.<no memory space> [shape: f32[1,1], index: 6, kind: input, shape index: {}]
  %s7 = inlined_call_operand.vmem [shape: f32[1,256], index: 7, kind: input, shape index: {}]
  %s8 = inlined_call_operand.vmem [shape: f32[1,64], index: 8, kind: input, shape index: {}]
  %s9 = inlined_call_operand.<no memory space> [shape: f32[1,1], index: 9, kind: input, shape index: {}]
  %s10 = inlined_call_operand.hbm [shape: f32[2,1,12], index: 10, kind: output, shape index: {0}]
  %s11 = inlined_call_operand.hbm [shape: f32[2,1,12], index: 11, kind: output, shape index: {1}]
  %12 = xla_tuple %s10, %s11
  %s13 = sld [smem:[#allocation0]]
  $region81: #{bidaf_forward.27} parent=0
    _
  %s15 = ssub.s32 1, %s13
  %s16 = scalar_select 0, %s15, %s13
  %v17 = vstv %s6
  %18 = vst [vmem:[#allocation2] sm:$0x1] %v17
  %v19 = vstv %s9
  %20 = vst [vmem:[#allocation3] sm:$0x1] %v19
  $region1: #{bidaf_forward.27} parent=0
    #allocation4 [shape = 'u8[1024]{0}', space=vmem, size = 0x400, scoped, tag = 'output window, operand 0']
    #allocation5 [shape = 's32[2]{0}', space=sflag, size = 0x8, scoped, tag = 'scoped memory for bidaf_forward.27']
    #allocation6 [shape = 'u8[1024]{0}', space=vmem, size = 0x400, scoped, tag = 'output window, operand 1']
    #allocation7 [shape = 's32[2]{0}', space=sflag, size = 0x8, scoped, tag = 'scoped memory for bidaf_forward.27']
    %21 = vsyncpa [#allocation5], 0
    %s22 = scalar_lea.sflag [#allocation5], 1
    %23 = vsyncpa %s22, 0
    %24 = vsyncpa [#allocation7], 0
    %s25 = scalar_lea.sflag [#allocation7], 1
    %26 = vsyncpa %s25, 0
    loop: start=0, step=1, limit=4
    $region2: #{bidaf_forward.27} parent=1 // loop_pre_header
      _
    $region3: #{bidaf_forward.27} parent=1 // loop_header
      %s28 = sphi 0, %s32
      %p29 = scmp.ge.s32.totalorder %s28, 4
      %s38 = sphi 0, %s40
      %s41 = sphi 0, %s38
      %s42 = sphi 0, %s41
      %s58 = sphi 0, %s42
      %s64 = sphi 0, %s66
      %s67 = sphi 0, %s64
      %s68 = sphi 0, %s67
      %s84 = sphi 0, %s68
      %s90 = sphi 0, %s92
      %s93 = sphi 0, %s90
      %s94 = sphi 0, %s93
      %s110 = sphi 0, %s94
      %s116 = sphi 0, %s118
      %s119 = sphi 0, %s116
      %s120 = sphi 0, %s119
      %s136 = sphi 0, %s120
      %s140 = sphi 0, %s140
      %s142 = sphi 0, %s140
      %s143 = sphi 0, %s142
      %s157 = sphi 0, %s143
      %s161 = sphi 0, %s161
      %s163 = sphi 0, %s161
      %s164 = sphi 0, %s163
      %s178 = sphi 0, %s164
      %s182 = sphi 0, %s182
      %s184 = sphi 0, %s182
      %s185 = sphi 0, %s184
      %s199 = sphi 0, %s185
      %s203 = sphi 0, %s203
      %s205 = sphi 0, %s203
      %s206 = sphi 0, %s205
      %s220 = sphi 0, %s206
      %s224 = sphi 0, %s224
      %s226 = sphi 0, %s224
      %s227 = sphi 0, %s226
      %s241 = sphi 0, %s227
      %s245 = sphi 0, %s245
      %s247 = sphi 0, %s245
      %s248 = sphi 0, %s247
      %s262 = sphi 0, %s248
      %s268 = sphi 0, %s270
      %s271 = sphi 0, %s268
      %s272 = sphi 0, %s271
      %s288 = sphi 0, %s272
      %s294 = sphi 0, %s296
      %s297 = sphi 0, %s294
      %s298 = sphi 0, %s297
      %s314 = sphi 0, %s298
    $region4: #{bidaf_forward.27} parent=1 // loop_header_branch
      %31 = sbr.rel (%p29) target = $region8
    $region5: #{bidaf_forward.27} parent=1 // loop_body
      %s33 = ssub.s32 %s28, 1
      %s34 = ssub.s32 %s28, 2
      %s35 = sadd.s32 %s28, 1
      %s36 = ssub.s32 %s28, %s35
      %p37 = scmp.eq.s32.totalorder %s36, 0
      %s39 = sadd.s32 %s38, 1
      %s40 = scalar_select %p37, %s38, %s39
      %p43 = pneg %p37
      %p44 = scmp.eq.s32.totalorder %s28, 1
      %p45 = por %p43, %p44
      %p46 = scmp.ne.s32.totalorder %s38, %s41
      %p47 = scmp.eq.s32.totalorder %s28, 0
      %p48 = por %p46, %p47
      %p49 = scmp.ne.s32.totalorder %s38, %s41
      %p50 = scmp.eq.s32.totalorder %s33, 1
      %p51 = por %p49, %p50
      %p52 = scmp.ne.s32.totalorder %s41, %s42
      %p53 = scmp.eq.s32.totalorder %s33, 0
      %p54 = por %p52, %p53
      %p55 = scmp.ne.s32.totalorder %s41, %s42
      %p56 = scmp.eq.s32.totalorder %s34, 1
      %p57 = por %p55, %p56
      %p59 = scmp.ne.s32.totalorder %s42, %s58
      %p60 = scmp.eq.s32.totalorder %s34, 0
      %p61 = por %p59, %p60
      %s62 = ssub.s32 %s28, %s35
      %p63 = scmp.eq.s32.totalorder %s62, 0
      %s65 = sadd.s32 %s64, 1
      %s66 = scalar_select %p63, %s64, %s65
      %p69 = pneg %p63
      %p70 = scmp.eq.s32.totalorder %s28, 1
      %p71 = por %p69, %p70
      %p72 = scmp.ne.s32.totalorder %s64, %s67
      %p73 = scmp.eq.s32.totalorder %s28, 0
      %p74 = por %p72, %p73
      %p75 = scmp.ne.s32.totalorder %s64, %s67
      %p76 = scmp.eq.s32.totalorder %s33, 1
      %p77 = por %p75, %p76
      %p78 = scmp.ne.s32.totalorder %s67, %s68
      %p79 = scmp.eq.s32.totalorder %s33, 0
      %p80 = por %p78, %p79
      %p81 = scmp.ne.s32.totalorder %s67, %s68
      %p82 = scmp.eq.s32.totalorder %s34, 1
      %p83 = por %p81, %p82
      %p85 = scmp.ne.s32.totalorder %s68, %s84
      %p86 = scmp.eq.s32.totalorder %s34, 0
      %p87 = por %p85, %p86
      %s88 = ssub.s32 %s28, %s35
      %p89 = scmp.eq.s32.totalorder %s88, 0
      %s91 = sadd.s32 %s90, 1
      %s92 = scalar_select %p89, %s90, %s91
      %p95 = pneg %p89
      %p96 = scmp.eq.s32.totalorder %s28, 1
      %p97 = por %p95, %p96
      %p98 = scmp.ne.s32.totalorder %s90, %s93
      %p99 = scmp.eq.s32.totalorder %s28, 0
      %p100 = por %p98, %p99
      %p101 = scmp.ne.s32.totalorder %s90, %s93
      %p102 = scmp.eq.s32.totalorder %s33, 1
      %p103 = por %p101, %p102
      %p104 = scmp.ne.s32.totalorder %s93, %s94
      %p105 = scmp.eq.s32.totalorder %s33, 0
      %p106 = por %p104, %p105
      %p107 = scmp.ne.s32.totalorder %s93, %s94
      %p108 = scmp.eq.s32.totalorder %s34, 1
      %p109 = por %p107, %p108
      %p111 = scmp.ne.s32.totalorder %s94, %s110
      %p112 = scmp.eq.s32.totalorder %s34, 0
      %p113 = por %p111, %p112
      %s114 = ssub.s32 %s28, %s35
      %p115 = scmp.eq.s32.totalorder %s114, 0
      %s117 = sadd.s32 %s116, 1
      %s118 = scalar_select %p115, %s116, %s117
      %p121 = pneg %p115
      %p122 = scmp.eq.s32.totalorder %s28, 1
      %p123 = por %p121, %p122
      %p124 = scmp.ne.s32.totalorder %s116, %s119
      %p125 = scmp.eq.s32.totalorder %s28, 0
      %p126 = por %p124, %p125
      %p127 = scmp.ne.s32.totalorder %s116, %s119
      %p128 = scmp.eq.s32.totalorder %s33, 1
      %p129 = por %p127, %p128
      %p130 = scmp.ne.s32.totalorder %s119, %s120
      %p131 = scmp.eq.s32.totalorder %s33, 0
      %p132 = por %p130, %p131
      %p133 = scmp.ne.s32.totalorder %s119, %s120
      %p134 = scmp.eq.s32.totalorder %s34, 1
      %p135 = por %p133, %p134
      %p137 = scmp.ne.s32.totalorder %s120, %s136
      %p138 = scmp.eq.s32.totalorder %s34, 0
      %p139 = por %p137, %p138
      %s141 = sadd.s32 %s140, 1
      %p144 = scmp.eq.s32.totalorder %s28, 1
      %p145 = scmp.ne.s32.totalorder %s140, %s142
      %p146 = scmp.eq.s32.totalorder %s28, 0
      %p147 = por %p145, %p146
      %p148 = scmp.ne.s32.totalorder %s140, %s142
      %p149 = scmp.eq.s32.totalorder %s33, 1
      %p150 = por %p148, %p149
      %p151 = scmp.ne.s32.totalorder %s142, %s143
      %p152 = scmp.eq.s32.totalorder %s33, 0
      %p153 = por %p151, %p152
      %p154 = scmp.ne.s32.totalorder %s142, %s143
      %p155 = scmp.eq.s32.totalorder %s34, 1
      %p156 = por %p154, %p155
      %p158 = scmp.ne.s32.totalorder %s143, %s157
      %p159 = scmp.eq.s32.totalorder %s34, 0
      %p160 = por %p158, %p159
      %s162 = sadd.s32 %s161, 1
      %p165 = scmp.eq.s32.totalorder %s28, 1
      %p166 = scmp.ne.s32.totalorder %s161, %s163
      %p167 = scmp.eq.s32.totalorder %s28, 0
      %p168 = por %p166, %p167
      %p169 = scmp.ne.s32.totalorder %s161, %s163
      %p170 = scmp.eq.s32.totalorder %s33, 1
      %p171 = por %p169, %p170
      %p172 = scmp.ne.s32.totalorder %s163, %s164
      %p173 = scmp.eq.s32.totalorder %s33, 0
      %p174 = por %p172, %p173
      %p175 = scmp.ne.s32.totalorder %s163, %s164
      %p176 = scmp.eq.s32.totalorder %s34, 1
      %p177 = por %p175, %p176
      %p179 = scmp.ne.s32.totalorder %s164, %s178
      %p180 = scmp.eq.s32.totalorder %s34, 0
      %p181 = por %p179, %p180
      %s183 = sadd.s32 %s182, 1
      %p186 = scmp.eq.s32.totalorder %s28, 1
      %p187 = scmp.ne.s32.totalorder %s182, %s184
      %p188 = scmp.eq.s32.totalorder %s28, 0
      %p189 = por %p187, %p188
      %p190 = scmp.ne.s32.totalorder %s182, %s184
      %p191 = scmp.eq.s32.totalorder %s33, 1
      %p192 = por %p190, %p191
      %p193 = scmp.ne.s32.totalorder %s184, %s185
      %p194 = scmp.eq.s32.totalorder %s33, 0
      %p195 = por %p193, %p194
      %p196 = scmp.ne.s32.totalorder %s184, %s185
      %p197 = scmp.eq.s32.totalorder %s34, 1
      %p198 = por %p196, %p197
      %p200 = scmp.ne.s32.totalorder %s185, %s199
      %p201 = scmp.eq.s32.totalorder %s34, 0
      %p202 = por %p200, %p201
      %s204 = sadd.s32 %s203, 1
      %p207 = scmp.eq.s32.totalorder %s28, 1
      %p208 = scmp.ne.s32.totalorder %s203, %s205
      %p209 = scmp.eq.s32.totalorder %s28, 0
      %p210 = por %p208, %p209
      %p211 = scmp.ne.s32.totalorder %s203, %s205
      %p212 = scmp.eq.s32.totalorder %s33, 1
      %p213 = por %p211, %p212
      %p214 = scmp.ne.s32.totalorder %s205, %s206
      %p215 = scmp.eq.s32.totalorder %s33, 0
      %p216 = por %p214, %p215
      %p217 = scmp.ne.s32.totalorder %s205, %s206
      %p218 = scmp.eq.s32.totalorder %s34, 1
      %p219 = por %p217, %p218
      %p221 = scmp.ne.s32.totalorder %s206, %s220
      %p222 = scmp.eq.s32.totalorder %s34, 0
      %p223 = por %p221, %p222
      %s225 = sadd.s32 %s224, 1
      %p228 = scmp.eq.s32.totalorder %s28, 1
      %p229 = scmp.ne.s32.totalorder %s224, %s226
      %p230 = scmp.eq.s32.totalorder %s28, 0
      %p231 = por %p229, %p230
      %p232 = scmp.ne.s32.totalorder %s224, %s226
      %p233 = scmp.eq.s32.totalorder %s33, 1
      %p234 = por %p232, %p233
      %p235 = scmp.ne.s32.totalorder %s226, %s227
      %p236 = scmp.eq.s32.totalorder %s33, 0
      %p237 = por %p235, %p236
      %p238 = scmp.ne.s32.totalorder %s226, %s227
      %p239 = scmp.eq.s32.totalorder %s34, 1
      %p240 = por %p238, %p239
      %p242 = scmp.ne.s32.totalorder %s227, %s241
      %p243 = scmp.eq.s32.totalorder %s34, 0
      %p244 = por %p242, %p243
      %s246 = sadd.s32 %s245, 1
      %p249 = scmp.eq.s32.totalorder %s28, 1
      %p250 = scmp.ne.s32.totalorder %s245, %s247
      %p251 = scmp.eq.s32.totalorder %s28, 0
      %p252 = por %p250, %p251
      %p253 = scmp.ne.s32.totalorder %s245, %s247
      %p254 = scmp.eq.s32.totalorder %s33, 1
      %p255 = por %p253, %p254
      %p256 = scmp.ne.s32.totalorder %s247, %s248
      %p257 = scmp.eq.s32.totalorder %s33, 0
      %p258 = por %p256, %p257
      %p259 = scmp.ne.s32.totalorder %s247, %s248
      %p260 = scmp.eq.s32.totalorder %s34, 1
      %p261 = por %p259, %p260
      %p263 = scmp.ne.s32.totalorder %s248, %s262
      %p264 = scmp.eq.s32.totalorder %s34, 0
      %p265 = por %p263, %p264
      %s266 = ssub.s32 %s28, %s35
      %p267 = scmp.eq.s32.totalorder %s266, 0
      %s269 = sadd.s32 %s268, 1
      %s270 = scalar_select %p267, %s268, %s269
      %p273 = pneg %p267
      %p274 = scmp.eq.s32.totalorder %s28, 1
      %p275 = por %p273, %p274
      %p276 = scmp.ne.s32.totalorder %s268, %s271
      %p277 = scmp.eq.s32.totalorder %s28, 0
      %p278 = por %p276, %p277
      %p279 = scmp.ne.s32.totalorder %s268, %s271
      %p280 = scmp.eq.s32.totalorder %s33, 1
      %p281 = por %p279, %p280
      %p282 = scmp.ne.s32.totalorder %s271, %s272
      %p283 = scmp.eq.s32.totalorder %s33, 0
      %p284 = por %p282, %p283
      %p285 = scmp.ne.s32.totalorder %s271, %s272
      %p286 = scmp.eq.s32.totalorder %s34, 1
      %p287 = por %p285, %p286
      %p289 = scmp.ne.s32.totalorder %s272, %s288
      %p290 = scmp.eq.s32.totalorder %s34, 0
      %p291 = por %p289, %p290
      %s292 = ssub.s32 %s28, %s35
      %p293 = scmp.eq.s32.totalorder %s292, 0
      %s295 = sadd.s32 %s294, 1
      %s296 = scalar_select %p293, %s294, %s295
      %p299 = pneg %p293
      %p300 = scmp.eq.s32.totalorder %s28, 1
      %p301 = por %p299, %p300
      %p302 = scmp.ne.s32.totalorder %s294, %s297
      %p303 = scmp.eq.s32.totalorder %s28, 0
      %p304 = por %p302, %p303
      %p305 = scmp.ne.s32.totalorder %s294, %s297
      %p306 = scmp.eq.s32.totalorder %s33, 1
      %p307 = por %p305, %p306
      %p308 = scmp.ne.s32.totalorder %s297, %s298
      %p309 = scmp.eq.s32.totalorder %s33, 0
      %p310 = por %p308, %p309
      %p311 = scmp.ne.s32.totalorder %s297, %s298
      %p312 = scmp.eq.s32.totalorder %s34, 1
      %p313 = por %p311, %p312
      %p315 = scmp.ne.s32.totalorder %s298, %s314
      %p316 = scmp.eq.s32.totalorder %s34, 0
      %p317 = por %p315, %p316
      %p318 = scmp.le.s32.totalorder 1, %s28
      %p319 = scmp.lt.s32.totalorder %s28, 3
      %p320 = pnand %p318, %p319
      %p321 = pneg %p320
      // Predicated region
      $region9: #{bidaf_forward.27} parent=5 // pred_check
        _
      $region10: #{bidaf_forward.27} parent=5 // pred_check_branch
        %323 = sbr.rel (%p320) target = $region12
      $region11: #{bidaf_forward.27} parent=5 // pred_region
        %s324 = ssub.s32 %s28, 1
        // Predicated region
        $region13: #{bidaf_forward.27} parent=11 // pred_check
          %p325 = pneg %p153
        $region14: #{bidaf_forward.27} parent=11 // pred_check_branch
          %327 = sbr.rel (%p325) target = $region16
        $region15: #{bidaf_forward.27} parent=11 // pred_region
          _
        $region16: #{bidaf_forward.27} parent=11 // pred_fallthru
          _
        // Predicated region
        $region17: #{bidaf_forward.27} parent=11 // pred_check
          %p328 = pneg %p174
        $region18: #{bidaf_forward.27} parent=11 // pred_check_branch
          %330 = sbr.rel (%p328) target = $region20
        $region19: #{bidaf_forward.27} parent=11 // pred_region
          _
        $region20: #{bidaf_forward.27} parent=11 // pred_fallthru
          _
        // Predicated region
        $region21: #{bidaf_forward.27} parent=11 // pred_check
          %p331 = pneg %p195
        $region22: #{bidaf_forward.27} parent=11 // pred_check_branch
          %333 = sbr.rel (%p331) target = $region24
        $region23: #{bidaf_forward.27} parent=11 // pred_region
          _
        $region24: #{bidaf_forward.27} parent=11 // pred_fallthru
          _
        // Predicated region
        $region25: #{bidaf_forward.27} parent=11 // pred_check
          %p334 = pneg %p216
        $region26: #{bidaf_forward.27} parent=11 // pred_check_branch
          %336 = sbr.rel (%p334) target = $region28
        $region27: #{bidaf_forward.27} parent=11 // pred_region
          _
        $region28: #{bidaf_forward.27} parent=11 // pred_fallthru
          _
        // Predicated region
        $region29: #{bidaf_forward.27} parent=11 // pred_check
          %p337 = pneg %p237
        $region30: #{bidaf_forward.27} parent=11 // pred_check_branch
          %339 = sbr.rel (%p337) target = $region32
        $region31: #{bidaf_forward.27} parent=11 // pred_region
          _
        $region32: #{bidaf_forward.27} parent=11 // pred_fallthru
          _
        // Predicated region
        $region33: #{bidaf_forward.27} parent=11 // pred_check
          %p340 = pneg %p258
        $region34: #{bidaf_forward.27} parent=11 // pred_check_branch
          %342 = sbr.rel (%p340) target = $region36
        $region35: #{bidaf_forward.27} parent=11 // pred_region
          _
        $region36: #{bidaf_forward.27} parent=11 // pred_fallthru
          _
      $region12: #{bidaf_forward.27} parent=5 // pred_fallthru
        _
      %p343 = scmp.lt.s32.totalorder %s28, 2
      // Predicated region
      $region37: #{bidaf_forward.27} parent=5 // pred_check
        %p344 = pneg %p343
      $region38: #{bidaf_forward.27} parent=5 // pred_check_branch
        %346 = sbr.rel (%p344) target = $region40
      $region39: #{bidaf_forward.27} parent=5 // pred_region
        // Predicated region
        $region41: #{bidaf_forward.27} parent=39 // pred_check
          %p347 = pneg %p48
        $region42: #{bidaf_forward.27} parent=39 // pred_check_branch
          %349 = sbr.rel (%p347) target = $region44
        $region43: #{bidaf_forward.27} parent=39 // pred_region
          %p350 = scmp.lt.s32.totalorder %s28, 1
          %s351 = scalar_select %p350, %s28, 1
          %s352 = smul.addr %s351, 4
          %s353 = smul.addr %s352, 8
          %s354 = scalar_lea.vmem %s0, %s353
        $region44: #{bidaf_forward.27} parent=39 // pred_fallthru
          _
        // Predicated region
        $region45: #{bidaf_forward.27} parent=39 // pred_check
          %p355 = pneg %p74
        $region46: #{bidaf_forward.27} parent=39 // pred_check_branch
          %357 = sbr.rel (%p355) target = $region48
        $region47: #{bidaf_forward.27} parent=39 // pred_region
          %p358 = scmp.lt.s32.totalorder %s28, 1
          %s359 = scalar_select %p358, %s28, 1
          %s360 = smul.addr %s359, 2
          %s361 = smul.addr %s360, 8
          %s362 = scalar_lea.vmem %s1, %s361
        $region48: #{bidaf_forward.27} parent=39 // pred_fallthru
          _
        // Predicated region
        $region49: #{bidaf_forward.27} parent=39 // pred_check
          %p363 = pneg %p100
        $region50: #{bidaf_forward.27} parent=39 // pred_check_branch
          %365 = sbr.rel (%p363) target = $region52
        $region51: #{bidaf_forward.27} parent=39 // pred_region
          %p366 = scmp.lt.s32.totalorder %s28, 1
          %s367 = scalar_select %p366, %s28, 1
          %s368 = smul.addr %s367, 2
          %s369 = smul.addr %s368, 8
          %s370 = scalar_lea.vmem %s2, %s369
        $region52: #{bidaf_forward.27} parent=39 // pred_fallthru
          _
        // Predicated region
        $region53: #{bidaf_forward.27} parent=39 // pred_check
          %p371 = pneg %p126
        $region54: #{bidaf_forward.27} parent=39 // pred_check_branch
          %373 = sbr.rel (%p371) target = $region56
        $region55: #{bidaf_forward.27} parent=39 // pred_region
          %p374 = scmp.lt.s32.totalorder %s28, 1
          %s375 = scalar_select %p374, %s28, 1
          %s376 = scalar_lea.vmem %s3, %s375
        $region56: #{bidaf_forward.27} parent=39 // pred_fallthru
          _
      $region40: #{bidaf_forward.27} parent=5 // pred_fallthru
        _
      %p377 = scmp.le.s32.totalorder 1, %s28
      %p378 = scmp.lt.s32.totalorder %s28, 3
      %p379 = pnand %p377, %p378
      %p380 = pneg %p379
      // Predicated region
      $region57: #{bidaf_forward.27} parent=5 // pred_check
        _
      $region58: #{bidaf_forward.27} parent=5 // pred_check_branch
        %382 = sbr.rel (%p379) target = $region60
      $region59: #{bidaf_forward.27} parent=5 // pred_region
        %s383 = ssub.s32 %s28, 1
        %p384 = scmp.lt.s32.totalorder %s33, 1
        %s385 = scalar_select %p384, %s33, 1
        %s386 = smul.addr %s385, 4
        %s387 = smul.addr %s386, 8
        %s388 = scalar_lea.vmem %s0, %s387
        %p389 = pneg %p54
        %p390 = pneg %p51
        %p391 = scmp.lt.s32.totalorder %s33, 1
        %s392 = scalar_select %p391, %s33, 1
        %s393 = smul.addr %s392, 2
        %s394 = smul.addr %s393, 8
        %s395 = scalar_lea.vmem %s1, %s394
        %p396 = pneg %p80
        %p397 = pneg %p77
        %p398 = scmp.lt.s32.totalorder %s33, 1
        %s399 = scalar_select %p398, %s33, 1
        %s400 = smul.addr %s399, 2
        %s401 = smul.addr %s400, 8
        %s402 = scalar_lea.vmem %s2, %s401
        %p403 = pneg %p106
        %p404 = pneg %p103
        %p405 = scmp.lt.s32.totalorder %s33, 1
        %s406 = scalar_select %p405, %s33, 1
        %s407 = scalar_lea.vmem %s3, %s406
        %p408 = pneg %p132
        %p409 = pneg %p129
        %p410 = pneg %p153
        %p411 = pneg %p150
        %p412 = pneg %p174
        %p413 = pneg %p171
        %p414 = pneg %p195
        %p415 = pneg %p192
        %p416 = pneg %p216
        %p417 = pneg %p213
        %p418 = pneg %p237
        %p419 = pneg %p234
        %p420 = pneg %p258
        %p421 = pneg %p255
        %p422 = pneg %p284
        %p423 = pneg %p281
        %s424 = sand.u32 %s271, 1
        %s425 = scalar_lea.sflag [#allocation5], %s424
        %s426 = sand.u32 %s271, 1
        %s427 = scalar_lea.vmem [#allocation4], %s426
        %p428 = pneg %p310
        %p429 = pneg %p307
        %s430 = sand.u32 %s297, 1
        %s431 = scalar_lea.sflag [#allocation7], %s430
        %s432 = sand.u32 %s297, 1
        %s433 = scalar_lea.vmem [#allocation6], %s432
        %p434 = scmp.lt.s32.totalorder %s33, 1
        %s435 = scalar_select %p434, %s33, 1
        %s436 = smul.addr %s435, 4
        %s437 = smul.addr %s436, 8
        %s438 = scalar_lea.vmem %s0, %s437
        %p439 = scmp.lt.s32.totalorder %s33, 1
        %s440 = scalar_select %p439, %s33, 1
        %s441 = smul.addr %s440, 2
        %s442 = smul.addr %s441, 8
        %s443 = scalar_lea.vmem %s1, %s442
        %p444 = scmp.lt.s32.totalorder %s33, 1
        %s445 = scalar_select %p444, %s33, 1
        %s446 = smul.addr %s445, 2
        %s447 = smul.addr %s446, 8
        %s448 = scalar_lea.vmem %s2, %s447
        %p449 = scmp.lt.s32.totalorder %s33, 1
        %s450 = scalar_select %p449, %s33, 1
        %s451 = scalar_lea.vmem %s3, %s450
        %v452 = vld [vmem:[%s438] sm:$0xff]
        %v453 = vld [vmem:[%s438 + $0x8] sm:$0xff]
        %v454 = vld [vmem:[%s438 + $0x10] sm:$0xf]
        %v455 = vld [vmem:[%s438 + $0x18] sm:$0xf]
        %v456 = vld [vmem:[%s443] sm:$0xff]
        %v457 = vld [vmem:[%s443 + $0x8] sm:$0xf]
        %v458 = vld [vmem:[%s448] sm:$0xff]
        %v459 = vld [vmem:[%s448 + $0x8] sm:$0xf]
        %v460 = vld [vmem:[%s451] sm:$0x1]
        %v461 = vld [vmem:[%s4] sm:$0x3]
        %v463 = vlaneseq
        %v464 = vshrl.u32 %v463, 7
        %v465 = vsub.s32 0, %v464
        %v466 = vrot.slane %v461, %v465
        %v467 = vlaneseq
        %v468 = vshrl.u32 %v467, 7
        %v469 = vsub.s32 1, %v468
        %v470 = vrot.slane %v461, %v469
        %v473 = vmul.f32 %v452, %v466
        %v474 = vmul.f32 %v453, %v470
        %v475 = vmul.f32 %v454, %v466
        %v476 = vmul.f32 %v455, %v470
        %v477 = vadd.f32 %v473, %v474
        %478 = vadd.xlane.f32.xlu0 %v477
        %v479 = vpop.xlane.xlu0 %478
        %vm480 = vcmask 1043456
        %v481 = vsel %vm480, %v475, 0.0
        %v482 = vsel %vm480, %v476, 0.0
        %v483 = vadd.f32 %v481, %v482
        %484 = vadd.xlane.f32.xlu0 %v483
        %v485 = vpop.xlane.xlu0 %484
        %v486 = vld [vmem:[%s5] sm:$0x1]
        %v488 = vlaneseq
        %v489 = vshrl.u32 %v488, 7
        %v490 = vsub.s32 0, %v489
        %v491 = vrot.slane %v486, %v490
        %v493 = vmul.f32 %v456, %v491
        %v494 = vmul.f32 %v457, %v491
        %vm495 = vcmask 523264
        %v496 = vsel %vm495, %v493, 0.0
        %497 = vadd.xlane.f32.xlu0 %v496
        %v498 = vpop.xlane.xlu0 %497
        %vm499 = vcmask 519168
        %v500 = vsel %vm499, %v494, 0.0
        %501 = vadd.xlane.f32.xlu0 %v500
        %v502 = vpop.xlane.xlu0 %501
        %v503 = vadd.f32 %v479, %v498
        %v504 = vadd.f32 %v485, %v502
        %v505 = vld [vmem:[#allocation2] sm:$0x1]
        %507 = vset.pattern.permute.xlu0 0
        %508 = vperm.xlu0 %507, %v505
        %v509 = vpop.permute.xlu0 %508
        %v511 = vlaneseq
        %v512 = vshrl.u32 %v511, 7
        %v513 = vsub.s32 0, %v512
        %v514 = vrot.slane %v509, %v513
        %v515 = vadd.f32 %v503, %v514
        %v516 = vadd.f32 %v504, %v514
        %v517 = vld [vmem:[%s7] sm:$0x3]
        %v519 = vlaneseq
        %v520 = vshrl.u32 %v519, 7
        %v521 = vsub.s32 0, %v520
        %v522 = vrot.slane %v517, %v521
        %v523 = vlaneseq
        %v524 = vshrl.u32 %v523, 7
        %v525 = vsub.s32 1, %v524
        %v526 = vrot.slane %v517, %v525
        %v529 = vmul.f32 %v452, %v522
        %v530 = vmul.f32 %v453, %v526
        %v531 = vmul.f32 %v454, %v522
        %v532 = vmul.f32 %v455, %v526
        %v533 = vadd.f32 %v529, %v530
        %534 = vadd.xlane.f32.xlu0 %v533
        %v535 = vpop.xlane.xlu0 %534
        %v536 = vsel %vm480, %v531, 0.0
        %v537 = vsel %vm480, %v532, 0.0
        %v538 = vadd.f32 %v536, %v537
        %539 = vadd.xlane.f32.xlu0 %v538
        %v540 = vpop.xlane.xlu0 %539
        %v541 = vld [vmem:[%s8] sm:$0x1]
        %v543 = vlaneseq
        %v544 = vshrl.u32 %v543, 7
        %v545 = vsub.s32 0, %v544
        %v546 = vrot.slane %v541, %v545
        %v548 = vmul.f32 %v458, %v546
        %v549 = vmul.f32 %v459, %v546
        %v550 = vsel %vm495, %v548, 0.0
        %551 = vadd.xlane.f32.xlu0 %v550
        %v552 = vpop.xlane.xlu0 %551
        %v553 = vsel %vm499, %v549, 0.0
        %554 = vadd.xlane.f32.xlu0 %v553
        %v555 = vpop.xlane.xlu0 %554
        %v556 = vadd.f32 %v535, %v552
        %v557 = vadd.f32 %v540, %v555
        %v558 = vld [vmem:[#allocation3] sm:$0x1]
        %560 = vset.pattern.permute.xlu0 0
        %561 = vperm.xlu0 %560, %v558
        %v562 = vpop.permute.xlu0 %561
        %v564 = vlaneseq
        %v565 = vshrl.u32 %v564, 7
        %v566 = vsub.s32 0, %v565
        %v567 = vrot.slane %v562, %v566
        %v568 = vadd.f32 %v556, %v567
        %v569 = vadd.f32 %v557, %v567
        %v572 = vlaneseq
        %v573 = vshrl.u32 %v572, 7
        %v574 = vsub.s32 0, %v573
        %v575 = vrot.slane %v515, %v574
        %v576 = vlaneseq
        %v577 = vshrl.u32 %v576, 7
        %v578 = vsub.s32 1, %v577
        %v579 = vrot.slane %v515, %v578
        %v580 = vlaneseq
        %v581 = vshrl.u32 %v580, 7
        %v582 = vsub.s32 2, %v581
        %v583 = vrot.slane %v515, %v582
        %v584 = vlaneseq
        %v585 = vshrl.u32 %v584, 7
        %v586 = vsub.s32 3, %v585
        %v587 = vrot.slane %v515, %v586
        %v588 = vlaneseq
        %v589 = vshrl.u32 %v588, 7
        %v590 = vsub.s32 4, %v589
        %v591 = vrot.slane %v515, %v590
        %v592 = vlaneseq
        %v593 = vshrl.u32 %v592, 7
        %v594 = vsub.s32 5, %v593
        %v595 = vrot.slane %v515, %v594
        %v596 = vlaneseq
        %v597 = vshrl.u32 %v596, 7
        %v598 = vsub.s32 6, %v597
        %v599 = vrot.slane %v515, %v598
        %v600 = vlaneseq
        %v601 = vshrl.u32 %v600, 7
        %v602 = vsub.s32 7, %v601
        %v603 = vrot.slane %v515, %v602
        %v604 = vlaneseq
        %v605 = vshrl.u32 %v604, 7
        %v606 = vsub.s32 0, %v605
        %v607 = vrot.slane %v516, %v606
        %v608 = vlaneseq
        %v609 = vshrl.u32 %v608, 7
        %v610 = vsub.s32 1, %v609
        %v611 = vrot.slane %v516, %v610
        %v612 = vlaneseq
        %v613 = vshrl.u32 %v612, 7
        %v614 = vsub.s32 2, %v613
        %v615 = vrot.slane %v516, %v614
        %v616 = vlaneseq
        %v617 = vshrl.u32 %v616, 7
        %v618 = vsub.s32 3, %v617
        %v619 = vrot.slane %v516, %v618
        %v620 = vcombine.low %v575, %v579
        %v621 = vcombine.low %v583, %v587
        %v622 = vcombine.low %v591, %v595
        %v623 = vcombine.low %v599, %v603
        %v625 = vunpack.c.l.s4 1966171168
        %v626 = vunpack.c.0.s8 %v625
        %v627 = vlaneseq
        %v628 = vshrl.u32 %v627, 7
        %v629 = vsub.s32 %v626, %v628
        %v630 = vrot.slane %v620, %v629
        %v632 = vunpack.c.l.s4 1966171168
        %v633 = vunpack.c.0.s8 %v632
        %v634 = vlaneseq
        %v635 = vshrl.u32 %v634, 7
        %v636 = vsub.s32 %v633, %v635
        %v637 = vrot.slane %v621, %v636
        %v639 = vunpack.c.l.s4 1966171168
        %v640 = vunpack.c.0.s8 %v639
        %v641 = vlaneseq
        %v642 = vshrl.u32 %v641, 7
        %v643 = vsub.s32 %v640, %v642
        %v644 = vrot.slane %v622, %v643
        %v646 = vunpack.c.l.s4 1966171168
        %v647 = vunpack.c.0.s8 %v646
        %v648 = vlaneseq
        %v649 = vshrl.u32 %v648, 7
        %v650 = vsub.s32 %v647, %v649
        %v651 = vrot.slane %v623, %v650
        %v652 = vcombine.low %v630, %v637
        %v653 = vcombine.low %v644, %v651
        %v655 = vunpack.c.l.s4 1966171168
        %v656 = vunpack.c.0.s8 %v655
        %v657 = vlaneseq
        %v658 = vshrl.u32 %v657, 7
        %v659 = vsub.s32 %v656, %v658
        %v660 = vrot.slane %v652, %v659
        %v662 = vunpack.c.l.s4 1966171168
        %v663 = vunpack.c.0.s8 %v662
        %v664 = vlaneseq
        %v665 = vshrl.u32 %v664, 7
        %v666 = vsub.s32 %v663, %v665
        %v667 = vrot.slane %v653, %v666
        %v668 = vcombine.low %v660, %v667
        %v669 = vcombine.low %v607, %v611
        %v670 = vcombine.low %v615, %v619
        %v672 = vunpack.c.l.s4 1966171168
        %v673 = vunpack.c.0.s8 %v672
        %v674 = vlaneseq
        %v675 = vshrl.u32 %v674, 7
        %v676 = vsub.s32 %v673, %v675
        %v677 = vrot.slane %v669, %v676
        %v679 = vunpack.c.l.s4 1966171168
        %v680 = vunpack.c.0.s8 %v679
        %v681 = vlaneseq
        %v682 = vshrl.u32 %v681, 7
        %v683 = vsub.s32 %v680, %v682
        %v684 = vrot.slane %v670, %v683
        %v685 = vcombine.low %v677, %v684
        %v687 = vunpack.c.l.s4 1966171168
        %v688 = vunpack.c.0.s8 %v687
        %v689 = vlaneseq
        %v690 = vshrl.u32 %v689, 7
        %v691 = vsub.s32 %v688, %v690
        %v692 = vrot.slane %v685, %v691
        %693 = vset.pattern.permute.xlu0 0
        %694 = vperm.xlu0 %693, %v668
        %v695 = vpop.permute.xlu0 %694
        %696 = vset.pattern.permute.xlu0 0
        %697 = vperm.xlu0 %696, %v692
        %v698 = vpop.permute.xlu0 %697
        %v699 = vlaneseq
        %v700 = vand.u32 %v699, 127
        %v701 = vlaneseq
        %v702 = vshrl.u32 %v701, 7
        %v703 = vsub.s32 %v700, %v702
        %v704 = vrot.slane %v695, %v703
        %v705 = vadd.s32 %v700, 4294967288
        %v706 = vlaneseq
        %v707 = vshrl.u32 %v706, 7
        %v708 = vsub.s32 %v705, %v707
        %v709 = vrot.slane %v698, %v708
        %vm710 = vcmask 130112
        %v711 = vsel %vm710, %v709, %v704
        %v713 = vunpack.c.l.s4 1966171168
        %v714 = vunpack.c.0.s8 %v713
        %v715 = vlaneseq
        %v716 = vshrl.u32 %v715, 7
        %v717 = vsub.s32 %v714, %v716
        %v718 = vrot.slane %v711, %v717
        %v720 = vunpack.c.l.s4 1966171168
        %v721 = vunpack.c.0.s8 %v720
        %v722 = vlaneseq
        %v723 = vshrl.u32 %v722, 7
        %v724 = vsub.s32 %v721, %v723
        %v725 = vrot.slane %v718, %v724
        %v727 = vmul.f32 %v460, %v725
        %v728 = vsub.f32 1.0, %v460
        %v729 = vmul.f32 %v728, -1e+30
        %v730 = vadd.f32 %v727, %v729
        %vm731 = vcmask 90112
        %v732 = vsel %vm731, %v730, -inf
        %733 = vmax.xlane.f32.xlu0 %v732
        %v734 = vpop.xlane.xlu0 %733
        %v735 = vsub.f32 %v730, %v734
        %v736 = vmul.f32 %v735, 1.442695
        %v737 = vpow.pop %v736
        %v738 = vsel %vm731, %v737, 0.0
        %739 = vadd.xlane.f32.xlu0 %v738
        %v740 = vpop.xlane.xlu0 %739
        %v741 = vlog2.pop %v740
        %v742 = vmul.f32 %v741, 0.6931472
        %v743 = vsub.f32 %v735, %v742
        %744 = vst.msk [vmem:[%s427] sm:$0x1] %vm731, %v743
        %v747 = vlaneseq
        %v748 = vshrl.u32 %v747, 7
        %v749 = vsub.s32 0, %v748
        %v750 = vrot.slane %v568, %v749
        %v751 = vlaneseq
        %v752 = vshrl.u32 %v751, 7
        %v753 = vsub.s32 1, %v752
        %v754 = vrot.slane %v568, %v753
        %v755 = vlaneseq
        %v756 = vshrl.u32 %v755, 7
        %v757 = vsub.s32 2, %v756
        %v758 = vrot.slane %v568, %v757
        %v759 = vlaneseq
        %v760 = vshrl.u32 %v759, 7
        %v761 = vsub.s32 3, %v760
        %v762 = vrot.slane %v568, %v761
        %v763 = vlaneseq
        %v764 = vshrl.u32 %v763, 7
        %v765 = vsub.s32 4, %v764
        %v766 = vrot.slane %v568, %v765
        %v767 = vlaneseq
        %v768 = vshrl.u32 %v767, 7
        %v769 = vsub.s32 5, %v768
        %v770 = vrot.slane %v568, %v769
        %v771 = vlaneseq
        %v772 = vshrl.u32 %v771, 7
        %v773 = vsub.s32 6, %v772
        %v774 = vrot.slane %v568, %v773
        %v775 = vlaneseq
        %v776 = vshrl.u32 %v775, 7
        %v777 = vsub.s32 7, %v776
        %v778 = vrot.slane %v568, %v777
        %v779 = vlaneseq
        %v780 = vshrl.u32 %v779, 7
        %v781 = vsub.s32 0, %v780
        %v782 = vrot.slane %v569, %v781
        %v783 = vlaneseq
        %v784 = vshrl.u32 %v783, 7
        %v785 = vsub.s32 1, %v784
        %v786 = vrot.slane %v569, %v785
        %v787 = vlaneseq
        %v788 = vshrl.u32 %v787, 7
        %v789 = vsub.s32 2, %v788
        %v790 = vrot.slane %v569, %v789
        %v791 = vlaneseq
        %v792 = vshrl.u32 %v791, 7
        %v793 = vsub.s32 3, %v792
        %v794 = vrot.slane %v569, %v793
        %v795 = vcombine.low %v750, %v754
        %v796 = vcombine.low %v758, %v762
        %v797 = vcombine.low %v766, %v770
        %v798 = vcombine.low %v774, %v778
        %v800 = vunpack.c.l.s4 1966171168
        %v801 = vunpack.c.0.s8 %v800
        %v802 = vlaneseq
        %v803 = vshrl.u32 %v802, 7
        %v804 = vsub.s32 %v801, %v803
        %v805 = vrot.slane %v795, %v804
        %v807 = vunpack.c.l.s4 1966171168
        %v808 = vunpack.c.0.s8 %v807
        %v809 = vlaneseq
        %v810 = vshrl.u32 %v809, 7
        %v811 = vsub.s32 %v808, %v810
        %v812 = vrot.slane %v796, %v811
        %v814 = vunpack.c.l.s4 1966171168
        %v815 = vunpack.c.0.s8 %v814
        %v816 = vlaneseq
        %v817 = vshrl.u32 %v816, 7
        %v818 = vsub.s32 %v815, %v817
        %v819 = vrot.slane %v797, %v818
        %v821 = vunpack.c.l.s4 1966171168
        %v822 = vunpack.c.0.s8 %v821
        %v823 = vlaneseq
        %v824 = vshrl.u32 %v823, 7
        %v825 = vsub.s32 %v822, %v824
        %v826 = vrot.slane %v798, %v825
        %v827 = vcombine.low %v805, %v812
        %v828 = vcombine.low %v819, %v826
        %v830 = vunpack.c.l.s4 1966171168
        %v831 = vunpack.c.0.s8 %v830
        %v832 = vlaneseq
        %v833 = vshrl.u32 %v832, 7
        %v834 = vsub.s32 %v831, %v833
        %v835 = vrot.slane %v827, %v834
        %v837 = vunpack.c.l.s4 1966171168
        %v838 = vunpack.c.0.s8 %v837
        %v839 = vlaneseq
        %v840 = vshrl.u32 %v839, 7
        %v841 = vsub.s32 %v838, %v840
        %v842 = vrot.slane %v828, %v841
        %v843 = vcombine.low %v835, %v842
        %v844 = vcombine.low %v782, %v786
        %v845 = vcombine.low %v790, %v794
        %v847 = vunpack.c.l.s4 1966171168
        %v848 = vunpack.c.0.s8 %v847
        %v849 = vlaneseq
        %v850 = vshrl.u32 %v849, 7
        %v851 = vsub.s32 %v848, %v850
        %v852 = vrot.slane %v844, %v851
        %v854 = vunpack.c.l.s4 1966171168
        %v855 = vunpack.c.0.s8 %v854
        %v856 = vlaneseq
        %v857 = vshrl.u32 %v856, 7
        %v858 = vsub.s32 %v855, %v857
        %v859 = vrot.slane %v845, %v858
        %v860 = vcombine.low %v852, %v859
        %v862 = vunpack.c.l.s4 1966171168
        %v863 = vunpack.c.0.s8 %v862
        %v864 = vlaneseq
        %v865 = vshrl.u32 %v864, 7
        %v866 = vsub.s32 %v863, %v865
        %v867 = vrot.slane %v860, %v866
        %868 = vset.pattern.permute.xlu0 0
        %869 = vperm.xlu0 %868, %v843
        %v870 = vpop.permute.xlu0 %869
        %871 = vset.pattern.permute.xlu0 0
        %872 = vperm.xlu0 %871, %v867
        %v873 = vpop.permute.xlu0 %872
        %v874 = vlaneseq
        %v875 = vshrl.u32 %v874, 7
        %v876 = vsub.s32 %v700, %v875
        %v877 = vrot.slane %v870, %v876
        %v878 = vlaneseq
        %v879 = vshrl.u32 %v878, 7
        %v880 = vsub.s32 %v705, %v879
        %v881 = vrot.slane %v873, %v880
        %v882 = vsel %vm710, %v881, %v877
        %v884 = vunpack.c.l.s4 1966171168
        %v885 = vunpack.c.0.s8 %v884
        %v886 = vlaneseq
        %v887 = vshrl.u32 %v886, 7
        %v888 = vsub.s32 %v885, %v887
        %v889 = vrot.slane %v882, %v888
        %v891 = vunpack.c.l.s4 1966171168
        %v892 = vunpack.c.0.s8 %v891
        %v893 = vlaneseq
        %v894 = vshrl.u32 %v893, 7
        %v895 = vsub.s32 %v892, %v894
        %v896 = vrot.slane %v889, %v895
        %v898 = vmul.f32 %v460, %v896
        %v899 = vadd.f32 %v898, %v729
        %v900 = vsel %vm731, %v899, -inf
        %901 = vmax.xlane.f32.xlu0 %v900
        %v902 = vpop.xlane.xlu0 %901
        %v903 = vsub.f32 %v899, %v902
        %v904 = vmul.f32 %v903, 1.442695
        %v905 = vpow.pop %v904
        %v906 = vsel %vm731, %v905, 0.0
        %907 = vadd.xlane.f32.xlu0 %v906
        %v908 = vpop.xlane.xlu0 %907
        %v909 = vlog2.pop %v908
        %v910 = vmul.f32 %v909, 0.6931472
        %v911 = vsub.f32 %v903, %v910
        %912 = vst.msk [vmem:[%s433] sm:$0x1] %vm731, %v911
        %s913 = sand.u32 %s271, 1
        %s914 = scalar_lea.sflag [#allocation5], %s913
        %s915 = sand.u32 %s271, 1
        %s916 = scalar_lea.vmem [#allocation4], %s915
        %s917 = sand.u32 %s297, 1
        %s918 = scalar_lea.sflag [#allocation7], %s917
        %s919 = sand.u32 %s297, 1
        %s920 = scalar_lea.vmem [#allocation6], %s919
        // Predicated region
        $region61: #{bidaf_forward.27} parent=59 // pred_check
          %p921 = pneg %p281
        $region62: #{bidaf_forward.27} parent=59 // pred_check_branch
          %923 = sbr.rel (%p921) target = $region64
        $region63: #{bidaf_forward.27} parent=59 // pred_region
          %s925 = ssub.s32 16, 16
          %926 = vsyncadd %s914, %s925
          %s927 = smul.addr %s33, 16
          %s928 = scalar_lea.hbm %s10, %s927
          %s930 = sshll.u32 %s916, 4
          %s931 = int_to_ptr.vmem [resolvable:$true] %s930
          %933 = dma.vmem_to_hbm [thread:$0]  %s931, 16, %s928, %s914
        $region64: #{bidaf_forward.27} parent=59 // pred_fallthru
          _
        // Predicated region
        $region65: #{bidaf_forward.27} parent=59 // pred_check
          %p934 = pneg %p307
        $region66: #{bidaf_forward.27} parent=59 // pred_check_branch
          %936 = sbr.rel (%p934) target = $region68
        $region67: #{bidaf_forward.27} parent=59 // pred_region
          %s938 = ssub.s32 16, 16
          %939 = vsyncadd %s918, %s938
          %s940 = smul.addr %s33, 16
          %s941 = scalar_lea.hbm %s11, %s940
          %s943 = sshll.u32 %s920, 4
          %s944 = int_to_ptr.vmem [resolvable:$true] %s943
          %946 = dma.vmem_to_hbm [thread:$0]  %s944, 16, %s941, %s918
        $region68: #{bidaf_forward.27} parent=59 // pred_fallthru
          _
      $region60: #{bidaf_forward.27} parent=5 // pred_fallthru
        _
      %p947 = scmp.le.s32.totalorder 2, %s28
      // Predicated region
      $region69: #{bidaf_forward.27} parent=5 // pred_check
        %p948 = pneg %p947
      $region70: #{bidaf_forward.27} parent=5 // pred_check_branch
        %950 = sbr.rel (%p948) target = $region72
      $region71: #{bidaf_forward.27} parent=5 // pred_region
        %s951 = ssub.s32 %s28, 2
        // Predicated region
        $region73: #{bidaf_forward.27} parent=71 // pred_check
          %p952 = pneg %p287
        $region74: #{bidaf_forward.27} parent=71 // pred_check_branch
          %954 = sbr.rel (%p952) target = $region76
        $region75: #{bidaf_forward.27} parent=71 // pred_region
          %s955 = sand.u32 %s272, 1
          %s956 = scalar_lea.sflag [#allocation5], %s955
          %s957 = sand.u32 %s272, 1
          %s958 = scalar_lea.vmem [#allocation4], %s957
          %959 = dma.done %s956, 16
        $region76: #{bidaf_forward.27} parent=71 // pred_fallthru
          _
        // Predicated region
        $region77: #{bidaf_forward.27} parent=71 // pred_check
          %p960 = pneg %p313
        $region78: #{bidaf_forward.27} parent=71 // pred_check_branch
          %962 = sbr.rel (%p960) target = $region80
        $region79: #{bidaf_forward.27} parent=71 // pred_region
          %s963 = sand.u32 %s298, 1
          %s964 = scalar_lea.sflag [#allocation7], %s963
          %s965 = sand.u32 %s298, 1
          %s966 = scalar_lea.vmem [#allocation6], %s965
          %967 = dma.done %s964, 16
        $region80: #{bidaf_forward.27} parent=71 // pred_fallthru
          _
      $region72: #{bidaf_forward.27} parent=5 // pred_fallthru
        _
    $region6: #{bidaf_forward.27} parent=1 // loop_footer
      %s32 = sadd.s32 1, %s28
    $region7: #{bidaf_forward.27} parent=1 // loop_footer_branch
      %27 = sbr.rel target = $region3
    $region8: #{bidaf_forward.27} parent=1 // loop_exit
      _
    %968 = vsyncpa [#allocation5], 1
    %s969 = scalar_lea.sflag [#allocation5], 1
    %970 = vsyncpa %s969, 1
    %971 = vsyncpa [#allocation7], 1
    %s972 = scalar_lea.sflag [#allocation7], 1
    %973 = vsyncpa %s972, 1

</llo_original>
